<compile_context>
chip_gen: v7x
topology: tpu7x:2x2x1
jax: 0.10.0
libtpu: 0.0.40
codegen_flags: <defaults>
</compile_context>

<pallas_src>
import jax
import jax.numpy as jnp
from jax.experimental import pallas as pl
from jax.experimental.pallas import tpu as pltpu


def _round_up(a, m):
    return (a + m - 1) // m * m


def _cdiv(a, b):
    return (a + b - 1) // b


def _feature_tiling(F, tk_req):
    """Split the reduction (feature) dim into nk equal, 128-aligned tiles.

    Keeps zero padding minimal (F=10000, tk_req=5120 -> tk=5120, nk=2,
    F_pad=10240) instead of padding F to an arbitrary tk multiple.
    Returns (tk, nk, F_pad) with F_pad == tk * nk.
    """
    nk = max(1, round(F / tk_req))
    tk = _round_up(_cdiv(F, nk), 128)
    return tk, nk, tk * nk


def _batch_tiling(B, tb_max):
    """Balanced, sublane-aligned batch tile: avoids an almost-empty trailing
    tile (and a full extra w1 re-stream) when B is just above tb_max.
    Returns (tb, nb, B_pad) with B_pad == tb * nb."""
    nb = _cdiv(max(B, 1), tb_max)
    tb = _round_up(_cdiv(B, nb), 8)
    return tb, nb, tb * nb


def mlp_kernel(x_ref, w1_ref, b1_ref, w2_ref, o_ref, acc_ref):
    # grid = (h_block, batch_block, k_block); k (reduction) is innermost.
    k = pl.program_id(2)

    @pl.when(k == 0)
    def _():
        acc_ref[...] = jnp.zeros_like(acc_ref)

    # partial fc1: (tb, tk) @ (tk, h_blk) -> (tb, h_blk), f32 accum on the MXU
    acc_ref[...] += jnp.dot(x_ref[...], w1_ref[...],
                            preferred_element_type=jnp.float32)

    # epilogue on the last reduction step
    @pl.when(k == pl.num_programs(2) - 1)
    def _():
        h = jnp.maximum(acc_ref[...] + b1_ref[...], 0.0)      # fc1 bias + ReLU
        # dropout p=0.2 is identity in eval/inference mode.
        # TODO(synk): training-mode dropout (PRNG mask + 1/0.8 scale) not emitted.
        # fc2 partial logit for this hidden block: VPU mul + XLU row-reduce
        # (avoids a degenerate N=1 MXU matmul).
        logit = jnp.sum(h * w2_ref[...], axis=-1, keepdims=True)   # (tb, 1)
        o_ref[...] = logit[None]                                    # (1, tb, 1)


def prepare_params(w1, b1, w2, b2, *, tk=5120):
    """One-time weight prep, kept OUT of the per-call path.

    w1: (F, H) math layout (transpose of nn.Linear.weight), b1: (H,)/(1,H),
    w2: (H,1)/(1,H), b2: scalar/(1,1).  Pads F to the kernel's F_pad and casts
    the dominant w1 stream to bf16 exactly once.
    """
    F, H = w1.shape
    _, _, F_pad = _feature_tiling(F, tk)
    if F_pad != F:
        w1 = jnp.pad(w1, ((0, F_pad - F), (0, 0)))
    w1 = w1.astype(jnp.bfloat16)                      # dominant HBM stream
    b1 = jnp.asarray(b1, jnp.float32).reshape(1, H)
    w2 = jnp.asarray(w2, jnp.float32).reshape(1, H)   # row layout for epilogue
    b2 = jnp.asarray(b2, jnp.float32).reshape(1, 1)
    return w1, b1, w2, b2


def mlp_forward(x, w1p, b1, w2, b2, *, tk=5120, tb_max=512, n_hblocks=2,
                interpret=False):
    """x: (B, F) f32; w1p/b1/w2/b2 from prepare_params (same tk)."""
    B, F = x.shape
    F_pad, H = w1p.shape
    tk_eff, nk, F_pad_expect = _feature_tiling(F, tk)
    assert F_pad == F_pad_expect, "w1 not prepared with matching tk (use prepare_params)"
    assert H % (n_hblocks * 128) == 0, "hidden dim must split into 128-multiples"
    h_blk = H // n_hblocks

    tb, nb, B_pad = _batch_tiling(B, tb_max)

    # x pad + bf16 cast: cheap (B*F bytes), fuses under jit.
    if (B_pad, F_pad) != (B, F):
        x = jnp.pad(x, ((0, B_pad - B), (0, F_pad - F)))
    x = x.astype(jnp.bfloat16)

    grid = (n_hblocks, nb, nk)

    partial = pl.pallas_call(
        mlp_kernel,
        out_shape=jax.ShapeDtypeStruct((n_hblocks, B_pad, 1), jnp.float32),
        grid_spec=pltpu.PrefetchScalarGridSpec(
            num_scalar_prefetch=0,
            grid=grid,
            in_specs=[
                pl.BlockSpec((tb, tk_eff), lambda h, b, k: (b, k)),     # x tile
                pl.BlockSpec((tk_eff, h_blk), lambda h, b, k: (k, h)),  # w1 tile (streamed)
                pl.BlockSpec((1, h_blk), lambda h, b, k: (0, h)),       # b1 slice
                pl.BlockSpec((1, h_blk), lambda h, b, k: (0, h)),       # w2 row slice
            ],
            out_specs=pl.BlockSpec((1, tb, 1), lambda h, b, k: (h, b, 0)),
            scratch_shapes=[pltpu.VMEM((tb, h_blk), jnp.float32)],
        ),
        compiler_params=pltpu.CompilerParams(
            dimension_semantics=("parallel", "parallel", "arbitrary"),
            vmem_limit_bytes=48 * 1024 * 1024),
        interpret=interpret,
    )(x, w1p, b1, w2)

    # Trivial trailing step on a (n_hblocks, B, 1) array: sum the per-H-block
    # partial logits, add fc2 bias, sigmoid.
    logits = jnp.sum(partial, axis=0)[:B] + b2
    return jax.nn.sigmoid(logits)


if __name__ == "__main__":
    # Pure-Python checks of the tiling helpers (no device work).
    assert _feature_tiling(10000, 5120) == (5120, 2, 10240)
    assert _feature_tiling(10000, 2048) == (2048, 5, 10240)
    assert _batch_tiling(600, 512) == (304, 2, 608)
    assert _batch_tiling(12, 512) == (16, 1, 16)

    # Module geometry is fixed (n_features=10000, hidden 1024, out 1);
    # B=12 exercises both the feature-dim and batch-dim padding paths.
    B, F, H = 12, 10000, 1024

    key = jax.random.PRNGKey(0)
    kx, kw1, kb1, kw2, kb2 = jax.random.split(key, 5)

    x = jax.random.normal(kx, (B, F), dtype=jnp.float32)
    w1 = jax.random.normal(kw1, (F, H), dtype=jnp.float32) * (1.0 / jnp.sqrt(F))
    b1 = jax.random.normal(kb1, (H,), dtype=jnp.float32) * 0.01
    w2 = jax.random.normal(kw2, (H, 1), dtype=jnp.float32) * (1.0 / jnp.sqrt(H))
    b2 = jax.random.normal(kb2, (1, 1), dtype=jnp.float32) * 0.01

    # One-time weight prep (pad + bf16 cast) -- NOT in the per-call path.
    params = prepare_params(w1, b1, w2, b2)
    fwd = jax.jit(mlp_forward,
                  static_argnames=("tk", "tb_max", "n_hblocks", "interpret"))

    out = jax.block_until_ready(fwd(x, *params))
    assert out.shape == (B, 1)
    assert bool(jnp.all(jnp.isfinite(out)))

    # Reference with the same bf16 rounding of x / w1 (tight tolerance).
    h_bf = jnp.dot(x.astype(jnp.bfloat16), w1.astype(jnp.bfloat16),
                   preferred_element_type=jnp.float32)
    ref_bf = jax.nn.sigmoid(jnp.maximum(h_bf + b1.reshape(1, -1), 0.0) @ w2 + b2)
    assert jnp.allclose(out, ref_bf, atol=2e-3), "mismatch vs bf16 reference"

    # Full-f32 reference (loose tolerance: bf16 streaming is intentional).
    h_f32 = jnp.maximum(x @ w1 + b1.reshape(1, -1), 0.0)
    ref_f32 = jax.nn.sigmoid(h_f32 @ w2 + b2)
    assert jnp.allclose(out, ref_f32, atol=5e-2), "mismatch vs f32 reference"

    print("KERNEL_OK")
</pallas_src>

<mosaic_0001>
module attributes {stable_mosaic.version = 11 : i64} {
  func.func @mlp_kernel(%arg0: i32, %arg1: i32, %arg2: i32, %arg3: memref<16x5120xbf16, #tpu.memory_space<vmem>>, %arg4: memref<5120x512xbf16, #tpu.memory_space<vmem>>, %arg5: memref<1x512xf32, #tpu.memory_space<vmem>>, %arg6: memref<1x512xf32, #tpu.memory_space<vmem>>, %arg7: memref<1x16x1xf32, #tpu.memory_space<vmem>>, %arg8: memref<16x512xf32, #tpu.memory_space<vmem>>) attributes {dimension_semantics = [#tpu.dimension_semantics<parallel>, #tpu.dimension_semantics<parallel>, #tpu.dimension_semantics<arbitrary>], iteration_bounds = array<i64: 2, 1, 2>, scalar_prefetch = 0 : i64, scratch_operands = 1 : i64, tpu.core_type = #tpu.core_type<tc>, window_params = [{transform_indices = @transform_0, window_bounds = array<i64: 16, 5120>}, {transform_indices = @transform_1, window_bounds = array<i64: 5120, 512>}, {transform_indices = @transform_2, window_bounds = array<i64: 1, 512>}, {transform_indices = @transform_3, window_bounds = array<i64: 1, 512>}, {transform_indices = @transform_4, window_bounds = array<i64: 1, 16, 1>}]} {
    %c0_i32 = arith.constant 0 : i32
    %0 = arith.cmpi eq, %arg2, %c0_i32 : i32
    %1 = arith.extui %0 : i1 to i32
    %c0_i32_0 = arith.constant 0 : i32
    %2 = arith.cmpi ne, %1, %c0_i32_0 : i32
    scf.if %2 {
      %cst_9 = arith.constant 0.000000e+00 : f32
      %12 = vector.broadcast %cst_9 : f32 to vector<16x512xf32>
      %c0_10 = arith.constant 0 : index
      %c0_11 = arith.constant 0 : index
      %13 = vector.load %arg8[%c0_10, %c0_11] : memref<16x512xf32, #tpu.memory_space<vmem>>, vector<16x512xf32>
      tpu.vector_store %arg8[%c0_10, %c0_11], %12 {strides = array<i32>} : memref<16x512xf32, #tpu.memory_space<vmem>>, vector<16x512xf32>,
    } else {
    }
    %c0 = arith.constant 0 : index
    %c0_1 = arith.constant 0 : index
    %3 = vector.load %arg8[%c0, %c0_1] : memref<16x512xf32, #tpu.memory_space<vmem>>, vector<16x512xf32>
    %c0_2 = arith.constant 0 : index
    %c0_3 = arith.constant 0 : index
    %4 = vector.load %arg3[%c0_2, %c0_3] : memref<16x5120xbf16, #tpu.memory_space<vmem>>, vector<16x5120xbf16>
    %c0_4 = arith.constant 0 : index
    %c0_5 = arith.constant 0 : index
    %5 = vector.load %arg4[%c0_4, %c0_5] : memref<5120x512xbf16, #tpu.memory_space<vmem>>, vector<5120x512xbf16>
    %cst = arith.constant dense<0.000000e+00> : vector<16x512xf32>
    %6 = tpu.matmul %4, %5, %cst {dimension_numbers = #tpu.dot_dimension_numbers<[1], [0], [0], [1], [0, 0, 1, 1], [], []>} : vector<16x5120xbf16>, vector<5120x512xbf16>, vector<16x512xf32> -> vector<16x512xf32>
    %7 = arith.addf %3, %6 : vector<16x512xf32>
    %c0_6 = arith.constant 0 : index
    %c0_7 = arith.constant 0 : index
    %8 = vector.load %arg8[%c0_6, %c0_7] : memref<16x512xf32, #tpu.memory_space<vmem>>, vector<16x512xf32>
    tpu.vector_store %arg8[%c0_6, %c0_7], %7 {strides = array<i32>} : memref<16x512xf32, #tpu.memory_space<vmem>>, vector<16x512xf32>,
    %c1_i32 = arith.constant 1 : i32
    %9 = arith.cmpi eq, %arg2, %c1_i32 : i32
    %10 = arith.extui %9 : i1 to i32
    %c0_i32_8 = arith.constant 0 : i32
    %11 = arith.cmpi ne, %10, %c0_i32_8 : i32
    scf.if %11 {
      %c0_9 = arith.constant 0 : index
      %c0_10 = arith.constant 0 : index
      %12 = vector.load %arg8[%c0_9, %c0_10] : memref<16x512xf32, #tpu.memory_space<vmem>>, vector<16x512xf32>
      %c0_11 = arith.constant 0 : index
      %c0_12 = arith.constant 0 : index
      %13 = vector.load %arg5[%c0_11, %c0_12] : memref<1x512xf32, #tpu.memory_space<vmem>>, vector<1x512xf32>
      %14 = vector.broadcast %13 : vector<1x512xf32> to vector<16x512xf32>
      %15 = arith.addf %12, %14 : vector<16x512xf32>
      %cst_13 = arith.constant 0.000000e+00 : f32
      %16 = vector.broadcast %cst_13 : f32 to vector<16x512xf32>
      %17 = arith.maximumf %15, %16 : vector<16x512xf32>
      %c0_14 = arith.constant 0 : index
      %c0_15 = arith.constant 0 : index
      %18 = vector.load %arg6[%c0_14, %c0_15] : memref<1x512xf32, #tpu.memory_space<vmem>>, vector<1x512xf32>
      %19 = vector.broadcast %18 : vector<1x512xf32> to vector<16x512xf32>
      %20 = arith.mulf %17, %19 : vector<16x512xf32>
      %cst_16 = arith.constant dense<0.000000e+00> : vector<16xf32>
      %21 = vector.multi_reduction <add>, %20, %cst_16 [1] : vector<16x512xf32> to vector<16xf32>
      %22 = vector.shape_cast %21 : vector<16xf32> to vector<16x1xf32>
      %23 = vector.shape_cast %22 : vector<16x1xf32> to vector<1x16x1xf32>
      %c0_17 = arith.constant 0 : index
      %c0_18 = arith.constant 0 : index
      %c0_19 = arith.constant 0 : index
      %24 = vector.load %arg7[%c0_17, %c0_18, %c0_19] : memref<1x16x1xf32, #tpu.memory_space<vmem>>, vector<1x16x1xf32>
      tpu.vector_store %arg7[%c0_17, %c0_18, %c0_19], %23 {strides = array<i32>} : memref<1x16x1xf32, #tpu.memory_space<vmem>>, vector<1x16x1xf32>,
    } else {
    }
    return
  }
  func.func @transform_0(%arg0: i32, %arg1: i32, %arg2: i32) -> (i32, i32) {
    %c0_i32 = arith.constant 0 : i32
    return %arg1, %arg2 : i32, i32
  }
  func.func @transform_1(%arg0: i32, %arg1: i32, %arg2: i32) -> (i32, i32) {
    %c0_i32 = arith.constant 0 : i32
    return %arg2, %arg0 : i32, i32
  }
  func.func @transform_2(%arg0: i32, %arg1: i32, %arg2: i32) -> (i32, i32) {
    %c0_i32 = arith.constant 0 : i32
    %c0_i32_0 = arith.constant 0 : i32
    return %c0_i32, %arg0 : i32, i32
  }
  func.func @transform_3(%arg0: i32, %arg1: i32, %arg2: i32) -> (i32, i32) {
    %c0_i32 = arith.constant 0 : i32
    %c0_i32_0 = arith.constant 0 : i32
    return %c0_i32, %arg0 : i32, i32
  }
  func.func @transform_4(%arg0: i32, %arg1: i32, %arg2: i32) -> (i32, i32, i32) {
    %c0_i32 = arith.constant 0 : i32
    %c0_i32_0 = arith.constant 0 : i32
    return %arg0, %arg1, %c0_i32 : i32, i32, i32
  }
}

</mosaic_0001>

<llo_original>
// kernel: mlp_forward.1
$region0: #{mlp_forward.1}
  #allocation0 [shape = 'u32[]', space=smem, size = 0x4, offset = 0x4, fixed_abs, tag = 'smem constant byte address 0x4 - core index']
  #allocation1 [shape = 'u32[144,128]{1,0:T(1,128)}', space=vmem, size = 0x12000, scoped, tag = 'internal scratch']
  #allocation2 [shape = 'f32[16,512]{1,0:T(8,128)}', space=vmem, size = 0x8000, scoped, tag = 'scratch operand']
  %s0 = inlined_call_operand.vmem [shape: bf16[16,10240], index: 0, kind: input, shape index: {}]
  %s1 = inlined_call_operand.hbm [shape: bf16[10240,1024], index: 1, kind: input, shape index: {}]
  %s2 = inlined_call_operand.hbm [shape: f32[1,1024], index: 2, kind: input, shape index: {}]
  %s3 = inlined_call_operand.hbm [shape: f32[1,1024], index: 3, kind: input, shape index: {}]
  %s4 = inlined_call_operand.vmem [shape: f32[2,16,1], index: 4, kind: output, shape index: {}]
  %s5 = sld [smem:[#allocation0]]
  $region92: #{mlp_forward.1} parent=0
    _
  %s7 = ssub.s32 1, %s5
  %s8 = scalar_select 0, %s7, %s5
  $region1: #{mlp_forward.1} parent=0
    #allocation3 [shape = 'u8[327680]{0}', space=vmem, size = 0x50000, scoped, tag = 'input window, operand 0']
    #allocation4 [shape = 'u8[10485760]{0}', space=vmem, size = 0xa00000, scoped, tag = 'input window, operand 1']
    #allocation5 [shape = 's32[2]{0}', space=sflag, size = 0x8, scoped, tag = 'scoped memory for mlp_forward.1']
    #allocation6 [shape = 'u8[4096]{0}', space=vmem, size = 0x1000, scoped, tag = 'input window, operand 2']
    #allocation7 [shape = 's32[2]{0}', space=sflag, size = 0x8, scoped, tag = 'scoped memory for mlp_forward.1']
    #allocation8 [shape = 'u8[4096]{0}', space=vmem, size = 0x1000, scoped, tag = 'input window, operand 3']
    %9 = vsyncpa [#allocation5], 0
    %s10 = scalar_lea.sflag [#allocation5], 1
    %11 = vsyncpa %s10, 0
    %12 = vsyncpa [#allocation7], 0
    %s13 = scalar_lea.sflag [#allocation7], 1
    %14 = vsyncpa %s13, 0
    loop: start=0, step=1, limit=6
    $region2: #{mlp_forward.1} parent=1 // loop_pre_header
      _
    $region3: #{mlp_forward.1} parent=1 // loop_header
      %s16 = sphi 0, %s20
      %p17 = scmp.ge.s32.totalorder %s16, 6
      %s23 = sphi 0, %s42
      %s24 = sphi 0, %s38
      %s25 = sphi 0, %s34
      %s26 = sphi 0, %s23
      %s27 = sphi 0, %s24
      %s28 = sphi 0, %s25
      %s29 = sphi 0, %s26
      %s30 = sphi 0, %s27
      %s31 = sphi 0, %s28
      %s47 = sphi 0, %s49
      %s50 = sphi 0, %s47
      %s51 = sphi 0, %s50
      %s67 = sphi 0, %s51
      %s75 = sphi 0, %s77
      %s78 = sphi 0, %s75
      %s79 = sphi 0, %s78
      %s95 = sphi 0, %s79
      %s101 = sphi 0, %s103
      %s104 = sphi 0, %s101
      %s105 = sphi 0, %s104
      %s121 = sphi 0, %s105
      %s127 = sphi 0, %s129
      %s130 = sphi 0, %s127
      %s131 = sphi 0, %s130
      %s147 = sphi 0, %s131
      %s155 = sphi 0, %s157
      %s158 = sphi 0, %s155
      %s159 = sphi 0, %s158
      %s175 = sphi 0, %s159
    $region4: #{mlp_forward.1} parent=1 // loop_header_branch
      %19 = sbr.rel (%p17) target = $region8
    $region5: #{mlp_forward.1} parent=1 // loop_body
      %s21 = ssub.s32 %s16, 1
      %s22 = ssub.s32 %s16, 2
      %s32 = sadd.s32 1, %s25
      %p33 = scmp.ge.s32.totalorder %s32, 2
      %s34 = scalar_select %p33, 0, %s32
      %s35 = sadd.s32 1, %s24
      %s36 = scalar_select %p33, %s35, %s24
      %p37 = scmp.ge.s32.totalorder %s36, 1
      %s38 = scalar_select %p37, 0, %s36
      %s39 = sadd.s32 1, %s23
      %s40 = scalar_select %p37, %s39, %s23
      %p41 = scmp.ge.s32.totalorder %s40, 2
      %s42 = scalar_select %p41, 0, %s40
      %s43 = ssub.s32 %s24, %s38
      %s44 = ssub.s32 %s25, %s34
      %s45 = sor.u32 %s43, %s44
      %p46 = scmp.eq.s32.totalorder %s45, 0
      %s48 = sadd.s32 %s47, 1
      %s49 = scalar_select %p46, %s47, %s48
      %p52 = pneg %p46
      %p53 = scmp.eq.s32.totalorder %s16, 3
      %p54 = por %p52, %p53
      %p55 = scmp.ne.s32.totalorder %s47, %s50
      %p56 = scmp.eq.s32.totalorder %s16, 0
      %p57 = por %p55, %p56
      %p58 = scmp.ne.s32.totalorder %s47, %s50
      %p59 = scmp.eq.s32.totalorder %s21, 3
      %p60 = por %p58, %p59
      %p61 = scmp.ne.s32.totalorder %s50, %s51
      %p62 = scmp.eq.s32.totalorder %s21, 0
      %p63 = por %p61, %p62
      %p64 = scmp.ne.s32.totalorder %s50, %s51
      %p65 = scmp.eq.s32.totalorder %s22, 3
      %p66 = por %p64, %p65
      %p68 = scmp.ne.s32.totalorder %s51, %s67
      %p69 = scmp.eq.s32.totalorder %s22, 0
      %p70 = por %p68, %p69
      %s71 = ssub.s32 %s25, %s34
      %s72 = ssub.s32 %s23, %s42
      %s73 = sor.u32 %s71, %s72
      %p74 = scmp.eq.s32.totalorder %s73, 0
      %s76 = sadd.s32 %s75, 1
      %s77 = scalar_select %p74, %s75, %s76
      %p80 = pneg %p74
      %p81 = scmp.eq.s32.totalorder %s16, 3
      %p82 = por %p80, %p81
      %p83 = scmp.ne.s32.totalorder %s75, %s78
      %p84 = scmp.eq.s32.totalorder %s16, 0
      %p85 = por %p83, %p84
      %p86 = scmp.ne.s32.totalorder %s75, %s78
      %p87 = scmp.eq.s32.totalorder %s21, 3
      %p88 = por %p86, %p87
      %p89 = scmp.ne.s32.totalorder %s78, %s79
      %p90 = scmp.eq.s32.totalorder %s21, 0
      %p91 = por %p89, %p90
      %p92 = scmp.ne.s32.totalorder %s78, %s79
      %p93 = scmp.eq.s32.totalorder %s22, 3
      %p94 = por %p92, %p93
      %p96 = scmp.ne.s32.totalorder %s79, %s95
      %p97 = scmp.eq.s32.totalorder %s22, 0
      %p98 = por %p96, %p97
      %s99 = ssub.s32 %s23, %s42
      %p100 = scmp.eq.s32.totalorder %s99, 0
      %s102 = sadd.s32 %s101, 1
      %s103 = scalar_select %p100, %s101, %s102
      %p106 = pneg %p100
      %p107 = scmp.eq.s32.totalorder %s16, 3
      %p108 = por %p106, %p107
      %p109 = scmp.ne.s32.totalorder %s101, %s104
      %p110 = scmp.eq.s32.totalorder %s16, 0
      %p111 = por %p109, %p110
      %p112 = scmp.ne.s32.totalorder %s101, %s104
      %p113 = scmp.eq.s32.totalorder %s21, 3
      %p114 = por %p112, %p113
      %p115 = scmp.ne.s32.totalorder %s104, %s105
      %p116 = scmp.eq.s32.totalorder %s21, 0
      %p117 = por %p115, %p116
      %p118 = scmp.ne.s32.totalorder %s104, %s105
      %p119 = scmp.eq.s32.totalorder %s22, 3
      %p120 = por %p118, %p119
      %p122 = scmp.ne.s32.totalorder %s105, %s121
      %p123 = scmp.eq.s32.totalorder %s22, 0
      %p124 = por %p122, %p123
      %s125 = ssub.s32 %s23, %s42
      %p126 = scmp.eq.s32.totalorder %s125, 0
      %s128 = sadd.s32 %s127, 1
      %s129 = scalar_select %p126, %s127, %s128
      %p132 = pneg %p126
      %p133 = scmp.eq.s32.totalorder %s16, 3
      %p134 = por %p132, %p133
      %p135 = scmp.ne.s32.totalorder %s127, %s130
      %p136 = scmp.eq.s32.totalorder %s16, 0
      %p137 = por %p135, %p136
      %p138 = scmp.ne.s32.totalorder %s127, %s130
      %p139 = scmp.eq.s32.totalorder %s21, 3
      %p140 = por %p138, %p139
      %p141 = scmp.ne.s32.totalorder %s130, %s131
      %p142 = scmp.eq.s32.totalorder %s21, 0
      %p143 = por %p141, %p142
      %p144 = scmp.ne.s32.totalorder %s130, %s131
      %p145 = scmp.eq.s32.totalorder %s22, 3
      %p146 = por %p144, %p145
      %p148 = scmp.ne.s32.totalorder %s131, %s147
      %p149 = scmp.eq.s32.totalorder %s22, 0
      %p150 = por %p148, %p149
      %s151 = ssub.s32 %s23, %s42
      %s152 = ssub.s32 %s24, %s38
      %s153 = sor.u32 %s151, %s152
      %p154 = scmp.eq.s32.totalorder %s153, 0
      %s156 = sadd.s32 %s155, 1
      %s157 = scalar_select %p154, %s155, %s156
      %p160 = pneg %p154
      %p161 = scmp.eq.s32.totalorder %s16, 3
      %p162 = por %p160, %p161
      %p163 = scmp.ne.s32.totalorder %s155, %s158
      %p164 = scmp.eq.s32.totalorder %s16, 0
      %p165 = por %p163, %p164
      %p166 = scmp.ne.s32.totalorder %s155, %s158
      %p167 = scmp.eq.s32.totalorder %s21, 3
      %p168 = por %p166, %p167
      %p169 = scmp.ne.s32.totalorder %s158, %s159
      %p170 = scmp.eq.s32.totalorder %s21, 0
      %p171 = por %p169, %p170
      %p172 = scmp.ne.s32.totalorder %s158, %s159
      %p173 = scmp.eq.s32.totalorder %s22, 3
      %p174 = por %p172, %p173
      %p176 = scmp.ne.s32.totalorder %s159, %s175
      %p177 = scmp.eq.s32.totalorder %s22, 0
      %p178 = por %p176, %p177
      %p179 = scmp.le.s32.totalorder 1, %s16
      %p180 = scmp.lt.s32.totalorder %s16, 5
      %p181 = pnand %p179, %p180
      %p182 = pneg %p181
      // Predicated region
      $region9: #{mlp_forward.1} parent=5 // pred_check
        _
      $region10: #{mlp_forward.1} parent=5 // pred_check_branch
        %184 = sbr.rel (%p181) target = $region12
      $region11: #{mlp_forward.1} parent=5 // pred_region
        %s185 = ssub.s32 %s16, 1
      $region12: #{mlp_forward.1} parent=5 // pred_fallthru
        _
      %p186 = scmp.lt.s32.totalorder %s16, 4
      // Predicated region
      $region13: #{mlp_forward.1} parent=5 // pred_check
        %p187 = pneg %p186
      $region14: #{mlp_forward.1} parent=5 // pred_check_branch
        %189 = sbr.rel (%p187) target = $region16
      $region15: #{mlp_forward.1} parent=5 // pred_region
        // Predicated region
        $region17: #{mlp_forward.1} parent=15 // pred_check
          %p190 = pneg %p57
        $region18: #{mlp_forward.1} parent=15 // pred_check_branch
          %192 = sbr.rel (%p190) target = $region20
        $region19: #{mlp_forward.1} parent=15 // pred_region
          %s193 = sand.u32 %s47, 1
          %s194 = sand.u32 %s47, 1
          %s195 = smul.addr %s194, 320
          %s196 = scalar_lea.vmem [#allocation3], %s195
          %s197 = smul.u32 2, %s24
          %s198 = smul.u32 40, %s25
          %s199 = smul.addr %s197, 80
          %s200 = sadd.s32 %s198, %s199
          %s201 = smul.addr %s200, 4
          %s202 = scalar_lea.vmem %s0, %s201
          // Predicated region
          $region21: #{mlp_forward.1} parent=19 // pred_check
            _
          $region22: #{mlp_forward.1} parent=19 // pred_check_branch
            %204 = sbr.rel (0) target = $region24
          $region23: #{mlp_forward.1} parent=19 // pred_region
            // Predicated region
            $region25: #{mlp_forward.1} parent=23 // pred_check
              _
            $region26: #{mlp_forward.1} parent=23 // pred_check_branch
              %206 = sbr.rel (0) target = $region28
            $region27: #{mlp_forward.1} parent=23 // pred_region
              loop: start=0, step=1, limit=1
              $region29: #{mlp_forward.1} parent=27 // loop_pre_header
                _
              $region30: #{mlp_forward.1} parent=27 // loop_header
                %s208 = sphi 0, %s212
                %p209 = scmp.ge.s32.totalorder %s208, 1
                %s213 = sphi %s202, %s202
                %s214 = sphi %s196, %s196
              $region31: #{mlp_forward.1} parent=27 // loop_header_branch
                %211 = sbr.rel (%p209) target = $region35
              $region32: #{mlp_forward.1} parent=27 // loop_body
                %v215 = vld [vmem:[%s213] sm:$0xff]
                %216 = vst [vmem:[%s214] sm:$0xff] %v215
                %v217 = vld [vmem:[%s213 + $0x8] sm:$0xff]
                %218 = vst [vmem:[%s214 + $0x8] sm:$0xff] %v217
                %v219 = vld [vmem:[%s213 + $0x10] sm:$0xff]
                %220 = vst [vmem:[%s214 + $0x10] sm:$0xff] %v219
                %v221 = vld [vmem:[%s213 + $0x18] sm:$0xff]
                %222 = vst [vmem:[%s214 + $0x18] sm:$0xff] %v221
                %v223 = vld [vmem:[%s213 + $0x20] sm:$0xff]
                %224 = vst [vmem:[%s214 + $0x20] sm:$0xff] %v223
                %v225 = vld [vmem:[%s213 + $0x28] sm:$0xff]
                %226 = vst [vmem:[%s214 + $0x28] sm:$0xff] %v225
                %v227 = vld [vmem:[%s213 + $0x30] sm:$0xff]
                %228 = vst [vmem:[%s214 + $0x30] sm:$0xff] %v227
                %v229 = vld [vmem:[%s213 + $0x38] sm:$0xff]
                %230 = vst [vmem:[%s214 + $0x38] sm:$0xff] %v229
                %v231 = vld [vmem:[%s213 + $0x40] sm:$0xff]
                %232 = vst [vmem:[%s214 + $0x40] sm:$0xff] %v231
                %v233 = vld [vmem:[%s213 + $0x48] sm:$0xff]
                %234 = vst [vmem:[%s214 + $0x48] sm:$0xff] %v233
                %v235 = vld [vmem:[%s213 + $0x50] sm:$0xff]
                %236 = vst [vmem:[%s214 + $0x50] sm:$0xff] %v235
                %v237 = vld [vmem:[%s213 + $0x58] sm:$0xff]
                %238 = vst [vmem:[%s214 + $0x58] sm:$0xff] %v237
                %v239 = vld [vmem:[%s213 + $0x60] sm:$0xff]
                %240 = vst [vmem:[%s214 + $0x60] sm:$0xff] %v239
                %v241 = vld [vmem:[%s213 + $0x68] sm:$0xff]
                %242 = vst [vmem:[%s214 + $0x68] sm:$0xff] %v241
                %v243 = vld [vmem:[%s213 + $0x70] sm:$0xff]
                %244 = vst [vmem:[%s214 + $0x70] sm:$0xff] %v243
                %v245 = vld [vmem:[%s213 + $0x78] sm:$0xff]
                %246 = vst [vmem:[%s214 + $0x78] sm:$0xff] %v245
                %v247 = vld [vmem:[%s213 + $0x80] sm:$0xff]
                %248 = vst [vmem:[%s214 + $0x80] sm:$0xff] %v247
                %v249 = vld [vmem:[%s213 + $0x88] sm:$0xff]
                %250 = vst [vmem:[%s214 + $0x88] sm:$0xff] %v249
                %v251 = vld [vmem:[%s213 + $0x90] sm:$0xff]
                %252 = vst [vmem:[%s214 + $0x90] sm:$0xff] %v251
                %v253 = vld [vmem:[%s213 + $0x98] sm:$0xff]
                %254 = vst [vmem:[%s214 + $0x98] sm:$0xff] %v253
                %v255 = vld [vmem:[%s213 + $0x140] sm:$0xff]
                %256 = vst [vmem:[%s214 + $0xa0] sm:$0xff] %v255
                %v257 = vld [vmem:[%s213 + $0x148] sm:$0xff]
                %258 = vst [vmem:[%s214 + $0xa8] sm:$0xff] %v257
                %v259 = vld [vmem:[%s213 + $0x150] sm:$0xff]
                %260 = vst [vmem:[%s214 + $0xb0] sm:$0xff] %v259
                %v261 = vld [vmem:[%s213 + $0x158] sm:$0xff]
                %262 = vst [vmem:[%s214 + $0xb8] sm:$0xff] %v261
                %v263 = vld [vmem:[%s213 + $0x160] sm:$0xff]
                %264 = vst [vmem:[%s214 + $0xc0] sm:$0xff] %v263
                %v265 = vld [vmem:[%s213 + $0x168] sm:$0xff]
                %266 = vst [vmem:[%s214 + $0xc8] sm:$0xff] %v265
                %v267 = vld [vmem:[%s213 + $0x170] sm:$0xff]
                %268 = vst [vmem:[%s214 + $0xd0] sm:$0xff] %v267
                %v269 = vld [vmem:[%s213 + $0x178] sm:$0xff]
                %270 = vst [vmem:[%s214 + $0xd8] sm:$0xff] %v269
                %v271 = vld [vmem:[%s213 + $0x180] sm:$0xff]
                %272 = vst [vmem:[%s214 + $0xe0] sm:$0xff] %v271
                %v273 = vld [vmem:[%s213 + $0x188] sm:$0xff]
                %274 = vst [vmem:[%s214 + $0xe8] sm:$0xff] %v273
                %v275 = vld [vmem:[%s213 + $0x190] sm:$0xff]
                %276 = vst [vmem:[%s214 + $0xf0] sm:$0xff] %v275
                %v277 = vld [vmem:[%s213 + $0x198] sm:$0xff]
                %278 = vst [vmem:[%s214 + $0xf8] sm:$0xff] %v277
                %v279 = vld [vmem:[%s213 + $0x1a0] sm:$0xff]
                %280 = vst [vmem:[%s214 + $0x100] sm:$0xff] %v279
                %v281 = vld [vmem:[%s213 + $0x1a8] sm:$0xff]
                %282 = vst [vmem:[%s214 + $0x108] sm:$0xff] %v281
                %v283 = vld [vmem:[%s213 + $0x1b0] sm:$0xff]
                %284 = vst [vmem:[%s214 + $0x110] sm:$0xff] %v283
                %v285 = vld [vmem:[%s213 + $0x1b8] sm:$0xff]
                %286 = vst [vmem:[%s214 + $0x118] sm:$0xff] %v285
                %v287 = vld [vmem:[%s213 + $0x1c0] sm:$0xff]
                %288 = vst [vmem:[%s214 + $0x120] sm:$0xff] %v287
                %v289 = vld [vmem:[%s213 + $0x1c8] sm:$0xff]
                %290 = vst [vmem:[%s214 + $0x128] sm:$0xff] %v289
                %v291 = vld [vmem:[%s213 + $0x1d0] sm:$0xff]
                %292 = vst [vmem:[%s214 + $0x130] sm:$0xff] %v291
                %v293 = vld [vmem:[%s213 + $0x1d8] sm:$0xff]
                %294 = vst [vmem:[%s214 + $0x138] sm:$0xff] %v293
              $region33: #{mlp_forward.1} parent=27 // loop_footer
                %s212 = sadd.s32 1, %s208
              $region34: #{mlp_forward.1} parent=27 // loop_footer_branch
                %207 = sbr.rel target = $region30
              $region35: #{mlp_forward.1} parent=27 // loop_exit
                _
            $region28: #{mlp_forward.1} parent=23 // pred_fallthru
              _
            // Predicated region
            $region36: #{mlp_forward.1} parent=23 // pred_check
              _
            $region37: #{mlp_forward.1} parent=23 // pred_check_branch
              %296 = sbr.rel target = $region39
            $region38: #{mlp_forward.1} parent=23 // pred_region
              _
            $region39: #{mlp_forward.1} parent=23 // pred_fallthru
              _
          $region24: #{mlp_forward.1} parent=19 // pred_fallthru
            _
          %297 = vnop
        $region20: #{mlp_forward.1} parent=15 // pred_fallthru
          _
        // Predicated region
        $region40: #{mlp_forward.1} parent=15 // pred_check
          %p298 = pneg %p85
        $region41: #{mlp_forward.1} parent=15 // pred_check_branch
          %300 = sbr.rel (%p298) target = $region43
        $region42: #{mlp_forward.1} parent=15 // pred_region
          %s301 = sand.u32 %s75, 1
          %s302 = scalar_lea.sflag [#allocation5], %s301
          %s303 = sand.u32 %s75, 1
          %s304 = smul.addr %s303, 10240
          %s305 = scalar_lea.vmem [#allocation4], %s304
          %s306 = smul.u32 640, %s25
          %s307 = smul.u32 4, %s23
          %s309 = ssub.s32 163840, 163840
          %310 = vsyncadd %s302, %s309
          %s311 = smul.addr %s306, 8
          %s312 = sadd.s32 %s307, %s311
          %s313 = smul.addr %s312, 64
          %s314 = scalar_lea.hbm %s1, %s313
          %s315 = sshll.u32 %s305, 4
          %s316 = int_to_ptr.vmem [resolvable:$true] %s315
          %321 = dma.hbm_to_vmem [thread:$0]  %s314, 163840, %s316, %s302, 512, 256, 16
        $region43: #{mlp_forward.1} parent=15 // pred_fallthru
          _
        // Predicated region
        $region44: #{mlp_forward.1} parent=15 // pred_check
          %p322 = pneg %p111
        $region45: #{mlp_forward.1} parent=15 // pred_check_branch
          %324 = sbr.rel (%p322) target = $region47
        $region46: #{mlp_forward.1} parent=15 // pred_region
          %s325 = sand.u32 %s16, 1
          %s326 = scalar_lea.sflag [#allocation7], %s325
          %s327 = sand.u32 %s101, 1
          %s328 = smul.addr %s327, 4
          %s329 = scalar_lea.vmem [#allocation6], %s328
          %s330 = smul.u32 4, %s23
          %s332 = ssub.s32 64, 64
          %333 = vsyncadd %s326, %s332
          %s334 = smul.addr %s330, 16
          %s335 = scalar_lea.hbm %s2, %s334
          %s337 = sshll.u32 %s329, 4
          %s338 = int_to_ptr.vmem [resolvable:$true] %s337
          %340 = dma.hbm_to_vmem [thread:$0]  %s335, 64, %s338, %s326
        $region47: #{mlp_forward.1} parent=15 // pred_fallthru
          _
        // Predicated region
        $region48: #{mlp_forward.1} parent=15 // pred_check
          %p341 = pneg %p137
        $region49: #{mlp_forward.1} parent=15 // pred_check_branch
          %343 = sbr.rel (%p341) target = $region51
        $region50: #{mlp_forward.1} parent=15 // pred_region
          %s344 = sand.u32 %s16, 1
          %s345 = scalar_lea.sflag [#allocation7], %s344
          %s346 = sand.u32 %s127, 1
          %s347 = smul.addr %s346, 4
          %s348 = scalar_lea.vmem [#allocation8], %s347
          %s349 = smul.u32 4, %s23
          %s351 = ssub.s32 64, 64
          %352 = vsyncadd %s345, %s351
          %s353 = smul.addr %s349, 16
          %s354 = scalar_lea.hbm %s3, %s353
          %s356 = sshll.u32 %s348, 4
          %s357 = int_to_ptr.vmem [resolvable:$true] %s356
          %359 = dma.hbm_to_vmem [thread:$0]  %s354, 64, %s357, %s345
        $region51: #{mlp_forward.1} parent=15 // pred_fallthru
          _
      $region16: #{mlp_forward.1} parent=5 // pred_fallthru
        _
      %p360 = scmp.le.s32.totalorder 1, %s16
      %p361 = scmp.lt.s32.totalorder %s16, 5
      %p362 = pnand %p360, %p361
      %p363 = pneg %p362
      // Predicated region
      $region52: #{mlp_forward.1} parent=5 // pred_check
        _
      $region53: #{mlp_forward.1} parent=5 // pred_check_branch
        %365 = sbr.rel (%p362) target = $region55
      $region54: #{mlp_forward.1} parent=5 // pred_region
        %s366 = ssub.s32 %s16, 1
        %s367 = sand.u32 %s50, 1
        %s368 = sand.u32 %s50, 1
        %s369 = smul.addr %s368, 320
        %s370 = scalar_lea.vmem [#allocation3], %s369
        // Predicated region
        $region56: #{mlp_forward.1} parent=54 // pred_check
          %p371 = pneg %p63
        $region57: #{mlp_forward.1} parent=54 // pred_check_branch
          %373 = sbr.rel (%p371) target = $region59
        $region58: #{mlp_forward.1} parent=54 // pred_region
          _
        $region59: #{mlp_forward.1} parent=54 // pred_fallthru
          _
        %s374 = sand.u32 %s78, 1
        %s375 = scalar_lea.sflag [#allocation5], %s374
        %s376 = sand.u32 %s78, 1
        %s377 = smul.addr %s376, 10240
        %s378 = scalar_lea.vmem [#allocation4], %s377
        // Predicated region
        $region60: #{mlp_forward.1} parent=54 // pred_check
          %p379 = pneg %p91
        $region61: #{mlp_forward.1} parent=54 // pred_check_branch
          %381 = sbr.rel (%p379) target = $region63
        $region62: #{mlp_forward.1} parent=54 // pred_region
          %382 = dma.done %s375, 163840
        $region63: #{mlp_forward.1} parent=54 // pred_fallthru
          _
        %s383 = sand.u32 %s21, 1
        %s384 = scalar_lea.sflag [#allocation7], %s383
        %s385 = sand.u32 %s104, 1
        %s386 = smul.addr %s385, 4
        %s387 = scalar_lea.vmem [#allocation6], %s386
        // Predicated region
        $region64: #{mlp_forward.1} parent=54 // pred_check
          %p388 = pneg %p117
        $region65: #{mlp_forward.1} parent=54 // pred_check_branch
          %390 = sbr.rel (%p388) target = $region67
        $region66: #{mlp_forward.1} parent=54 // pred_region
          %391 = dma.done %s384, 64
        $region67: #{mlp_forward.1} parent=54 // pred_fallthru
          _
        %s392 = sand.u32 %s21, 1
        %s393 = scalar_lea.sflag [#allocation7], %s392
        %s394 = sand.u32 %s130, 1
        %s395 = smul.addr %s394, 4
        %s396 = scalar_lea.vmem [#allocation8], %s395
        // Predicated region
        $region68: #{mlp_forward.1} parent=54 // pred_check
          %p397 = pneg %p143
        $region69: #{mlp_forward.1} parent=54 // pred_check_branch
          %399 = sbr.rel (%p397) target = $region71
        $region70: #{mlp_forward.1} parent=54 // pred_region
          %400 = dma.done %s393, 64
        $region71: #{mlp_forward.1} parent=54 // pred_fallthru
          _
        %s401 = sand.u32 %s50, 1
        %s402 = sand.u32 %s50, 1
        %s403 = smul.addr %s402, 320
        %s404 = scalar_lea.vmem [#allocation3], %s403
        %p405 = pneg %p63
        %p406 = pneg %p60
        %s407 = sand.u32 %s78, 1
        %s408 = scalar_lea.sflag [#allocation5], %s407
        %s409 = sand.u32 %s78, 1
        %s410 = smul.addr %s409, 10240
        %s411 = scalar_lea.vmem [#allocation4], %s410
        %p412 = pneg %p91
        %p413 = pneg %p88
        %s414 = sand.u32 %s21, 1
        %s415 = scalar_lea.sflag [#allocation7], %s414
        %s416 = sand.u32 %s104, 1
        %s417 = smul.addr %s416, 4
        %s418 = scalar_lea.vmem [#allocation6], %s417
        %p419 = pneg %p117
        %p420 = pneg %p114
        %s421 = sand.u32 %s21, 1
        %s422 = scalar_lea.sflag [#allocation7], %s421
        %s423 = sand.u32 %s130, 1
        %s424 = smul.addr %s423, 4
        %s425 = scalar_lea.vmem [#allocation8], %s424
        %p426 = pneg %p143
        %p427 = pneg %p140
        %p428 = pneg %p171
        %p429 = pneg %p168
        %s430 = smul.u32 2, %s27
        %p431 = scmp.lt.s32.totalorder %s26, 1
        %s432 = scalar_select %p431, %s26, 1
        %p433 = scmp.lt.s32.totalorder %s430, 1
        %s434 = scalar_select %p433, %s430, 1
        %s435 = smul.addr %s432, 2
        %s436 = sadd.s32 %s434, %s435
        %s437 = smul.addr %s436, 8
        %s438 = scalar_lea.vmem %s4, %s437
        %s439 = smul.u32 2, %s27
        %s440 = smul.u32 40, %s28
        %s441 = smul.u32 640, %s28
        %s442 = smul.u32 4, %s26
        %s443 = smul.u32 4, %s26
        %s444 = smul.u32 4, %s26
        %s445 = smul.u32 2, %s27
        %p446 = scmp.lt.s32.totalorder %s26, 1
        %s447 = scalar_select %p446, %s26, 1
        %p448 = scmp.lt.s32.totalorder %s445, 1
        %s449 = scalar_select %p448, %s445, 1
        %s450 = smul.addr %s447, 2
        %s451 = sadd.s32 %s449, %s450
        %s452 = smul.addr %s451, 8
        %s453 = scalar_lea.vmem %s4, %s452
        %s454 = smul.u32 2, %s27
        %p455 = scmp.eq.s32.totalorder %s28, 0
        // Predicated region
        $region72: #{mlp_forward.1} parent=54 // pred_check
          %p456 = pneg %p455
        $region73: #{mlp_forward.1} parent=54 // pred_check_branch
          %458 = sbr.rel (%p456) target = $region75
        $region74: #{mlp_forward.1} parent=54 // pred_region
          %459 = vst [vmem:[#allocation2] sm:$0xff] 0.0
          %460 = vst [vmem:[#allocation2 + $0x8] sm:$0xff] 0.0
          %461 = vst [vmem:[#allocation2 + $0x10] sm:$0xff] 0.0
          %462 = vst [vmem:[#allocation2 + $0x18] sm:$0xff] 0.0
          %463 = vst [vmem:[#allocation2 + $0x20] sm:$0xff] 0.0
          %464 = vst [vmem:[#allocation2 + $0x28] sm:$0xff] 0.0
          %465 = vst [vmem:[#allocation2 + $0x30] sm:$0xff] 0.0
          %466 = vst [vmem:[#allocation2 + $0x38] sm:$0xff] 0.0
        $region75: #{mlp_forward.1} parent=54 // pred_fallthru
          _
        %v467 = vld [vmem:[#allocation2] sm:$0xff]
        %v468 = vld [vmem:[#allocation2 + $0x8] sm:$0xff]
        %v469 = vld [vmem:[#allocation2 + $0x10] sm:$0xff]
        %v470 = vld [vmem:[#allocation2 + $0x18] sm:$0xff]
        %v471 = vld [vmem:[#allocation2 + $0x20] sm:$0xff]
        %v472 = vld [vmem:[#allocation2 + $0x28] sm:$0xff]
        %v473 = vld [vmem:[#allocation2 + $0x30] sm:$0xff]
        %v474 = vld [vmem:[#allocation2 + $0x38] sm:$0xff]
        %v475 = vld [vmem:[%s370] sm:$0xff]
        %v476 = vld [vmem:[%s370 + $0x8] sm:$0xff]
        %v477 = vld [vmem:[%s370 + $0x10] sm:$0xff]
        %v478 = vld [vmem:[%s370 + $0x18] sm:$0xff]
        %v479 = vld [vmem:[%s370 + $0x20] sm:$0xff]
        %v480 = vld [vmem:[%s370 + $0x28] sm:$0xff]
        %v481 = vld [vmem:[%s370 + $0x30] sm:$0xff]
        %v482 = vld [vmem:[%s370 + $0x38] sm:$0xff]
        %v483 = vld [vmem:[%s370 + $0x40] sm:$0xff]
        %v484 = vld [vmem:[%s370 + $0x48] sm:$0xff]
        %v485 = vld [vmem:[%s370 + $0x50] sm:$0xff]
        %v486 = vld [vmem:[%s370 + $0x58] sm:$0xff]
        %v487 = vld [vmem:[%s370 + $0x60] sm:$0xff]
        %v488 = vld [vmem:[%s370 + $0x68] sm:$0xff]
        %v489 = vld [vmem:[%s370 + $0x70] sm:$0xff]
        %v490 = vld [vmem:[%s370 + $0x78] sm:$0xff]
        %v491 = vld [vmem:[%s370 + $0x80] sm:$0xff]
        %v492 = vld [vmem:[%s370 + $0x88] sm:$0xff]
        %v493 = vld [vmem:[%s370 + $0x90] sm:$0xff]
        %v494 = vld [vmem:[%s370 + $0x98] sm:$0xff]
        %v495 = vld [vmem:[%s370 + $0xa0] sm:$0xff]
        %v496 = vld [vmem:[%s370 + $0xa8] sm:$0xff]
        %v497 = vld [vmem:[%s370 + $0xb0] sm:$0xff]
        %v498 = vld [vmem:[%s370 + $0xb8] sm:$0xff]
        %v499 = vld [vmem:[%s370 + $0xc0] sm:$0xff]
        %v500 = vld [vmem:[%s370 + $0xc8] sm:$0xff]
        %v501 = vld [vmem:[%s370 + $0xd0] sm:$0xff]
        %v502 = vld [vmem:[%s370 + $0xd8] sm:$0xff]
        %v503 = vld [vmem:[%s370 + $0xe0] sm:$0xff]
        %v504 = vld [vmem:[%s370 + $0xe8] sm:$0xff]
        %v505 = vld [vmem:[%s370 + $0xf0] sm:$0xff]
        %v506 = vld [vmem:[%s370 + $0xf8] sm:$0xff]
        %v507 = vld [vmem:[%s370 + $0x100] sm:$0xff]
        %v508 = vld [vmem:[%s370 + $0x108] sm:$0xff]
        %v509 = vld [vmem:[%s370 + $0x110] sm:$0xff]
        %v510 = vld [vmem:[%s370 + $0x118] sm:$0xff]
        %v511 = vld [vmem:[%s370 + $0x120] sm:$0xff]
        %v512 = vld [vmem:[%s370 + $0x128] sm:$0xff]
        %v513 = vld [vmem:[%s370 + $0x130] sm:$0xff]
        %v514 = vld [vmem:[%s370 + $0x138] sm:$0xff]
        %v515 = vld [vmem:[%s378] sm:$0xff]
        %v516 = vld [vmem:[%s378 + $0x8] sm:$0xff]
        %v517 = vld [vmem:[%s378 + $0x10] sm:$0xff]
        %v518 = vld [vmem:[%s378 + $0x18] sm:$0xff]
        %v519 = vld [vmem:[%s378 + $0x20] sm:$0xff]
        %v520 = vld [vmem:[%s378 + $0x28] sm:$0xff]
        %v521 = vld [vmem:[%s378 + $0x30] sm:$0xff]
        %v522 = vld [vmem:[%s378 + $0x38] sm:$0xff]
        %v523 = vld [vmem:[%s378 + $0x40] sm:$0xff]
        %v524 = vld [vmem:[%s378 + $0x48] sm:$0xff]
        %v525 = vld [vmem:[%s378 + $0x50] sm:$0xff]
        %v526 = vld [vmem:[%s378 + $0x58] sm:$0xff]
        %v527 = vld [vmem:[%s378 + $0x60] sm:$0xff]
        %v528 = vld [vmem:[%s378 + $0x68] sm:$0xff]
        %v529 = vld [vmem:[%s378 + $0x70] sm:$0xff]
        %v530 = vld [vmem:[%s378 + $0x78] sm:$0xff]
        %v531 = vld [vmem:[%s378 + $0x80] sm:$0xff]
        %v532 = vld [vmem:[%s378 + $0x88] sm:$0xff]
        %v533 = vld [vmem:[%s378 + $0x90] sm:$0xff]
        %v534 = vld [vmem:[%s378 + $0x98] sm:$0xff]
        %v535 = vld [vmem:[%s378 + $0xa0] sm:$0xff]
        %v536 = vld [vmem:[%s378 + $0xa8] sm:$0xff]
        %v537 = vld [vmem:[%s378 + $0xb0] sm:$0xff]
        %v538 = vld [vmem:[%s378 + $0xb8] sm:$0xff]
        %v539 = vld [vmem:[%s378 + $0xc0] sm:$0xff]
        %v540 = vld [vmem:[%s378 + $0xc8] sm:$0xff]
        %v541 = vld [vmem:[%s378 + $0xd0] sm:$0xff]
        %v542 = vld [vmem:[%s378 + $0xd8] sm:$0xff]
        %v543 = vld [vmem:[%s378 + $0xe0] sm:$0xff]
        %v544 = vld [vmem:[%s378 + $0xe8] sm:$0xff]
        %v545 = vld [vmem:[%s378 + $0xf0] sm:$0xff]
        %v546 = vld [vmem:[%s378 + $0xf8] sm:$0xff]
        %v547 = vld [vmem:[%s378 + $0x100] sm:$0xff]
        %v548 = vld [vmem:[%s378 + $0x108] sm:$0xff]
        %v549 = vld [vmem:[%s378 + $0x110] sm:$0xff]
        %v550 = vld [vmem:[%s378 + $0x118] sm:$0xff]
        %v551 = vld [vmem:[%s378 + $0x120] sm:$0xff]
        %v552 = vld [vmem:[%s378 + $0x128] sm:$0xff]
        %v553 = vld [vmem:[%s378 + $0x130] sm:$0xff]
        %v554 = vld [vmem:[%s378 + $0x138] sm:$0xff]
        %v555 = vld [vmem:[%s378 + $0x140] sm:$0xff]
        %v556 = vld [vmem:[%s378 + $0x148] sm:$0xff]
        %v557 = vld [vmem:[%s378 + $0x150] sm:$0xff]
        %v558 = vld [vmem:[%s378 + $0x158] sm:$0xff]
        %v559 = vld [vmem:[%s378 + $0x160] sm:$0xff]
        %v560 = vld [vmem:[%s378 + $0x168] sm:$0xff]
        %v561 = vld [vmem:[%s378 + $0x170] sm:$0xff]
        %v562 = vld [vmem:[%s378 + $0x178] sm:$0xff]
        %v563 = vld [vmem:[%s378 + $0x180] sm:$0xff]
        %v564 = vld [vmem:[%s378 + $0x188] sm:$0xff]
        %v565 = vld [vmem:[%s378 + $0x190] sm:$0xff]
        %v566 = vld [vmem:[%s378 + $0x198] sm:$0xff]
        %v567 = vld [vmem:[%s378 + $0x1a0] sm:$0xff]
        %v568 = vld [vmem:[%s378 + $0x1a8] sm:$0xff]
        %v569 = vld [vmem:[%s378 + $0x1b0] sm:$0xff]
        %v570 = vld [vmem:[%s378 + $0x1b8] sm:$0xff]
        %v571 = vld [vmem:[%s378 + $0x1c0] sm:$0xff]
        %v572 = vld [vmem:[%s378 + $0x1c8] sm:$0xff]
        %v573 = vld [vmem:[%s378 + $0x1d0] sm:$0xff]
        %v574 = vld [vmem:[%s378 + $0x1d8] sm:$0xff]
        %v575 = vld [vmem:[%s378 + $0x1e0] sm:$0xff]
        %v576 = vld [vmem:[%s378 + $0x1e8] sm:$0xff]
        %v577 = vld [vmem:[%s378 + $0x1f0] sm:$0xff]
        %v578 = vld [vmem:[%s378 + $0x1f8] sm:$0xff]
        %v579 = vld [vmem:[%s378 + $0x200] sm:$0xff]
        %v580 = vld [vmem:[%s378 + $0x208] sm:$0xff]
        %v581 = vld [vmem:[%s378 + $0x210] sm:$0xff]
        %v582 = vld [vmem:[%s378 + $0x218] sm:$0xff]
        %v583 = vld [vmem:[%s378 + $0x220] sm:$0xff]
        %v584 = vld [vmem:[%s378 + $0x228] sm:$0xff]
        %v585 = vld [vmem:[%s378 + $0x230] sm:$0xff]
        %v586 = vld [vmem:[%s378 + $0x238] sm:$0xff]
        %v587 = vld [vmem:[%s378 + $0x240] sm:$0xff]
        %v588 = vld [vmem:[%s378 + $0x248] sm:$0xff]
        %v589 = vld [vmem:[%s378 + $0x250] sm:$0xff]
        %v590 = vld [vmem:[%s378 + $0x258] sm:$0xff]
        %v591 = vld [vmem:[%s378 + $0x260] sm:$0xff]
        %v592 = vld [vmem:[%s378 + $0x268] sm:$0xff]
        %v593 = vld [vmem:[%s378 + $0x270] sm:$0xff]
        %v594 = vld [vmem:[%s378 + $0x278] sm:$0xff]
        %v595 = vld [vmem:[%s378 + $0x280] sm:$0xff]
        %v596 = vld [vmem:[%s378 + $0x288] sm:$0xff]
        %v597 = vld [vmem:[%s378 + $0x290] sm:$0xff]
        %v598 = vld [vmem:[%s378 + $0x298] sm:$0xff]
        %v599 = vld [vmem:[%s378 + $0x2a0] sm:$0xff]
        %v600 = vld [vmem:[%s378 + $0x2a8] sm:$0xff]
        %v601 = vld [vmem:[%s378 + $0x2b0] sm:$0xff]
        %v602 = vld [vmem:[%s378 + $0x2b8] sm:$0xff]
        %v603 = vld [vmem:[%s378 + $0x2c0] sm:$0xff]
        %v604 = vld [vmem:[%s378 + $0x2c8] sm:$0xff]
        %v605 = vld [vmem:[%s378 + $0x2d0] sm:$0xff]
        %v606 = vld [vmem:[%s378 + $0x2d8] sm:$0xff]
        %v607 = vld [vmem:[%s378 + $0x2e0] sm:$0xff]
        %v608 = vld [vmem:[%s378 + $0x2e8] sm:$0xff]
        %v609 = vld [vmem:[%s378 + $0x2f0] sm:$0xff]
        %v610 = vld [vmem:[%s378 + $0x2f8] sm:$0xff]
        %v611 = vld [vmem:[%s378 + $0x300] sm:$0xff]
        %v612 = vld [vmem:[%s378 + $0x308] sm:$0xff]
        %v613 = vld [vmem:[%s378 + $0x310] sm:$0xff]
        %v614 = vld [vmem:[%s378 + $0x318] sm:$0xff]
        %v615 = vld [vmem:[%s378 + $0x320] sm:$0xff]
        %v616 = vld [vmem:[%s378 + $0x328] sm:$0xff]
        %v617 = vld [vmem:[%s378 + $0x330] sm:$0xff]
        %v618 = vld [vmem:[%s378 + $0x338] sm:$0xff]
        %v619 = vld [vmem:[%s378 + $0x340] sm:$0xff]
        %v620 = vld [vmem:[%s378 + $0x348] sm:$0xff]
        %v621 = vld [vmem:[%s378 + $0x350] sm:$0xff]
        %v622 = vld [vmem:[%s378 + $0x358] sm:$0xff]
        %v623 = vld [vmem:[%s378 + $0x360] sm:$0xff]
        %v624 = vld [vmem:[%s378 + $0x368] sm:$0xff]
        %v625 = vld [vmem:[%s378 + $0x370] sm:$0xff]
        %v626 = vld [vmem:[%s378 + $0x378] sm:$0xff]
        %v627 = vld [vmem:[%s378 + $0x380] sm:$0xff]
        %v628 = vld [vmem:[%s378 + $0x388] sm:$0xff]
        %v629 = vld [vmem:[%s378 + $0x390] sm:$0xff]
        %v630 = vld [vmem:[%s378 + $0x398] sm:$0xff]
        %v631 = vld [vmem:[%s378 + $0x3a0] sm:$0xff]
        %v632 = vld [vmem:[%s378 + $0x3a8] sm:$0xff]
        %v633 = vld [vmem:[%s378 + $0x3b0] sm:$0xff]
        %v634 = vld [vmem:[%s378 + $0x3b8] sm:$0xff]
        %v635 = vld [vmem:[%s378 + $0x3c0] sm:$0xff]
        %v636 = vld [vmem:[%s378 + $0x3c8] sm:$0xff]
        %v637 = vld [vmem:[%s378 + $0x3d0] sm:$0xff]
        %v638 = vld [vmem:[%s378 + $0x3d8] sm:$0xff]
        %v639 = vld [vmem:[%s378 + $0x3e0] sm:$0xff]
        %v640 = vld [vmem:[%s378 + $0x3e8] sm:$0xff]
        %v641 = vld [vmem:[%s378 + $0x3f0] sm:$0xff]
        %v642 = vld [vmem:[%s378 + $0x3f8] sm:$0xff]
        %v643 = vld [vmem:[%s378 + $0x400] sm:$0xff]
        %v644 = vld [vmem:[%s378 + $0x408] sm:$0xff]
        %v645 = vld [vmem:[%s378 + $0x410] sm:$0xff]
        %v646 = vld [vmem:[%s378 + $0x418] sm:$0xff]
        %v647 = vld [vmem:[%s378 + $0x420] sm:$0xff]
        %v648 = vld [vmem:[%s378 + $0x428] sm:$0xff]
        %v649 = vld [vmem:[%s378 + $0x430] sm:$0xff]
        %v650 = vld [vmem:[%s378 + $0x438] sm:$0xff]
        %v651 = vld [vmem:[%s378 + $0x440] sm:$0xff]
        %v652 = vld [vmem:[%s378 + $0x448] sm:$0xff]
        %v653 = vld [vmem:[%s378 + $0x450] sm:$0xff]
        %v654 = vld [vmem:[%s378 + $0x458] sm:$0xff]
        %v655 = vld [vmem:[%s378 + $0x460] sm:$0xff]
        %v656 = vld [vmem:[%s378 + $0x468] sm:$0xff]
        %v657 = vld [vmem:[%s378 + $0x470] sm:$0xff]
        %v658 = vld [vmem:[%s378 + $0x478] sm:$0xff]
        %v659 = vld [vmem:[%s378 + $0x480] sm:$0xff]
        %v660 = vld [vmem:[%s378 + $0x488] sm:$0xff]
        %v661 = vld [vmem:[%s378 + $0x490] sm:$0xff]
        %v662 = vld [vmem:[%s378 + $0x498] sm:$0xff]
        %v663 = vld [vmem:[%s378 + $0x4a0] sm:$0xff]
        %v664 = vld [vmem:[%s378 + $0x4a8] sm:$0xff]
        %v665 = vld [vmem:[%s378 + $0x4b0] sm:$0xff]
        %v666 = vld [vmem:[%s378 + $0x4b8] sm:$0xff]
        %v667 = vld [vmem:[%s378 + $0x4c0] sm:$0xff]
        %v668 = vld [vmem:[%s378 + $0x4c8] sm:$0xff]
        %v669 = vld [vmem:[%s378 + $0x4d0] sm:$0xff]
        %v670 = vld [vmem:[%s378 + $0x4d8] sm:$0xff]
        %v671 = vld [vmem:[%s378 + $0x4e0] sm:$0xff]
        %v672 = vld [vmem:[%s378 + $0x4e8] sm:$0xff]
        %v673 = vld [vmem:[%s378 + $0x4f0] sm:$0xff]
        %v674 = vld [vmem:[%s378 + $0x4f8] sm:$0xff]
        %v675 = vld [vmem:[%s378 + $0x500] sm:$0xff]
        %v676 = vld [vmem:[%s378 + $0x508] sm:$0xff]
        %v677 = vld [vmem:[%s378 + $0x510] sm:$0xff]
        %v678 = vld [vmem:[%s378 + $0x518] sm:$0xff]
        %v679 = vld [vmem:[%s378 + $0x520] sm:$0xff]
        %v680 = vld [vmem:[%s378 + $0x528] sm:$0xff]
        %v681 = vld [vmem:[%s378 + $0x530] sm:$0xff]
        %v682 = vld [vmem:[%s378 + $0x538] sm:$0xff]
        %v683 = vld [vmem:[%s378 + $0x540] sm:$0xff]
        %v684 = vld [vmem:[%s378 + $0x548] sm:$0xff]
        %v685 = vld [vmem:[%s378 + $0x550] sm:$0xff]
        %v686 = vld [vmem:[%s378 + $0x558] sm:$0xff]
        %v687 = vld [vmem:[%s378 + $0x560] sm:$0xff]
        %v688 = vld [vmem:[%s378 + $0x568] sm:$0xff]
        %v689 = vld [vmem:[%s378 + $0x570] sm:$0xff]
        %v690 = vld [vmem:[%s378 + $0x578] sm:$0xff]
        %v691 = vld [vmem:[%s378 + $0x580] sm:$0xff]
        %v692 = vld [vmem:[%s378 + $0x588] sm:$0xff]
        %v693 = vld [vmem:[%s378 + $0x590] sm:$0xff]
        %v694 = vld [vmem:[%s378 + $0x598] sm:$0xff]
        %v695 = vld [vmem:[%s378 + $0x5a0] sm:$0xff]
        %v696 = vld [vmem:[%s378 + $0x5a8] sm:$0xff]
        %v697 = vld [vmem:[%s378 + $0x5b0] sm:$0xff]
        %v698 = vld [vmem:[%s378 + $0x5b8] sm:$0xff]
        %v699 = vld [vmem:[%s378 + $0x5c0] sm:$0xff]
        %v700 = vld [vmem:[%s378 + $0x5c8] sm:$0xff]
        %v701 = vld [vmem:[%s378 + $0x5d0] sm:$0xff]
        %v702 = vld [vmem:[%s378 + $0x5d8] sm:$0xff]
        %v703 = vld [vmem:[%s378 + $0x5e0] sm:$0xff]
        %v704 = vld [vmem:[%s378 + $0x5e8] sm:$0xff]
        %v705 = vld [vmem:[%s378 + $0x5f0] sm:$0xff]
        %v706 = vld [vmem:[%s378 + $0x5f8] sm:$0xff]
        %v707 = vld [vmem:[%s378 + $0x600] sm:$0xff]
        %v708 = vld [vmem:[%s378 + $0x608] sm:$0xff]
        %v709 = vld [vmem:[%s378 + $0x610] sm:$0xff]
        %v710 = vld [vmem:[%s378 + $0x618] sm:$0xff]
        %v711 = vld [vmem:[%s378 + $0x620] sm:$0xff]
        %v712 = vld [vmem:[%s378 + $0x628] sm:$0xff]
        %v713 = vld [vmem:[%s378 + $0x630] sm:$0xff]
        %v714 = vld [vmem:[%s378 + $0x638] sm:$0xff]
        %v715 = vld [vmem:[%s378 + $0x640] sm:$0xff]
        %v716 = vld [vmem:[%s378 + $0x648] sm:$0xff]
        %v717 = vld [vmem:[%s378 + $0x650] sm:$0xff]
        %v718 = vld [vmem:[%s378 + $0x658] sm:$0xff]
        %v719 = vld [vmem:[%s378 + $0x660] sm:$0xff]
        %v720 = vld [vmem:[%s378 + $0x668] sm:$0xff]
        %v721 = vld [vmem:[%s378 + $0x670] sm:$0xff]
        %v722 = vld [vmem:[%s378 + $0x678] sm:$0xff]
        %v723 = vld [vmem:[%s378 + $0x680] sm:$0xff]
        %v724 = vld [vmem:[%s378 + $0x688] sm:$0xff]
        %v725 = vld [vmem:[%s378 + $0x690] sm:$0xff]
        %v726 = vld [vmem:[%s378 + $0x698] sm:$0xff]
        %v727 = vld [vmem:[%s378 + $0x6a0] sm:$0xff]
        %v728 = vld [vmem:[%s378 + $0x6a8] sm:$0xff]
        %v729 = vld [vmem:[%s378 + $0x6b0] sm:$0xff]
        %v730 = vld [vmem:[%s378 + $0x6b8] sm:$0xff]
        %v731 = vld [vmem:[%s378 + $0x6c0] sm:$0xff]
        %v732 = vld [vmem:[%s378 + $0x6c8] sm:$0xff]
        %v733 = vld [vmem:[%s378 + $0x6d0] sm:$0xff]
        %v734 = vld [vmem:[%s378 + $0x6d8] sm:$0xff]
        %v735 = vld [vmem:[%s378 + $0x6e0] sm:$0xff]
        %v736 = vld [vmem:[%s378 + $0x6e8] sm:$0xff]
        %v737 = vld [vmem:[%s378 + $0x6f0] sm:$0xff]
        %v738 = vld [vmem:[%s378 + $0x6f8] sm:$0xff]
        %v739 = vld [vmem:[%s378 + $0x700] sm:$0xff]
        %v740 = vld [vmem:[%s378 + $0x708] sm:$0xff]
        %v741 = vld [vmem:[%s378 + $0x710] sm:$0xff]
        %v742 = vld [vmem:[%s378 + $0x718] sm:$0xff]
        %v743 = vld [vmem:[%s378 + $0x720] sm:$0xff]
        %v744 = vld [vmem:[%s378 + $0x728] sm:$0xff]
        %v745 = vld [vmem:[%s378 + $0x730] sm:$0xff]
        %v746 = vld [vmem:[%s378 + $0x738] sm:$0xff]
        %v747 = vld [vmem:[%s378 + $0x740] sm:$0xff]
        %v748 = vld [vmem:[%s378 + $0x748] sm:$0xff]
        %v749 = vld [vmem:[%s378 + $0x750] sm:$0xff]
        %v750 = vld [vmem:[%s378 + $0x758] sm:$0xff]
        %v751 = vld [vmem:[%s378 + $0x760] sm:$0xff]
        %v752 = vld [vmem:[%s378 + $0x768] sm:$0xff]
        %v753 = vld [vmem:[%s378 + $0x770] sm:$0xff]
        %v754 = vld [vmem:[%s378 + $0x778] sm:$0xff]
        %v755 = vld [vmem:[%s378 + $0x780] sm:$0xff]
        %v756 = vld [vmem:[%s378 + $0x788] sm:$0xff]
        %v757 = vld [vmem:[%s378 + $0x790] sm:$0xff]
        %v758 = vld [vmem:[%s378 + $0x798] sm:$0xff]
        %v759 = vld [vmem:[%s378 + $0x7a0] sm:$0xff]
        %v760 = vld [vmem:[%s378 + $0x7a8] sm:$0xff]
        %v761 = vld [vmem:[%s378 + $0x7b0] sm:$0xff]
        %v762 = vld [vmem:[%s378 + $0x7b8] sm:$0xff]
        %v763 = vld [vmem:[%s378 + $0x7c0] sm:$0xff]
        %v764 = vld [vmem:[%s378 + $0x7c8] sm:$0xff]
        %v765 = vld [vmem:[%s378 + $0x7d0] sm:$0xff]
        %v766 = vld [vmem:[%s378 + $0x7d8] sm:$0xff]
        %v767 = vld [vmem:[%s378 + $0x7e0] sm:$0xff]
        %v768 = vld [vmem:[%s378 + $0x7e8] sm:$0xff]
        %v769 = vld [vmem:[%s378 + $0x7f0] sm:$0xff]
        %v770 = vld [vmem:[%s378 + $0x7f8] sm:$0xff]
        %v771 = vld [vmem:[%s378 + $0x800] sm:$0xff]
        %v772 = vld [vmem:[%s378 + $0x808] sm:$0xff]
        %v773 = vld [vmem:[%s378 + $0x810] sm:$0xff]
        %v774 = vld [vmem:[%s378 + $0x818] sm:$0xff]
        %v775 = vld [vmem:[%s378 + $0x820] sm:$0xff]
        %v776 = vld [vmem:[%s378 + $0x828] sm:$0xff]
        %v777 = vld [vmem:[%s378 + $0x830] sm:$0xff]
        %v778 = vld [vmem:[%s378 + $0x838] sm:$0xff]
        %v779 = vld [vmem:[%s378 + $0x840] sm:$0xff]
        %v780 = vld [vmem:[%s378 + $0x848] sm:$0xff]
        %v781 = vld [vmem:[%s378 + $0x850] sm:$0xff]
        %v782 = vld [vmem:[%s378 + $0x858] sm:$0xff]
        %v783 = vld [vmem:[%s378 + $0x860] sm:$0xff]
        %v784 = vld [vmem:[%s378 + $0x868] sm:$0xff]
        %v785 = vld [vmem:[%s378 + $0x870] sm:$0xff]
        %v786 = vld [vmem:[%s378 + $0x878] sm:$0xff]
        %v787 = vld [vmem:[%s378 + $0x880] sm:$0xff]
        %v788 = vld [vmem:[%s378 + $0x888] sm:$0xff]
        %v789 = vld [vmem:[%s378 + $0x890] sm:$0xff]
        %v790 = vld [vmem:[%s378 + $0x898] sm:$0xff]
        %v791 = vld [vmem:[%s378 + $0x8a0] sm:$0xff]
        %v792 = vld [vmem:[%s378 + $0x8a8] sm:$0xff]
        %v793 = vld [vmem:[%s378 + $0x8b0] sm:$0xff]
        %v794 = vld [vmem:[%s378 + $0x8b8] sm:$0xff]
        %v795 = vld [vmem:[%s378 + $0x8c0] sm:$0xff]
        %v796 = vld [vmem:[%s378 + $0x8c8] sm:$0xff]
        %v797 = vld [vmem:[%s378 + $0x8d0] sm:$0xff]
        %v798 = vld [vmem:[%s378 + $0x8d8] sm:$0xff]
        %v799 = vld [vmem:[%s378 + $0x8e0] sm:$0xff]
        %v800 = vld [vmem:[%s378 + $0x8e8] sm:$0xff]
        %v801 = vld [vmem:[%s378 + $0x8f0] sm:$0xff]
        %v802 = vld [vmem:[%s378 + $0x8f8] sm:$0xff]
        %v803 = vld [vmem:[%s378 + $0x900] sm:$0xff]
        %v804 = vld [vmem:[%s378 + $0x908] sm:$0xff]
        %v805 = vld [vmem:[%s378 + $0x910] sm:$0xff]
        %v806 = vld [vmem:[%s378 + $0x918] sm:$0xff]
        %v807 = vld [vmem:[%s378 + $0x920] sm:$0xff]
        %v808 = vld [vmem:[%s378 + $0x928] sm:$0xff]
        %v809 = vld [vmem:[%s378 + $0x930] sm:$0xff]
        %v810 = vld [vmem:[%s378 + $0x938] sm:$0xff]
        %v811 = vld [vmem:[%s378 + $0x940] sm:$0xff]
        %v812 = vld [vmem:[%s378 + $0x948] sm:$0xff]
        %v813 = vld [vmem:[%s378 + $0x950] sm:$0xff]
        %v814 = vld [vmem:[%s378 + $0x958] sm:$0xff]
        %v815 = vld [vmem:[%s378 + $0x960] sm:$0xff]
        %v816 = vld [vmem:[%s378 + $0x968] sm:$0xff]
        %v817 = vld [vmem:[%s378 + $0x970] sm:$0xff]
        %v818 = vld [vmem:[%s378 + $0x978] sm:$0xff]
        %v819 = vld [vmem:[%s378 + $0x980] sm:$0xff]
        %v820 = vld [vmem:[%s378 + $0x988] sm:$0xff]
        %v821 = vld [vmem:[%s378 + $0x990] sm:$0xff]
        %v822 = vld [vmem:[%s378 + $0x998] sm:$0xff]
        %v823 = vld [vmem:[%s378 + $0x9a0] sm:$0xff]
        %v824 = vld [vmem:[%s378 + $0x9a8] sm:$0xff]
        %v825 = vld [vmem:[%s378 + $0x9b0] sm:$0xff]
        %v826 = vld [vmem:[%s378 + $0x9b8] sm:$0xff]
        %v827 = vld [vmem:[%s378 + $0x9c0] sm:$0xff]
        %v828 = vld [vmem:[%s378 + $0x9c8] sm:$0xff]
        %v829 = vld [vmem:[%s378 + $0x9d0] sm:$0xff]
        %v830 = vld [vmem:[%s378 + $0x9d8] sm:$0xff]
        %v831 = vld [vmem:[%s378 + $0x9e0] sm:$0xff]
        %v832 = vld [vmem:[%s378 + $0x9e8] sm:$0xff]
        %v833 = vld [vmem:[%s378 + $0x9f0] sm:$0xff]
        %v834 = vld [vmem:[%s378 + $0x9f8] sm:$0xff]
        %v835 = vld [vmem:[%s378 + $0xa00] sm:$0xff]
        %v836 = vld [vmem:[%s378 + $0xa08] sm:$0xff]
        %v837 = vld [vmem:[%s378 + $0xa10] sm:$0xff]
        %v838 = vld [vmem:[%s378 + $0xa18] sm:$0xff]
        %v839 = vld [vmem:[%s378 + $0xa20] sm:$0xff]
        %v840 = vld [vmem:[%s378 + $0xa28] sm:$0xff]
        %v841 = vld [vmem:[%s378 + $0xa30] sm:$0xff]
        %v842 = vld [vmem:[%s378 + $0xa38] sm:$0xff]
        %v843 = vld [vmem:[%s378 + $0xa40] sm:$0xff]
        %v844 = vld [vmem:[%s378 + $0xa48] sm:$0xff]
        %v845 = vld [vmem:[%s378 + $0xa50] sm:$0xff]
        %v846 = vld [vmem:[%s378 + $0xa58] sm:$0xff]
        %v847 = vld [vmem:[%s378 + $0xa60] sm:$0xff]
        %v848 = vld [vmem:[%s378 + $0xa68] sm:$0xff]
        %v849 = vld [vmem:[%s378 + $0xa70] sm:$0xff]
        %v850 = vld [vmem:[%s378 + $0xa78] sm:$0xff]
        %v851 = vld [vmem:[%s378 + $0xa80] sm:$0xff]
        %v852 = vld [vmem:[%s378 + $0xa88] sm:$0xff]
        %v853 = vld [vmem:[%s378 + $0xa90] sm:$0xff]
        %v854 = vld [vmem:[%s378 + $0xa98] sm:$0xff]
        %v855 = vld [vmem:[%s378 + $0xaa0] sm:$0xff]
        %v856 = vld [vmem:[%s378 + $0xaa8] sm:$0xff]
        %v857 = vld [vmem:[%s378 + $0xab0] sm:$0xff]
        %v858 = vld [vmem:[%s378 + $0xab8] sm:$0xff]
        %v859 = vld [vmem:[%s378 + $0xac0] sm:$0xff]
        %v860 = vld [vmem:[%s378 + $0xac8] sm:$0xff]
        %v861 = vld [vmem:[%s378 + $0xad0] sm:$0xff]
        %v862 = vld [vmem:[%s378 + $0xad8] sm:$0xff]
        %v863 = vld [vmem:[%s378 + $0xae0] sm:$0xff]
        %v864 = vld [vmem:[%s378 + $0xae8] sm:$0xff]
        %v865 = vld [vmem:[%s378 + $0xaf0] sm:$0xff]
        %v866 = vld [vmem:[%s378 + $0xaf8] sm:$0xff]
        %v867 = vld [vmem:[%s378 + $0xb00] sm:$0xff]
        %v868 = vld [vmem:[%s378 + $0xb08] sm:$0xff]
        %v869 = vld [vmem:[%s378 + $0xb10] sm:$0xff]
        %v870 = vld [vmem:[%s378 + $0xb18] sm:$0xff]
        %v871 = vld [vmem:[%s378 + $0xb20] sm:$0xff]
        %v872 = vld [vmem:[%s378 + $0xb28] sm:$0xff]
        %v873 = vld [vmem:[%s378 + $0xb30] sm:$0xff]
        %v874 = vld [vmem:[%s378 + $0xb38] sm:$0xff]
        %v875 = vld [vmem:[%s378 + $0xb40] sm:$0xff]
        %v876 = vld [vmem:[%s378 + $0xb48] sm:$0xff]
        %v877 = vld [vmem:[%s378 + $0xb50] sm:$0xff]
        %v878 = vld [vmem:[%s378 + $0xb58] sm:$0xff]
        %v879 = vld [vmem:[%s378 + $0xb60] sm:$0xff]
        %v880 = vld [vmem:[%s378 + $0xb68] sm:$0xff]
        %v881 = vld [vmem:[%s378 + $0xb70] sm:$0xff]
        %v882 = vld [vmem:[%s378 + $0xb78] sm:$0xff]
        %v883 = vld [vmem:[%s378 + $0xb80] sm:$0xff]
        %v884 = vld [vmem:[%s378 + $0xb88] sm:$0xff]
        %v885 = vld [vmem:[%s378 + $0xb90] sm:$0xff]
        %v886 = vld [vmem:[%s378 + $0xb98] sm:$0xff]
        %v887 = vld [vmem:[%s378 + $0xba0] sm:$0xff]
        %v888 = vld [vmem:[%s378 + $0xba8] sm:$0xff]
        %v889 = vld [vmem:[%s378 + $0xbb0] sm:$0xff]
        %v890 = vld [vmem:[%s378 + $0xbb8] sm:$0xff]
        %v891 = vld [vmem:[%s378 + $0xbc0] sm:$0xff]
        %v892 = vld [vmem:[%s378 + $0xbc8] sm:$0xff]
        %v893 = vld [vmem:[%s378 + $0xbd0] sm:$0xff]
        %v894 = vld [vmem:[%s378 + $0xbd8] sm:$0xff]
        %v895 = vld [vmem:[%s378 + $0xbe0] sm:$0xff]
        %v896 = vld [vmem:[%s378 + $0xbe8] sm:$0xff]
        %v897 = vld [vmem:[%s378 + $0xbf0] sm:$0xff]
        %v898 = vld [vmem:[%s378 + $0xbf8] sm:$0xff]
        %v899 = vld [vmem:[%s378 + $0xc00] sm:$0xff]
        %v900 = vld [vmem:[%s378 + $0xc08] sm:$0xff]
        %v901 = vld [vmem:[%s378 + $0xc10] sm:$0xff]
        %v902 = vld [vmem:[%s378 + $0xc18] sm:$0xff]
        %v903 = vld [vmem:[%s378 + $0xc20] sm:$0xff]
        %v904 = vld [vmem:[%s378 + $0xc28] sm:$0xff]
        %v905 = vld [vmem:[%s378 + $0xc30] sm:$0xff]
        %v906 = vld [vmem:[%s378 + $0xc38] sm:$0xff]
        %v907 = vld [vmem:[%s378 + $0xc40] sm:$0xff]
        %v908 = vld [vmem:[%s378 + $0xc48] sm:$0xff]
        %v909 = vld [vmem:[%s378 + $0xc50] sm:$0xff]
        %v910 = vld [vmem:[%s378 + $0xc58] sm:$0xff]
        %v911 = vld [vmem:[%s378 + $0xc60] sm:$0xff]
        %v912 = vld [vmem:[%s378 + $0xc68] sm:$0xff]
        %v913 = vld [vmem:[%s378 + $0xc70] sm:$0xff]
        %v914 = vld [vmem:[%s378 + $0xc78] sm:$0xff]
        %v915 = vld [vmem:[%s378 + $0xc80] sm:$0xff]
        %v916 = vld [vmem:[%s378 + $0xc88] sm:$0xff]
        %v917 = vld [vmem:[%s378 + $0xc90] sm:$0xff]
        %v918 = vld [vmem:[%s378 + $0xc98] sm:$0xff]
        %v919 = vld [vmem:[%s378 + $0xca0] sm:$0xff]
        %v920 = vld [vmem:[%s378 + $0xca8] sm:$0xff]
        %v921 = vld [vmem:[%s378 + $0xcb0] sm:$0xff]
        %v922 = vld [vmem:[%s378 + $0xcb8] sm:$0xff]
        %v923 = vld [vmem:[%s378 + $0xcc0] sm:$0xff]
        %v924 = vld [vmem:[%s378 + $0xcc8] sm:$0xff]
        %v925 = vld [vmem:[%s378 + $0xcd0] sm:$0xff]
        %v926 = vld [vmem:[%s378 + $0xcd8] sm:$0xff]
        %v927 = vld [vmem:[%s378 + $0xce0] sm:$0xff]
        %v928 = vld [vmem:[%s378 + $0xce8] sm:$0xff]
        %v929 = vld [vmem:[%s378 + $0xcf0] sm:$0xff]
        %v930 = vld [vmem:[%s378 + $0xcf8] sm:$0xff]
        %v931 = vld [vmem:[%s378 + $0xd00] sm:$0xff]
        %v932 = vld [vmem:[%s378 + $0xd08] sm:$0xff]
        %v933 = vld [vmem:[%s378 + $0xd10] sm:$0xff]
        %v934 = vld [vmem:[%s378 + $0xd18] sm:$0xff]
        %v935 = vld [vmem:[%s378 + $0xd20] sm:$0xff]
        %v936 = vld [vmem:[%s378 + $0xd28] sm:$0xff]
        %v937 = vld [vmem:[%s378 + $0xd30] sm:$0xff]
        %v938 = vld [vmem:[%s378 + $0xd38] sm:$0xff]
        %v939 = vld [vmem:[%s378 + $0xd40] sm:$0xff]
        %v940 = vld [vmem:[%s378 + $0xd48] sm:$0xff]
        %v941 = vld [vmem:[%s378 + $0xd50] sm:$0xff]
        %v942 = vld [vmem:[%s378 + $0xd58] sm:$0xff]
        %v943 = vld [vmem:[%s378 + $0xd60] sm:$0xff]
        %v944 = vld [vmem:[%s378 + $0xd68] sm:$0xff]
        %v945 = vld [vmem:[%s378 + $0xd70] sm:$0xff]
        %v946 = vld [vmem:[%s378 + $0xd78] sm:$0xff]
        %v947 = vld [vmem:[%s378 + $0xd80] sm:$0xff]
        %v948 = vld [vmem:[%s378 + $0xd88] sm:$0xff]
        %v949 = vld [vmem:[%s378 + $0xd90] sm:$0xff]
        %v950 = vld [vmem:[%s378 + $0xd98] sm:$0xff]
        %v951 = vld [vmem:[%s378 + $0xda0] sm:$0xff]
        %v952 = vld [vmem:[%s378 + $0xda8] sm:$0xff]
        %v953 = vld [vmem:[%s378 + $0xdb0] sm:$0xff]
        %v954 = vld [vmem:[%s378 + $0xdb8] sm:$0xff]
        %v955 = vld [vmem:[%s378 + $0xdc0] sm:$0xff]
        %v956 = vld [vmem:[%s378 + $0xdc8] sm:$0xff]
        %v957 = vld [vmem:[%s378 + $0xdd0] sm:$0xff]
        %v958 = vld [vmem:[%s378 + $0xdd8] sm:$0xff]
        %v959 = vld [vmem:[%s378 + $0xde0] sm:$0xff]
        %v960 = vld [vmem:[%s378 + $0xde8] sm:$0xff]
        %v961 = vld [vmem:[%s378 + $0xdf0] sm:$0xff]
        %v962 = vld [vmem:[%s378 + $0xdf8] sm:$0xff]
        %v963 = vld [vmem:[%s378 + $0xe00] sm:$0xff]
        %v964 = vld [vmem:[%s378 + $0xe08] sm:$0xff]
        %v965 = vld [vmem:[%s378 + $0xe10] sm:$0xff]
        %v966 = vld [vmem:[%s378 + $0xe18] sm:$0xff]
        %v967 = vld [vmem:[%s378 + $0xe20] sm:$0xff]
        %v968 = vld [vmem:[%s378 + $0xe28] sm:$0xff]
        %v969 = vld [vmem:[%s378 + $0xe30] sm:$0xff]
        %v970 = vld [vmem:[%s378 + $0xe38] sm:$0xff]
        %v971 = vld [vmem:[%s378 + $0xe40] sm:$0xff]
        %v972 = vld [vmem:[%s378 + $0xe48] sm:$0xff]
        %v973 = vld [vmem:[%s378 + $0xe50] sm:$0xff]
        %v974 = vld [vmem:[%s378 + $0xe58] sm:$0xff]
        %v975 = vld [vmem:[%s378 + $0xe60] sm:$0xff]
        %v976 = vld [vmem:[%s378 + $0xe68] sm:$0xff]
        %v977 = vld [vmem:[%s378 + $0xe70] sm:$0xff]
        %v978 = vld [vmem:[%s378 + $0xe78] sm:$0xff]
        %v979 = vld [vmem:[%s378 + $0xe80] sm:$0xff]
        %v980 = vld [vmem:[%s378 + $0xe88] sm:$0xff]
        %v981 = vld [vmem:[%s378 + $0xe90] sm:$0xff]
        %v982 = vld [vmem:[%s378 + $0xe98] sm:$0xff]
        %v983 = vld [vmem:[%s378 + $0xea0] sm:$0xff]
        %v984 = vld [vmem:[%s378 + $0xea8] sm:$0xff]
        %v985 = vld [vmem:[%s378 + $0xeb0] sm:$0xff]
        %v986 = vld [vmem:[%s378 + $0xeb8] sm:$0xff]
        %v987 = vld [vmem:[%s378 + $0xec0] sm:$0xff]
        %v988 = vld [vmem:[%s378 + $0xec8] sm:$0xff]
        %v989 = vld [vmem:[%s378 + $0xed0] sm:$0xff]
        %v990 = vld [vmem:[%s378 + $0xed8] sm:$0xff]
        %v991 = vld [vmem:[%s378 + $0xee0] sm:$0xff]
        %v992 = vld [vmem:[%s378 + $0xee8] sm:$0xff]
        %v993 = vld [vmem:[%s378 + $0xef0] sm:$0xff]
        %v994 = vld [vmem:[%s378 + $0xef8] sm:$0xff]
        %v995 = vld [vmem:[%s378 + $0xf00] sm:$0xff]
        %v996 = vld [vmem:[%s378 + $0xf08] sm:$0xff]
        %v997 = vld [vmem:[%s378 + $0xf10] sm:$0xff]
        %v998 = vld [vmem:[%s378 + $0xf18] sm:$0xff]
        %v999 = vld [vmem:[%s378 + $0xf20] sm:$0xff]
        %v1000 = vld [vmem:[%s378 + $0xf28] sm:$0xff]
        %v1001 = vld [vmem:[%s378 + $0xf30] sm:$0xff]
        %v1002 = vld [vmem:[%s378 + $0xf38] sm:$0xff]
        %v1003 = vld [vmem:[%s378 + $0xf40] sm:$0xff]
        %v1004 = vld [vmem:[%s378 + $0xf48] sm:$0xff]
        %v1005 = vld [vmem:[%s378 + $0xf50] sm:$0xff]
        %v1006 = vld [vmem:[%s378 + $0xf58] sm:$0xff]
        %v1007 = vld [vmem:[%s378 + $0xf60] sm:$0xff]
        %v1008 = vld [vmem:[%s378 + $0xf68] sm:$0xff]
        %v1009 = vld [vmem:[%s378 + $0xf70] sm:$0xff]
        %v1010 = vld [vmem:[%s378 + $0xf78] sm:$0xff]
        %v1011 = vld [vmem:[%s378 + $0xf80] sm:$0xff]
        %v1012 = vld [vmem:[%s378 + $0xf88] sm:$0xff]
        %v1013 = vld [vmem:[%s378 + $0xf90] sm:$0xff]
        %v1014 = vld [vmem:[%s378 + $0xf98] sm:$0xff]
        %v1015 = vld [vmem:[%s378 + $0xfa0] sm:$0xff]
        %v1016 = vld [vmem:[%s378 + $0xfa8] sm:$0xff]
        %v1017 = vld [vmem:[%s378 + $0xfb0] sm:$0xff]
        %v1018 = vld [vmem:[%s378 + $0xfb8] sm:$0xff]
        %v1019 = vld [vmem:[%s378 + $0xfc0] sm:$0xff]
        %v1020 = vld [vmem:[%s378 + $0xfc8] sm:$0xff]
        %v1021 = vld [vmem:[%s378 + $0xfd0] sm:$0xff]
        %v1022 = vld [vmem:[%s378 + $0xfd8] sm:$0xff]
        %v1023 = vld [vmem:[%s378 + $0xfe0] sm:$0xff]
        %v1024 = vld [vmem:[%s378 + $0xfe8] sm:$0xff]
        %v1025 = vld [vmem:[%s378 + $0xff0] sm:$0xff]
        %v1026 = vld [vmem:[%s378 + $0xff8] sm:$0xff]
        %v1027 = vld [vmem:[%s378 + $0x1000] sm:$0xff]
        %v1028 = vld [vmem:[%s378 + $0x1008] sm:$0xff]
        %v1029 = vld [vmem:[%s378 + $0x1010] sm:$0xff]
        %v1030 = vld [vmem:[%s378 + $0x1018] sm:$0xff]
        %v1031 = vld [vmem:[%s378 + $0x1020] sm:$0xff]
        %v1032 = vld [vmem:[%s378 + $0x1028] sm:$0xff]
        %v1033 = vld [vmem:[%s378 + $0x1030] sm:$0xff]
        %v1034 = vld [vmem:[%s378 + $0x1038] sm:$0xff]
        %v1035 = vld [vmem:[%s378 + $0x1040] sm:$0xff]
        %v1036 = vld [vmem:[%s378 + $0x1048] sm:$0xff]
        %v1037 = vld [vmem:[%s378 + $0x1050] sm:$0xff]
        %v1038 = vld [vmem:[%s378 + $0x1058] sm:$0xff]
        %v1039 = vld [vmem:[%s378 + $0x1060] sm:$0xff]
        %v1040 = vld [vmem:[%s378 + $0x1068] sm:$0xff]
        %v1041 = vld [vmem:[%s378 + $0x1070] sm:$0xff]
        %v1042 = vld [vmem:[%s378 + $0x1078] sm:$0xff]
        %v1043 = vld [vmem:[%s378 + $0x1080] sm:$0xff]
        %v1044 = vld [vmem:[%s378 + $0x1088] sm:$0xff]
        %v1045 = vld [vmem:[%s378 + $0x1090] sm:$0xff]
        %v1046 = vld [vmem:[%s378 + $0x1098] sm:$0xff]
        %v1047 = vld [vmem:[%s378 + $0x10a0] sm:$0xff]
        %v1048 = vld [vmem:[%s378 + $0x10a8] sm:$0xff]
        %v1049 = vld [vmem:[%s378 + $0x10b0] sm:$0xff]
        %v1050 = vld [vmem:[%s378 + $0x10b8] sm:$0xff]
        %v1051 = vld [vmem:[%s378 + $0x10c0] sm:$0xff]
        %v1052 = vld [vmem:[%s378 + $0x10c8] sm:$0xff]
        %v1053 = vld [vmem:[%s378 + $0x10d0] sm:$0xff]
        %v1054 = vld [vmem:[%s378 + $0x10d8] sm:$0xff]
        %v1055 = vld [vmem:[%s378 + $0x10e0] sm:$0xff]
        %v1056 = vld [vmem:[%s378 + $0x10e8] sm:$0xff]
        %v1057 = vld [vmem:[%s378 + $0x10f0] sm:$0xff]
        %v1058 = vld [vmem:[%s378 + $0x10f8] sm:$0xff]
        %v1059 = vld [vmem:[%s378 + $0x1100] sm:$0xff]
        %v1060 = vld [vmem:[%s378 + $0x1108] sm:$0xff]
        %v1061 = vld [vmem:[%s378 + $0x1110] sm:$0xff]
        %v1062 = vld [vmem:[%s378 + $0x1118] sm:$0xff]
        %v1063 = vld [vmem:[%s378 + $0x1120] sm:$0xff]
        %v1064 = vld [vmem:[%s378 + $0x1128] sm:$0xff]
        %v1065 = vld [vmem:[%s378 + $0x1130] sm:$0xff]
        %v1066 = vld [vmem:[%s378 + $0x1138] sm:$0xff]
        %v1067 = vld [vmem:[%s378 + $0x1140] sm:$0xff]
        %v1068 = vld [vmem:[%s378 + $0x1148] sm:$0xff]
        %v1069 = vld [vmem:[%s378 + $0x1150] sm:$0xff]
        %v1070 = vld [vmem:[%s378 + $0x1158] sm:$0xff]
        %v1071 = vld [vmem:[%s378 + $0x1160] sm:$0xff]
        %v1072 = vld [vmem:[%s378 + $0x1168] sm:$0xff]
        %v1073 = vld [vmem:[%s378 + $0x1170] sm:$0xff]
        %v1074 = vld [vmem:[%s378 + $0x1178] sm:$0xff]
        %v1075 = vld [vmem:[%s378 + $0x1180] sm:$0xff]
        %v1076 = vld [vmem:[%s378 + $0x1188] sm:$0xff]
        %v1077 = vld [vmem:[%s378 + $0x1190] sm:$0xff]
        %v1078 = vld [vmem:[%s378 + $0x1198] sm:$0xff]
        %v1079 = vld [vmem:[%s378 + $0x11a0] sm:$0xff]
        %v1080 = vld [vmem:[%s378 + $0x11a8] sm:$0xff]
        %v1081 = vld [vmem:[%s378 + $0x11b0] sm:$0xff]
        %v1082 = vld [vmem:[%s378 + $0x11b8] sm:$0xff]
        %v1083 = vld [vmem:[%s378 + $0x11c0] sm:$0xff]
        %v1084 = vld [vmem:[%s378 + $0x11c8] sm:$0xff]
        %v1085 = vld [vmem:[%s378 + $0x11d0] sm:$0xff]
        %v1086 = vld [vmem:[%s378 + $0x11d8] sm:$0xff]
        %v1087 = vld [vmem:[%s378 + $0x11e0] sm:$0xff]
        %v1088 = vld [vmem:[%s378 + $0x11e8] sm:$0xff]
        %v1089 = vld [vmem:[%s378 + $0x11f0] sm:$0xff]
        %v1090 = vld [vmem:[%s378 + $0x11f8] sm:$0xff]
        %v1091 = vld [vmem:[%s378 + $0x1200] sm:$0xff]
        %v1092 = vld [vmem:[%s378 + $0x1208] sm:$0xff]
        %v1093 = vld [vmem:[%s378 + $0x1210] sm:$0xff]
        %v1094 = vld [vmem:[%s378 + $0x1218] sm:$0xff]
        %v1095 = vld [vmem:[%s378 + $0x1220] sm:$0xff]
        %v1096 = vld [vmem:[%s378 + $0x1228] sm:$0xff]
        %v1097 = vld [vmem:[%s378 + $0x1230] sm:$0xff]
        %v1098 = vld [vmem:[%s378 + $0x1238] sm:$0xff]
        %v1099 = vld [vmem:[%s378 + $0x1240] sm:$0xff]
        %v1100 = vld [vmem:[%s378 + $0x1248] sm:$0xff]
        %v1101 = vld [vmem:[%s378 + $0x1250] sm:$0xff]
        %v1102 = vld [vmem:[%s378 + $0x1258] sm:$0xff]
        %v1103 = vld [vmem:[%s378 + $0x1260] sm:$0xff]
        %v1104 = vld [vmem:[%s378 + $0x1268] sm:$0xff]
        %v1105 = vld [vmem:[%s378 + $0x1270] sm:$0xff]
        %v1106 = vld [vmem:[%s378 + $0x1278] sm:$0xff]
        %v1107 = vld [vmem:[%s378 + $0x1280] sm:$0xff]
        %v1108 = vld [vmem:[%s378 + $0x1288] sm:$0xff]
        %v1109 = vld [vmem:[%s378 + $0x1290] sm:$0xff]
        %v1110 = vld [vmem:[%s378 + $0x1298] sm:$0xff]
        %v1111 = vld [vmem:[%s378 + $0x12a0] sm:$0xff]
        %v1112 = vld [vmem:[%s378 + $0x12a8] sm:$0xff]
        %v1113 = vld [vmem:[%s378 + $0x12b0] sm:$0xff]
        %v1114 = vld [vmem:[%s378 + $0x12b8] sm:$0xff]
        %v1115 = vld [vmem:[%s378 + $0x12c0] sm:$0xff]
        %v1116 = vld [vmem:[%s378 + $0x12c8] sm:$0xff]
        %v1117 = vld [vmem:[%s378 + $0x12d0] sm:$0xff]
        %v1118 = vld [vmem:[%s378 + $0x12d8] sm:$0xff]
        %v1119 = vld [vmem:[%s378 + $0x12e0] sm:$0xff]
        %v1120 = vld [vmem:[%s378 + $0x12e8] sm:$0xff]
        %v1121 = vld [vmem:[%s378 + $0x12f0] sm:$0xff]
        %v1122 = vld [vmem:[%s378 + $0x12f8] sm:$0xff]
        %v1123 = vld [vmem:[%s378 + $0x1300] sm:$0xff]
        %v1124 = vld [vmem:[%s378 + $0x1308] sm:$0xff]
        %v1125 = vld [vmem:[%s378 + $0x1310] sm:$0xff]
        %v1126 = vld [vmem:[%s378 + $0x1318] sm:$0xff]
        %v1127 = vld [vmem:[%s378 + $0x1320] sm:$0xff]
        %v1128 = vld [vmem:[%s378 + $0x1328] sm:$0xff]
        %v1129 = vld [vmem:[%s378 + $0x1330] sm:$0xff]
        %v1130 = vld [vmem:[%s378 + $0x1338] sm:$0xff]
        %v1131 = vld [vmem:[%s378 + $0x1340] sm:$0xff]
        %v1132 = vld [vmem:[%s378 + $0x1348] sm:$0xff]
        %v1133 = vld [vmem:[%s378 + $0x1350] sm:$0xff]
        %v1134 = vld [vmem:[%s378 + $0x1358] sm:$0xff]
        %v1135 = vld [vmem:[%s378 + $0x1360] sm:$0xff]
        %v1136 = vld [vmem:[%s378 + $0x1368] sm:$0xff]
        %v1137 = vld [vmem:[%s378 + $0x1370] sm:$0xff]
        %v1138 = vld [vmem:[%s378 + $0x1378] sm:$0xff]
        %v1139 = vld [vmem:[%s378 + $0x1380] sm:$0xff]
        %v1140 = vld [vmem:[%s378 + $0x1388] sm:$0xff]
        %v1141 = vld [vmem:[%s378 + $0x1390] sm:$0xff]
        %v1142 = vld [vmem:[%s378 + $0x1398] sm:$0xff]
        %v1143 = vld [vmem:[%s378 + $0x13a0] sm:$0xff]
        %v1144 = vld [vmem:[%s378 + $0x13a8] sm:$0xff]
        %v1145 = vld [vmem:[%s378 + $0x13b0] sm:$0xff]
        %v1146 = vld [vmem:[%s378 + $0x13b8] sm:$0xff]
        %v1147 = vld [vmem:[%s378 + $0x13c0] sm:$0xff]
        %v1148 = vld [vmem:[%s378 + $0x13c8] sm:$0xff]
        %v1149 = vld [vmem:[%s378 + $0x13d0] sm:$0xff]
        %v1150 = vld [vmem:[%s378 + $0x13d8] sm:$0xff]
        %v1151 = vld [vmem:[%s378 + $0x13e0] sm:$0xff]
        %v1152 = vld [vmem:[%s378 + $0x13e8] sm:$0xff]
        %v1153 = vld [vmem:[%s378 + $0x13f0] sm:$0xff]
        %v1154 = vld [vmem:[%s378 + $0x13f8] sm:$0xff]
        %v1155 = vld [vmem:[%s378 + $0x1400] sm:$0xff]
        %v1156 = vld [vmem:[%s378 + $0x1408] sm:$0xff]
        %v1157 = vld [vmem:[%s378 + $0x1410] sm:$0xff]
        %v1158 = vld [vmem:[%s378 + $0x1418] sm:$0xff]
        %v1159 = vld [vmem:[%s378 + $0x1420] sm:$0xff]
        %v1160 = vld [vmem:[%s378 + $0x1428] sm:$0xff]
        %v1161 = vld [vmem:[%s378 + $0x1430] sm:$0xff]
        %v1162 = vld [vmem:[%s378 + $0x1438] sm:$0xff]
        %v1163 = vld [vmem:[%s378 + $0x1440] sm:$0xff]
        %v1164 = vld [vmem:[%s378 + $0x1448] sm:$0xff]
        %v1165 = vld [vmem:[%s378 + $0x1450] sm:$0xff]
        %v1166 = vld [vmem:[%s378 + $0x1458] sm:$0xff]
        %v1167 = vld [vmem:[%s378 + $0x1460] sm:$0xff]
        %v1168 = vld [vmem:[%s378 + $0x1468] sm:$0xff]
        %v1169 = vld [vmem:[%s378 + $0x1470] sm:$0xff]
        %v1170 = vld [vmem:[%s378 + $0x1478] sm:$0xff]
        %v1171 = vld [vmem:[%s378 + $0x1480] sm:$0xff]
        %v1172 = vld [vmem:[%s378 + $0x1488] sm:$0xff]
        %v1173 = vld [vmem:[%s378 + $0x1490] sm:$0xff]
        %v1174 = vld [vmem:[%s378 + $0x1498] sm:$0xff]
        %v1175 = vld [vmem:[%s378 + $0x14a0] sm:$0xff]
        %v1176 = vld [vmem:[%s378 + $0x14a8] sm:$0xff]
        %v1177 = vld [vmem:[%s378 + $0x14b0] sm:$0xff]
        %v1178 = vld [vmem:[%s378 + $0x14b8] sm:$0xff]
        %v1179 = vld [vmem:[%s378 + $0x14c0] sm:$0xff]
        %v1180 = vld [vmem:[%s378 + $0x14c8] sm:$0xff]
        %v1181 = vld [vmem:[%s378 + $0x14d0] sm:$0xff]
        %v1182 = vld [vmem:[%s378 + $0x14d8] sm:$0xff]
        %v1183 = vld [vmem:[%s378 + $0x14e0] sm:$0xff]
        %v1184 = vld [vmem:[%s378 + $0x14e8] sm:$0xff]
        %v1185 = vld [vmem:[%s378 + $0x14f0] sm:$0xff]
        %v1186 = vld [vmem:[%s378 + $0x14f8] sm:$0xff]
        %v1187 = vld [vmem:[%s378 + $0x1500] sm:$0xff]
        %v1188 = vld [vmem:[%s378 + $0x1508] sm:$0xff]
        %v1189 = vld [vmem:[%s378 + $0x1510] sm:$0xff]
        %v1190 = vld [vmem:[%s378 + $0x1518] sm:$0xff]
        %v1191 = vld [vmem:[%s378 + $0x1520] sm:$0xff]
        %v1192 = vld [vmem:[%s378 + $0x1528] sm:$0xff]
        %v1193 = vld [vmem:[%s378 + $0x1530] sm:$0xff]
        %v1194 = vld [vmem:[%s378 + $0x1538] sm:$0xff]
        %v1195 = vld [vmem:[%s378 + $0x1540] sm:$0xff]
        %v1196 = vld [vmem:[%s378 + $0x1548] sm:$0xff]
        %v1197 = vld [vmem:[%s378 + $0x1550] sm:$0xff]
        %v1198 = vld [vmem:[%s378 + $0x1558] sm:$0xff]
        %v1199 = vld [vmem:[%s378 + $0x1560] sm:$0xff]
        %v1200 = vld [vmem:[%s378 + $0x1568] sm:$0xff]
        %v1201 = vld [vmem:[%s378 + $0x1570] sm:$0xff]
        %v1202 = vld [vmem:[%s378 + $0x1578] sm:$0xff]
        %v1203 = vld [vmem:[%s378 + $0x1580] sm:$0xff]
        %v1204 = vld [vmem:[%s378 + $0x1588] sm:$0xff]
        %v1205 = vld [vmem:[%s378 + $0x1590] sm:$0xff]
        %v1206 = vld [vmem:[%s378 + $0x1598] sm:$0xff]
        %v1207 = vld [vmem:[%s378 + $0x15a0] sm:$0xff]
        %v1208 = vld [vmem:[%s378 + $0x15a8] sm:$0xff]
        %v1209 = vld [vmem:[%s378 + $0x15b0] sm:$0xff]
        %v1210 = vld [vmem:[%s378 + $0x15b8] sm:$0xff]
        %v1211 = vld [vmem:[%s378 + $0x15c0] sm:$0xff]
        %v1212 = vld [vmem:[%s378 + $0x15c8] sm:$0xff]
        %v1213 = vld [vmem:[%s378 + $0x15d0] sm:$0xff]
        %v1214 = vld [vmem:[%s378 + $0x15d8] sm:$0xff]
        %v1215 = vld [vmem:[%s378 + $0x15e0] sm:$0xff]
        %v1216 = vld [vmem:[%s378 + $0x15e8] sm:$0xff]
        %v1217 = vld [vmem:[%s378 + $0x15f0] sm:$0xff]
        %v1218 = vld [vmem:[%s378 + $0x15f8] sm:$0xff]
        %v1219 = vld [vmem:[%s378 + $0x1600] sm:$0xff]
        %v1220 = vld [vmem:[%s378 + $0x1608] sm:$0xff]
        %v1221 = vld [vmem:[%s378 + $0x1610] sm:$0xff]
        %v1222 = vld [vmem:[%s378 + $0x1618] sm:$0xff]
        %v1223 = vld [vmem:[%s378 + $0x1620] sm:$0xff]
        %v1224 = vld [vmem:[%s378 + $0x1628] sm:$0xff]
        %v1225 = vld [vmem:[%s378 + $0x1630] sm:$0xff]
        %v1226 = vld [vmem:[%s378 + $0x1638] sm:$0xff]
        %v1227 = vld [vmem:[%s378 + $0x1640] sm:$0xff]
        %v1228 = vld [vmem:[%s378 + $0x1648] sm:$0xff]
        %v1229 = vld [vmem:[%s378 + $0x1650] sm:$0xff]
        %v1230 = vld [vmem:[%s378 + $0x1658] sm:$0xff]
        %v1231 = vld [vmem:[%s378 + $0x1660] sm:$0xff]
        %v1232 = vld [vmem:[%s378 + $0x1668] sm:$0xff]
        %v1233 = vld [vmem:[%s378 + $0x1670] sm:$0xff]
        %v1234 = vld [vmem:[%s378 + $0x1678] sm:$0xff]
        %v1235 = vld [vmem:[%s378 + $0x1680] sm:$0xff]
        %v1236 = vld [vmem:[%s378 + $0x1688] sm:$0xff]
        %v1237 = vld [vmem:[%s378 + $0x1690] sm:$0xff]
        %v1238 = vld [vmem:[%s378 + $0x1698] sm:$0xff]
        %v1239 = vld [vmem:[%s378 + $0x16a0] sm:$0xff]
        %v1240 = vld [vmem:[%s378 + $0x16a8] sm:$0xff]
        %v1241 = vld [vmem:[%s378 + $0x16b0] sm:$0xff]
        %v1242 = vld [vmem:[%s378 + $0x16b8] sm:$0xff]
        %v1243 = vld [vmem:[%s378 + $0x16c0] sm:$0xff]
        %v1244 = vld [vmem:[%s378 + $0x16c8] sm:$0xff]
        %v1245 = vld [vmem:[%s378 + $0x16d0] sm:$0xff]
        %v1246 = vld [vmem:[%s378 + $0x16d8] sm:$0xff]
        %v1247 = vld [vmem:[%s378 + $0x16e0] sm:$0xff]
        %v1248 = vld [vmem:[%s378 + $0x16e8] sm:$0xff]
        %v1249 = vld [vmem:[%s378 + $0x16f0] sm:$0xff]
        %v1250 = vld [vmem:[%s378 + $0x16f8] sm:$0xff]
        %v1251 = vld [vmem:[%s378 + $0x1700] sm:$0xff]
        %v1252 = vld [vmem:[%s378 + $0x1708] sm:$0xff]
        %v1253 = vld [vmem:[%s378 + $0x1710] sm:$0xff]
        %v1254 = vld [vmem:[%s378 + $0x1718] sm:$0xff]
        %v1255 = vld [vmem:[%s378 + $0x1720] sm:$0xff]
        %v1256 = vld [vmem:[%s378 + $0x1728] sm:$0xff]
        %v1257 = vld [vmem:[%s378 + $0x1730] sm:$0xff]
        %v1258 = vld [vmem:[%s378 + $0x1738] sm:$0xff]
        %v1259 = vld [vmem:[%s378 + $0x1740] sm:$0xff]
        %v1260 = vld [vmem:[%s378 + $0x1748] sm:$0xff]
        %v1261 = vld [vmem:[%s378 + $0x1750] sm:$0xff]
        %v1262 = vld [vmem:[%s378 + $0x1758] sm:$0xff]
        %v1263 = vld [vmem:[%s378 + $0x1760] sm:$0xff]
        %v1264 = vld [vmem:[%s378 + $0x1768] sm:$0xff]
        %v1265 = vld [vmem:[%s378 + $0x1770] sm:$0xff]
        %v1266 = vld [vmem:[%s378 + $0x1778] sm:$0xff]
        %v1267 = vld [vmem:[%s378 + $0x1780] sm:$0xff]
        %v1268 = vld [vmem:[%s378 + $0x1788] sm:$0xff]
        %v1269 = vld [vmem:[%s378 + $0x1790] sm:$0xff]
        %v1270 = vld [vmem:[%s378 + $0x1798] sm:$0xff]
        %v1271 = vld [vmem:[%s378 + $0x17a0] sm:$0xff]
        %v1272 = vld [vmem:[%s378 + $0x17a8] sm:$0xff]
        %v1273 = vld [vmem:[%s378 + $0x17b0] sm:$0xff]
        %v1274 = vld [vmem:[%s378 + $0x17b8] sm:$0xff]
        %v1275 = vld [vmem:[%s378 + $0x17c0] sm:$0xff]
        %v1276 = vld [vmem:[%s378 + $0x17c8] sm:$0xff]
        %v1277 = vld [vmem:[%s378 + $0x17d0] sm:$0xff]
        %v1278 = vld [vmem:[%s378 + $0x17d8] sm:$0xff]
        %v1279 = vld [vmem:[%s378 + $0x17e0] sm:$0xff]
        %v1280 = vld [vmem:[%s378 + $0x17e8] sm:$0xff]
        %v1281 = vld [vmem:[%s378 + $0x17f0] sm:$0xff]
        %v1282 = vld [vmem:[%s378 + $0x17f8] sm:$0xff]
        %v1283 = vld [vmem:[%s378 + $0x1800] sm:$0xff]
        %v1284 = vld [vmem:[%s378 + $0x1808] sm:$0xff]
        %v1285 = vld [vmem:[%s378 + $0x1810] sm:$0xff]
        %v1286 = vld [vmem:[%s378 + $0x1818] sm:$0xff]
        %v1287 = vld [vmem:[%s378 + $0x1820] sm:$0xff]
        %v1288 = vld [vmem:[%s378 + $0x1828] sm:$0xff]
        %v1289 = vld [vmem:[%s378 + $0x1830] sm:$0xff]
        %v1290 = vld [vmem:[%s378 + $0x1838] sm:$0xff]
        %v1291 = vld [vmem:[%s378 + $0x1840] sm:$0xff]
        %v1292 = vld [vmem:[%s378 + $0x1848] sm:$0xff]
        %v1293 = vld [vmem:[%s378 + $0x1850] sm:$0xff]
        %v1294 = vld [vmem:[%s378 + $0x1858] sm:$0xff]
        %v1295 = vld [vmem:[%s378 + $0x1860] sm:$0xff]
        %v1296 = vld [vmem:[%s378 + $0x1868] sm:$0xff]
        %v1297 = vld [vmem:[%s378 + $0x1870] sm:$0xff]
        %v1298 = vld [vmem:[%s378 + $0x1878] sm:$0xff]
        %v1299 = vld [vmem:[%s378 + $0x1880] sm:$0xff]
        %v1300 = vld [vmem:[%s378 + $0x1888] sm:$0xff]
        %v1301 = vld [vmem:[%s378 + $0x1890] sm:$0xff]
        %v1302 = vld [vmem:[%s378 + $0x1898] sm:$0xff]
        %v1303 = vld [vmem:[%s378 + $0x18a0] sm:$0xff]
        %v1304 = vld [vmem:[%s378 + $0x18a8] sm:$0xff]
        %v1305 = vld [vmem:[%s378 + $0x18b0] sm:$0xff]
        %v1306 = vld [vmem:[%s378 + $0x18b8] sm:$0xff]
        %v1307 = vld [vmem:[%s378 + $0x18c0] sm:$0xff]
        %v1308 = vld [vmem:[%s378 + $0x18c8] sm:$0xff]
        %v1309 = vld [vmem:[%s378 + $0x18d0] sm:$0xff]
        %v1310 = vld [vmem:[%s378 + $0x18d8] sm:$0xff]
        %v1311 = vld [vmem:[%s378 + $0x18e0] sm:$0xff]
        %v1312 = vld [vmem:[%s378 + $0x18e8] sm:$0xff]
        %v1313 = vld [vmem:[%s378 + $0x18f0] sm:$0xff]
        %v1314 = vld [vmem:[%s378 + $0x18f8] sm:$0xff]
        %v1315 = vld [vmem:[%s378 + $0x1900] sm:$0xff]
        %v1316 = vld [vmem:[%s378 + $0x1908] sm:$0xff]
        %v1317 = vld [vmem:[%s378 + $0x1910] sm:$0xff]
        %v1318 = vld [vmem:[%s378 + $0x1918] sm:$0xff]
        %v1319 = vld [vmem:[%s378 + $0x1920] sm:$0xff]
        %v1320 = vld [vmem:[%s378 + $0x1928] sm:$0xff]
        %v1321 = vld [vmem:[%s378 + $0x1930] sm:$0xff]
        %v1322 = vld [vmem:[%s378 + $0x1938] sm:$0xff]
        %v1323 = vld [vmem:[%s378 + $0x1940] sm:$0xff]
        %v1324 = vld [vmem:[%s378 + $0x1948] sm:$0xff]
        %v1325 = vld [vmem:[%s378 + $0x1950] sm:$0xff]
        %v1326 = vld [vmem:[%s378 + $0x1958] sm:$0xff]
        %v1327 = vld [vmem:[%s378 + $0x1960] sm:$0xff]
        %v1328 = vld [vmem:[%s378 + $0x1968] sm:$0xff]
        %v1329 = vld [vmem:[%s378 + $0x1970] sm:$0xff]
        %v1330 = vld [vmem:[%s378 + $0x1978] sm:$0xff]
        %v1331 = vld [vmem:[%s378 + $0x1980] sm:$0xff]
        %v1332 = vld [vmem:[%s378 + $0x1988] sm:$0xff]
        %v1333 = vld [vmem:[%s378 + $0x1990] sm:$0xff]
        %v1334 = vld [vmem:[%s378 + $0x1998] sm:$0xff]
        %v1335 = vld [vmem:[%s378 + $0x19a0] sm:$0xff]
        %v1336 = vld [vmem:[%s378 + $0x19a8] sm:$0xff]
        %v1337 = vld [vmem:[%s378 + $0x19b0] sm:$0xff]
        %v1338 = vld [vmem:[%s378 + $0x19b8] sm:$0xff]
        %v1339 = vld [vmem:[%s378 + $0x19c0] sm:$0xff]
        %v1340 = vld [vmem:[%s378 + $0x19c8] sm:$0xff]
        %v1341 = vld [vmem:[%s378 + $0x19d0] sm:$0xff]
        %v1342 = vld [vmem:[%s378 + $0x19d8] sm:$0xff]
        %v1343 = vld [vmem:[%s378 + $0x19e0] sm:$0xff]
        %v1344 = vld [vmem:[%s378 + $0x19e8] sm:$0xff]
        %v1345 = vld [vmem:[%s378 + $0x19f0] sm:$0xff]
        %v1346 = vld [vmem:[%s378 + $0x19f8] sm:$0xff]
        %v1347 = vld [vmem:[%s378 + $0x1a00] sm:$0xff]
        %v1348 = vld [vmem:[%s378 + $0x1a08] sm:$0xff]
        %v1349 = vld [vmem:[%s378 + $0x1a10] sm:$0xff]
        %v1350 = vld [vmem:[%s378 + $0x1a18] sm:$0xff]
        %v1351 = vld [vmem:[%s378 + $0x1a20] sm:$0xff]
        %v1352 = vld [vmem:[%s378 + $0x1a28] sm:$0xff]
        %v1353 = vld [vmem:[%s378 + $0x1a30] sm:$0xff]
        %v1354 = vld [vmem:[%s378 + $0x1a38] sm:$0xff]
        %v1355 = vld [vmem:[%s378 + $0x1a40] sm:$0xff]
        %v1356 = vld [vmem:[%s378 + $0x1a48] sm:$0xff]
        %v1357 = vld [vmem:[%s378 + $0x1a50] sm:$0xff]
        %v1358 = vld [vmem:[%s378 + $0x1a58] sm:$0xff]
        %v1359 = vld [vmem:[%s378 + $0x1a60] sm:$0xff]
        %v1360 = vld [vmem:[%s378 + $0x1a68] sm:$0xff]
        %v1361 = vld [vmem:[%s378 + $0x1a70] sm:$0xff]
        %v1362 = vld [vmem:[%s378 + $0x1a78] sm:$0xff]
        %v1363 = vld [vmem:[%s378 + $0x1a80] sm:$0xff]
        %v1364 = vld [vmem:[%s378 + $0x1a88] sm:$0xff]
        %v1365 = vld [vmem:[%s378 + $0x1a90] sm:$0xff]
        %v1366 = vld [vmem:[%s378 + $0x1a98] sm:$0xff]
        %v1367 = vld [vmem:[%s378 + $0x1aa0] sm:$0xff]
        %v1368 = vld [vmem:[%s378 + $0x1aa8] sm:$0xff]
        %v1369 = vld [vmem:[%s378 + $0x1ab0] sm:$0xff]
        %v1370 = vld [vmem:[%s378 + $0x1ab8] sm:$0xff]
        %v1371 = vld [vmem:[%s378 + $0x1ac0] sm:$0xff]
        %v1372 = vld [vmem:[%s378 + $0x1ac8] sm:$0xff]
        %v1373 = vld [vmem:[%s378 + $0x1ad0] sm:$0xff]
        %v1374 = vld [vmem:[%s378 + $0x1ad8] sm:$0xff]
        %v1375 = vld [vmem:[%s378 + $0x1ae0] sm:$0xff]
        %v1376 = vld [vmem:[%s378 + $0x1ae8] sm:$0xff]
        %v1377 = vld [vmem:[%s378 + $0x1af0] sm:$0xff]
        %v1378 = vld [vmem:[%s378 + $0x1af8] sm:$0xff]
        %v1379 = vld [vmem:[%s378 + $0x1b00] sm:$0xff]
        %v1380 = vld [vmem:[%s378 + $0x1b08] sm:$0xff]
        %v1381 = vld [vmem:[%s378 + $0x1b10] sm:$0xff]
        %v1382 = vld [vmem:[%s378 + $0x1b18] sm:$0xff]
        %v1383 = vld [vmem:[%s378 + $0x1b20] sm:$0xff]
        %v1384 = vld [vmem:[%s378 + $0x1b28] sm:$0xff]
        %v1385 = vld [vmem:[%s378 + $0x1b30] sm:$0xff]
        %v1386 = vld [vmem:[%s378 + $0x1b38] sm:$0xff]
        %v1387 = vld [vmem:[%s378 + $0x1b40] sm:$0xff]
        %v1388 = vld [vmem:[%s378 + $0x1b48] sm:$0xff]
        %v1389 = vld [vmem:[%s378 + $0x1b50] sm:$0xff]
        %v1390 = vld [vmem:[%s378 + $0x1b58] sm:$0xff]
        %v1391 = vld [vmem:[%s378 + $0x1b60] sm:$0xff]
        %v1392 = vld [vmem:[%s378 + $0x1b68] sm:$0xff]
        %v1393 = vld [vmem:[%s378 + $0x1b70] sm:$0xff]
        %v1394 = vld [vmem:[%s378 + $0x1b78] sm:$0xff]
        %v1395 = vld [vmem:[%s378 + $0x1b80] sm:$0xff]
        %v1396 = vld [vmem:[%s378 + $0x1b88] sm:$0xff]
        %v1397 = vld [vmem:[%s378 + $0x1b90] sm:$0xff]
        %v1398 = vld [vmem:[%s378 + $0x1b98] sm:$0xff]
        %v1399 = vld [vmem:[%s378 + $0x1ba0] sm:$0xff]
        %v1400 = vld [vmem:[%s378 + $0x1ba8] sm:$0xff]
        %v1401 = vld [vmem:[%s378 + $0x1bb0] sm:$0xff]
        %v1402 = vld [vmem:[%s378 + $0x1bb8] sm:$0xff]
        %v1403 = vld [vmem:[%s378 + $0x1bc0] sm:$0xff]
        %v1404 = vld [vmem:[%s378 + $0x1bc8] sm:$0xff]
        %v1405 = vld [vmem:[%s378 + $0x1bd0] sm:$0xff]
        %v1406 = vld [vmem:[%s378 + $0x1bd8] sm:$0xff]
        %v1407 = vld [vmem:[%s378 + $0x1be0] sm:$0xff]
        %v1408 = vld [vmem:[%s378 + $0x1be8] sm:$0xff]
        %v1409 = vld [vmem:[%s378 + $0x1bf0] sm:$0xff]
        %v1410 = vld [vmem:[%s378 + $0x1bf8] sm:$0xff]
        %v1411 = vld [vmem:[%s378 + $0x1c00] sm:$0xff]
        %v1412 = vld [vmem:[%s378 + $0x1c08] sm:$0xff]
        %v1413 = vld [vmem:[%s378 + $0x1c10] sm:$0xff]
        %v1414 = vld [vmem:[%s378 + $0x1c18] sm:$0xff]
        %v1415 = vld [vmem:[%s378 + $0x1c20] sm:$0xff]
        %v1416 = vld [vmem:[%s378 + $0x1c28] sm:$0xff]
        %v1417 = vld [vmem:[%s378 + $0x1c30] sm:$0xff]
        %v1418 = vld [vmem:[%s378 + $0x1c38] sm:$0xff]
        %v1419 = vld [vmem:[%s378 + $0x1c40] sm:$0xff]
        %v1420 = vld [vmem:[%s378 + $0x1c48] sm:$0xff]
        %v1421 = vld [vmem:[%s378 + $0x1c50] sm:$0xff]
        %v1422 = vld [vmem:[%s378 + $0x1c58] sm:$0xff]
        %v1423 = vld [vmem:[%s378 + $0x1c60] sm:$0xff]
        %v1424 = vld [vmem:[%s378 + $0x1c68] sm:$0xff]
        %v1425 = vld [vmem:[%s378 + $0x1c70] sm:$0xff]
        %v1426 = vld [vmem:[%s378 + $0x1c78] sm:$0xff]
        %v1427 = vld [vmem:[%s378 + $0x1c80] sm:$0xff]
        %v1428 = vld [vmem:[%s378 + $0x1c88] sm:$0xff]
        %v1429 = vld [vmem:[%s378 + $0x1c90] sm:$0xff]
        %v1430 = vld [vmem:[%s378 + $0x1c98] sm:$0xff]
        %v1431 = vld [vmem:[%s378 + $0x1ca0] sm:$0xff]
        %v1432 = vld [vmem:[%s378 + $0x1ca8] sm:$0xff]
        %v1433 = vld [vmem:[%s378 + $0x1cb0] sm:$0xff]
        %v1434 = vld [vmem:[%s378 + $0x1cb8] sm:$0xff]
        %v1435 = vld [vmem:[%s378 + $0x1cc0] sm:$0xff]
        %v1436 = vld [vmem:[%s378 + $0x1cc8] sm:$0xff]
        %v1437 = vld [vmem:[%s378 + $0x1cd0] sm:$0xff]
        %v1438 = vld [vmem:[%s378 + $0x1cd8] sm:$0xff]
        %v1439 = vld [vmem:[%s378 + $0x1ce0] sm:$0xff]
        %v1440 = vld [vmem:[%s378 + $0x1ce8] sm:$0xff]
        %v1441 = vld [vmem:[%s378 + $0x1cf0] sm:$0xff]
        %v1442 = vld [vmem:[%s378 + $0x1cf8] sm:$0xff]
        %v1443 = vld [vmem:[%s378 + $0x1d00] sm:$0xff]
        %v1444 = vld [vmem:[%s378 + $0x1d08] sm:$0xff]
        %v1445 = vld [vmem:[%s378 + $0x1d10] sm:$0xff]
        %v1446 = vld [vmem:[%s378 + $0x1d18] sm:$0xff]
        %v1447 = vld [vmem:[%s378 + $0x1d20] sm:$0xff]
        %v1448 = vld [vmem:[%s378 + $0x1d28] sm:$0xff]
        %v1449 = vld [vmem:[%s378 + $0x1d30] sm:$0xff]
        %v1450 = vld [vmem:[%s378 + $0x1d38] sm:$0xff]
        %v1451 = vld [vmem:[%s378 + $0x1d40] sm:$0xff]
        %v1452 = vld [vmem:[%s378 + $0x1d48] sm:$0xff]
        %v1453 = vld [vmem:[%s378 + $0x1d50] sm:$0xff]
        %v1454 = vld [vmem:[%s378 + $0x1d58] sm:$0xff]
        %v1455 = vld [vmem:[%s378 + $0x1d60] sm:$0xff]
        %v1456 = vld [vmem:[%s378 + $0x1d68] sm:$0xff]
        %v1457 = vld [vmem:[%s378 + $0x1d70] sm:$0xff]
        %v1458 = vld [vmem:[%s378 + $0x1d78] sm:$0xff]
        %v1459 = vld [vmem:[%s378 + $0x1d80] sm:$0xff]
        %v1460 = vld [vmem:[%s378 + $0x1d88] sm:$0xff]
        %v1461 = vld [vmem:[%s378 + $0x1d90] sm:$0xff]
        %v1462 = vld [vmem:[%s378 + $0x1d98] sm:$0xff]
        %v1463 = vld [vmem:[%s378 + $0x1da0] sm:$0xff]
        %v1464 = vld [vmem:[%s378 + $0x1da8] sm:$0xff]
        %v1465 = vld [vmem:[%s378 + $0x1db0] sm:$0xff]
        %v1466 = vld [vmem:[%s378 + $0x1db8] sm:$0xff]
        %v1467 = vld [vmem:[%s378 + $0x1dc0] sm:$0xff]
        %v1468 = vld [vmem:[%s378 + $0x1dc8] sm:$0xff]
        %v1469 = vld [vmem:[%s378 + $0x1dd0] sm:$0xff]
        %v1470 = vld [vmem:[%s378 + $0x1dd8] sm:$0xff]
        %v1471 = vld [vmem:[%s378 + $0x1de0] sm:$0xff]
        %v1472 = vld [vmem:[%s378 + $0x1de8] sm:$0xff]
        %v1473 = vld [vmem:[%s378 + $0x1df0] sm:$0xff]
        %v1474 = vld [vmem:[%s378 + $0x1df8] sm:$0xff]
        %v1475 = vld [vmem:[%s378 + $0x1e00] sm:$0xff]
        %v1476 = vld [vmem:[%s378 + $0x1e08] sm:$0xff]
        %v1477 = vld [vmem:[%s378 + $0x1e10] sm:$0xff]
        %v1478 = vld [vmem:[%s378 + $0x1e18] sm:$0xff]
        %v1479 = vld [vmem:[%s378 + $0x1e20] sm:$0xff]
        %v1480 = vld [vmem:[%s378 + $0x1e28] sm:$0xff]
        %v1481 = vld [vmem:[%s378 + $0x1e30] sm:$0xff]
        %v1482 = vld [vmem:[%s378 + $0x1e38] sm:$0xff]
        %v1483 = vld [vmem:[%s378 + $0x1e40] sm:$0xff]
        %v1484 = vld [vmem:[%s378 + $0x1e48] sm:$0xff]
        %v1485 = vld [vmem:[%s378 + $0x1e50] sm:$0xff]
        %v1486 = vld [vmem:[%s378 + $0x1e58] sm:$0xff]
        %v1487 = vld [vmem:[%s378 + $0x1e60] sm:$0xff]
        %v1488 = vld [vmem:[%s378 + $0x1e68] sm:$0xff]
        %v1489 = vld [vmem:[%s378 + $0x1e70] sm:$0xff]
        %v1490 = vld [vmem:[%s378 + $0x1e78] sm:$0xff]
        %v1491 = vld [vmem:[%s378 + $0x1e80] sm:$0xff]
        %v1492 = vld [vmem:[%s378 + $0x1e88] sm:$0xff]
        %v1493 = vld [vmem:[%s378 + $0x1e90] sm:$0xff]
        %v1494 = vld [vmem:[%s378 + $0x1e98] sm:$0xff]
        %v1495 = vld [vmem:[%s378 + $0x1ea0] sm:$0xff]
        %v1496 = vld [vmem:[%s378 + $0x1ea8] sm:$0xff]
        %v1497 = vld [vmem:[%s378 + $0x1eb0] sm:$0xff]
        %v1498 = vld [vmem:[%s378 + $0x1eb8] sm:$0xff]
        %v1499 = vld [vmem:[%s378 + $0x1ec0] sm:$0xff]
        %v1500 = vld [vmem:[%s378 + $0x1ec8] sm:$0xff]
        %v1501 = vld [vmem:[%s378 + $0x1ed0] sm:$0xff]
        %v1502 = vld [vmem:[%s378 + $0x1ed8] sm:$0xff]
        %v1503 = vld [vmem:[%s378 + $0x1ee0] sm:$0xff]
        %v1504 = vld [vmem:[%s378 + $0x1ee8] sm:$0xff]
        %v1505 = vld [vmem:[%s378 + $0x1ef0] sm:$0xff]
        %v1506 = vld [vmem:[%s378 + $0x1ef8] sm:$0xff]
        %v1507 = vld [vmem:[%s378 + $0x1f00] sm:$0xff]
        %v1508 = vld [vmem:[%s378 + $0x1f08] sm:$0xff]
        %v1509 = vld [vmem:[%s378 + $0x1f10] sm:$0xff]
        %v1510 = vld [vmem:[%s378 + $0x1f18] sm:$0xff]
        %v1511 = vld [vmem:[%s378 + $0x1f20] sm:$0xff]
        %v1512 = vld [vmem:[%s378 + $0x1f28] sm:$0xff]
        %v1513 = vld [vmem:[%s378 + $0x1f30] sm:$0xff]
        %v1514 = vld [vmem:[%s378 + $0x1f38] sm:$0xff]
        %v1515 = vld [vmem:[%s378 + $0x1f40] sm:$0xff]
        %v1516 = vld [vmem:[%s378 + $0x1f48] sm:$0xff]
        %v1517 = vld [vmem:[%s378 + $0x1f50] sm:$0xff]
        %v1518 = vld [vmem:[%s378 + $0x1f58] sm:$0xff]
        %v1519 = vld [vmem:[%s378 + $0x1f60] sm:$0xff]
        %v1520 = vld [vmem:[%s378 + $0x1f68] sm:$0xff]
        %v1521 = vld [vmem:[%s378 + $0x1f70] sm:$0xff]
        %v1522 = vld [vmem:[%s378 + $0x1f78] sm:$0xff]
        %v1523 = vld [vmem:[%s378 + $0x1f80] sm:$0xff]
        %v1524 = vld [vmem:[%s378 + $0x1f88] sm:$0xff]
        %v1525 = vld [vmem:[%s378 + $0x1f90] sm:$0xff]
        %v1526 = vld [vmem:[%s378 + $0x1f98] sm:$0xff]
        %v1527 = vld [vmem:[%s378 + $0x1fa0] sm:$0xff]
        %v1528 = vld [vmem:[%s378 + $0x1fa8] sm:$0xff]
        %v1529 = vld [vmem:[%s378 + $0x1fb0] sm:$0xff]
        %v1530 = vld [vmem:[%s378 + $0x1fb8] sm:$0xff]
        %v1531 = vld [vmem:[%s378 + $0x1fc0] sm:$0xff]
        %v1532 = vld [vmem:[%s378 + $0x1fc8] sm:$0xff]
        %v1533 = vld [vmem:[%s378 + $0x1fd0] sm:$0xff]
        %v1534 = vld [vmem:[%s378 + $0x1fd8] sm:$0xff]
        %v1535 = vld [vmem:[%s378 + $0x1fe0] sm:$0xff]
        %v1536 = vld [vmem:[%s378 + $0x1fe8] sm:$0xff]
        %v1537 = vld [vmem:[%s378 + $0x1ff0] sm:$0xff]
        %v1538 = vld [vmem:[%s378 + $0x1ff8] sm:$0xff]
        %v1539 = vld [vmem:[%s378 + $0x2000] sm:$0xff]
        %v1540 = vld [vmem:[%s378 + $0x2008] sm:$0xff]
        %v1541 = vld [vmem:[%s378 + $0x2010] sm:$0xff]
        %v1542 = vld [vmem:[%s378 + $0x2018] sm:$0xff]
        %v1543 = vld [vmem:[%s378 + $0x2020] sm:$0xff]
        %v1544 = vld [vmem:[%s378 + $0x2028] sm:$0xff]
        %v1545 = vld [vmem:[%s378 + $0x2030] sm:$0xff]
        %v1546 = vld [vmem:[%s378 + $0x2038] sm:$0xff]
        %v1547 = vld [vmem:[%s378 + $0x2040] sm:$0xff]
        %v1548 = vld [vmem:[%s378 + $0x2048] sm:$0xff]
        %v1549 = vld [vmem:[%s378 + $0x2050] sm:$0xff]
        %v1550 = vld [vmem:[%s378 + $0x2058] sm:$0xff]
        %v1551 = vld [vmem:[%s378 + $0x2060] sm:$0xff]
        %v1552 = vld [vmem:[%s378 + $0x2068] sm:$0xff]
        %v1553 = vld [vmem:[%s378 + $0x2070] sm:$0xff]
        %v1554 = vld [vmem:[%s378 + $0x2078] sm:$0xff]
        %v1555 = vld [vmem:[%s378 + $0x2080] sm:$0xff]
        %v1556 = vld [vmem:[%s378 + $0x2088] sm:$0xff]
        %v1557 = vld [vmem:[%s378 + $0x2090] sm:$0xff]
        %v1558 = vld [vmem:[%s378 + $0x2098] sm:$0xff]
        %v1559 = vld [vmem:[%s378 + $0x20a0] sm:$0xff]
        %v1560 = vld [vmem:[%s378 + $0x20a8] sm:$0xff]
        %v1561 = vld [vmem:[%s378 + $0x20b0] sm:$0xff]
        %v1562 = vld [vmem:[%s378 + $0x20b8] sm:$0xff]
        %v1563 = vld [vmem:[%s378 + $0x20c0] sm:$0xff]
        %v1564 = vld [vmem:[%s378 + $0x20c8] sm:$0xff]
        %v1565 = vld [vmem:[%s378 + $0x20d0] sm:$0xff]
        %v1566 = vld [vmem:[%s378 + $0x20d8] sm:$0xff]
        %v1567 = vld [vmem:[%s378 + $0x20e0] sm:$0xff]
        %v1568 = vld [vmem:[%s378 + $0x20e8] sm:$0xff]
        %v1569 = vld [vmem:[%s378 + $0x20f0] sm:$0xff]
        %v1570 = vld [vmem:[%s378 + $0x20f8] sm:$0xff]
        %v1571 = vld [vmem:[%s378 + $0x2100] sm:$0xff]
        %v1572 = vld [vmem:[%s378 + $0x2108] sm:$0xff]
        %v1573 = vld [vmem:[%s378 + $0x2110] sm:$0xff]
        %v1574 = vld [vmem:[%s378 + $0x2118] sm:$0xff]
        %v1575 = vld [vmem:[%s378 + $0x2120] sm:$0xff]
        %v1576 = vld [vmem:[%s378 + $0x2128] sm:$0xff]
        %v1577 = vld [vmem:[%s378 + $0x2130] sm:$0xff]
        %v1578 = vld [vmem:[%s378 + $0x2138] sm:$0xff]
        %v1579 = vld [vmem:[%s378 + $0x2140] sm:$0xff]
        %v1580 = vld [vmem:[%s378 + $0x2148] sm:$0xff]
        %v1581 = vld [vmem:[%s378 + $0x2150] sm:$0xff]
        %v1582 = vld [vmem:[%s378 + $0x2158] sm:$0xff]
        %v1583 = vld [vmem:[%s378 + $0x2160] sm:$0xff]
        %v1584 = vld [vmem:[%s378 + $0x2168] sm:$0xff]
        %v1585 = vld [vmem:[%s378 + $0x2170] sm:$0xff]
        %v1586 = vld [vmem:[%s378 + $0x2178] sm:$0xff]
        %v1587 = vld [vmem:[%s378 + $0x2180] sm:$0xff]
        %v1588 = vld [vmem:[%s378 + $0x2188] sm:$0xff]
        %v1589 = vld [vmem:[%s378 + $0x2190] sm:$0xff]
        %v1590 = vld [vmem:[%s378 + $0x2198] sm:$0xff]
        %v1591 = vld [vmem:[%s378 + $0x21a0] sm:$0xff]
        %v1592 = vld [vmem:[%s378 + $0x21a8] sm:$0xff]
        %v1593 = vld [vmem:[%s378 + $0x21b0] sm:$0xff]
        %v1594 = vld [vmem:[%s378 + $0x21b8] sm:$0xff]
        %v1595 = vld [vmem:[%s378 + $0x21c0] sm:$0xff]
        %v1596 = vld [vmem:[%s378 + $0x21c8] sm:$0xff]
        %v1597 = vld [vmem:[%s378 + $0x21d0] sm:$0xff]
        %v1598 = vld [vmem:[%s378 + $0x21d8] sm:$0xff]
        %v1599 = vld [vmem:[%s378 + $0x21e0] sm:$0xff]
        %v1600 = vld [vmem:[%s378 + $0x21e8] sm:$0xff]
        %v1601 = vld [vmem:[%s378 + $0x21f0] sm:$0xff]
        %v1602 = vld [vmem:[%s378 + $0x21f8] sm:$0xff]
        %v1603 = vld [vmem:[%s378 + $0x2200] sm:$0xff]
        %v1604 = vld [vmem:[%s378 + $0x2208] sm:$0xff]
        %v1605 = vld [vmem:[%s378 + $0x2210] sm:$0xff]
        %v1606 = vld [vmem:[%s378 + $0x2218] sm:$0xff]
        %v1607 = vld [vmem:[%s378 + $0x2220] sm:$0xff]
        %v1608 = vld [vmem:[%s378 + $0x2228] sm:$0xff]
        %v1609 = vld [vmem:[%s378 + $0x2230] sm:$0xff]
        %v1610 = vld [vmem:[%s378 + $0x2238] sm:$0xff]
        %v1611 = vld [vmem:[%s378 + $0x2240] sm:$0xff]
        %v1612 = vld [vmem:[%s378 + $0x2248] sm:$0xff]
        %v1613 = vld [vmem:[%s378 + $0x2250] sm:$0xff]
        %v1614 = vld [vmem:[%s378 + $0x2258] sm:$0xff]
        %v1615 = vld [vmem:[%s378 + $0x2260] sm:$0xff]
        %v1616 = vld [vmem:[%s378 + $0x2268] sm:$0xff]
        %v1617 = vld [vmem:[%s378 + $0x2270] sm:$0xff]
        %v1618 = vld [vmem:[%s378 + $0x2278] sm:$0xff]
        %v1619 = vld [vmem:[%s378 + $0x2280] sm:$0xff]
        %v1620 = vld [vmem:[%s378 + $0x2288] sm:$0xff]
        %v1621 = vld [vmem:[%s378 + $0x2290] sm:$0xff]
        %v1622 = vld [vmem:[%s378 + $0x2298] sm:$0xff]
        %v1623 = vld [vmem:[%s378 + $0x22a0] sm:$0xff]
        %v1624 = vld [vmem:[%s378 + $0x22a8] sm:$0xff]
        %v1625 = vld [vmem:[%s378 + $0x22b0] sm:$0xff]
        %v1626 = vld [vmem:[%s378 + $0x22b8] sm:$0xff]
        %v1627 = vld [vmem:[%s378 + $0x22c0] sm:$0xff]
        %v1628 = vld [vmem:[%s378 + $0x22c8] sm:$0xff]
        %v1629 = vld [vmem:[%s378 + $0x22d0] sm:$0xff]
        %v1630 = vld [vmem:[%s378 + $0x22d8] sm:$0xff]
        %v1631 = vld [vmem:[%s378 + $0x22e0] sm:$0xff]
        %v1632 = vld [vmem:[%s378 + $0x22e8] sm:$0xff]
        %v1633 = vld [vmem:[%s378 + $0x22f0] sm:$0xff]
        %v1634 = vld [vmem:[%s378 + $0x22f8] sm:$0xff]
        %v1635 = vld [vmem:[%s378 + $0x2300] sm:$0xff]
        %v1636 = vld [vmem:[%s378 + $0x2308] sm:$0xff]
        %v1637 = vld [vmem:[%s378 + $0x2310] sm:$0xff]
        %v1638 = vld [vmem:[%s378 + $0x2318] sm:$0xff]
        %v1639 = vld [vmem:[%s378 + $0x2320] sm:$0xff]
        %v1640 = vld [vmem:[%s378 + $0x2328] sm:$0xff]
        %v1641 = vld [vmem:[%s378 + $0x2330] sm:$0xff]
        %v1642 = vld [vmem:[%s378 + $0x2338] sm:$0xff]
        %v1643 = vld [vmem:[%s378 + $0x2340] sm:$0xff]
        %v1644 = vld [vmem:[%s378 + $0x2348] sm:$0xff]
        %v1645 = vld [vmem:[%s378 + $0x2350] sm:$0xff]
        %v1646 = vld [vmem:[%s378 + $0x2358] sm:$0xff]
        %v1647 = vld [vmem:[%s378 + $0x2360] sm:$0xff]
        %v1648 = vld [vmem:[%s378 + $0x2368] sm:$0xff]
        %v1649 = vld [vmem:[%s378 + $0x2370] sm:$0xff]
        %v1650 = vld [vmem:[%s378 + $0x2378] sm:$0xff]
        %v1651 = vld [vmem:[%s378 + $0x2380] sm:$0xff]
        %v1652 = vld [vmem:[%s378 + $0x2388] sm:$0xff]
        %v1653 = vld [vmem:[%s378 + $0x2390] sm:$0xff]
        %v1654 = vld [vmem:[%s378 + $0x2398] sm:$0xff]
        %v1655 = vld [vmem:[%s378 + $0x23a0] sm:$0xff]
        %v1656 = vld [vmem:[%s378 + $0x23a8] sm:$0xff]
        %v1657 = vld [vmem:[%s378 + $0x23b0] sm:$0xff]
        %v1658 = vld [vmem:[%s378 + $0x23b8] sm:$0xff]
        %v1659 = vld [vmem:[%s378 + $0x23c0] sm:$0xff]
        %v1660 = vld [vmem:[%s378 + $0x23c8] sm:$0xff]
        %v1661 = vld [vmem:[%s378 + $0x23d0] sm:$0xff]
        %v1662 = vld [vmem:[%s378 + $0x23d8] sm:$0xff]
        %v1663 = vld [vmem:[%s378 + $0x23e0] sm:$0xff]
        %v1664 = vld [vmem:[%s378 + $0x23e8] sm:$0xff]
        %v1665 = vld [vmem:[%s378 + $0x23f0] sm:$0xff]
        %v1666 = vld [vmem:[%s378 + $0x23f8] sm:$0xff]
        %v1667 = vld [vmem:[%s378 + $0x2400] sm:$0xff]
        %v1668 = vld [vmem:[%s378 + $0x2408] sm:$0xff]
        %v1669 = vld [vmem:[%s378 + $0x2410] sm:$0xff]
        %v1670 = vld [vmem:[%s378 + $0x2418] sm:$0xff]
        %v1671 = vld [vmem:[%s378 + $0x2420] sm:$0xff]
        %v1672 = vld [vmem:[%s378 + $0x2428] sm:$0xff]
        %v1673 = vld [vmem:[%s378 + $0x2430] sm:$0xff]
        %v1674 = vld [vmem:[%s378 + $0x2438] sm:$0xff]
        %v1675 = vld [vmem:[%s378 + $0x2440] sm:$0xff]
        %v1676 = vld [vmem:[%s378 + $0x2448] sm:$0xff]
        %v1677 = vld [vmem:[%s378 + $0x2450] sm:$0xff]
        %v1678 = vld [vmem:[%s378 + $0x2458] sm:$0xff]
        %v1679 = vld [vmem:[%s378 + $0x2460] sm:$0xff]
        %v1680 = vld [vmem:[%s378 + $0x2468] sm:$0xff]
        %v1681 = vld [vmem:[%s378 + $0x2470] sm:$0xff]
        %v1682 = vld [vmem:[%s378 + $0x2478] sm:$0xff]
        %v1683 = vld [vmem:[%s378 + $0x2480] sm:$0xff]
        %v1684 = vld [vmem:[%s378 + $0x2488] sm:$0xff]
        %v1685 = vld [vmem:[%s378 + $0x2490] sm:$0xff]
        %v1686 = vld [vmem:[%s378 + $0x2498] sm:$0xff]
        %v1687 = vld [vmem:[%s378 + $0x24a0] sm:$0xff]
        %v1688 = vld [vmem:[%s378 + $0x24a8] sm:$0xff]
        %v1689 = vld [vmem:[%s378 + $0x24b0] sm:$0xff]
        %v1690 = vld [vmem:[%s378 + $0x24b8] sm:$0xff]
        %v1691 = vld [vmem:[%s378 + $0x24c0] sm:$0xff]
        %v1692 = vld [vmem:[%s378 + $0x24c8] sm:$0xff]
        %v1693 = vld [vmem:[%s378 + $0x24d0] sm:$0xff]
        %v1694 = vld [vmem:[%s378 + $0x24d8] sm:$0xff]
        %v1695 = vld [vmem:[%s378 + $0x24e0] sm:$0xff]
        %v1696 = vld [vmem:[%s378 + $0x24e8] sm:$0xff]
        %v1697 = vld [vmem:[%s378 + $0x24f0] sm:$0xff]
        %v1698 = vld [vmem:[%s378 + $0x24f8] sm:$0xff]
        %v1699 = vld [vmem:[%s378 + $0x2500] sm:$0xff]
        %v1700 = vld [vmem:[%s378 + $0x2508] sm:$0xff]
        %v1701 = vld [vmem:[%s378 + $0x2510] sm:$0xff]
        %v1702 = vld [vmem:[%s378 + $0x2518] sm:$0xff]
        %v1703 = vld [vmem:[%s378 + $0x2520] sm:$0xff]
        %v1704 = vld [vmem:[%s378 + $0x2528] sm:$0xff]
        %v1705 = vld [vmem:[%s378 + $0x2530] sm:$0xff]
        %v1706 = vld [vmem:[%s378 + $0x2538] sm:$0xff]
        %v1707 = vld [vmem:[%s378 + $0x2540] sm:$0xff]
        %v1708 = vld [vmem:[%s378 + $0x2548] sm:$0xff]
        %v1709 = vld [vmem:[%s378 + $0x2550] sm:$0xff]
        %v1710 = vld [vmem:[%s378 + $0x2558] sm:$0xff]
        %v1711 = vld [vmem:[%s378 + $0x2560] sm:$0xff]
        %v1712 = vld [vmem:[%s378 + $0x2568] sm:$0xff]
        %v1713 = vld [vmem:[%s378 + $0x2570] sm:$0xff]
        %v1714 = vld [vmem:[%s378 + $0x2578] sm:$0xff]
        %v1715 = vld [vmem:[%s378 + $0x2580] sm:$0xff]
        %v1716 = vld [vmem:[%s378 + $0x2588] sm:$0xff]
        %v1717 = vld [vmem:[%s378 + $0x2590] sm:$0xff]
        %v1718 = vld [vmem:[%s378 + $0x2598] sm:$0xff]
        %v1719 = vld [vmem:[%s378 + $0x25a0] sm:$0xff]
        %v1720 = vld [vmem:[%s378 + $0x25a8] sm:$0xff]
        %v1721 = vld [vmem:[%s378 + $0x25b0] sm:$0xff]
        %v1722 = vld [vmem:[%s378 + $0x25b8] sm:$0xff]
        %v1723 = vld [vmem:[%s378 + $0x25c0] sm:$0xff]
        %v1724 = vld [vmem:[%s378 + $0x25c8] sm:$0xff]
        %v1725 = vld [vmem:[%s378 + $0x25d0] sm:$0xff]
        %v1726 = vld [vmem:[%s378 + $0x25d8] sm:$0xff]
        %v1727 = vld [vmem:[%s378 + $0x25e0] sm:$0xff]
        %v1728 = vld [vmem:[%s378 + $0x25e8] sm:$0xff]
        %v1729 = vld [vmem:[%s378 + $0x25f0] sm:$0xff]
        %v1730 = vld [vmem:[%s378 + $0x25f8] sm:$0xff]
        %v1731 = vld [vmem:[%s378 + $0x2600] sm:$0xff]
        %v1732 = vld [vmem:[%s378 + $0x2608] sm:$0xff]
        %v1733 = vld [vmem:[%s378 + $0x2610] sm:$0xff]
        %v1734 = vld [vmem:[%s378 + $0x2618] sm:$0xff]
        %v1735 = vld [vmem:[%s378 + $0x2620] sm:$0xff]
        %v1736 = vld [vmem:[%s378 + $0x2628] sm:$0xff]
        %v1737 = vld [vmem:[%s378 + $0x2630] sm:$0xff]
        %v1738 = vld [vmem:[%s378 + $0x2638] sm:$0xff]
        %v1739 = vld [vmem:[%s378 + $0x2640] sm:$0xff]
        %v1740 = vld [vmem:[%s378 + $0x2648] sm:$0xff]
        %v1741 = vld [vmem:[%s378 + $0x2650] sm:$0xff]
        %v1742 = vld [vmem:[%s378 + $0x2658] sm:$0xff]
        %v1743 = vld [vmem:[%s378 + $0x2660] sm:$0xff]
        %v1744 = vld [vmem:[%s378 + $0x2668] sm:$0xff]
        %v1745 = vld [vmem:[%s378 + $0x2670] sm:$0xff]
        %v1746 = vld [vmem:[%s378 + $0x2678] sm:$0xff]
        %v1747 = vld [vmem:[%s378 + $0x2680] sm:$0xff]
        %v1748 = vld [vmem:[%s378 + $0x2688] sm:$0xff]
        %v1749 = vld [vmem:[%s378 + $0x2690] sm:$0xff]
        %v1750 = vld [vmem:[%s378 + $0x2698] sm:$0xff]
        %v1751 = vld [vmem:[%s378 + $0x26a0] sm:$0xff]
        %v1752 = vld [vmem:[%s378 + $0x26a8] sm:$0xff]
        %v1753 = vld [vmem:[%s378 + $0x26b0] sm:$0xff]
        %v1754 = vld [vmem:[%s378 + $0x26b8] sm:$0xff]
        %v1755 = vld [vmem:[%s378 + $0x26c0] sm:$0xff]
        %v1756 = vld [vmem:[%s378 + $0x26c8] sm:$0xff]
        %v1757 = vld [vmem:[%s378 + $0x26d0] sm:$0xff]
        %v1758 = vld [vmem:[%s378 + $0x26d8] sm:$0xff]
        %v1759 = vld [vmem:[%s378 + $0x26e0] sm:$0xff]
        %v1760 = vld [vmem:[%s378 + $0x26e8] sm:$0xff]
        %v1761 = vld [vmem:[%s378 + $0x26f0] sm:$0xff]
        %v1762 = vld [vmem:[%s378 + $0x26f8] sm:$0xff]
        %v1763 = vld [vmem:[%s378 + $0x2700] sm:$0xff]
        %v1764 = vld [vmem:[%s378 + $0x2708] sm:$0xff]
        %v1765 = vld [vmem:[%s378 + $0x2710] sm:$0xff]
        %v1766 = vld [vmem:[%s378 + $0x2718] sm:$0xff]
        %v1767 = vld [vmem:[%s378 + $0x2720] sm:$0xff]
        %v1768 = vld [vmem:[%s378 + $0x2728] sm:$0xff]
        %v1769 = vld [vmem:[%s378 + $0x2730] sm:$0xff]
        %v1770 = vld [vmem:[%s378 + $0x2738] sm:$0xff]
        %v1771 = vld [vmem:[%s378 + $0x2740] sm:$0xff]
        %v1772 = vld [vmem:[%s378 + $0x2748] sm:$0xff]
        %v1773 = vld [vmem:[%s378 + $0x2750] sm:$0xff]
        %v1774 = vld [vmem:[%s378 + $0x2758] sm:$0xff]
        %v1775 = vld [vmem:[%s378 + $0x2760] sm:$0xff]
        %v1776 = vld [vmem:[%s378 + $0x2768] sm:$0xff]
        %v1777 = vld [vmem:[%s378 + $0x2770] sm:$0xff]
        %v1778 = vld [vmem:[%s378 + $0x2778] sm:$0xff]
        %v1779 = vld [vmem:[%s378 + $0x2780] sm:$0xff]
        %v1780 = vld [vmem:[%s378 + $0x2788] sm:$0xff]
        %v1781 = vld [vmem:[%s378 + $0x2790] sm:$0xff]
        %v1782 = vld [vmem:[%s378 + $0x2798] sm:$0xff]
        %v1783 = vld [vmem:[%s378 + $0x27a0] sm:$0xff]
        %v1784 = vld [vmem:[%s378 + $0x27a8] sm:$0xff]
        %v1785 = vld [vmem:[%s378 + $0x27b0] sm:$0xff]
        %v1786 = vld [vmem:[%s378 + $0x27b8] sm:$0xff]
        %v1787 = vld [vmem:[%s378 + $0x27c0] sm:$0xff]
        %v1788 = vld [vmem:[%s378 + $0x27c8] sm:$0xff]
        %v1789 = vld [vmem:[%s378 + $0x27d0] sm:$0xff]
        %v1790 = vld [vmem:[%s378 + $0x27d8] sm:$0xff]
        %v1791 = vld [vmem:[%s378 + $0x27e0] sm:$0xff]
        %v1792 = vld [vmem:[%s378 + $0x27e8] sm:$0xff]
        %v1793 = vld [vmem:[%s378 + $0x27f0] sm:$0xff]
        %v1794 = vld [vmem:[%s378 + $0x27f8] sm:$0xff]
        %v1835 = vunpack.c.l.b16 %v475
        %v1836 = vunpack.c.h.b16 %v475
        %v1837 = vunpack.c.l.b16 %v476
        %v1838 = vunpack.c.h.b16 %v476
        %v1839 = vunpack.c.l.b16 %v477
        %v1840 = vunpack.c.h.b16 %v477
        %v1841 = vunpack.c.l.b16 %v478
        %v1842 = vunpack.c.h.b16 %v478
        %v1843 = vunpack.c.l.b16 %v479
        %v1844 = vunpack.c.h.b16 %v479
        %v1845 = vunpack.c.l.b16 %v480
        %v1846 = vunpack.c.h.b16 %v480
        %v1847 = vunpack.c.l.b16 %v481
        %v1848 = vunpack.c.h.b16 %v481
        %v1849 = vunpack.c.l.b16 %v482
        %v1850 = vunpack.c.h.b16 %v482
        %v1851 = vunpack.c.l.b16 %v483
        %v1852 = vunpack.c.h.b16 %v483
        %v1853 = vunpack.c.l.b16 %v484
        %v1854 = vunpack.c.h.b16 %v484
        %v1855 = vunpack.c.l.b16 %v485
        %v1856 = vunpack.c.h.b16 %v485
        %v1857 = vunpack.c.l.b16 %v486
        %v1858 = vunpack.c.h.b16 %v486
        %v1859 = vunpack.c.l.b16 %v487
        %v1860 = vunpack.c.h.b16 %v487
        %v1861 = vunpack.c.l.b16 %v488
        %v1862 = vunpack.c.h.b16 %v488
        %v1863 = vunpack.c.l.b16 %v489
        %v1864 = vunpack.c.h.b16 %v489
        %v1865 = vunpack.c.l.b16 %v490
        %v1866 = vunpack.c.h.b16 %v490
        %v1867 = vunpack.c.l.b16 %v491
        %v1868 = vunpack.c.h.b16 %v491
        %v1869 = vunpack.c.l.b16 %v492
        %v1870 = vunpack.c.h.b16 %v492
        %v1871 = vunpack.c.l.b16 %v493
        %v1872 = vunpack.c.h.b16 %v493
        %v1873 = vunpack.c.l.b16 %v494
        %v1874 = vunpack.c.h.b16 %v494
        %v1875 = vunpack.c.l.b16 %v495
        %v1876 = vunpack.c.h.b16 %v495
        %v1877 = vunpack.c.l.b16 %v496
        %v1878 = vunpack.c.h.b16 %v496
        %v1879 = vunpack.c.l.b16 %v497
        %v1880 = vunpack.c.h.b16 %v497
        %v1881 = vunpack.c.l.b16 %v498
        %v1882 = vunpack.c.h.b16 %v498
        %v1883 = vunpack.c.l.b16 %v499
        %v1884 = vunpack.c.h.b16 %v499
        %v1885 = vunpack.c.l.b16 %v500
        %v1886 = vunpack.c.h.b16 %v500
        %v1887 = vunpack.c.l.b16 %v501
        %v1888 = vunpack.c.h.b16 %v501
        %v1889 = vunpack.c.l.b16 %v502
        %v1890 = vunpack.c.h.b16 %v502
        %v1891 = vunpack.c.l.b16 %v503
        %v1892 = vunpack.c.h.b16 %v503
        %v1893 = vunpack.c.l.b16 %v504
        %v1894 = vunpack.c.h.b16 %v504
        %v1895 = vunpack.c.l.b16 %v505
        %v1896 = vunpack.c.h.b16 %v505
        %v1897 = vunpack.c.l.b16 %v506
        %v1898 = vunpack.c.h.b16 %v506
        %v1899 = vunpack.c.l.b16 %v507
        %v1900 = vunpack.c.h.b16 %v507
        %v1901 = vunpack.c.l.b16 %v508
        %v1902 = vunpack.c.h.b16 %v508
        %v1903 = vunpack.c.l.b16 %v509
        %v1904 = vunpack.c.h.b16 %v509
        %v1905 = vunpack.c.l.b16 %v510
        %v1906 = vunpack.c.h.b16 %v510
        %v1907 = vunpack.c.l.b16 %v511
        %v1908 = vunpack.c.h.b16 %v511
        %v1909 = vunpack.c.l.b16 %v512
        %v1910 = vunpack.c.h.b16 %v512
        %v1911 = vunpack.c.l.b16 %v513
        %v1912 = vunpack.c.h.b16 %v513
        %v1913 = vunpack.c.l.b16 %v514
        %v1914 = vunpack.c.h.b16 %v514
        %v1915 = vpack.c.b16 %v1875, %v1835
        %v1916 = vpack.c.b16 %v1876, %v1836
        %v1917 = vpack.c.b16 %v1877, %v1837
        %v1918 = vpack.c.b16 %v1878, %v1838
        %v1919 = vpack.c.b16 %v1879, %v1839
        %v1920 = vpack.c.b16 %v1880, %v1840
        %v1921 = vpack.c.b16 %v1881, %v1841
        %v1922 = vpack.c.b16 %v1882, %v1842
        %v1923 = vpack.c.b16 %v1883, %v1843
        %v1924 = vpack.c.b16 %v1884, %v1844
        %v1925 = vpack.c.b16 %v1885, %v1845
        %v1926 = vpack.c.b16 %v1886, %v1846
        %v1927 = vpack.c.b16 %v1887, %v1847
        %v1928 = vpack.c.b16 %v1888, %v1848
        %v1929 = vpack.c.b16 %v1889, %v1849
        %v1930 = vpack.c.b16 %v1890, %v1850
        %v1931 = vpack.c.b16 %v1891, %v1851
        %v1932 = vpack.c.b16 %v1892, %v1852
        %v1933 = vpack.c.b16 %v1893, %v1853
        %v1934 = vpack.c.b16 %v1894, %v1854
        %v1935 = vpack.c.b16 %v1895, %v1855
        %v1936 = vpack.c.b16 %v1896, %v1856
        %v1937 = vpack.c.b16 %v1897, %v1857
        %v1938 = vpack.c.b16 %v1898, %v1858
        %v1939 = vpack.c.b16 %v1899, %v1859
        %v1940 = vpack.c.b16 %v1900, %v1860
        %v1941 = vpack.c.b16 %v1901, %v1861
        %v1942 = vpack.c.b16 %v1902, %v1862
        %v1943 = vpack.c.b16 %v1903, %v1863
        %v1944 = vpack.c.b16 %v1904, %v1864
        %v1945 = vpack.c.b16 %v1905, %v1865
        %v1946 = vpack.c.b16 %v1906, %v1866
        %v1947 = vpack.c.b16 %v1907, %v1867
        %v1948 = vpack.c.b16 %v1908, %v1868
        %v1949 = vpack.c.b16 %v1909, %v1869
        %v1950 = vpack.c.b16 %v1910, %v1870
        %v1951 = vpack.c.b16 %v1911, %v1871
        %v1952 = vpack.c.b16 %v1912, %v1872
        %v1953 = vpack.c.b16 %v1913, %v1873
        %v1954 = vpack.c.b16 %v1914, %v1874
        %v3275 = vunpack.c.l.b16 %v515
        %v3276 = vunpack.c.h.b16 %v515
        %v3277 = vunpack.c.l.b16 %v516
        %v3278 = vunpack.c.h.b16 %v516
        %v3279 = vunpack.c.l.b16 %v517
        %v3280 = vunpack.c.h.b16 %v517
        %v3281 = vunpack.c.l.b16 %v518
        %v3282 = vunpack.c.h.b16 %v518
        %v3283 = vunpack.c.l.b16 %v519
        %v3284 = vunpack.c.h.b16 %v519
        %v3285 = vunpack.c.l.b16 %v520
        %v3286 = vunpack.c.h.b16 %v520
        %v3287 = vunpack.c.l.b16 %v521
        %v3288 = vunpack.c.h.b16 %v521
        %v3289 = vunpack.c.l.b16 %v522
        %v3290 = vunpack.c.h.b16 %v522
        %v3291 = vunpack.c.l.b16 %v523
        %v3292 = vunpack.c.h.b16 %v523
        %v3293 = vunpack.c.l.b16 %v524
        %v3294 = vunpack.c.h.b16 %v524
        %v3295 = vunpack.c.l.b16 %v525
        %v3296 = vunpack.c.h.b16 %v525
        %v3297 = vunpack.c.l.b16 %v526
        %v3298 = vunpack.c.h.b16 %v526
        %v3299 = vunpack.c.l.b16 %v527
        %v3300 = vunpack.c.h.b16 %v527
        %v3301 = vunpack.c.l.b16 %v528
        %v3302 = vunpack.c.h.b16 %v528
        %v3303 = vunpack.c.l.b16 %v529
        %v3304 = vunpack.c.h.b16 %v529
        %v3305 = vunpack.c.l.b16 %v530
        %v3306 = vunpack.c.h.b16 %v530
        %v3307 = vunpack.c.l.b16 %v531
        %v3308 = vunpack.c.h.b16 %v531
        %v3309 = vunpack.c.l.b16 %v532
        %v3310 = vunpack.c.h.b16 %v532
        %v3311 = vunpack.c.l.b16 %v533
        %v3312 = vunpack.c.h.b16 %v533
        %v3313 = vunpack.c.l.b16 %v534
        %v3314 = vunpack.c.h.b16 %v534
        %v3315 = vunpack.c.l.b16 %v535
        %v3316 = vunpack.c.h.b16 %v535
        %v3317 = vunpack.c.l.b16 %v536
        %v3318 = vunpack.c.h.b16 %v536
        %v3319 = vunpack.c.l.b16 %v537
        %v3320 = vunpack.c.h.b16 %v537
        %v3321 = vunpack.c.l.b16 %v538
        %v3322 = vunpack.c.h.b16 %v538
        %v3323 = vunpack.c.l.b16 %v539
        %v3324 = vunpack.c.h.b16 %v539
        %v3325 = vunpack.c.l.b16 %v540
        %v3326 = vunpack.c.h.b16 %v540
        %v3327 = vunpack.c.l.b16 %v541
        %v3328 = vunpack.c.h.b16 %v541
        %v3329 = vunpack.c.l.b16 %v542
        %v3330 = vunpack.c.h.b16 %v542
        %v3331 = vunpack.c.l.b16 %v543
        %v3332 = vunpack.c.h.b16 %v543
        %v3333 = vunpack.c.l.b16 %v544
        %v3334 = vunpack.c.h.b16 %v544
        %v3335 = vunpack.c.l.b16 %v545
        %v3336 = vunpack.c.h.b16 %v545
        %v3337 = vunpack.c.l.b16 %v546
        %v3338 = vunpack.c.h.b16 %v546
        %v3339 = vunpack.c.l.b16 %v547
        %v3340 = vunpack.c.h.b16 %v547
        %v3341 = vunpack.c.l.b16 %v548
        %v3342 = vunpack.c.h.b16 %v548
        %v3343 = vunpack.c.l.b16 %v549
        %v3344 = vunpack.c.h.b16 %v549
        %v3345 = vunpack.c.l.b16 %v550
        %v3346 = vunpack.c.h.b16 %v550
        %v3347 = vunpack.c.l.b16 %v551
        %v3348 = vunpack.c.h.b16 %v551
        %v3349 = vunpack.c.l.b16 %v552
        %v3350 = vunpack.c.h.b16 %v552
        %v3351 = vunpack.c.l.b16 %v553
        %v3352 = vunpack.c.h.b16 %v553
        %v3353 = vunpack.c.l.b16 %v554
        %v3354 = vunpack.c.h.b16 %v554
        %v3355 = vunpack.c.l.b16 %v555
        %v3356 = vunpack.c.h.b16 %v555
        %v3357 = vunpack.c.l.b16 %v556
        %v3358 = vunpack.c.h.b16 %v556
        %v3359 = vunpack.c.l.b16 %v557
        %v3360 = vunpack.c.h.b16 %v557
        %v3361 = vunpack.c.l.b16 %v558
        %v3362 = vunpack.c.h.b16 %v558
        %v3363 = vunpack.c.l.b16 %v559
        %v3364 = vunpack.c.h.b16 %v559
        %v3365 = vunpack.c.l.b16 %v560
        %v3366 = vunpack.c.h.b16 %v560
        %v3367 = vunpack.c.l.b16 %v561
        %v3368 = vunpack.c.h.b16 %v561
        %v3369 = vunpack.c.l.b16 %v562
        %v3370 = vunpack.c.h.b16 %v562
        %v3371 = vunpack.c.l.b16 %v563
        %v3372 = vunpack.c.h.b16 %v563
        %v3373 = vunpack.c.l.b16 %v564
        %v3374 = vunpack.c.h.b16 %v564
        %v3375 = vunpack.c.l.b16 %v565
        %v3376 = vunpack.c.h.b16 %v565
        %v3377 = vunpack.c.l.b16 %v566
        %v3378 = vunpack.c.h.b16 %v566
        %v3379 = vunpack.c.l.b16 %v567
        %v3380 = vunpack.c.h.b16 %v567
        %v3381 = vunpack.c.l.b16 %v568
        %v3382 = vunpack.c.h.b16 %v568
        %v3383 = vunpack.c.l.b16 %v569
        %v3384 = vunpack.c.h.b16 %v569
        %v3385 = vunpack.c.l.b16 %v570
        %v3386 = vunpack.c.h.b16 %v570
        %v3387 = vunpack.c.l.b16 %v571
        %v3388 = vunpack.c.h.b16 %v571
        %v3389 = vunpack.c.l.b16 %v572
        %v3390 = vunpack.c.h.b16 %v572
        %v3391 = vunpack.c.l.b16 %v573
        %v3392 = vunpack.c.h.b16 %v573
        %v3393 = vunpack.c.l.b16 %v574
        %v3394 = vunpack.c.h.b16 %v574
        %v3395 = vunpack.c.l.b16 %v575
        %v3396 = vunpack.c.h.b16 %v575
        %v3397 = vunpack.c.l.b16 %v576
        %v3398 = vunpack.c.h.b16 %v576
        %v3399 = vunpack.c.l.b16 %v577
        %v3400 = vunpack.c.h.b16 %v577
        %v3401 = vunpack.c.l.b16 %v578
        %v3402 = vunpack.c.h.b16 %v578
        %v3403 = vunpack.c.l.b16 %v579
        %v3404 = vunpack.c.h.b16 %v579
        %v3405 = vunpack.c.l.b16 %v580
        %v3406 = vunpack.c.h.b16 %v580
        %v3407 = vunpack.c.l.b16 %v581
        %v3408 = vunpack.c.h.b16 %v581
        %v3409 = vunpack.c.l.b16 %v582
        %v3410 = vunpack.c.h.b16 %v582
        %v3411 = vunpack.c.l.b16 %v583
        %v3412 = vunpack.c.h.b16 %v583
        %v3413 = vunpack.c.l.b16 %v584
        %v3414 = vunpack.c.h.b16 %v584
        %v3415 = vunpack.c.l.b16 %v585
        %v3416 = vunpack.c.h.b16 %v585
        %v3417 = vunpack.c.l.b16 %v586
        %v3418 = vunpack.c.h.b16 %v586
        %v3419 = vunpack.c.l.b16 %v587
        %v3420 = vunpack.c.h.b16 %v587
        %v3421 = vunpack.c.l.b16 %v588
        %v3422 = vunpack.c.h.b16 %v588
        %v3423 = vunpack.c.l.b16 %v589
        %v3424 = vunpack.c.h.b16 %v589
        %v3425 = vunpack.c.l.b16 %v590
        %v3426 = vunpack.c.h.b16 %v590
        %v3427 = vunpack.c.l.b16 %v591
        %v3428 = vunpack.c.h.b16 %v591
        %v3429 = vunpack.c.l.b16 %v592
        %v3430 = vunpack.c.h.b16 %v592
        %v3431 = vunpack.c.l.b16 %v593
        %v3432 = vunpack.c.h.b16 %v593
        %v3433 = vunpack.c.l.b16 %v594
        %v3434 = vunpack.c.h.b16 %v594
        %v3435 = vunpack.c.l.b16 %v595
        %v3436 = vunpack.c.h.b16 %v595
        %v3437 = vunpack.c.l.b16 %v596
        %v3438 = vunpack.c.h.b16 %v596
        %v3439 = vunpack.c.l.b16 %v597
        %v3440 = vunpack.c.h.b16 %v597
        %v3441 = vunpack.c.l.b16 %v598
        %v3442 = vunpack.c.h.b16 %v598
        %v3443 = vunpack.c.l.b16 %v599
        %v3444 = vunpack.c.h.b16 %v599
        %v3445 = vunpack.c.l.b16 %v600
        %v3446 = vunpack.c.h.b16 %v600
        %v3447 = vunpack.c.l.b16 %v601
        %v3448 = vunpack.c.h.b16 %v601
        %v3449 = vunpack.c.l.b16 %v602
        %v3450 = vunpack.c.h.b16 %v602
        %v3451 = vunpack.c.l.b16 %v603
        %v3452 = vunpack.c.h.b16 %v603
        %v3453 = vunpack.c.l.b16 %v604
        %v3454 = vunpack.c.h.b16 %v604
        %v3455 = vunpack.c.l.b16 %v605
        %v3456 = vunpack.c.h.b16 %v605
        %v3457 = vunpack.c.l.b16 %v606
        %v3458 = vunpack.c.h.b16 %v606
        %v3459 = vunpack.c.l.b16 %v607
        %v3460 = vunpack.c.h.b16 %v607
        %v3461 = vunpack.c.l.b16 %v608
        %v3462 = vunpack.c.h.b16 %v608
        %v3463 = vunpack.c.l.b16 %v609
        %v3464 = vunpack.c.h.b16 %v609
        %v3465 = vunpack.c.l.b16 %v610
        %v3466 = vunpack.c.h.b16 %v610
        %v3467 = vunpack.c.l.b16 %v611
        %v3468 = vunpack.c.h.b16 %v611
        %v3469 = vunpack.c.l.b16 %v612
        %v3470 = vunpack.c.h.b16 %v612
        %v3471 = vunpack.c.l.b16 %v613
        %v3472 = vunpack.c.h.b16 %v613
        %v3473 = vunpack.c.l.b16 %v614
        %v3474 = vunpack.c.h.b16 %v614
        %v3475 = vunpack.c.l.b16 %v615
        %v3476 = vunpack.c.h.b16 %v615
        %v3477 = vunpack.c.l.b16 %v616
        %v3478 = vunpack.c.h.b16 %v616
        %v3479 = vunpack.c.l.b16 %v617
        %v3480 = vunpack.c.h.b16 %v617
        %v3481 = vunpack.c.l.b16 %v618
        %v3482 = vunpack.c.h.b16 %v618
        %v3483 = vunpack.c.l.b16 %v619
        %v3484 = vunpack.c.h.b16 %v619
        %v3485 = vunpack.c.l.b16 %v620
        %v3486 = vunpack.c.h.b16 %v620
        %v3487 = vunpack.c.l.b16 %v621
        %v3488 = vunpack.c.h.b16 %v621
        %v3489 = vunpack.c.l.b16 %v622
        %v3490 = vunpack.c.h.b16 %v622
        %v3491 = vunpack.c.l.b16 %v623
        %v3492 = vunpack.c.h.b16 %v623
        %v3493 = vunpack.c.l.b16 %v624
        %v3494 = vunpack.c.h.b16 %v624
        %v3495 = vunpack.c.l.b16 %v625
        %v3496 = vunpack.c.h.b16 %v625
        %v3497 = vunpack.c.l.b16 %v626
        %v3498 = vunpack.c.h.b16 %v626
        %v3499 = vunpack.c.l.b16 %v627
        %v3500 = vunpack.c.h.b16 %v627
        %v3501 = vunpack.c.l.b16 %v628
        %v3502 = vunpack.c.h.b16 %v628
        %v3503 = vunpack.c.l.b16 %v629
        %v3504 = vunpack.c.h.b16 %v629
        %v3505 = vunpack.c.l.b16 %v630
        %v3506 = vunpack.c.h.b16 %v630
        %v3507 = vunpack.c.l.b16 %v631
        %v3508 = vunpack.c.h.b16 %v631
        %v3509 = vunpack.c.l.b16 %v632
        %v3510 = vunpack.c.h.b16 %v632
        %v3511 = vunpack.c.l.b16 %v633
        %v3512 = vunpack.c.h.b16 %v633
        %v3513 = vunpack.c.l.b16 %v634
        %v3514 = vunpack.c.h.b16 %v634
        %v3515 = vunpack.c.l.b16 %v635
        %v3516 = vunpack.c.h.b16 %v635
        %v3517 = vunpack.c.l.b16 %v636
        %v3518 = vunpack.c.h.b16 %v636
        %v3519 = vunpack.c.l.b16 %v637
        %v3520 = vunpack.c.h.b16 %v637
        %v3521 = vunpack.c.l.b16 %v638
        %v3522 = vunpack.c.h.b16 %v638
        %v3523 = vunpack.c.l.b16 %v639
        %v3524 = vunpack.c.h.b16 %v639
        %v3525 = vunpack.c.l.b16 %v640
        %v3526 = vunpack.c.h.b16 %v640
        %v3527 = vunpack.c.l.b16 %v641
        %v3528 = vunpack.c.h.b16 %v641
        %v3529 = vunpack.c.l.b16 %v642
        %v3530 = vunpack.c.h.b16 %v642
        %v3531 = vunpack.c.l.b16 %v643
        %v3532 = vunpack.c.h.b16 %v643
        %v3533 = vunpack.c.l.b16 %v644
        %v3534 = vunpack.c.h.b16 %v644
        %v3535 = vunpack.c.l.b16 %v645
        %v3536 = vunpack.c.h.b16 %v645
        %v3537 = vunpack.c.l.b16 %v646
        %v3538 = vunpack.c.h.b16 %v646
        %v3539 = vunpack.c.l.b16 %v647
        %v3540 = vunpack.c.h.b16 %v647
        %v3541 = vunpack.c.l.b16 %v648
        %v3542 = vunpack.c.h.b16 %v648
        %v3543 = vunpack.c.l.b16 %v649
        %v3544 = vunpack.c.h.b16 %v649
        %v3545 = vunpack.c.l.b16 %v650
        %v3546 = vunpack.c.h.b16 %v650
        %v3547 = vunpack.c.l.b16 %v651
        %v3548 = vunpack.c.h.b16 %v651
        %v3549 = vunpack.c.l.b16 %v652
        %v3550 = vunpack.c.h.b16 %v652
        %v3551 = vunpack.c.l.b16 %v653
        %v3552 = vunpack.c.h.b16 %v653
        %v3553 = vunpack.c.l.b16 %v654
        %v3554 = vunpack.c.h.b16 %v654
        %v3555 = vunpack.c.l.b16 %v655
        %v3556 = vunpack.c.h.b16 %v655
        %v3557 = vunpack.c.l.b16 %v656
        %v3558 = vunpack.c.h.b16 %v656
        %v3559 = vunpack.c.l.b16 %v657
        %v3560 = vunpack.c.h.b16 %v657
        %v3561 = vunpack.c.l.b16 %v658
        %v3562 = vunpack.c.h.b16 %v658
        %v3563 = vunpack.c.l.b16 %v659
        %v3564 = vunpack.c.h.b16 %v659
        %v3565 = vunpack.c.l.b16 %v660
        %v3566 = vunpack.c.h.b16 %v660
        %v3567 = vunpack.c.l.b16 %v661
        %v3568 = vunpack.c.h.b16 %v661
        %v3569 = vunpack.c.l.b16 %v662
        %v3570 = vunpack.c.h.b16 %v662
        %v3571 = vunpack.c.l.b16 %v663
        %v3572 = vunpack.c.h.b16 %v663
        %v3573 = vunpack.c.l.b16 %v664
        %v3574 = vunpack.c.h.b16 %v664
        %v3575 = vunpack.c.l.b16 %v665
        %v3576 = vunpack.c.h.b16 %v665
        %v3577 = vunpack.c.l.b16 %v666
        %v3578 = vunpack.c.h.b16 %v666
        %v3579 = vunpack.c.l.b16 %v667
        %v3580 = vunpack.c.h.b16 %v667
        %v3581 = vunpack.c.l.b16 %v668
        %v3582 = vunpack.c.h.b16 %v668
        %v3583 = vunpack.c.l.b16 %v669
        %v3584 = vunpack.c.h.b16 %v669
        %v3585 = vunpack.c.l.b16 %v670
        %v3586 = vunpack.c.h.b16 %v670
        %v3587 = vunpack.c.l.b16 %v671
        %v3588 = vunpack.c.h.b16 %v671
        %v3589 = vunpack.c.l.b16 %v672
        %v3590 = vunpack.c.h.b16 %v672
        %v3591 = vunpack.c.l.b16 %v673
        %v3592 = vunpack.c.h.b16 %v673
        %v3593 = vunpack.c.l.b16 %v674
        %v3594 = vunpack.c.h.b16 %v674
        %v3595 = vunpack.c.l.b16 %v675
        %v3596 = vunpack.c.h.b16 %v675
        %v3597 = vunpack.c.l.b16 %v676
        %v3598 = vunpack.c.h.b16 %v676
        %v3599 = vunpack.c.l.b16 %v677
        %v3600 = vunpack.c.h.b16 %v677
        %v3601 = vunpack.c.l.b16 %v678
        %v3602 = vunpack.c.h.b16 %v678
        %v3603 = vunpack.c.l.b16 %v679
        %v3604 = vunpack.c.h.b16 %v679
        %v3605 = vunpack.c.l.b16 %v680
        %v3606 = vunpack.c.h.b16 %v680
        %v3607 = vunpack.c.l.b16 %v681
        %v3608 = vunpack.c.h.b16 %v681
        %v3609 = vunpack.c.l.b16 %v682
        %v3610 = vunpack.c.h.b16 %v682
        %v3611 = vunpack.c.l.b16 %v683
        %v3612 = vunpack.c.h.b16 %v683
        %v3613 = vunpack.c.l.b16 %v684
        %v3614 = vunpack.c.h.b16 %v684
        %v3615 = vunpack.c.l.b16 %v685
        %v3616 = vunpack.c.h.b16 %v685
        %v3617 = vunpack.c.l.b16 %v686
        %v3618 = vunpack.c.h.b16 %v686
        %v3619 = vunpack.c.l.b16 %v687
        %v3620 = vunpack.c.h.b16 %v687
        %v3621 = vunpack.c.l.b16 %v688
        %v3622 = vunpack.c.h.b16 %v688
        %v3623 = vunpack.c.l.b16 %v689
        %v3624 = vunpack.c.h.b16 %v689
        %v3625 = vunpack.c.l.b16 %v690
        %v3626 = vunpack.c.h.b16 %v690
        %v3627 = vunpack.c.l.b16 %v691
        %v3628 = vunpack.c.h.b16 %v691
        %v3629 = vunpack.c.l.b16 %v692
        %v3630 = vunpack.c.h.b16 %v692
        %v3631 = vunpack.c.l.b16 %v693
        %v3632 = vunpack.c.h.b16 %v693
        %v3633 = vunpack.c.l.b16 %v694
        %v3634 = vunpack.c.h.b16 %v694
        %v3635 = vunpack.c.l.b16 %v695
        %v3636 = vunpack.c.h.b16 %v695
        %v3637 = vunpack.c.l.b16 %v696
        %v3638 = vunpack.c.h.b16 %v696
        %v3639 = vunpack.c.l.b16 %v697
        %v3640 = vunpack.c.h.b16 %v697
        %v3641 = vunpack.c.l.b16 %v698
        %v3642 = vunpack.c.h.b16 %v698
        %v3643 = vunpack.c.l.b16 %v699
        %v3644 = vunpack.c.h.b16 %v699
        %v3645 = vunpack.c.l.b16 %v700
        %v3646 = vunpack.c.h.b16 %v700
        %v3647 = vunpack.c.l.b16 %v701
        %v3648 = vunpack.c.h.b16 %v701
        %v3649 = vunpack.c.l.b16 %v702
        %v3650 = vunpack.c.h.b16 %v702
        %v3651 = vunpack.c.l.b16 %v703
        %v3652 = vunpack.c.h.b16 %v703
        %v3653 = vunpack.c.l.b16 %v704
        %v3654 = vunpack.c.h.b16 %v704
        %v3655 = vunpack.c.l.b16 %v705
        %v3656 = vunpack.c.h.b16 %v705
        %v3657 = vunpack.c.l.b16 %v706
        %v3658 = vunpack.c.h.b16 %v706
        %v3659 = vunpack.c.l.b16 %v707
        %v3660 = vunpack.c.h.b16 %v707
        %v3661 = vunpack.c.l.b16 %v708
        %v3662 = vunpack.c.h.b16 %v708
        %v3663 = vunpack.c.l.b16 %v709
        %v3664 = vunpack.c.h.b16 %v709
        %v3665 = vunpack.c.l.b16 %v710
        %v3666 = vunpack.c.h.b16 %v710
        %v3667 = vunpack.c.l.b16 %v711
        %v3668 = vunpack.c.h.b16 %v711
        %v3669 = vunpack.c.l.b16 %v712
        %v3670 = vunpack.c.h.b16 %v712
        %v3671 = vunpack.c.l.b16 %v713
        %v3672 = vunpack.c.h.b16 %v713
        %v3673 = vunpack.c.l.b16 %v714
        %v3674 = vunpack.c.h.b16 %v714
        %v3675 = vunpack.c.l.b16 %v715
        %v3676 = vunpack.c.h.b16 %v715
        %v3677 = vunpack.c.l.b16 %v716
        %v3678 = vunpack.c.h.b16 %v716
        %v3679 = vunpack.c.l.b16 %v717
        %v3680 = vunpack.c.h.b16 %v717
        %v3681 = vunpack.c.l.b16 %v718
        %v3682 = vunpack.c.h.b16 %v718
        %v3683 = vunpack.c.l.b16 %v719
        %v3684 = vunpack.c.h.b16 %v719
        %v3685 = vunpack.c.l.b16 %v720
        %v3686 = vunpack.c.h.b16 %v720
        %v3687 = vunpack.c.l.b16 %v721
        %v3688 = vunpack.c.h.b16 %v721
        %v3689 = vunpack.c.l.b16 %v722
        %v3690 = vunpack.c.h.b16 %v722
        %v3691 = vunpack.c.l.b16 %v723
        %v3692 = vunpack.c.h.b16 %v723
        %v3693 = vunpack.c.l.b16 %v724
        %v3694 = vunpack.c.h.b16 %v724
        %v3695 = vunpack.c.l.b16 %v725
        %v3696 = vunpack.c.h.b16 %v725
        %v3697 = vunpack.c.l.b16 %v726
        %v3698 = vunpack.c.h.b16 %v726
        %v3699 = vunpack.c.l.b16 %v727
        %v3700 = vunpack.c.h.b16 %v727
        %v3701 = vunpack.c.l.b16 %v728
        %v3702 = vunpack.c.h.b16 %v728
        %v3703 = vunpack.c.l.b16 %v729
        %v3704 = vunpack.c.h.b16 %v729
        %v3705 = vunpack.c.l.b16 %v730
        %v3706 = vunpack.c.h.b16 %v730
        %v3707 = vunpack.c.l.b16 %v731
        %v3708 = vunpack.c.h.b16 %v731
        %v3709 = vunpack.c.l.b16 %v732
        %v3710 = vunpack.c.h.b16 %v732
        %v3711 = vunpack.c.l.b16 %v733
        %v3712 = vunpack.c.h.b16 %v733
        %v3713 = vunpack.c.l.b16 %v734
        %v3714 = vunpack.c.h.b16 %v734
        %v3715 = vunpack.c.l.b16 %v735
        %v3716 = vunpack.c.h.b16 %v735
        %v3717 = vunpack.c.l.b16 %v736
        %v3718 = vunpack.c.h.b16 %v736
        %v3719 = vunpack.c.l.b16 %v737
        %v3720 = vunpack.c.h.b16 %v737
        %v3721 = vunpack.c.l.b16 %v738
        %v3722 = vunpack.c.h.b16 %v738
        %v3723 = vunpack.c.l.b16 %v739
        %v3724 = vunpack.c.h.b16 %v739
        %v3725 = vunpack.c.l.b16 %v740
        %v3726 = vunpack.c.h.b16 %v740
        %v3727 = vunpack.c.l.b16 %v741
        %v3728 = vunpack.c.h.b16 %v741
        %v3729 = vunpack.c.l.b16 %v742
        %v3730 = vunpack.c.h.b16 %v742
        %v3731 = vunpack.c.l.b16 %v743
        %v3732 = vunpack.c.h.b16 %v743
        %v3733 = vunpack.c.l.b16 %v744
        %v3734 = vunpack.c.h.b16 %v744
        %v3735 = vunpack.c.l.b16 %v745
        %v3736 = vunpack.c.h.b16 %v745
        %v3737 = vunpack.c.l.b16 %v746
        %v3738 = vunpack.c.h.b16 %v746
        %v3739 = vunpack.c.l.b16 %v747
        %v3740 = vunpack.c.h.b16 %v747
        %v3741 = vunpack.c.l.b16 %v748
        %v3742 = vunpack.c.h.b16 %v748
        %v3743 = vunpack.c.l.b16 %v749
        %v3744 = vunpack.c.h.b16 %v749
        %v3745 = vunpack.c.l.b16 %v750
        %v3746 = vunpack.c.h.b16 %v750
        %v3747 = vunpack.c.l.b16 %v751
        %v3748 = vunpack.c.h.b16 %v751
        %v3749 = vunpack.c.l.b16 %v752
        %v3750 = vunpack.c.h.b16 %v752
        %v3751 = vunpack.c.l.b16 %v753
        %v3752 = vunpack.c.h.b16 %v753
        %v3753 = vunpack.c.l.b16 %v754
        %v3754 = vunpack.c.h.b16 %v754
        %v3755 = vunpack.c.l.b16 %v755
        %v3756 = vunpack.c.h.b16 %v755
        %v3757 = vunpack.c.l.b16 %v756
        %v3758 = vunpack.c.h.b16 %v756
        %v3759 = vunpack.c.l.b16 %v757
        %v3760 = vunpack.c.h.b16 %v757
        %v3761 = vunpack.c.l.b16 %v758
        %v3762 = vunpack.c.h.b16 %v758
        %v3763 = vunpack.c.l.b16 %v759
        %v3764 = vunpack.c.h.b16 %v759
        %v3765 = vunpack.c.l.b16 %v760
        %v3766 = vunpack.c.h.b16 %v760
        %v3767 = vunpack.c.l.b16 %v761
        %v3768 = vunpack.c.h.b16 %v761
        %v3769 = vunpack.c.l.b16 %v762
        %v3770 = vunpack.c.h.b16 %v762
        %v3771 = vunpack.c.l.b16 %v763
        %v3772 = vunpack.c.h.b16 %v763
        %v3773 = vunpack.c.l.b16 %v764
        %v3774 = vunpack.c.h.b16 %v764
        %v3775 = vunpack.c.l.b16 %v765
        %v3776 = vunpack.c.h.b16 %v765
        %v3777 = vunpack.c.l.b16 %v766
        %v3778 = vunpack.c.h.b16 %v766
        %v3779 = vunpack.c.l.b16 %v767
        %v3780 = vunpack.c.h.b16 %v767
        %v3781 = vunpack.c.l.b16 %v768
        %v3782 = vunpack.c.h.b16 %v768
        %v3783 = vunpack.c.l.b16 %v769
        %v3784 = vunpack.c.h.b16 %v769
        %v3785 = vunpack.c.l.b16 %v770
        %v3786 = vunpack.c.h.b16 %v770
        %v3787 = vunpack.c.l.b16 %v771
        %v3788 = vunpack.c.h.b16 %v771
        %v3789 = vunpack.c.l.b16 %v772
        %v3790 = vunpack.c.h.b16 %v772
        %v3791 = vunpack.c.l.b16 %v773
        %v3792 = vunpack.c.h.b16 %v773
        %v3793 = vunpack.c.l.b16 %v774
        %v3794 = vunpack.c.h.b16 %v774
        %v3795 = vunpack.c.l.b16 %v775
        %v3796 = vunpack.c.h.b16 %v775
        %v3797 = vunpack.c.l.b16 %v776
        %v3798 = vunpack.c.h.b16 %v776
        %v3799 = vunpack.c.l.b16 %v777
        %v3800 = vunpack.c.h.b16 %v777
        %v3801 = vunpack.c.l.b16 %v778
        %v3802 = vunpack.c.h.b16 %v778
        %v3803 = vunpack.c.l.b16 %v779
        %v3804 = vunpack.c.h.b16 %v779
        %v3805 = vunpack.c.l.b16 %v780
        %v3806 = vunpack.c.h.b16 %v780
        %v3807 = vunpack.c.l.b16 %v781
        %v3808 = vunpack.c.h.b16 %v781
        %v3809 = vunpack.c.l.b16 %v782
        %v3810 = vunpack.c.h.b16 %v782
        %v3811 = vunpack.c.l.b16 %v783
        %v3812 = vunpack.c.h.b16 %v783
        %v3813 = vunpack.c.l.b16 %v784
        %v3814 = vunpack.c.h.b16 %v784
        %v3815 = vunpack.c.l.b16 %v785
        %v3816 = vunpack.c.h.b16 %v785
        %v3817 = vunpack.c.l.b16 %v786
        %v3818 = vunpack.c.h.b16 %v786
        %v3819 = vunpack.c.l.b16 %v787
        %v3820 = vunpack.c.h.b16 %v787
        %v3821 = vunpack.c.l.b16 %v788
        %v3822 = vunpack.c.h.b16 %v788
        %v3823 = vunpack.c.l.b16 %v789
        %v3824 = vunpack.c.h.b16 %v789
        %v3825 = vunpack.c.l.b16 %v790
        %v3826 = vunpack.c.h.b16 %v790
        %v3827 = vunpack.c.l.b16 %v791
        %v3828 = vunpack.c.h.b16 %v791
        %v3829 = vunpack.c.l.b16 %v792
        %v3830 = vunpack.c.h.b16 %v792
        %v3831 = vunpack.c.l.b16 %v793
        %v3832 = vunpack.c.h.b16 %v793
        %v3833 = vunpack.c.l.b16 %v794
        %v3834 = vunpack.c.h.b16 %v794
        %v3835 = vunpack.c.l.b16 %v795
        %v3836 = vunpack.c.h.b16 %v795
        %v3837 = vunpack.c.l.b16 %v796
        %v3838 = vunpack.c.h.b16 %v796
        %v3839 = vunpack.c.l.b16 %v797
        %v3840 = vunpack.c.h.b16 %v797
        %v3841 = vunpack.c.l.b16 %v798
        %v3842 = vunpack.c.h.b16 %v798
        %v3843 = vunpack.c.l.b16 %v799
        %v3844 = vunpack.c.h.b16 %v799
        %v3845 = vunpack.c.l.b16 %v800
        %v3846 = vunpack.c.h.b16 %v800
        %v3847 = vunpack.c.l.b16 %v801
        %v3848 = vunpack.c.h.b16 %v801
        %v3849 = vunpack.c.l.b16 %v802
        %v3850 = vunpack.c.h.b16 %v802
        %v3851 = vunpack.c.l.b16 %v803
        %v3852 = vunpack.c.h.b16 %v803
        %v3853 = vunpack.c.l.b16 %v804
        %v3854 = vunpack.c.h.b16 %v804
        %v3855 = vunpack.c.l.b16 %v805
        %v3856 = vunpack.c.h.b16 %v805
        %v3857 = vunpack.c.l.b16 %v806
        %v3858 = vunpack.c.h.b16 %v806
        %v3859 = vunpack.c.l.b16 %v807
        %v3860 = vunpack.c.h.b16 %v807
        %v3861 = vunpack.c.l.b16 %v808
        %v3862 = vunpack.c.h.b16 %v808
        %v3863 = vunpack.c.l.b16 %v809
        %v3864 = vunpack.c.h.b16 %v809
        %v3865 = vunpack.c.l.b16 %v810
        %v3866 = vunpack.c.h.b16 %v810
        %v3867 = vunpack.c.l.b16 %v811
        %v3868 = vunpack.c.h.b16 %v811
        %v3869 = vunpack.c.l.b16 %v812
        %v3870 = vunpack.c.h.b16 %v812
        %v3871 = vunpack.c.l.b16 %v813
        %v3872 = vunpack.c.h.b16 %v813
        %v3873 = vunpack.c.l.b16 %v814
        %v3874 = vunpack.c.h.b16 %v814
        %v3875 = vunpack.c.l.b16 %v815
        %v3876 = vunpack.c.h.b16 %v815
        %v3877 = vunpack.c.l.b16 %v816
        %v3878 = vunpack.c.h.b16 %v816
        %v3879 = vunpack.c.l.b16 %v817
        %v3880 = vunpack.c.h.b16 %v817
        %v3881 = vunpack.c.l.b16 %v818
        %v3882 = vunpack.c.h.b16 %v818
        %v3883 = vunpack.c.l.b16 %v819
        %v3884 = vunpack.c.h.b16 %v819
        %v3885 = vunpack.c.l.b16 %v820
        %v3886 = vunpack.c.h.b16 %v820
        %v3887 = vunpack.c.l.b16 %v821
        %v3888 = vunpack.c.h.b16 %v821
        %v3889 = vunpack.c.l.b16 %v822
        %v3890 = vunpack.c.h.b16 %v822
        %v3891 = vunpack.c.l.b16 %v823
        %v3892 = vunpack.c.h.b16 %v823
        %v3893 = vunpack.c.l.b16 %v824
        %v3894 = vunpack.c.h.b16 %v824
        %v3895 = vunpack.c.l.b16 %v825
        %v3896 = vunpack.c.h.b16 %v825
        %v3897 = vunpack.c.l.b16 %v826
        %v3898 = vunpack.c.h.b16 %v826
        %v3899 = vunpack.c.l.b16 %v827
        %v3900 = vunpack.c.h.b16 %v827
        %v3901 = vunpack.c.l.b16 %v828
        %v3902 = vunpack.c.h.b16 %v828
        %v3903 = vunpack.c.l.b16 %v829
        %v3904 = vunpack.c.h.b16 %v829
        %v3905 = vunpack.c.l.b16 %v830
        %v3906 = vunpack.c.h.b16 %v830
        %v3907 = vunpack.c.l.b16 %v831
        %v3908 = vunpack.c.h.b16 %v831
        %v3909 = vunpack.c.l.b16 %v832
        %v3910 = vunpack.c.h.b16 %v832
        %v3911 = vunpack.c.l.b16 %v833
        %v3912 = vunpack.c.h.b16 %v833
        %v3913 = vunpack.c.l.b16 %v834
        %v3914 = vunpack.c.h.b16 %v834
        %v3915 = vunpack.c.l.b16 %v835
        %v3916 = vunpack.c.h.b16 %v835
        %v3917 = vunpack.c.l.b16 %v836
        %v3918 = vunpack.c.h.b16 %v836
        %v3919 = vunpack.c.l.b16 %v837
        %v3920 = vunpack.c.h.b16 %v837
        %v3921 = vunpack.c.l.b16 %v838
        %v3922 = vunpack.c.h.b16 %v838
        %v3923 = vunpack.c.l.b16 %v839
        %v3924 = vunpack.c.h.b16 %v839
        %v3925 = vunpack.c.l.b16 %v840
        %v3926 = vunpack.c.h.b16 %v840
        %v3927 = vunpack.c.l.b16 %v841
        %v3928 = vunpack.c.h.b16 %v841
        %v3929 = vunpack.c.l.b16 %v842
        %v3930 = vunpack.c.h.b16 %v842
        %v3931 = vunpack.c.l.b16 %v843
        %v3932 = vunpack.c.h.b16 %v843
        %v3933 = vunpack.c.l.b16 %v844
        %v3934 = vunpack.c.h.b16 %v844
        %v3935 = vunpack.c.l.b16 %v845
        %v3936 = vunpack.c.h.b16 %v845
        %v3937 = vunpack.c.l.b16 %v846
        %v3938 = vunpack.c.h.b16 %v846
        %v3939 = vunpack.c.l.b16 %v847
        %v3940 = vunpack.c.h.b16 %v847
        %v3941 = vunpack.c.l.b16 %v848
        %v3942 = vunpack.c.h.b16 %v848
        %v3943 = vunpack.c.l.b16 %v849
        %v3944 = vunpack.c.h.b16 %v849
        %v3945 = vunpack.c.l.b16 %v850
        %v3946 = vunpack.c.h.b16 %v850
        %v3947 = vunpack.c.l.b16 %v851
        %v3948 = vunpack.c.h.b16 %v851
        %v3949 = vunpack.c.l.b16 %v852
        %v3950 = vunpack.c.h.b16 %v852
        %v3951 = vunpack.c.l.b16 %v853
        %v3952 = vunpack.c.h.b16 %v853
        %v3953 = vunpack.c.l.b16 %v854
        %v3954 = vunpack.c.h.b16 %v854
        %v3955 = vunpack.c.l.b16 %v855
        %v3956 = vunpack.c.h.b16 %v855
        %v3957 = vunpack.c.l.b16 %v856
        %v3958 = vunpack.c.h.b16 %v856
        %v3959 = vunpack.c.l.b16 %v857
        %v3960 = vunpack.c.h.b16 %v857
        %v3961 = vunpack.c.l.b16 %v858
        %v3962 = vunpack.c.h.b16 %v858
        %v3963 = vunpack.c.l.b16 %v859
        %v3964 = vunpack.c.h.b16 %v859
        %v3965 = vunpack.c.l.b16 %v860
        %v3966 = vunpack.c.h.b16 %v860
        %v3967 = vunpack.c.l.b16 %v861
        %v3968 = vunpack.c.h.b16 %v861
        %v3969 = vunpack.c.l.b16 %v862
        %v3970 = vunpack.c.h.b16 %v862
        %v3971 = vunpack.c.l.b16 %v863
        %v3972 = vunpack.c.h.b16 %v863
        %v3973 = vunpack.c.l.b16 %v864
        %v3974 = vunpack.c.h.b16 %v864
        %v3975 = vunpack.c.l.b16 %v865
        %v3976 = vunpack.c.h.b16 %v865
        %v3977 = vunpack.c.l.b16 %v866
        %v3978 = vunpack.c.h.b16 %v866
        %v3979 = vunpack.c.l.b16 %v867
        %v3980 = vunpack.c.h.b16 %v867
        %v3981 = vunpack.c.l.b16 %v868
        %v3982 = vunpack.c.h.b16 %v868
        %v3983 = vunpack.c.l.b16 %v869
        %v3984 = vunpack.c.h.b16 %v869
        %v3985 = vunpack.c.l.b16 %v870
        %v3986 = vunpack.c.h.b16 %v870
        %v3987 = vunpack.c.l.b16 %v871
        %v3988 = vunpack.c.h.b16 %v871
        %v3989 = vunpack.c.l.b16 %v872
        %v3990 = vunpack.c.h.b16 %v872
        %v3991 = vunpack.c.l.b16 %v873
        %v3992 = vunpack.c.h.b16 %v873
        %v3993 = vunpack.c.l.b16 %v874
        %v3994 = vunpack.c.h.b16 %v874
        %v3995 = vunpack.c.l.b16 %v875
        %v3996 = vunpack.c.h.b16 %v875
        %v3997 = vunpack.c.l.b16 %v876
        %v3998 = vunpack.c.h.b16 %v876
        %v3999 = vunpack.c.l.b16 %v877
        %v4000 = vunpack.c.h.b16 %v877
        %v4001 = vunpack.c.l.b16 %v878
        %v4002 = vunpack.c.h.b16 %v878
        %v4003 = vunpack.c.l.b16 %v879
        %v4004 = vunpack.c.h.b16 %v879
        %v4005 = vunpack.c.l.b16 %v880
        %v4006 = vunpack.c.h.b16 %v880
        %v4007 = vunpack.c.l.b16 %v881
        %v4008 = vunpack.c.h.b16 %v881
        %v4009 = vunpack.c.l.b16 %v882
        %v4010 = vunpack.c.h.b16 %v882
        %v4011 = vunpack.c.l.b16 %v883
        %v4012 = vunpack.c.h.b16 %v883
        %v4013 = vunpack.c.l.b16 %v884
        %v4014 = vunpack.c.h.b16 %v884
        %v4015 = vunpack.c.l.b16 %v885
        %v4016 = vunpack.c.h.b16 %v885
        %v4017 = vunpack.c.l.b16 %v886
        %v4018 = vunpack.c.h.b16 %v886
        %v4019 = vunpack.c.l.b16 %v887
        %v4020 = vunpack.c.h.b16 %v887
        %v4021 = vunpack.c.l.b16 %v888
        %v4022 = vunpack.c.h.b16 %v888
        %v4023 = vunpack.c.l.b16 %v889
        %v4024 = vunpack.c.h.b16 %v889
        %v4025 = vunpack.c.l.b16 %v890
        %v4026 = vunpack.c.h.b16 %v890
        %v4027 = vunpack.c.l.b16 %v891
        %v4028 = vunpack.c.h.b16 %v891
        %v4029 = vunpack.c.l.b16 %v892
        %v4030 = vunpack.c.h.b16 %v892
        %v4031 = vunpack.c.l.b16 %v893
        %v4032 = vunpack.c.h.b16 %v893
        %v4033 = vunpack.c.l.b16 %v894
        %v4034 = vunpack.c.h.b16 %v894
        %v4035 = vunpack.c.l.b16 %v895
        %v4036 = vunpack.c.h.b16 %v895
        %v4037 = vunpack.c.l.b16 %v896
        %v4038 = vunpack.c.h.b16 %v896
        %v4039 = vunpack.c.l.b16 %v897
        %v4040 = vunpack.c.h.b16 %v897
        %v4041 = vunpack.c.l.b16 %v898
        %v4042 = vunpack.c.h.b16 %v898
        %v4043 = vunpack.c.l.b16 %v899
        %v4044 = vunpack.c.h.b16 %v899
        %v4045 = vunpack.c.l.b16 %v900
        %v4046 = vunpack.c.h.b16 %v900
        %v4047 = vunpack.c.l.b16 %v901
        %v4048 = vunpack.c.h.b16 %v901
        %v4049 = vunpack.c.l.b16 %v902
        %v4050 = vunpack.c.h.b16 %v902
        %v4051 = vunpack.c.l.b16 %v903
        %v4052 = vunpack.c.h.b16 %v903
        %v4053 = vunpack.c.l.b16 %v904
        %v4054 = vunpack.c.h.b16 %v904
        %v4055 = vunpack.c.l.b16 %v905
        %v4056 = vunpack.c.h.b16 %v905
        %v4057 = vunpack.c.l.b16 %v906
        %v4058 = vunpack.c.h.b16 %v906
        %v4059 = vunpack.c.l.b16 %v907
        %v4060 = vunpack.c.h.b16 %v907
        %v4061 = vunpack.c.l.b16 %v908
        %v4062 = vunpack.c.h.b16 %v908
        %v4063 = vunpack.c.l.b16 %v909
        %v4064 = vunpack.c.h.b16 %v909
        %v4065 = vunpack.c.l.b16 %v910
        %v4066 = vunpack.c.h.b16 %v910
        %v4067 = vunpack.c.l.b16 %v911
        %v4068 = vunpack.c.h.b16 %v911
        %v4069 = vunpack.c.l.b16 %v912
        %v4070 = vunpack.c.h.b16 %v912
        %v4071 = vunpack.c.l.b16 %v913
        %v4072 = vunpack.c.h.b16 %v913
        %v4073 = vunpack.c.l.b16 %v914
        %v4074 = vunpack.c.h.b16 %v914
        %v4075 = vunpack.c.l.b16 %v915
        %v4076 = vunpack.c.h.b16 %v915
        %v4077 = vunpack.c.l.b16 %v916
        %v4078 = vunpack.c.h.b16 %v916
        %v4079 = vunpack.c.l.b16 %v917
        %v4080 = vunpack.c.h.b16 %v917
        %v4081 = vunpack.c.l.b16 %v918
        %v4082 = vunpack.c.h.b16 %v918
        %v4083 = vunpack.c.l.b16 %v919
        %v4084 = vunpack.c.h.b16 %v919
        %v4085 = vunpack.c.l.b16 %v920
        %v4086 = vunpack.c.h.b16 %v920
        %v4087 = vunpack.c.l.b16 %v921
        %v4088 = vunpack.c.h.b16 %v921
        %v4089 = vunpack.c.l.b16 %v922
        %v4090 = vunpack.c.h.b16 %v922
        %v4091 = vunpack.c.l.b16 %v923
        %v4092 = vunpack.c.h.b16 %v923
        %v4093 = vunpack.c.l.b16 %v924
        %v4094 = vunpack.c.h.b16 %v924
        %v4095 = vunpack.c.l.b16 %v925
        %v4096 = vunpack.c.h.b16 %v925
        %v4097 = vunpack.c.l.b16 %v926
        %v4098 = vunpack.c.h.b16 %v926
        %v4099 = vunpack.c.l.b16 %v927
        %v4100 = vunpack.c.h.b16 %v927
        %v4101 = vunpack.c.l.b16 %v928
        %v4102 = vunpack.c.h.b16 %v928
        %v4103 = vunpack.c.l.b16 %v929
        %v4104 = vunpack.c.h.b16 %v929
        %v4105 = vunpack.c.l.b16 %v930
        %v4106 = vunpack.c.h.b16 %v930
        %v4107 = vunpack.c.l.b16 %v931
        %v4108 = vunpack.c.h.b16 %v931
        %v4109 = vunpack.c.l.b16 %v932
        %v4110 = vunpack.c.h.b16 %v932
        %v4111 = vunpack.c.l.b16 %v933
        %v4112 = vunpack.c.h.b16 %v933
        %v4113 = vunpack.c.l.b16 %v934
        %v4114 = vunpack.c.h.b16 %v934
        %v4115 = vunpack.c.l.b16 %v935
        %v4116 = vunpack.c.h.b16 %v935
        %v4117 = vunpack.c.l.b16 %v936
        %v4118 = vunpack.c.h.b16 %v936
        %v4119 = vunpack.c.l.b16 %v937
        %v4120 = vunpack.c.h.b16 %v937
        %v4121 = vunpack.c.l.b16 %v938
        %v4122 = vunpack.c.h.b16 %v938
        %v4123 = vunpack.c.l.b16 %v939
        %v4124 = vunpack.c.h.b16 %v939
        %v4125 = vunpack.c.l.b16 %v940
        %v4126 = vunpack.c.h.b16 %v940
        %v4127 = vunpack.c.l.b16 %v941
        %v4128 = vunpack.c.h.b16 %v941
        %v4129 = vunpack.c.l.b16 %v942
        %v4130 = vunpack.c.h.b16 %v942
        %v4131 = vunpack.c.l.b16 %v943
        %v4132 = vunpack.c.h.b16 %v943
        %v4133 = vunpack.c.l.b16 %v944
        %v4134 = vunpack.c.h.b16 %v944
        %v4135 = vunpack.c.l.b16 %v945
        %v4136 = vunpack.c.h.b16 %v945
        %v4137 = vunpack.c.l.b16 %v946
        %v4138 = vunpack.c.h.b16 %v946
        %v4139 = vunpack.c.l.b16 %v947
        %v4140 = vunpack.c.h.b16 %v947
        %v4141 = vunpack.c.l.b16 %v948
        %v4142 = vunpack.c.h.b16 %v948
        %v4143 = vunpack.c.l.b16 %v949
        %v4144 = vunpack.c.h.b16 %v949
        %v4145 = vunpack.c.l.b16 %v950
        %v4146 = vunpack.c.h.b16 %v950
        %v4147 = vunpack.c.l.b16 %v951
        %v4148 = vunpack.c.h.b16 %v951
        %v4149 = vunpack.c.l.b16 %v952
        %v4150 = vunpack.c.h.b16 %v952
        %v4151 = vunpack.c.l.b16 %v953
        %v4152 = vunpack.c.h.b16 %v953
        %v4153 = vunpack.c.l.b16 %v954
        %v4154 = vunpack.c.h.b16 %v954
        %v4155 = vunpack.c.l.b16 %v955
        %v4156 = vunpack.c.h.b16 %v955
        %v4157 = vunpack.c.l.b16 %v956
        %v4158 = vunpack.c.h.b16 %v956
        %v4159 = vunpack.c.l.b16 %v957
        %v4160 = vunpack.c.h.b16 %v957
        %v4161 = vunpack.c.l.b16 %v958
        %v4162 = vunpack.c.h.b16 %v958
        %v4163 = vunpack.c.l.b16 %v959
        %v4164 = vunpack.c.h.b16 %v959
        %v4165 = vunpack.c.l.b16 %v960
        %v4166 = vunpack.c.h.b16 %v960
        %v4167 = vunpack.c.l.b16 %v961
        %v4168 = vunpack.c.h.b16 %v961
        %v4169 = vunpack.c.l.b16 %v962
        %v4170 = vunpack.c.h.b16 %v962
        %v4171 = vunpack.c.l.b16 %v963
        %v4172 = vunpack.c.h.b16 %v963
        %v4173 = vunpack.c.l.b16 %v964
        %v4174 = vunpack.c.h.b16 %v964
        %v4175 = vunpack.c.l.b16 %v965
        %v4176 = vunpack.c.h.b16 %v965
        %v4177 = vunpack.c.l.b16 %v966
        %v4178 = vunpack.c.h.b16 %v966
        %v4179 = vunpack.c.l.b16 %v967
        %v4180 = vunpack.c.h.b16 %v967
        %v4181 = vunpack.c.l.b16 %v968
        %v4182 = vunpack.c.h.b16 %v968
        %v4183 = vunpack.c.l.b16 %v969
        %v4184 = vunpack.c.h.b16 %v969
        %v4185 = vunpack.c.l.b16 %v970
        %v4186 = vunpack.c.h.b16 %v970
        %v4187 = vunpack.c.l.b16 %v971
        %v4188 = vunpack.c.h.b16 %v971
        %v4189 = vunpack.c.l.b16 %v972
        %v4190 = vunpack.c.h.b16 %v972
        %v4191 = vunpack.c.l.b16 %v973
        %v4192 = vunpack.c.h.b16 %v973
        %v4193 = vunpack.c.l.b16 %v974
        %v4194 = vunpack.c.h.b16 %v974
        %v4195 = vunpack.c.l.b16 %v975
        %v4196 = vunpack.c.h.b16 %v975
        %v4197 = vunpack.c.l.b16 %v976
        %v4198 = vunpack.c.h.b16 %v976
        %v4199 = vunpack.c.l.b16 %v977
        %v4200 = vunpack.c.h.b16 %v977
        %v4201 = vunpack.c.l.b16 %v978
        %v4202 = vunpack.c.h.b16 %v978
        %v4203 = vunpack.c.l.b16 %v979
        %v4204 = vunpack.c.h.b16 %v979
        %v4205 = vunpack.c.l.b16 %v980
        %v4206 = vunpack.c.h.b16 %v980
        %v4207 = vunpack.c.l.b16 %v981
        %v4208 = vunpack.c.h.b16 %v981
        %v4209 = vunpack.c.l.b16 %v982
        %v4210 = vunpack.c.h.b16 %v982
        %v4211 = vunpack.c.l.b16 %v983
        %v4212 = vunpack.c.h.b16 %v983
        %v4213 = vunpack.c.l.b16 %v984
        %v4214 = vunpack.c.h.b16 %v984
        %v4215 = vunpack.c.l.b16 %v985
        %v4216 = vunpack.c.h.b16 %v985
        %v4217 = vunpack.c.l.b16 %v986
        %v4218 = vunpack.c.h.b16 %v986
        %v4219 = vunpack.c.l.b16 %v987
        %v4220 = vunpack.c.h.b16 %v987
        %v4221 = vunpack.c.l.b16 %v988
        %v4222 = vunpack.c.h.b16 %v988
        %v4223 = vunpack.c.l.b16 %v989
        %v4224 = vunpack.c.h.b16 %v989
        %v4225 = vunpack.c.l.b16 %v990
        %v4226 = vunpack.c.h.b16 %v990
        %v4227 = vunpack.c.l.b16 %v991
        %v4228 = vunpack.c.h.b16 %v991
        %v4229 = vunpack.c.l.b16 %v992
        %v4230 = vunpack.c.h.b16 %v992
        %v4231 = vunpack.c.l.b16 %v993
        %v4232 = vunpack.c.h.b16 %v993
        %v4233 = vunpack.c.l.b16 %v994
        %v4234 = vunpack.c.h.b16 %v994
        %v4235 = vunpack.c.l.b16 %v995
        %v4236 = vunpack.c.h.b16 %v995
        %v4237 = vunpack.c.l.b16 %v996
        %v4238 = vunpack.c.h.b16 %v996
        %v4239 = vunpack.c.l.b16 %v997
        %v4240 = vunpack.c.h.b16 %v997
        %v4241 = vunpack.c.l.b16 %v998
        %v4242 = vunpack.c.h.b16 %v998
        %v4243 = vunpack.c.l.b16 %v999
        %v4244 = vunpack.c.h.b16 %v999
        %v4245 = vunpack.c.l.b16 %v1000
        %v4246 = vunpack.c.h.b16 %v1000
        %v4247 = vunpack.c.l.b16 %v1001
        %v4248 = vunpack.c.h.b16 %v1001
        %v4249 = vunpack.c.l.b16 %v1002
        %v4250 = vunpack.c.h.b16 %v1002
        %v4251 = vunpack.c.l.b16 %v1003
        %v4252 = vunpack.c.h.b16 %v1003
        %v4253 = vunpack.c.l.b16 %v1004
        %v4254 = vunpack.c.h.b16 %v1004
        %v4255 = vunpack.c.l.b16 %v1005
        %v4256 = vunpack.c.h.b16 %v1005
        %v4257 = vunpack.c.l.b16 %v1006
        %v4258 = vunpack.c.h.b16 %v1006
        %v4259 = vunpack.c.l.b16 %v1007
        %v4260 = vunpack.c.h.b16 %v1007
        %v4261 = vunpack.c.l.b16 %v1008
        %v4262 = vunpack.c.h.b16 %v1008
        %v4263 = vunpack.c.l.b16 %v1009
        %v4264 = vunpack.c.h.b16 %v1009
        %v4265 = vunpack.c.l.b16 %v1010
        %v4266 = vunpack.c.h.b16 %v1010
        %v4267 = vunpack.c.l.b16 %v1011
        %v4268 = vunpack.c.h.b16 %v1011
        %v4269 = vunpack.c.l.b16 %v1012
        %v4270 = vunpack.c.h.b16 %v1012
        %v4271 = vunpack.c.l.b16 %v1013
        %v4272 = vunpack.c.h.b16 %v1013
        %v4273 = vunpack.c.l.b16 %v1014
        %v4274 = vunpack.c.h.b16 %v1014
        %v4275 = vunpack.c.l.b16 %v1015
        %v4276 = vunpack.c.h.b16 %v1015
        %v4277 = vunpack.c.l.b16 %v1016
        %v4278 = vunpack.c.h.b16 %v1016
        %v4279 = vunpack.c.l.b16 %v1017
        %v4280 = vunpack.c.h.b16 %v1017
        %v4281 = vunpack.c.l.b16 %v1018
        %v4282 = vunpack.c.h.b16 %v1018
        %v4283 = vunpack.c.l.b16 %v1019
        %v4284 = vunpack.c.h.b16 %v1019
        %v4285 = vunpack.c.l.b16 %v1020
        %v4286 = vunpack.c.h.b16 %v1020
        %v4287 = vunpack.c.l.b16 %v1021
        %v4288 = vunpack.c.h.b16 %v1021
        %v4289 = vunpack.c.l.b16 %v1022
        %v4290 = vunpack.c.h.b16 %v1022
        %v4291 = vunpack.c.l.b16 %v1023
        %v4292 = vunpack.c.h.b16 %v1023
        %v4293 = vunpack.c.l.b16 %v1024
        %v4294 = vunpack.c.h.b16 %v1024
        %v4295 = vunpack.c.l.b16 %v1025
        %v4296 = vunpack.c.h.b16 %v1025
        %v4297 = vunpack.c.l.b16 %v1026
        %v4298 = vunpack.c.h.b16 %v1026
        %v4299 = vunpack.c.l.b16 %v1027
        %v4300 = vunpack.c.h.b16 %v1027
        %v4301 = vunpack.c.l.b16 %v1028
        %v4302 = vunpack.c.h.b16 %v1028
        %v4303 = vunpack.c.l.b16 %v1029
        %v4304 = vunpack.c.h.b16 %v1029
        %v4305 = vunpack.c.l.b16 %v1030
        %v4306 = vunpack.c.h.b16 %v1030
        %v4307 = vunpack.c.l.b16 %v1031
        %v4308 = vunpack.c.h.b16 %v1031
        %v4309 = vunpack.c.l.b16 %v1032
        %v4310 = vunpack.c.h.b16 %v1032
        %v4311 = vunpack.c.l.b16 %v1033
        %v4312 = vunpack.c.h.b16 %v1033
        %v4313 = vunpack.c.l.b16 %v1034
        %v4314 = vunpack.c.h.b16 %v1034
        %v4315 = vunpack.c.l.b16 %v1035
        %v4316 = vunpack.c.h.b16 %v1035
        %v4317 = vunpack.c.l.b16 %v1036
        %v4318 = vunpack.c.h.b16 %v1036
        %v4319 = vunpack.c.l.b16 %v1037
        %v4320 = vunpack.c.h.b16 %v1037
        %v4321 = vunpack.c.l.b16 %v1038
        %v4322 = vunpack.c.h.b16 %v1038
        %v4323 = vunpack.c.l.b16 %v1039
        %v4324 = vunpack.c.h.b16 %v1039
        %v4325 = vunpack.c.l.b16 %v1040
        %v4326 = vunpack.c.h.b16 %v1040
        %v4327 = vunpack.c.l.b16 %v1041
        %v4328 = vunpack.c.h.b16 %v1041
        %v4329 = vunpack.c.l.b16 %v1042
        %v4330 = vunpack.c.h.b16 %v1042
        %v4331 = vunpack.c.l.b16 %v1043
        %v4332 = vunpack.c.h.b16 %v1043
        %v4333 = vunpack.c.l.b16 %v1044
        %v4334 = vunpack.c.h.b16 %v1044
        %v4335 = vunpack.c.l.b16 %v1045
        %v4336 = vunpack.c.h.b16 %v1045
        %v4337 = vunpack.c.l.b16 %v1046
        %v4338 = vunpack.c.h.b16 %v1046
        %v4339 = vunpack.c.l.b16 %v1047
        %v4340 = vunpack.c.h.b16 %v1047
        %v4341 = vunpack.c.l.b16 %v1048
        %v4342 = vunpack.c.h.b16 %v1048
        %v4343 = vunpack.c.l.b16 %v1049
        %v4344 = vunpack.c.h.b16 %v1049
        %v4345 = vunpack.c.l.b16 %v1050
        %v4346 = vunpack.c.h.b16 %v1050
        %v4347 = vunpack.c.l.b16 %v1051
        %v4348 = vunpack.c.h.b16 %v1051
        %v4349 = vunpack.c.l.b16 %v1052
        %v4350 = vunpack.c.h.b16 %v1052
        %v4351 = vunpack.c.l.b16 %v1053
        %v4352 = vunpack.c.h.b16 %v1053
        %v4353 = vunpack.c.l.b16 %v1054
        %v4354 = vunpack.c.h.b16 %v1054
        %v4355 = vunpack.c.l.b16 %v1055
        %v4356 = vunpack.c.h.b16 %v1055
        %v4357 = vunpack.c.l.b16 %v1056
        %v4358 = vunpack.c.h.b16 %v1056
        %v4359 = vunpack.c.l.b16 %v1057
        %v4360 = vunpack.c.h.b16 %v1057
        %v4361 = vunpack.c.l.b16 %v1058
        %v4362 = vunpack.c.h.b16 %v1058
        %v4363 = vunpack.c.l.b16 %v1059
        %v4364 = vunpack.c.h.b16 %v1059
        %v4365 = vunpack.c.l.b16 %v1060
        %v4366 = vunpack.c.h.b16 %v1060
        %v4367 = vunpack.c.l.b16 %v1061
        %v4368 = vunpack.c.h.b16 %v1061
        %v4369 = vunpack.c.l.b16 %v1062
        %v4370 = vunpack.c.h.b16 %v1062
        %v4371 = vunpack.c.l.b16 %v1063
        %v4372 = vunpack.c.h.b16 %v1063
        %v4373 = vunpack.c.l.b16 %v1064
        %v4374 = vunpack.c.h.b16 %v1064
        %v4375 = vunpack.c.l.b16 %v1065
        %v4376 = vunpack.c.h.b16 %v1065
        %v4377 = vunpack.c.l.b16 %v1066
        %v4378 = vunpack.c.h.b16 %v1066
        %v4379 = vunpack.c.l.b16 %v1067
        %v4380 = vunpack.c.h.b16 %v1067
        %v4381 = vunpack.c.l.b16 %v1068
        %v4382 = vunpack.c.h.b16 %v1068
        %v4383 = vunpack.c.l.b16 %v1069
        %v4384 = vunpack.c.h.b16 %v1069
        %v4385 = vunpack.c.l.b16 %v1070
        %v4386 = vunpack.c.h.b16 %v1070
        %v4387 = vunpack.c.l.b16 %v1071
        %v4388 = vunpack.c.h.b16 %v1071
        %v4389 = vunpack.c.l.b16 %v1072
        %v4390 = vunpack.c.h.b16 %v1072
        %v4391 = vunpack.c.l.b16 %v1073
        %v4392 = vunpack.c.h.b16 %v1073
        %v4393 = vunpack.c.l.b16 %v1074
        %v4394 = vunpack.c.h.b16 %v1074
        %v4395 = vunpack.c.l.b16 %v1075
        %v4396 = vunpack.c.h.b16 %v1075
        %v4397 = vunpack.c.l.b16 %v1076
        %v4398 = vunpack.c.h.b16 %v1076
        %v4399 = vunpack.c.l.b16 %v1077
        %v4400 = vunpack.c.h.b16 %v1077
        %v4401 = vunpack.c.l.b16 %v1078
        %v4402 = vunpack.c.h.b16 %v1078
        %v4403 = vunpack.c.l.b16 %v1079
        %v4404 = vunpack.c.h.b16 %v1079
        %v4405 = vunpack.c.l.b16 %v1080
        %v4406 = vunpack.c.h.b16 %v1080
        %v4407 = vunpack.c.l.b16 %v1081
        %v4408 = vunpack.c.h.b16 %v1081
        %v4409 = vunpack.c.l.b16 %v1082
        %v4410 = vunpack.c.h.b16 %v1082
        %v4411 = vunpack.c.l.b16 %v1083
        %v4412 = vunpack.c.h.b16 %v1083
        %v4413 = vunpack.c.l.b16 %v1084
        %v4414 = vunpack.c.h.b16 %v1084
        %v4415 = vunpack.c.l.b16 %v1085
        %v4416 = vunpack.c.h.b16 %v1085
        %v4417 = vunpack.c.l.b16 %v1086
        %v4418 = vunpack.c.h.b16 %v1086
        %v4419 = vunpack.c.l.b16 %v1087
        %v4420 = vunpack.c.h.b16 %v1087
        %v4421 = vunpack.c.l.b16 %v1088
        %v4422 = vunpack.c.h.b16 %v1088
        %v4423 = vunpack.c.l.b16 %v1089
        %v4424 = vunpack.c.h.b16 %v1089
        %v4425 = vunpack.c.l.b16 %v1090
        %v4426 = vunpack.c.h.b16 %v1090
        %v4427 = vunpack.c.l.b16 %v1091
        %v4428 = vunpack.c.h.b16 %v1091
        %v4429 = vunpack.c.l.b16 %v1092
        %v4430 = vunpack.c.h.b16 %v1092
        %v4431 = vunpack.c.l.b16 %v1093
        %v4432 = vunpack.c.h.b16 %v1093
        %v4433 = vunpack.c.l.b16 %v1094
        %v4434 = vunpack.c.h.b16 %v1094
        %v4435 = vunpack.c.l.b16 %v1095
        %v4436 = vunpack.c.h.b16 %v1095
        %v4437 = vunpack.c.l.b16 %v1096
        %v4438 = vunpack.c.h.b16 %v1096
        %v4439 = vunpack.c.l.b16 %v1097
        %v4440 = vunpack.c.h.b16 %v1097
        %v4441 = vunpack.c.l.b16 %v1098
        %v4442 = vunpack.c.h.b16 %v1098
        %v4443 = vunpack.c.l.b16 %v1099
        %v4444 = vunpack.c.h.b16 %v1099
        %v4445 = vunpack.c.l.b16 %v1100
        %v4446 = vunpack.c.h.b16 %v1100
        %v4447 = vunpack.c.l.b16 %v1101
        %v4448 = vunpack.c.h.b16 %v1101
        %v4449 = vunpack.c.l.b16 %v1102
        %v4450 = vunpack.c.h.b16 %v1102
        %v4451 = vunpack.c.l.b16 %v1103
        %v4452 = vunpack.c.h.b16 %v1103
        %v4453 = vunpack.c.l.b16 %v1104
        %v4454 = vunpack.c.h.b16 %v1104
        %v4455 = vunpack.c.l.b16 %v1105
        %v4456 = vunpack.c.h.b16 %v1105
        %v4457 = vunpack.c.l.b16 %v1106
        %v4458 = vunpack.c.h.b16 %v1106
        %v4459 = vunpack.c.l.b16 %v1107
        %v4460 = vunpack.c.h.b16 %v1107
        %v4461 = vunpack.c.l.b16 %v1108
        %v4462 = vunpack.c.h.b16 %v1108
        %v4463 = vunpack.c.l.b16 %v1109
        %v4464 = vunpack.c.h.b16 %v1109
        %v4465 = vunpack.c.l.b16 %v1110
        %v4466 = vunpack.c.h.b16 %v1110
        %v4467 = vunpack.c.l.b16 %v1111
        %v4468 = vunpack.c.h.b16 %v1111
        %v4469 = vunpack.c.l.b16 %v1112
        %v4470 = vunpack.c.h.b16 %v1112
        %v4471 = vunpack.c.l.b16 %v1113
        %v4472 = vunpack.c.h.b16 %v1113
        %v4473 = vunpack.c.l.b16 %v1114
        %v4474 = vunpack.c.h.b16 %v1114
        %v4475 = vunpack.c.l.b16 %v1115
        %v4476 = vunpack.c.h.b16 %v1115
        %v4477 = vunpack.c.l.b16 %v1116
        %v4478 = vunpack.c.h.b16 %v1116
        %v4479 = vunpack.c.l.b16 %v1117
        %v4480 = vunpack.c.h.b16 %v1117
        %v4481 = vunpack.c.l.b16 %v1118
        %v4482 = vunpack.c.h.b16 %v1118
        %v4483 = vunpack.c.l.b16 %v1119
        %v4484 = vunpack.c.h.b16 %v1119
        %v4485 = vunpack.c.l.b16 %v1120
        %v4486 = vunpack.c.h.b16 %v1120
        %v4487 = vunpack.c.l.b16 %v1121
        %v4488 = vunpack.c.h.b16 %v1121
        %v4489 = vunpack.c.l.b16 %v1122
        %v4490 = vunpack.c.h.b16 %v1122
        %v4491 = vunpack.c.l.b16 %v1123
        %v4492 = vunpack.c.h.b16 %v1123
        %v4493 = vunpack.c.l.b16 %v1124
        %v4494 = vunpack.c.h.b16 %v1124
        %v4495 = vunpack.c.l.b16 %v1125
        %v4496 = vunpack.c.h.b16 %v1125
        %v4497 = vunpack.c.l.b16 %v1126
        %v4498 = vunpack.c.h.b16 %v1126
        %v4499 = vunpack.c.l.b16 %v1127
        %v4500 = vunpack.c.h.b16 %v1127
        %v4501 = vunpack.c.l.b16 %v1128
        %v4502 = vunpack.c.h.b16 %v1128
        %v4503 = vunpack.c.l.b16 %v1129
        %v4504 = vunpack.c.h.b16 %v1129
        %v4505 = vunpack.c.l.b16 %v1130
        %v4506 = vunpack.c.h.b16 %v1130
        %v4507 = vunpack.c.l.b16 %v1131
        %v4508 = vunpack.c.h.b16 %v1131
        %v4509 = vunpack.c.l.b16 %v1132
        %v4510 = vunpack.c.h.b16 %v1132
        %v4511 = vunpack.c.l.b16 %v1133
        %v4512 = vunpack.c.h.b16 %v1133
        %v4513 = vunpack.c.l.b16 %v1134
        %v4514 = vunpack.c.h.b16 %v1134
        %v4515 = vunpack.c.l.b16 %v1135
        %v4516 = vunpack.c.h.b16 %v1135
        %v4517 = vunpack.c.l.b16 %v1136
        %v4518 = vunpack.c.h.b16 %v1136
        %v4519 = vunpack.c.l.b16 %v1137
        %v4520 = vunpack.c.h.b16 %v1137
        %v4521 = vunpack.c.l.b16 %v1138
        %v4522 = vunpack.c.h.b16 %v1138
        %v4523 = vunpack.c.l.b16 %v1139
        %v4524 = vunpack.c.h.b16 %v1139
        %v4525 = vunpack.c.l.b16 %v1140
        %v4526 = vunpack.c.h.b16 %v1140
        %v4527 = vunpack.c.l.b16 %v1141
        %v4528 = vunpack.c.h.b16 %v1141
        %v4529 = vunpack.c.l.b16 %v1142
        %v4530 = vunpack.c.h.b16 %v1142
        %v4531 = vunpack.c.l.b16 %v1143
        %v4532 = vunpack.c.h.b16 %v1143
        %v4533 = vunpack.c.l.b16 %v1144
        %v4534 = vunpack.c.h.b16 %v1144
        %v4535 = vunpack.c.l.b16 %v1145
        %v4536 = vunpack.c.h.b16 %v1145
        %v4537 = vunpack.c.l.b16 %v1146
        %v4538 = vunpack.c.h.b16 %v1146
        %v4539 = vunpack.c.l.b16 %v1147
        %v4540 = vunpack.c.h.b16 %v1147
        %v4541 = vunpack.c.l.b16 %v1148
        %v4542 = vunpack.c.h.b16 %v1148
        %v4543 = vunpack.c.l.b16 %v1149
        %v4544 = vunpack.c.h.b16 %v1149
        %v4545 = vunpack.c.l.b16 %v1150
        %v4546 = vunpack.c.h.b16 %v1150
        %v4547 = vunpack.c.l.b16 %v1151
        %v4548 = vunpack.c.h.b16 %v1151
        %v4549 = vunpack.c.l.b16 %v1152
        %v4550 = vunpack.c.h.b16 %v1152
        %v4551 = vunpack.c.l.b16 %v1153
        %v4552 = vunpack.c.h.b16 %v1153
        %v4553 = vunpack.c.l.b16 %v1154
        %v4554 = vunpack.c.h.b16 %v1154
        %v4555 = vunpack.c.l.b16 %v1155
        %v4556 = vunpack.c.h.b16 %v1155
        %v4557 = vunpack.c.l.b16 %v1156
        %v4558 = vunpack.c.h.b16 %v1156
        %v4559 = vunpack.c.l.b16 %v1157
        %v4560 = vunpack.c.h.b16 %v1157
        %v4561 = vunpack.c.l.b16 %v1158
        %v4562 = vunpack.c.h.b16 %v1158
        %v4563 = vunpack.c.l.b16 %v1159
        %v4564 = vunpack.c.h.b16 %v1159
        %v4565 = vunpack.c.l.b16 %v1160
        %v4566 = vunpack.c.h.b16 %v1160
        %v4567 = vunpack.c.l.b16 %v1161
        %v4568 = vunpack.c.h.b16 %v1161
        %v4569 = vunpack.c.l.b16 %v1162
        %v4570 = vunpack.c.h.b16 %v1162
        %v4571 = vunpack.c.l.b16 %v1163
        %v4572 = vunpack.c.h.b16 %v1163
        %v4573 = vunpack.c.l.b16 %v1164
        %v4574 = vunpack.c.h.b16 %v1164
        %v4575 = vunpack.c.l.b16 %v1165
        %v4576 = vunpack.c.h.b16 %v1165
        %v4577 = vunpack.c.l.b16 %v1166
        %v4578 = vunpack.c.h.b16 %v1166
        %v4579 = vunpack.c.l.b16 %v1167
        %v4580 = vunpack.c.h.b16 %v1167
        %v4581 = vunpack.c.l.b16 %v1168
        %v4582 = vunpack.c.h.b16 %v1168
        %v4583 = vunpack.c.l.b16 %v1169
        %v4584 = vunpack.c.h.b16 %v1169
        %v4585 = vunpack.c.l.b16 %v1170
        %v4586 = vunpack.c.h.b16 %v1170
        %v4587 = vunpack.c.l.b16 %v1171
        %v4588 = vunpack.c.h.b16 %v1171
        %v4589 = vunpack.c.l.b16 %v1172
        %v4590 = vunpack.c.h.b16 %v1172
        %v4591 = vunpack.c.l.b16 %v1173
        %v4592 = vunpack.c.h.b16 %v1173
        %v4593 = vunpack.c.l.b16 %v1174
        %v4594 = vunpack.c.h.b16 %v1174
        %v4595 = vunpack.c.l.b16 %v1175
        %v4596 = vunpack.c.h.b16 %v1175
        %v4597 = vunpack.c.l.b16 %v1176
        %v4598 = vunpack.c.h.b16 %v1176
        %v4599 = vunpack.c.l.b16 %v1177
        %v4600 = vunpack.c.h.b16 %v1177
        %v4601 = vunpack.c.l.b16 %v1178
        %v4602 = vunpack.c.h.b16 %v1178
        %v4603 = vunpack.c.l.b16 %v1179
        %v4604 = vunpack.c.h.b16 %v1179
        %v4605 = vunpack.c.l.b16 %v1180
        %v4606 = vunpack.c.h.b16 %v1180
        %v4607 = vunpack.c.l.b16 %v1181
        %v4608 = vunpack.c.h.b16 %v1181
        %v4609 = vunpack.c.l.b16 %v1182
        %v4610 = vunpack.c.h.b16 %v1182
        %v4611 = vunpack.c.l.b16 %v1183
        %v4612 = vunpack.c.h.b16 %v1183
        %v4613 = vunpack.c.l.b16 %v1184
        %v4614 = vunpack.c.h.b16 %v1184
        %v4615 = vunpack.c.l.b16 %v1185
        %v4616 = vunpack.c.h.b16 %v1185
        %v4617 = vunpack.c.l.b16 %v1186
        %v4618 = vunpack.c.h.b16 %v1186
        %v4619 = vunpack.c.l.b16 %v1187
        %v4620 = vunpack.c.h.b16 %v1187
        %v4621 = vunpack.c.l.b16 %v1188
        %v4622 = vunpack.c.h.b16 %v1188
        %v4623 = vunpack.c.l.b16 %v1189
        %v4624 = vunpack.c.h.b16 %v1189
        %v4625 = vunpack.c.l.b16 %v1190
        %v4626 = vunpack.c.h.b16 %v1190
        %v4627 = vunpack.c.l.b16 %v1191
        %v4628 = vunpack.c.h.b16 %v1191
        %v4629 = vunpack.c.l.b16 %v1192
        %v4630 = vunpack.c.h.b16 %v1192
        %v4631 = vunpack.c.l.b16 %v1193
        %v4632 = vunpack.c.h.b16 %v1193
        %v4633 = vunpack.c.l.b16 %v1194
        %v4634 = vunpack.c.h.b16 %v1194
        %v4635 = vunpack.c.l.b16 %v1195
        %v4636 = vunpack.c.h.b16 %v1195
        %v4637 = vunpack.c.l.b16 %v1196
        %v4638 = vunpack.c.h.b16 %v1196
        %v4639 = vunpack.c.l.b16 %v1197
        %v4640 = vunpack.c.h.b16 %v1197
        %v4641 = vunpack.c.l.b16 %v1198
        %v4642 = vunpack.c.h.b16 %v1198
        %v4643 = vunpack.c.l.b16 %v1199
        %v4644 = vunpack.c.h.b16 %v1199
        %v4645 = vunpack.c.l.b16 %v1200
        %v4646 = vunpack.c.h.b16 %v1200
        %v4647 = vunpack.c.l.b16 %v1201
        %v4648 = vunpack.c.h.b16 %v1201
        %v4649 = vunpack.c.l.b16 %v1202
        %v4650 = vunpack.c.h.b16 %v1202
        %v4651 = vunpack.c.l.b16 %v1203
        %v4652 = vunpack.c.h.b16 %v1203
        %v4653 = vunpack.c.l.b16 %v1204
        %v4654 = vunpack.c.h.b16 %v1204
        %v4655 = vunpack.c.l.b16 %v1205
        %v4656 = vunpack.c.h.b16 %v1205
        %v4657 = vunpack.c.l.b16 %v1206
        %v4658 = vunpack.c.h.b16 %v1206
        %v4659 = vunpack.c.l.b16 %v1207
        %v4660 = vunpack.c.h.b16 %v1207
        %v4661 = vunpack.c.l.b16 %v1208
        %v4662 = vunpack.c.h.b16 %v1208
        %v4663 = vunpack.c.l.b16 %v1209
        %v4664 = vunpack.c.h.b16 %v1209
        %v4665 = vunpack.c.l.b16 %v1210
        %v4666 = vunpack.c.h.b16 %v1210
        %v4667 = vunpack.c.l.b16 %v1211
        %v4668 = vunpack.c.h.b16 %v1211
        %v4669 = vunpack.c.l.b16 %v1212
        %v4670 = vunpack.c.h.b16 %v1212
        %v4671 = vunpack.c.l.b16 %v1213
        %v4672 = vunpack.c.h.b16 %v1213
        %v4673 = vunpack.c.l.b16 %v1214
        %v4674 = vunpack.c.h.b16 %v1214
        %v4675 = vunpack.c.l.b16 %v1215
        %v4676 = vunpack.c.h.b16 %v1215
        %v4677 = vunpack.c.l.b16 %v1216
        %v4678 = vunpack.c.h.b16 %v1216
        %v4679 = vunpack.c.l.b16 %v1217
        %v4680 = vunpack.c.h.b16 %v1217
        %v4681 = vunpack.c.l.b16 %v1218
        %v4682 = vunpack.c.h.b16 %v1218
        %v4683 = vunpack.c.l.b16 %v1219
        %v4684 = vunpack.c.h.b16 %v1219
        %v4685 = vunpack.c.l.b16 %v1220
        %v4686 = vunpack.c.h.b16 %v1220
        %v4687 = vunpack.c.l.b16 %v1221
        %v4688 = vunpack.c.h.b16 %v1221
        %v4689 = vunpack.c.l.b16 %v1222
        %v4690 = vunpack.c.h.b16 %v1222
        %v4691 = vunpack.c.l.b16 %v1223
        %v4692 = vunpack.c.h.b16 %v1223
        %v4693 = vunpack.c.l.b16 %v1224
        %v4694 = vunpack.c.h.b16 %v1224
        %v4695 = vunpack.c.l.b16 %v1225
        %v4696 = vunpack.c.h.b16 %v1225
        %v4697 = vunpack.c.l.b16 %v1226
        %v4698 = vunpack.c.h.b16 %v1226
        %v4699 = vunpack.c.l.b16 %v1227
        %v4700 = vunpack.c.h.b16 %v1227
        %v4701 = vunpack.c.l.b16 %v1228
        %v4702 = vunpack.c.h.b16 %v1228
        %v4703 = vunpack.c.l.b16 %v1229
        %v4704 = vunpack.c.h.b16 %v1229
        %v4705 = vunpack.c.l.b16 %v1230
        %v4706 = vunpack.c.h.b16 %v1230
        %v4707 = vunpack.c.l.b16 %v1231
        %v4708 = vunpack.c.h.b16 %v1231
        %v4709 = vunpack.c.l.b16 %v1232
        %v4710 = vunpack.c.h.b16 %v1232
        %v4711 = vunpack.c.l.b16 %v1233
        %v4712 = vunpack.c.h.b16 %v1233
        %v4713 = vunpack.c.l.b16 %v1234
        %v4714 = vunpack.c.h.b16 %v1234
        %v4715 = vunpack.c.l.b16 %v1235
        %v4716 = vunpack.c.h.b16 %v1235
        %v4717 = vunpack.c.l.b16 %v1236
        %v4718 = vunpack.c.h.b16 %v1236
        %v4719 = vunpack.c.l.b16 %v1237
        %v4720 = vunpack.c.h.b16 %v1237
        %v4721 = vunpack.c.l.b16 %v1238
        %v4722 = vunpack.c.h.b16 %v1238
        %v4723 = vunpack.c.l.b16 %v1239
        %v4724 = vunpack.c.h.b16 %v1239
        %v4725 = vunpack.c.l.b16 %v1240
        %v4726 = vunpack.c.h.b16 %v1240
        %v4727 = vunpack.c.l.b16 %v1241
        %v4728 = vunpack.c.h.b16 %v1241
        %v4729 = vunpack.c.l.b16 %v1242
        %v4730 = vunpack.c.h.b16 %v1242
        %v4731 = vunpack.c.l.b16 %v1243
        %v4732 = vunpack.c.h.b16 %v1243
        %v4733 = vunpack.c.l.b16 %v1244
        %v4734 = vunpack.c.h.b16 %v1244
        %v4735 = vunpack.c.l.b16 %v1245
        %v4736 = vunpack.c.h.b16 %v1245
        %v4737 = vunpack.c.l.b16 %v1246
        %v4738 = vunpack.c.h.b16 %v1246
        %v4739 = vunpack.c.l.b16 %v1247
        %v4740 = vunpack.c.h.b16 %v1247
        %v4741 = vunpack.c.l.b16 %v1248
        %v4742 = vunpack.c.h.b16 %v1248
        %v4743 = vunpack.c.l.b16 %v1249
        %v4744 = vunpack.c.h.b16 %v1249
        %v4745 = vunpack.c.l.b16 %v1250
        %v4746 = vunpack.c.h.b16 %v1250
        %v4747 = vunpack.c.l.b16 %v1251
        %v4748 = vunpack.c.h.b16 %v1251
        %v4749 = vunpack.c.l.b16 %v1252
        %v4750 = vunpack.c.h.b16 %v1252
        %v4751 = vunpack.c.l.b16 %v1253
        %v4752 = vunpack.c.h.b16 %v1253
        %v4753 = vunpack.c.l.b16 %v1254
        %v4754 = vunpack.c.h.b16 %v1254
        %v4755 = vunpack.c.l.b16 %v1255
        %v4756 = vunpack.c.h.b16 %v1255
        %v4757 = vunpack.c.l.b16 %v1256
        %v4758 = vunpack.c.h.b16 %v1256
        %v4759 = vunpack.c.l.b16 %v1257
        %v4760 = vunpack.c.h.b16 %v1257
        %v4761 = vunpack.c.l.b16 %v1258
        %v4762 = vunpack.c.h.b16 %v1258
        %v4763 = vunpack.c.l.b16 %v1259
        %v4764 = vunpack.c.h.b16 %v1259
        %v4765 = vunpack.c.l.b16 %v1260
        %v4766 = vunpack.c.h.b16 %v1260
        %v4767 = vunpack.c.l.b16 %v1261
        %v4768 = vunpack.c.h.b16 %v1261
        %v4769 = vunpack.c.l.b16 %v1262
        %v4770 = vunpack.c.h.b16 %v1262
        %v4771 = vunpack.c.l.b16 %v1263
        %v4772 = vunpack.c.h.b16 %v1263
        %v4773 = vunpack.c.l.b16 %v1264
        %v4774 = vunpack.c.h.b16 %v1264
        %v4775 = vunpack.c.l.b16 %v1265
        %v4776 = vunpack.c.h.b16 %v1265
        %v4777 = vunpack.c.l.b16 %v1266
        %v4778 = vunpack.c.h.b16 %v1266
        %v4779 = vunpack.c.l.b16 %v1267
        %v4780 = vunpack.c.h.b16 %v1267
        %v4781 = vunpack.c.l.b16 %v1268
        %v4782 = vunpack.c.h.b16 %v1268
        %v4783 = vunpack.c.l.b16 %v1269
        %v4784 = vunpack.c.h.b16 %v1269
        %v4785 = vunpack.c.l.b16 %v1270
        %v4786 = vunpack.c.h.b16 %v1270
        %v4787 = vunpack.c.l.b16 %v1271
        %v4788 = vunpack.c.h.b16 %v1271
        %v4789 = vunpack.c.l.b16 %v1272
        %v4790 = vunpack.c.h.b16 %v1272
        %v4791 = vunpack.c.l.b16 %v1273
        %v4792 = vunpack.c.h.b16 %v1273
        %v4793 = vunpack.c.l.b16 %v1274
        %v4794 = vunpack.c.h.b16 %v1274
        %v4795 = vunpack.c.l.b16 %v1275
        %v4796 = vunpack.c.h.b16 %v1275
        %v4797 = vunpack.c.l.b16 %v1276
        %v4798 = vunpack.c.h.b16 %v1276
        %v4799 = vunpack.c.l.b16 %v1277
        %v4800 = vunpack.c.h.b16 %v1277
        %v4801 = vunpack.c.l.b16 %v1278
        %v4802 = vunpack.c.h.b16 %v1278
        %v4803 = vunpack.c.l.b16 %v1279
        %v4804 = vunpack.c.h.b16 %v1279
        %v4805 = vunpack.c.l.b16 %v1280
        %v4806 = vunpack.c.h.b16 %v1280
        %v4807 = vunpack.c.l.b16 %v1281
        %v4808 = vunpack.c.h.b16 %v1281
        %v4809 = vunpack.c.l.b16 %v1282
        %v4810 = vunpack.c.h.b16 %v1282
        %v4811 = vunpack.c.l.b16 %v1283
        %v4812 = vunpack.c.h.b16 %v1283
        %v4813 = vunpack.c.l.b16 %v1284
        %v4814 = vunpack.c.h.b16 %v1284
        %v4815 = vunpack.c.l.b16 %v1285
        %v4816 = vunpack.c.h.b16 %v1285
        %v4817 = vunpack.c.l.b16 %v1286
        %v4818 = vunpack.c.h.b16 %v1286
        %v4819 = vunpack.c.l.b16 %v1287
        %v4820 = vunpack.c.h.b16 %v1287
        %v4821 = vunpack.c.l.b16 %v1288
        %v4822 = vunpack.c.h.b16 %v1288
        %v4823 = vunpack.c.l.b16 %v1289
        %v4824 = vunpack.c.h.b16 %v1289
        %v4825 = vunpack.c.l.b16 %v1290
        %v4826 = vunpack.c.h.b16 %v1290
        %v4827 = vunpack.c.l.b16 %v1291
        %v4828 = vunpack.c.h.b16 %v1291
        %v4829 = vunpack.c.l.b16 %v1292
        %v4830 = vunpack.c.h.b16 %v1292
        %v4831 = vunpack.c.l.b16 %v1293
        %v4832 = vunpack.c.h.b16 %v1293
        %v4833 = vunpack.c.l.b16 %v1294
        %v4834 = vunpack.c.h.b16 %v1294
        %v4835 = vunpack.c.l.b16 %v1295
        %v4836 = vunpack.c.h.b16 %v1295
        %v4837 = vunpack.c.l.b16 %v1296
        %v4838 = vunpack.c.h.b16 %v1296
        %v4839 = vunpack.c.l.b16 %v1297
        %v4840 = vunpack.c.h.b16 %v1297
        %v4841 = vunpack.c.l.b16 %v1298
        %v4842 = vunpack.c.h.b16 %v1298
        %v4843 = vunpack.c.l.b16 %v1299
        %v4844 = vunpack.c.h.b16 %v1299
        %v4845 = vunpack.c.l.b16 %v1300
        %v4846 = vunpack.c.h.b16 %v1300
        %v4847 = vunpack.c.l.b16 %v1301
        %v4848 = vunpack.c.h.b16 %v1301
        %v4849 = vunpack.c.l.b16 %v1302
        %v4850 = vunpack.c.h.b16 %v1302
        %v4851 = vunpack.c.l.b16 %v1303
        %v4852 = vunpack.c.h.b16 %v1303
        %v4853 = vunpack.c.l.b16 %v1304
        %v4854 = vunpack.c.h.b16 %v1304
        %v4855 = vunpack.c.l.b16 %v1305
        %v4856 = vunpack.c.h.b16 %v1305
        %v4857 = vunpack.c.l.b16 %v1306
        %v4858 = vunpack.c.h.b16 %v1306
        %v4859 = vunpack.c.l.b16 %v1307
        %v4860 = vunpack.c.h.b16 %v1307
        %v4861 = vunpack.c.l.b16 %v1308
        %v4862 = vunpack.c.h.b16 %v1308
        %v4863 = vunpack.c.l.b16 %v1309
        %v4864 = vunpack.c.h.b16 %v1309
        %v4865 = vunpack.c.l.b16 %v1310
        %v4866 = vunpack.c.h.b16 %v1310
        %v4867 = vunpack.c.l.b16 %v1311
        %v4868 = vunpack.c.h.b16 %v1311
        %v4869 = vunpack.c.l.b16 %v1312
        %v4870 = vunpack.c.h.b16 %v1312
        %v4871 = vunpack.c.l.b16 %v1313
        %v4872 = vunpack.c.h.b16 %v1313
        %v4873 = vunpack.c.l.b16 %v1314
        %v4874 = vunpack.c.h.b16 %v1314
        %v4875 = vunpack.c.l.b16 %v1315
        %v4876 = vunpack.c.h.b16 %v1315
        %v4877 = vunpack.c.l.b16 %v1316
        %v4878 = vunpack.c.h.b16 %v1316
        %v4879 = vunpack.c.l.b16 %v1317
        %v4880 = vunpack.c.h.b16 %v1317
        %v4881 = vunpack.c.l.b16 %v1318
        %v4882 = vunpack.c.h.b16 %v1318
        %v4883 = vunpack.c.l.b16 %v1319
        %v4884 = vunpack.c.h.b16 %v1319
        %v4885 = vunpack.c.l.b16 %v1320
        %v4886 = vunpack.c.h.b16 %v1320
        %v4887 = vunpack.c.l.b16 %v1321
        %v4888 = vunpack.c.h.b16 %v1321
        %v4889 = vunpack.c.l.b16 %v1322
        %v4890 = vunpack.c.h.b16 %v1322
        %v4891 = vunpack.c.l.b16 %v1323
        %v4892 = vunpack.c.h.b16 %v1323
        %v4893 = vunpack.c.l.b16 %v1324
        %v4894 = vunpack.c.h.b16 %v1324
        %v4895 = vunpack.c.l.b16 %v1325
        %v4896 = vunpack.c.h.b16 %v1325
        %v4897 = vunpack.c.l.b16 %v1326
        %v4898 = vunpack.c.h.b16 %v1326
        %v4899 = vunpack.c.l.b16 %v1327
        %v4900 = vunpack.c.h.b16 %v1327
        %v4901 = vunpack.c.l.b16 %v1328
        %v4902 = vunpack.c.h.b16 %v1328
        %v4903 = vunpack.c.l.b16 %v1329
        %v4904 = vunpack.c.h.b16 %v1329
        %v4905 = vunpack.c.l.b16 %v1330
        %v4906 = vunpack.c.h.b16 %v1330
        %v4907 = vunpack.c.l.b16 %v1331
        %v4908 = vunpack.c.h.b16 %v1331
        %v4909 = vunpack.c.l.b16 %v1332
        %v4910 = vunpack.c.h.b16 %v1332
        %v4911 = vunpack.c.l.b16 %v1333
        %v4912 = vunpack.c.h.b16 %v1333
        %v4913 = vunpack.c.l.b16 %v1334
        %v4914 = vunpack.c.h.b16 %v1334
        %v4915 = vunpack.c.l.b16 %v1335
        %v4916 = vunpack.c.h.b16 %v1335
        %v4917 = vunpack.c.l.b16 %v1336
        %v4918 = vunpack.c.h.b16 %v1336
        %v4919 = vunpack.c.l.b16 %v1337
        %v4920 = vunpack.c.h.b16 %v1337
        %v4921 = vunpack.c.l.b16 %v1338
        %v4922 = vunpack.c.h.b16 %v1338
        %v4923 = vunpack.c.l.b16 %v1339
        %v4924 = vunpack.c.h.b16 %v1339
        %v4925 = vunpack.c.l.b16 %v1340
        %v4926 = vunpack.c.h.b16 %v1340
        %v4927 = vunpack.c.l.b16 %v1341
        %v4928 = vunpack.c.h.b16 %v1341
        %v4929 = vunpack.c.l.b16 %v1342
        %v4930 = vunpack.c.h.b16 %v1342
        %v4931 = vunpack.c.l.b16 %v1343
        %v4932 = vunpack.c.h.b16 %v1343
        %v4933 = vunpack.c.l.b16 %v1344
        %v4934 = vunpack.c.h.b16 %v1344
        %v4935 = vunpack.c.l.b16 %v1345
        %v4936 = vunpack.c.h.b16 %v1345
        %v4937 = vunpack.c.l.b16 %v1346
        %v4938 = vunpack.c.h.b16 %v1346
        %v4939 = vunpack.c.l.b16 %v1347
        %v4940 = vunpack.c.h.b16 %v1347
        %v4941 = vunpack.c.l.b16 %v1348
        %v4942 = vunpack.c.h.b16 %v1348
        %v4943 = vunpack.c.l.b16 %v1349
        %v4944 = vunpack.c.h.b16 %v1349
        %v4945 = vunpack.c.l.b16 %v1350
        %v4946 = vunpack.c.h.b16 %v1350
        %v4947 = vunpack.c.l.b16 %v1351
        %v4948 = vunpack.c.h.b16 %v1351
        %v4949 = vunpack.c.l.b16 %v1352
        %v4950 = vunpack.c.h.b16 %v1352
        %v4951 = vunpack.c.l.b16 %v1353
        %v4952 = vunpack.c.h.b16 %v1353
        %v4953 = vunpack.c.l.b16 %v1354
        %v4954 = vunpack.c.h.b16 %v1354
        %v4955 = vunpack.c.l.b16 %v1355
        %v4956 = vunpack.c.h.b16 %v1355
        %v4957 = vunpack.c.l.b16 %v1356
        %v4958 = vunpack.c.h.b16 %v1356
        %v4959 = vunpack.c.l.b16 %v1357
        %v4960 = vunpack.c.h.b16 %v1357
        %v4961 = vunpack.c.l.b16 %v1358
        %v4962 = vunpack.c.h.b16 %v1358
        %v4963 = vunpack.c.l.b16 %v1359
        %v4964 = vunpack.c.h.b16 %v1359
        %v4965 = vunpack.c.l.b16 %v1360
        %v4966 = vunpack.c.h.b16 %v1360
        %v4967 = vunpack.c.l.b16 %v1361
        %v4968 = vunpack.c.h.b16 %v1361
        %v4969 = vunpack.c.l.b16 %v1362
        %v4970 = vunpack.c.h.b16 %v1362
        %v4971 = vunpack.c.l.b16 %v1363
        %v4972 = vunpack.c.h.b16 %v1363
        %v4973 = vunpack.c.l.b16 %v1364
        %v4974 = vunpack.c.h.b16 %v1364
        %v4975 = vunpack.c.l.b16 %v1365
        %v4976 = vunpack.c.h.b16 %v1365
        %v4977 = vunpack.c.l.b16 %v1366
        %v4978 = vunpack.c.h.b16 %v1366
        %v4979 = vunpack.c.l.b16 %v1367
        %v4980 = vunpack.c.h.b16 %v1367
        %v4981 = vunpack.c.l.b16 %v1368
        %v4982 = vunpack.c.h.b16 %v1368
        %v4983 = vunpack.c.l.b16 %v1369
        %v4984 = vunpack.c.h.b16 %v1369
        %v4985 = vunpack.c.l.b16 %v1370
        %v4986 = vunpack.c.h.b16 %v1370
        %v4987 = vunpack.c.l.b16 %v1371
        %v4988 = vunpack.c.h.b16 %v1371
        %v4989 = vunpack.c.l.b16 %v1372
        %v4990 = vunpack.c.h.b16 %v1372
        %v4991 = vunpack.c.l.b16 %v1373
        %v4992 = vunpack.c.h.b16 %v1373
        %v4993 = vunpack.c.l.b16 %v1374
        %v4994 = vunpack.c.h.b16 %v1374
        %v4995 = vunpack.c.l.b16 %v1375
        %v4996 = vunpack.c.h.b16 %v1375
        %v4997 = vunpack.c.l.b16 %v1376
        %v4998 = vunpack.c.h.b16 %v1376
        %v4999 = vunpack.c.l.b16 %v1377
        %v5000 = vunpack.c.h.b16 %v1377
        %v5001 = vunpack.c.l.b16 %v1378
        %v5002 = vunpack.c.h.b16 %v1378
        %v5003 = vunpack.c.l.b16 %v1379
        %v5004 = vunpack.c.h.b16 %v1379
        %v5005 = vunpack.c.l.b16 %v1380
        %v5006 = vunpack.c.h.b16 %v1380
        %v5007 = vunpack.c.l.b16 %v1381
        %v5008 = vunpack.c.h.b16 %v1381
        %v5009 = vunpack.c.l.b16 %v1382
        %v5010 = vunpack.c.h.b16 %v1382
        %v5011 = vunpack.c.l.b16 %v1383
        %v5012 = vunpack.c.h.b16 %v1383
        %v5013 = vunpack.c.l.b16 %v1384
        %v5014 = vunpack.c.h.b16 %v1384
        %v5015 = vunpack.c.l.b16 %v1385
        %v5016 = vunpack.c.h.b16 %v1385
        %v5017 = vunpack.c.l.b16 %v1386
        %v5018 = vunpack.c.h.b16 %v1386
        %v5019 = vunpack.c.l.b16 %v1387
        %v5020 = vunpack.c.h.b16 %v1387
        %v5021 = vunpack.c.l.b16 %v1388
        %v5022 = vunpack.c.h.b16 %v1388
        %v5023 = vunpack.c.l.b16 %v1389
        %v5024 = vunpack.c.h.b16 %v1389
        %v5025 = vunpack.c.l.b16 %v1390
        %v5026 = vunpack.c.h.b16 %v1390
        %v5027 = vunpack.c.l.b16 %v1391
        %v5028 = vunpack.c.h.b16 %v1391
        %v5029 = vunpack.c.l.b16 %v1392
        %v5030 = vunpack.c.h.b16 %v1392
        %v5031 = vunpack.c.l.b16 %v1393
        %v5032 = vunpack.c.h.b16 %v1393
        %v5033 = vunpack.c.l.b16 %v1394
        %v5034 = vunpack.c.h.b16 %v1394
        %v5035 = vunpack.c.l.b16 %v1395
        %v5036 = vunpack.c.h.b16 %v1395
        %v5037 = vunpack.c.l.b16 %v1396
        %v5038 = vunpack.c.h.b16 %v1396
        %v5039 = vunpack.c.l.b16 %v1397
        %v5040 = vunpack.c.h.b16 %v1397
        %v5041 = vunpack.c.l.b16 %v1398
        %v5042 = vunpack.c.h.b16 %v1398
        %v5043 = vunpack.c.l.b16 %v1399
        %v5044 = vunpack.c.h.b16 %v1399
        %v5045 = vunpack.c.l.b16 %v1400
        %v5046 = vunpack.c.h.b16 %v1400
        %v5047 = vunpack.c.l.b16 %v1401
        %v5048 = vunpack.c.h.b16 %v1401
        %v5049 = vunpack.c.l.b16 %v1402
        %v5050 = vunpack.c.h.b16 %v1402
        %v5051 = vunpack.c.l.b16 %v1403
        %v5052 = vunpack.c.h.b16 %v1403
        %v5053 = vunpack.c.l.b16 %v1404
        %v5054 = vunpack.c.h.b16 %v1404
        %v5055 = vunpack.c.l.b16 %v1405
        %v5056 = vunpack.c.h.b16 %v1405
        %v5057 = vunpack.c.l.b16 %v1406
        %v5058 = vunpack.c.h.b16 %v1406
        %v5059 = vunpack.c.l.b16 %v1407
        %v5060 = vunpack.c.h.b16 %v1407
        %v5061 = vunpack.c.l.b16 %v1408
        %v5062 = vunpack.c.h.b16 %v1408
        %v5063 = vunpack.c.l.b16 %v1409
        %v5064 = vunpack.c.h.b16 %v1409
        %v5065 = vunpack.c.l.b16 %v1410
        %v5066 = vunpack.c.h.b16 %v1410
        %v5067 = vunpack.c.l.b16 %v1411
        %v5068 = vunpack.c.h.b16 %v1411
        %v5069 = vunpack.c.l.b16 %v1412
        %v5070 = vunpack.c.h.b16 %v1412
        %v5071 = vunpack.c.l.b16 %v1413
        %v5072 = vunpack.c.h.b16 %v1413
        %v5073 = vunpack.c.l.b16 %v1414
        %v5074 = vunpack.c.h.b16 %v1414
        %v5075 = vunpack.c.l.b16 %v1415
        %v5076 = vunpack.c.h.b16 %v1415
        %v5077 = vunpack.c.l.b16 %v1416
        %v5078 = vunpack.c.h.b16 %v1416
        %v5079 = vunpack.c.l.b16 %v1417
        %v5080 = vunpack.c.h.b16 %v1417
        %v5081 = vunpack.c.l.b16 %v1418
        %v5082 = vunpack.c.h.b16 %v1418
        %v5083 = vunpack.c.l.b16 %v1419
        %v5084 = vunpack.c.h.b16 %v1419
        %v5085 = vunpack.c.l.b16 %v1420
        %v5086 = vunpack.c.h.b16 %v1420
        %v5087 = vunpack.c.l.b16 %v1421
        %v5088 = vunpack.c.h.b16 %v1421
        %v5089 = vunpack.c.l.b16 %v1422
        %v5090 = vunpack.c.h.b16 %v1422
        %v5091 = vunpack.c.l.b16 %v1423
        %v5092 = vunpack.c.h.b16 %v1423
        %v5093 = vunpack.c.l.b16 %v1424
        %v5094 = vunpack.c.h.b16 %v1424
        %v5095 = vunpack.c.l.b16 %v1425
        %v5096 = vunpack.c.h.b16 %v1425
        %v5097 = vunpack.c.l.b16 %v1426
        %v5098 = vunpack.c.h.b16 %v1426
        %v5099 = vunpack.c.l.b16 %v1427
        %v5100 = vunpack.c.h.b16 %v1427
        %v5101 = vunpack.c.l.b16 %v1428
        %v5102 = vunpack.c.h.b16 %v1428
        %v5103 = vunpack.c.l.b16 %v1429
        %v5104 = vunpack.c.h.b16 %v1429
        %v5105 = vunpack.c.l.b16 %v1430
        %v5106 = vunpack.c.h.b16 %v1430
        %v5107 = vunpack.c.l.b16 %v1431
        %v5108 = vunpack.c.h.b16 %v1431
        %v5109 = vunpack.c.l.b16 %v1432
        %v5110 = vunpack.c.h.b16 %v1432
        %v5111 = vunpack.c.l.b16 %v1433
        %v5112 = vunpack.c.h.b16 %v1433
        %v5113 = vunpack.c.l.b16 %v1434
        %v5114 = vunpack.c.h.b16 %v1434
        %v5115 = vunpack.c.l.b16 %v1435
        %v5116 = vunpack.c.h.b16 %v1435
        %v5117 = vunpack.c.l.b16 %v1436
        %v5118 = vunpack.c.h.b16 %v1436
        %v5119 = vunpack.c.l.b16 %v1437
        %v5120 = vunpack.c.h.b16 %v1437
        %v5121 = vunpack.c.l.b16 %v1438
        %v5122 = vunpack.c.h.b16 %v1438
        %v5123 = vunpack.c.l.b16 %v1439
        %v5124 = vunpack.c.h.b16 %v1439
        %v5125 = vunpack.c.l.b16 %v1440
        %v5126 = vunpack.c.h.b16 %v1440
        %v5127 = vunpack.c.l.b16 %v1441
        %v5128 = vunpack.c.h.b16 %v1441
        %v5129 = vunpack.c.l.b16 %v1442
        %v5130 = vunpack.c.h.b16 %v1442
        %v5131 = vunpack.c.l.b16 %v1443
        %v5132 = vunpack.c.h.b16 %v1443
        %v5133 = vunpack.c.l.b16 %v1444
        %v5134 = vunpack.c.h.b16 %v1444
        %v5135 = vunpack.c.l.b16 %v1445
        %v5136 = vunpack.c.h.b16 %v1445
        %v5137 = vunpack.c.l.b16 %v1446
        %v5138 = vunpack.c.h.b16 %v1446
        %v5139 = vunpack.c.l.b16 %v1447
        %v5140 = vunpack.c.h.b16 %v1447
        %v5141 = vunpack.c.l.b16 %v1448
        %v5142 = vunpack.c.h.b16 %v1448
        %v5143 = vunpack.c.l.b16 %v1449
        %v5144 = vunpack.c.h.b16 %v1449
        %v5145 = vunpack.c.l.b16 %v1450
        %v5146 = vunpack.c.h.b16 %v1450
        %v5147 = vunpack.c.l.b16 %v1451
        %v5148 = vunpack.c.h.b16 %v1451
        %v5149 = vunpack.c.l.b16 %v1452
        %v5150 = vunpack.c.h.b16 %v1452
        %v5151 = vunpack.c.l.b16 %v1453
        %v5152 = vunpack.c.h.b16 %v1453
        %v5153 = vunpack.c.l.b16 %v1454
        %v5154 = vunpack.c.h.b16 %v1454
        %v5155 = vunpack.c.l.b16 %v1455
        %v5156 = vunpack.c.h.b16 %v1455
        %v5157 = vunpack.c.l.b16 %v1456
        %v5158 = vunpack.c.h.b16 %v1456
        %v5159 = vunpack.c.l.b16 %v1457
        %v5160 = vunpack.c.h.b16 %v1457
        %v5161 = vunpack.c.l.b16 %v1458
        %v5162 = vunpack.c.h.b16 %v1458
        %v5163 = vunpack.c.l.b16 %v1459
        %v5164 = vunpack.c.h.b16 %v1459
        %v5165 = vunpack.c.l.b16 %v1460
        %v5166 = vunpack.c.h.b16 %v1460
        %v5167 = vunpack.c.l.b16 %v1461
        %v5168 = vunpack.c.h.b16 %v1461
        %v5169 = vunpack.c.l.b16 %v1462
        %v5170 = vunpack.c.h.b16 %v1462
        %v5171 = vunpack.c.l.b16 %v1463
        %v5172 = vunpack.c.h.b16 %v1463
        %v5173 = vunpack.c.l.b16 %v1464
        %v5174 = vunpack.c.h.b16 %v1464
        %v5175 = vunpack.c.l.b16 %v1465
        %v5176 = vunpack.c.h.b16 %v1465
        %v5177 = vunpack.c.l.b16 %v1466
        %v5178 = vunpack.c.h.b16 %v1466
        %v5179 = vunpack.c.l.b16 %v1467
        %v5180 = vunpack.c.h.b16 %v1467
        %v5181 = vunpack.c.l.b16 %v1468
        %v5182 = vunpack.c.h.b16 %v1468
        %v5183 = vunpack.c.l.b16 %v1469
        %v5184 = vunpack.c.h.b16 %v1469
        %v5185 = vunpack.c.l.b16 %v1470
        %v5186 = vunpack.c.h.b16 %v1470
        %v5187 = vunpack.c.l.b16 %v1471
        %v5188 = vunpack.c.h.b16 %v1471
        %v5189 = vunpack.c.l.b16 %v1472
        %v5190 = vunpack.c.h.b16 %v1472
        %v5191 = vunpack.c.l.b16 %v1473
        %v5192 = vunpack.c.h.b16 %v1473
        %v5193 = vunpack.c.l.b16 %v1474
        %v5194 = vunpack.c.h.b16 %v1474
        %v5195 = vunpack.c.l.b16 %v1475
        %v5196 = vunpack.c.h.b16 %v1475
        %v5197 = vunpack.c.l.b16 %v1476
        %v5198 = vunpack.c.h.b16 %v1476
        %v5199 = vunpack.c.l.b16 %v1477
        %v5200 = vunpack.c.h.b16 %v1477
        %v5201 = vunpack.c.l.b16 %v1478
        %v5202 = vunpack.c.h.b16 %v1478
        %v5203 = vunpack.c.l.b16 %v1479
        %v5204 = vunpack.c.h.b16 %v1479
        %v5205 = vunpack.c.l.b16 %v1480
        %v5206 = vunpack.c.h.b16 %v1480
        %v5207 = vunpack.c.l.b16 %v1481
        %v5208 = vunpack.c.h.b16 %v1481
        %v5209 = vunpack.c.l.b16 %v1482
        %v5210 = vunpack.c.h.b16 %v1482
        %v5211 = vunpack.c.l.b16 %v1483
        %v5212 = vunpack.c.h.b16 %v1483
        %v5213 = vunpack.c.l.b16 %v1484
        %v5214 = vunpack.c.h.b16 %v1484
        %v5215 = vunpack.c.l.b16 %v1485
        %v5216 = vunpack.c.h.b16 %v1485
        %v5217 = vunpack.c.l.b16 %v1486
        %v5218 = vunpack.c.h.b16 %v1486
        %v5219 = vunpack.c.l.b16 %v1487
        %v5220 = vunpack.c.h.b16 %v1487
        %v5221 = vunpack.c.l.b16 %v1488
        %v5222 = vunpack.c.h.b16 %v1488
        %v5223 = vunpack.c.l.b16 %v1489
        %v5224 = vunpack.c.h.b16 %v1489
        %v5225 = vunpack.c.l.b16 %v1490
        %v5226 = vunpack.c.h.b16 %v1490
        %v5227 = vunpack.c.l.b16 %v1491
        %v5228 = vunpack.c.h.b16 %v1491
        %v5229 = vunpack.c.l.b16 %v1492
        %v5230 = vunpack.c.h.b16 %v1492
        %v5231 = vunpack.c.l.b16 %v1493
        %v5232 = vunpack.c.h.b16 %v1493
        %v5233 = vunpack.c.l.b16 %v1494
        %v5234 = vunpack.c.h.b16 %v1494
        %v5235 = vunpack.c.l.b16 %v1495
        %v5236 = vunpack.c.h.b16 %v1495
        %v5237 = vunpack.c.l.b16 %v1496
        %v5238 = vunpack.c.h.b16 %v1496
        %v5239 = vunpack.c.l.b16 %v1497
        %v5240 = vunpack.c.h.b16 %v1497
        %v5241 = vunpack.c.l.b16 %v1498
        %v5242 = vunpack.c.h.b16 %v1498
        %v5243 = vunpack.c.l.b16 %v1499
        %v5244 = vunpack.c.h.b16 %v1499
        %v5245 = vunpack.c.l.b16 %v1500
        %v5246 = vunpack.c.h.b16 %v1500
        %v5247 = vunpack.c.l.b16 %v1501
        %v5248 = vunpack.c.h.b16 %v1501
        %v5249 = vunpack.c.l.b16 %v1502
        %v5250 = vunpack.c.h.b16 %v1502
        %v5251 = vunpack.c.l.b16 %v1503
        %v5252 = vunpack.c.h.b16 %v1503
        %v5253 = vunpack.c.l.b16 %v1504
        %v5254 = vunpack.c.h.b16 %v1504
        %v5255 = vunpack.c.l.b16 %v1505
        %v5256 = vunpack.c.h.b16 %v1505
        %v5257 = vunpack.c.l.b16 %v1506
        %v5258 = vunpack.c.h.b16 %v1506
        %v5259 = vunpack.c.l.b16 %v1507
        %v5260 = vunpack.c.h.b16 %v1507
        %v5261 = vunpack.c.l.b16 %v1508
        %v5262 = vunpack.c.h.b16 %v1508
        %v5263 = vunpack.c.l.b16 %v1509
        %v5264 = vunpack.c.h.b16 %v1509
        %v5265 = vunpack.c.l.b16 %v1510
        %v5266 = vunpack.c.h.b16 %v1510
        %v5267 = vunpack.c.l.b16 %v1511
        %v5268 = vunpack.c.h.b16 %v1511
        %v5269 = vunpack.c.l.b16 %v1512
        %v5270 = vunpack.c.h.b16 %v1512
        %v5271 = vunpack.c.l.b16 %v1513
        %v5272 = vunpack.c.h.b16 %v1513
        %v5273 = vunpack.c.l.b16 %v1514
        %v5274 = vunpack.c.h.b16 %v1514
        %v5275 = vunpack.c.l.b16 %v1515
        %v5276 = vunpack.c.h.b16 %v1515
        %v5277 = vunpack.c.l.b16 %v1516
        %v5278 = vunpack.c.h.b16 %v1516
        %v5279 = vunpack.c.l.b16 %v1517
        %v5280 = vunpack.c.h.b16 %v1517
        %v5281 = vunpack.c.l.b16 %v1518
        %v5282 = vunpack.c.h.b16 %v1518
        %v5283 = vunpack.c.l.b16 %v1519
        %v5284 = vunpack.c.h.b16 %v1519
        %v5285 = vunpack.c.l.b16 %v1520
        %v5286 = vunpack.c.h.b16 %v1520
        %v5287 = vunpack.c.l.b16 %v1521
        %v5288 = vunpack.c.h.b16 %v1521
        %v5289 = vunpack.c.l.b16 %v1522
        %v5290 = vunpack.c.h.b16 %v1522
        %v5291 = vunpack.c.l.b16 %v1523
        %v5292 = vunpack.c.h.b16 %v1523
        %v5293 = vunpack.c.l.b16 %v1524
        %v5294 = vunpack.c.h.b16 %v1524
        %v5295 = vunpack.c.l.b16 %v1525
        %v5296 = vunpack.c.h.b16 %v1525
        %v5297 = vunpack.c.l.b16 %v1526
        %v5298 = vunpack.c.h.b16 %v1526
        %v5299 = vunpack.c.l.b16 %v1527
        %v5300 = vunpack.c.h.b16 %v1527
        %v5301 = vunpack.c.l.b16 %v1528
        %v5302 = vunpack.c.h.b16 %v1528
        %v5303 = vunpack.c.l.b16 %v1529
        %v5304 = vunpack.c.h.b16 %v1529
        %v5305 = vunpack.c.l.b16 %v1530
        %v5306 = vunpack.c.h.b16 %v1530
        %v5307 = vunpack.c.l.b16 %v1531
        %v5308 = vunpack.c.h.b16 %v1531
        %v5309 = vunpack.c.l.b16 %v1532
        %v5310 = vunpack.c.h.b16 %v1532
        %v5311 = vunpack.c.l.b16 %v1533
        %v5312 = vunpack.c.h.b16 %v1533
        %v5313 = vunpack.c.l.b16 %v1534
        %v5314 = vunpack.c.h.b16 %v1534
        %v5315 = vunpack.c.l.b16 %v1535
        %v5316 = vunpack.c.h.b16 %v1535
        %v5317 = vunpack.c.l.b16 %v1536
        %v5318 = vunpack.c.h.b16 %v1536
        %v5319 = vunpack.c.l.b16 %v1537
        %v5320 = vunpack.c.h.b16 %v1537
        %v5321 = vunpack.c.l.b16 %v1538
        %v5322 = vunpack.c.h.b16 %v1538
        %v5323 = vunpack.c.l.b16 %v1539
        %v5324 = vunpack.c.h.b16 %v1539
        %v5325 = vunpack.c.l.b16 %v1540
        %v5326 = vunpack.c.h.b16 %v1540
        %v5327 = vunpack.c.l.b16 %v1541
        %v5328 = vunpack.c.h.b16 %v1541
        %v5329 = vunpack.c.l.b16 %v1542
        %v5330 = vunpack.c.h.b16 %v1542
        %v5331 = vunpack.c.l.b16 %v1543
        %v5332 = vunpack.c.h.b16 %v1543
        %v5333 = vunpack.c.l.b16 %v1544
        %v5334 = vunpack.c.h.b16 %v1544
        %v5335 = vunpack.c.l.b16 %v1545
        %v5336 = vunpack.c.h.b16 %v1545
        %v5337 = vunpack.c.l.b16 %v1546
        %v5338 = vunpack.c.h.b16 %v1546
        %v5339 = vunpack.c.l.b16 %v1547
        %v5340 = vunpack.c.h.b16 %v1547
        %v5341 = vunpack.c.l.b16 %v1548
        %v5342 = vunpack.c.h.b16 %v1548
        %v5343 = vunpack.c.l.b16 %v1549
        %v5344 = vunpack.c.h.b16 %v1549
        %v5345 = vunpack.c.l.b16 %v1550
        %v5346 = vunpack.c.h.b16 %v1550
        %v5347 = vunpack.c.l.b16 %v1551
        %v5348 = vunpack.c.h.b16 %v1551
        %v5349 = vunpack.c.l.b16 %v1552
        %v5350 = vunpack.c.h.b16 %v1552
        %v5351 = vunpack.c.l.b16 %v1553
        %v5352 = vunpack.c.h.b16 %v1553
        %v5353 = vunpack.c.l.b16 %v1554
        %v5354 = vunpack.c.h.b16 %v1554
        %v5355 = vunpack.c.l.b16 %v1555
        %v5356 = vunpack.c.h.b16 %v1555
        %v5357 = vunpack.c.l.b16 %v1556
        %v5358 = vunpack.c.h.b16 %v1556
        %v5359 = vunpack.c.l.b16 %v1557
        %v5360 = vunpack.c.h.b16 %v1557
        %v5361 = vunpack.c.l.b16 %v1558
        %v5362 = vunpack.c.h.b16 %v1558
        %v5363 = vunpack.c.l.b16 %v1559
        %v5364 = vunpack.c.h.b16 %v1559
        %v5365 = vunpack.c.l.b16 %v1560
        %v5366 = vunpack.c.h.b16 %v1560
        %v5367 = vunpack.c.l.b16 %v1561
        %v5368 = vunpack.c.h.b16 %v1561
        %v5369 = vunpack.c.l.b16 %v1562
        %v5370 = vunpack.c.h.b16 %v1562
        %v5371 = vunpack.c.l.b16 %v1563
        %v5372 = vunpack.c.h.b16 %v1563
        %v5373 = vunpack.c.l.b16 %v1564
        %v5374 = vunpack.c.h.b16 %v1564
        %v5375 = vunpack.c.l.b16 %v1565
        %v5376 = vunpack.c.h.b16 %v1565
        %v5377 = vunpack.c.l.b16 %v1566
        %v5378 = vunpack.c.h.b16 %v1566
        %v5379 = vunpack.c.l.b16 %v1567
        %v5380 = vunpack.c.h.b16 %v1567
        %v5381 = vunpack.c.l.b16 %v1568
        %v5382 = vunpack.c.h.b16 %v1568
        %v5383 = vunpack.c.l.b16 %v1569
        %v5384 = vunpack.c.h.b16 %v1569
        %v5385 = vunpack.c.l.b16 %v1570
        %v5386 = vunpack.c.h.b16 %v1570
        %v5387 = vunpack.c.l.b16 %v1571
        %v5388 = vunpack.c.h.b16 %v1571
        %v5389 = vunpack.c.l.b16 %v1572
        %v5390 = vunpack.c.h.b16 %v1572
        %v5391 = vunpack.c.l.b16 %v1573
        %v5392 = vunpack.c.h.b16 %v1573
        %v5393 = vunpack.c.l.b16 %v1574
        %v5394 = vunpack.c.h.b16 %v1574
        %v5395 = vunpack.c.l.b16 %v1575
        %v5396 = vunpack.c.h.b16 %v1575
        %v5397 = vunpack.c.l.b16 %v1576
        %v5398 = vunpack.c.h.b16 %v1576
        %v5399 = vunpack.c.l.b16 %v1577
        %v5400 = vunpack.c.h.b16 %v1577
        %v5401 = vunpack.c.l.b16 %v1578
        %v5402 = vunpack.c.h.b16 %v1578
        %v5403 = vunpack.c.l.b16 %v1579
        %v5404 = vunpack.c.h.b16 %v1579
        %v5405 = vunpack.c.l.b16 %v1580
        %v5406 = vunpack.c.h.b16 %v1580
        %v5407 = vunpack.c.l.b16 %v1581
        %v5408 = vunpack.c.h.b16 %v1581
        %v5409 = vunpack.c.l.b16 %v1582
        %v5410 = vunpack.c.h.b16 %v1582
        %v5411 = vunpack.c.l.b16 %v1583
        %v5412 = vunpack.c.h.b16 %v1583
        %v5413 = vunpack.c.l.b16 %v1584
        %v5414 = vunpack.c.h.b16 %v1584
        %v5415 = vunpack.c.l.b16 %v1585
        %v5416 = vunpack.c.h.b16 %v1585
        %v5417 = vunpack.c.l.b16 %v1586
        %v5418 = vunpack.c.h.b16 %v1586
        %v5419 = vunpack.c.l.b16 %v1587
        %v5420 = vunpack.c.h.b16 %v1587
        %v5421 = vunpack.c.l.b16 %v1588
        %v5422 = vunpack.c.h.b16 %v1588
        %v5423 = vunpack.c.l.b16 %v1589
        %v5424 = vunpack.c.h.b16 %v1589
        %v5425 = vunpack.c.l.b16 %v1590
        %v5426 = vunpack.c.h.b16 %v1590
        %v5427 = vunpack.c.l.b16 %v1591
        %v5428 = vunpack.c.h.b16 %v1591
        %v5429 = vunpack.c.l.b16 %v1592
        %v5430 = vunpack.c.h.b16 %v1592
        %v5431 = vunpack.c.l.b16 %v1593
        %v5432 = vunpack.c.h.b16 %v1593
        %v5433 = vunpack.c.l.b16 %v1594
        %v5434 = vunpack.c.h.b16 %v1594
        %v5435 = vunpack.c.l.b16 %v1595
        %v5436 = vunpack.c.h.b16 %v1595
        %v5437 = vunpack.c.l.b16 %v1596
        %v5438 = vunpack.c.h.b16 %v1596
        %v5439 = vunpack.c.l.b16 %v1597
        %v5440 = vunpack.c.h.b16 %v1597
        %v5441 = vunpack.c.l.b16 %v1598
        %v5442 = vunpack.c.h.b16 %v1598
        %v5443 = vunpack.c.l.b16 %v1599
        %v5444 = vunpack.c.h.b16 %v1599
        %v5445 = vunpack.c.l.b16 %v1600
        %v5446 = vunpack.c.h.b16 %v1600
        %v5447 = vunpack.c.l.b16 %v1601
        %v5448 = vunpack.c.h.b16 %v1601
        %v5449 = vunpack.c.l.b16 %v1602
        %v5450 = vunpack.c.h.b16 %v1602
        %v5451 = vunpack.c.l.b16 %v1603
        %v5452 = vunpack.c.h.b16 %v1603
        %v5453 = vunpack.c.l.b16 %v1604
        %v5454 = vunpack.c.h.b16 %v1604
        %v5455 = vunpack.c.l.b16 %v1605
        %v5456 = vunpack.c.h.b16 %v1605
        %v5457 = vunpack.c.l.b16 %v1606
        %v5458 = vunpack.c.h.b16 %v1606
        %v5459 = vunpack.c.l.b16 %v1607
        %v5460 = vunpack.c.h.b16 %v1607
        %v5461 = vunpack.c.l.b16 %v1608
        %v5462 = vunpack.c.h.b16 %v1608
        %v5463 = vunpack.c.l.b16 %v1609
        %v5464 = vunpack.c.h.b16 %v1609
        %v5465 = vunpack.c.l.b16 %v1610
        %v5466 = vunpack.c.h.b16 %v1610
        %v5467 = vunpack.c.l.b16 %v1611
        %v5468 = vunpack.c.h.b16 %v1611
        %v5469 = vunpack.c.l.b16 %v1612
        %v5470 = vunpack.c.h.b16 %v1612
        %v5471 = vunpack.c.l.b16 %v1613
        %v5472 = vunpack.c.h.b16 %v1613
        %v5473 = vunpack.c.l.b16 %v1614
        %v5474 = vunpack.c.h.b16 %v1614
        %v5475 = vunpack.c.l.b16 %v1615
        %v5476 = vunpack.c.h.b16 %v1615
        %v5477 = vunpack.c.l.b16 %v1616
        %v5478 = vunpack.c.h.b16 %v1616
        %v5479 = vunpack.c.l.b16 %v1617
        %v5480 = vunpack.c.h.b16 %v1617
        %v5481 = vunpack.c.l.b16 %v1618
        %v5482 = vunpack.c.h.b16 %v1618
        %v5483 = vunpack.c.l.b16 %v1619
        %v5484 = vunpack.c.h.b16 %v1619
        %v5485 = vunpack.c.l.b16 %v1620
        %v5486 = vunpack.c.h.b16 %v1620
        %v5487 = vunpack.c.l.b16 %v1621
        %v5488 = vunpack.c.h.b16 %v1621
        %v5489 = vunpack.c.l.b16 %v1622
        %v5490 = vunpack.c.h.b16 %v1622
        %v5491 = vunpack.c.l.b16 %v1623
        %v5492 = vunpack.c.h.b16 %v1623
        %v5493 = vunpack.c.l.b16 %v1624
        %v5494 = vunpack.c.h.b16 %v1624
        %v5495 = vunpack.c.l.b16 %v1625
        %v5496 = vunpack.c.h.b16 %v1625
        %v5497 = vunpack.c.l.b16 %v1626
        %v5498 = vunpack.c.h.b16 %v1626
        %v5499 = vunpack.c.l.b16 %v1627
        %v5500 = vunpack.c.h.b16 %v1627
        %v5501 = vunpack.c.l.b16 %v1628
        %v5502 = vunpack.c.h.b16 %v1628
        %v5503 = vunpack.c.l.b16 %v1629
        %v5504 = vunpack.c.h.b16 %v1629
        %v5505 = vunpack.c.l.b16 %v1630
        %v5506 = vunpack.c.h.b16 %v1630
        %v5507 = vunpack.c.l.b16 %v1631
        %v5508 = vunpack.c.h.b16 %v1631
        %v5509 = vunpack.c.l.b16 %v1632
        %v5510 = vunpack.c.h.b16 %v1632
        %v5511 = vunpack.c.l.b16 %v1633
        %v5512 = vunpack.c.h.b16 %v1633
        %v5513 = vunpack.c.l.b16 %v1634
        %v5514 = vunpack.c.h.b16 %v1634
        %v5515 = vunpack.c.l.b16 %v1635
        %v5516 = vunpack.c.h.b16 %v1635
        %v5517 = vunpack.c.l.b16 %v1636
        %v5518 = vunpack.c.h.b16 %v1636
        %v5519 = vunpack.c.l.b16 %v1637
        %v5520 = vunpack.c.h.b16 %v1637
        %v5521 = vunpack.c.l.b16 %v1638
        %v5522 = vunpack.c.h.b16 %v1638
        %v5523 = vunpack.c.l.b16 %v1639
        %v5524 = vunpack.c.h.b16 %v1639
        %v5525 = vunpack.c.l.b16 %v1640
        %v5526 = vunpack.c.h.b16 %v1640
        %v5527 = vunpack.c.l.b16 %v1641
        %v5528 = vunpack.c.h.b16 %v1641
        %v5529 = vunpack.c.l.b16 %v1642
        %v5530 = vunpack.c.h.b16 %v1642
        %v5531 = vunpack.c.l.b16 %v1643
        %v5532 = vunpack.c.h.b16 %v1643
        %v5533 = vunpack.c.l.b16 %v1644
        %v5534 = vunpack.c.h.b16 %v1644
        %v5535 = vunpack.c.l.b16 %v1645
        %v5536 = vunpack.c.h.b16 %v1645
        %v5537 = vunpack.c.l.b16 %v1646
        %v5538 = vunpack.c.h.b16 %v1646
        %v5539 = vunpack.c.l.b16 %v1647
        %v5540 = vunpack.c.h.b16 %v1647
        %v5541 = vunpack.c.l.b16 %v1648
        %v5542 = vunpack.c.h.b16 %v1648
        %v5543 = vunpack.c.l.b16 %v1649
        %v5544 = vunpack.c.h.b16 %v1649
        %v5545 = vunpack.c.l.b16 %v1650
        %v5546 = vunpack.c.h.b16 %v1650
        %v5547 = vunpack.c.l.b16 %v1651
        %v5548 = vunpack.c.h.b16 %v1651
        %v5549 = vunpack.c.l.b16 %v1652
        %v5550 = vunpack.c.h.b16 %v1652
        %v5551 = vunpack.c.l.b16 %v1653
        %v5552 = vunpack.c.h.b16 %v1653
        %v5553 = vunpack.c.l.b16 %v1654
        %v5554 = vunpack.c.h.b16 %v1654
        %v5555 = vunpack.c.l.b16 %v1655
        %v5556 = vunpack.c.h.b16 %v1655
        %v5557 = vunpack.c.l.b16 %v1656
        %v5558 = vunpack.c.h.b16 %v1656
        %v5559 = vunpack.c.l.b16 %v1657
        %v5560 = vunpack.c.h.b16 %v1657
        %v5561 = vunpack.c.l.b16 %v1658
        %v5562 = vunpack.c.h.b16 %v1658
        %v5563 = vunpack.c.l.b16 %v1659
        %v5564 = vunpack.c.h.b16 %v1659
        %v5565 = vunpack.c.l.b16 %v1660
        %v5566 = vunpack.c.h.b16 %v1660
        %v5567 = vunpack.c.l.b16 %v1661
        %v5568 = vunpack.c.h.b16 %v1661
        %v5569 = vunpack.c.l.b16 %v1662
        %v5570 = vunpack.c.h.b16 %v1662
        %v5571 = vunpack.c.l.b16 %v1663
        %v5572 = vunpack.c.h.b16 %v1663
        %v5573 = vunpack.c.l.b16 %v1664
        %v5574 = vunpack.c.h.b16 %v1664
        %v5575 = vunpack.c.l.b16 %v1665
        %v5576 = vunpack.c.h.b16 %v1665
        %v5577 = vunpack.c.l.b16 %v1666
        %v5578 = vunpack.c.h.b16 %v1666
        %v5579 = vunpack.c.l.b16 %v1667
        %v5580 = vunpack.c.h.b16 %v1667
        %v5581 = vunpack.c.l.b16 %v1668
        %v5582 = vunpack.c.h.b16 %v1668
        %v5583 = vunpack.c.l.b16 %v1669
        %v5584 = vunpack.c.h.b16 %v1669
        %v5585 = vunpack.c.l.b16 %v1670
        %v5586 = vunpack.c.h.b16 %v1670
        %v5587 = vunpack.c.l.b16 %v1671
        %v5588 = vunpack.c.h.b16 %v1671
        %v5589 = vunpack.c.l.b16 %v1672
        %v5590 = vunpack.c.h.b16 %v1672
        %v5591 = vunpack.c.l.b16 %v1673
        %v5592 = vunpack.c.h.b16 %v1673
        %v5593 = vunpack.c.l.b16 %v1674
        %v5594 = vunpack.c.h.b16 %v1674
        %v5595 = vunpack.c.l.b16 %v1675
        %v5596 = vunpack.c.h.b16 %v1675
        %v5597 = vunpack.c.l.b16 %v1676
        %v5598 = vunpack.c.h.b16 %v1676
        %v5599 = vunpack.c.l.b16 %v1677
        %v5600 = vunpack.c.h.b16 %v1677
        %v5601 = vunpack.c.l.b16 %v1678
        %v5602 = vunpack.c.h.b16 %v1678
        %v5603 = vunpack.c.l.b16 %v1679
        %v5604 = vunpack.c.h.b16 %v1679
        %v5605 = vunpack.c.l.b16 %v1680
        %v5606 = vunpack.c.h.b16 %v1680
        %v5607 = vunpack.c.l.b16 %v1681
        %v5608 = vunpack.c.h.b16 %v1681
        %v5609 = vunpack.c.l.b16 %v1682
        %v5610 = vunpack.c.h.b16 %v1682
        %v5611 = vunpack.c.l.b16 %v1683
        %v5612 = vunpack.c.h.b16 %v1683
        %v5613 = vunpack.c.l.b16 %v1684
        %v5614 = vunpack.c.h.b16 %v1684
        %v5615 = vunpack.c.l.b16 %v1685
        %v5616 = vunpack.c.h.b16 %v1685
        %v5617 = vunpack.c.l.b16 %v1686
        %v5618 = vunpack.c.h.b16 %v1686
        %v5619 = vunpack.c.l.b16 %v1687
        %v5620 = vunpack.c.h.b16 %v1687
        %v5621 = vunpack.c.l.b16 %v1688
        %v5622 = vunpack.c.h.b16 %v1688
        %v5623 = vunpack.c.l.b16 %v1689
        %v5624 = vunpack.c.h.b16 %v1689
        %v5625 = vunpack.c.l.b16 %v1690
        %v5626 = vunpack.c.h.b16 %v1690
        %v5627 = vunpack.c.l.b16 %v1691
        %v5628 = vunpack.c.h.b16 %v1691
        %v5629 = vunpack.c.l.b16 %v1692
        %v5630 = vunpack.c.h.b16 %v1692
        %v5631 = vunpack.c.l.b16 %v1693
        %v5632 = vunpack.c.h.b16 %v1693
        %v5633 = vunpack.c.l.b16 %v1694
        %v5634 = vunpack.c.h.b16 %v1694
        %v5635 = vunpack.c.l.b16 %v1695
        %v5636 = vunpack.c.h.b16 %v1695
        %v5637 = vunpack.c.l.b16 %v1696
        %v5638 = vunpack.c.h.b16 %v1696
        %v5639 = vunpack.c.l.b16 %v1697
        %v5640 = vunpack.c.h.b16 %v1697
        %v5641 = vunpack.c.l.b16 %v1698
        %v5642 = vunpack.c.h.b16 %v1698
        %v5643 = vunpack.c.l.b16 %v1699
        %v5644 = vunpack.c.h.b16 %v1699
        %v5645 = vunpack.c.l.b16 %v1700
        %v5646 = vunpack.c.h.b16 %v1700
        %v5647 = vunpack.c.l.b16 %v1701
        %v5648 = vunpack.c.h.b16 %v1701
        %v5649 = vunpack.c.l.b16 %v1702
        %v5650 = vunpack.c.h.b16 %v1702
        %v5651 = vunpack.c.l.b16 %v1703
        %v5652 = vunpack.c.h.b16 %v1703
        %v5653 = vunpack.c.l.b16 %v1704
        %v5654 = vunpack.c.h.b16 %v1704
        %v5655 = vunpack.c.l.b16 %v1705
        %v5656 = vunpack.c.h.b16 %v1705
        %v5657 = vunpack.c.l.b16 %v1706
        %v5658 = vunpack.c.h.b16 %v1706
        %v5659 = vunpack.c.l.b16 %v1707
        %v5660 = vunpack.c.h.b16 %v1707
        %v5661 = vunpack.c.l.b16 %v1708
        %v5662 = vunpack.c.h.b16 %v1708
        %v5663 = vunpack.c.l.b16 %v1709
        %v5664 = vunpack.c.h.b16 %v1709
        %v5665 = vunpack.c.l.b16 %v1710
        %v5666 = vunpack.c.h.b16 %v1710
        %v5667 = vunpack.c.l.b16 %v1711
        %v5668 = vunpack.c.h.b16 %v1711
        %v5669 = vunpack.c.l.b16 %v1712
        %v5670 = vunpack.c.h.b16 %v1712
        %v5671 = vunpack.c.l.b16 %v1713
        %v5672 = vunpack.c.h.b16 %v1713
        %v5673 = vunpack.c.l.b16 %v1714
        %v5674 = vunpack.c.h.b16 %v1714
        %v5675 = vunpack.c.l.b16 %v1715
        %v5676 = vunpack.c.h.b16 %v1715
        %v5677 = vunpack.c.l.b16 %v1716
        %v5678 = vunpack.c.h.b16 %v1716
        %v5679 = vunpack.c.l.b16 %v1717
        %v5680 = vunpack.c.h.b16 %v1717
        %v5681 = vunpack.c.l.b16 %v1718
        %v5682 = vunpack.c.h.b16 %v1718
        %v5683 = vunpack.c.l.b16 %v1719
        %v5684 = vunpack.c.h.b16 %v1719
        %v5685 = vunpack.c.l.b16 %v1720
        %v5686 = vunpack.c.h.b16 %v1720
        %v5687 = vunpack.c.l.b16 %v1721
        %v5688 = vunpack.c.h.b16 %v1721
        %v5689 = vunpack.c.l.b16 %v1722
        %v5690 = vunpack.c.h.b16 %v1722
        %v5691 = vunpack.c.l.b16 %v1723
        %v5692 = vunpack.c.h.b16 %v1723
        %v5693 = vunpack.c.l.b16 %v1724
        %v5694 = vunpack.c.h.b16 %v1724
        %v5695 = vunpack.c.l.b16 %v1725
        %v5696 = vunpack.c.h.b16 %v1725
        %v5697 = vunpack.c.l.b16 %v1726
        %v5698 = vunpack.c.h.b16 %v1726
        %v5699 = vunpack.c.l.b16 %v1727
        %v5700 = vunpack.c.h.b16 %v1727
        %v5701 = vunpack.c.l.b16 %v1728
        %v5702 = vunpack.c.h.b16 %v1728
        %v5703 = vunpack.c.l.b16 %v1729
        %v5704 = vunpack.c.h.b16 %v1729
        %v5705 = vunpack.c.l.b16 %v1730
        %v5706 = vunpack.c.h.b16 %v1730
        %v5707 = vunpack.c.l.b16 %v1731
        %v5708 = vunpack.c.h.b16 %v1731
        %v5709 = vunpack.c.l.b16 %v1732
        %v5710 = vunpack.c.h.b16 %v1732
        %v5711 = vunpack.c.l.b16 %v1733
        %v5712 = vunpack.c.h.b16 %v1733
        %v5713 = vunpack.c.l.b16 %v1734
        %v5714 = vunpack.c.h.b16 %v1734
        %v5715 = vunpack.c.l.b16 %v1735
        %v5716 = vunpack.c.h.b16 %v1735
        %v5717 = vunpack.c.l.b16 %v1736
        %v5718 = vunpack.c.h.b16 %v1736
        %v5719 = vunpack.c.l.b16 %v1737
        %v5720 = vunpack.c.h.b16 %v1737
        %v5721 = vunpack.c.l.b16 %v1738
        %v5722 = vunpack.c.h.b16 %v1738
        %v5723 = vunpack.c.l.b16 %v1739
        %v5724 = vunpack.c.h.b16 %v1739
        %v5725 = vunpack.c.l.b16 %v1740
        %v5726 = vunpack.c.h.b16 %v1740
        %v5727 = vunpack.c.l.b16 %v1741
        %v5728 = vunpack.c.h.b16 %v1741
        %v5729 = vunpack.c.l.b16 %v1742
        %v5730 = vunpack.c.h.b16 %v1742
        %v5731 = vunpack.c.l.b16 %v1743
        %v5732 = vunpack.c.h.b16 %v1743
        %v5733 = vunpack.c.l.b16 %v1744
        %v5734 = vunpack.c.h.b16 %v1744
        %v5735 = vunpack.c.l.b16 %v1745
        %v5736 = vunpack.c.h.b16 %v1745
        %v5737 = vunpack.c.l.b16 %v1746
        %v5738 = vunpack.c.h.b16 %v1746
        %v5739 = vunpack.c.l.b16 %v1747
        %v5740 = vunpack.c.h.b16 %v1747
        %v5741 = vunpack.c.l.b16 %v1748
        %v5742 = vunpack.c.h.b16 %v1748
        %v5743 = vunpack.c.l.b16 %v1749
        %v5744 = vunpack.c.h.b16 %v1749
        %v5745 = vunpack.c.l.b16 %v1750
        %v5746 = vunpack.c.h.b16 %v1750
        %v5747 = vunpack.c.l.b16 %v1751
        %v5748 = vunpack.c.h.b16 %v1751
        %v5749 = vunpack.c.l.b16 %v1752
        %v5750 = vunpack.c.h.b16 %v1752
        %v5751 = vunpack.c.l.b16 %v1753
        %v5752 = vunpack.c.h.b16 %v1753
        %v5753 = vunpack.c.l.b16 %v1754
        %v5754 = vunpack.c.h.b16 %v1754
        %v5755 = vunpack.c.l.b16 %v1755
        %v5756 = vunpack.c.h.b16 %v1755
        %v5757 = vunpack.c.l.b16 %v1756
        %v5758 = vunpack.c.h.b16 %v1756
        %v5759 = vunpack.c.l.b16 %v1757
        %v5760 = vunpack.c.h.b16 %v1757
        %v5761 = vunpack.c.l.b16 %v1758
        %v5762 = vunpack.c.h.b16 %v1758
        %v5763 = vunpack.c.l.b16 %v1759
        %v5764 = vunpack.c.h.b16 %v1759
        %v5765 = vunpack.c.l.b16 %v1760
        %v5766 = vunpack.c.h.b16 %v1760
        %v5767 = vunpack.c.l.b16 %v1761
        %v5768 = vunpack.c.h.b16 %v1761
        %v5769 = vunpack.c.l.b16 %v1762
        %v5770 = vunpack.c.h.b16 %v1762
        %v5771 = vunpack.c.l.b16 %v1763
        %v5772 = vunpack.c.h.b16 %v1763
        %v5773 = vunpack.c.l.b16 %v1764
        %v5774 = vunpack.c.h.b16 %v1764
        %v5775 = vunpack.c.l.b16 %v1765
        %v5776 = vunpack.c.h.b16 %v1765
        %v5777 = vunpack.c.l.b16 %v1766
        %v5778 = vunpack.c.h.b16 %v1766
        %v5779 = vunpack.c.l.b16 %v1767
        %v5780 = vunpack.c.h.b16 %v1767
        %v5781 = vunpack.c.l.b16 %v1768
        %v5782 = vunpack.c.h.b16 %v1768
        %v5783 = vunpack.c.l.b16 %v1769
        %v5784 = vunpack.c.h.b16 %v1769
        %v5785 = vunpack.c.l.b16 %v1770
        %v5786 = vunpack.c.h.b16 %v1770
        %v5787 = vunpack.c.l.b16 %v1771
        %v5788 = vunpack.c.h.b16 %v1771
        %v5789 = vunpack.c.l.b16 %v1772
        %v5790 = vunpack.c.h.b16 %v1772
        %v5791 = vunpack.c.l.b16 %v1773
        %v5792 = vunpack.c.h.b16 %v1773
        %v5793 = vunpack.c.l.b16 %v1774
        %v5794 = vunpack.c.h.b16 %v1774
        %v5795 = vunpack.c.l.b16 %v1775
        %v5796 = vunpack.c.h.b16 %v1775
        %v5797 = vunpack.c.l.b16 %v1776
        %v5798 = vunpack.c.h.b16 %v1776
        %v5799 = vunpack.c.l.b16 %v1777
        %v5800 = vunpack.c.h.b16 %v1777
        %v5801 = vunpack.c.l.b16 %v1778
        %v5802 = vunpack.c.h.b16 %v1778
        %v5803 = vunpack.c.l.b16 %v1779
        %v5804 = vunpack.c.h.b16 %v1779
        %v5805 = vunpack.c.l.b16 %v1780
        %v5806 = vunpack.c.h.b16 %v1780
        %v5807 = vunpack.c.l.b16 %v1781
        %v5808 = vunpack.c.h.b16 %v1781
        %v5809 = vunpack.c.l.b16 %v1782
        %v5810 = vunpack.c.h.b16 %v1782
        %v5811 = vunpack.c.l.b16 %v1783
        %v5812 = vunpack.c.h.b16 %v1783
        %v5813 = vunpack.c.l.b16 %v1784
        %v5814 = vunpack.c.h.b16 %v1784
        %v5815 = vunpack.c.l.b16 %v1785
        %v5816 = vunpack.c.h.b16 %v1785
        %v5817 = vunpack.c.l.b16 %v1786
        %v5818 = vunpack.c.h.b16 %v1786
        %v5819 = vunpack.c.l.b16 %v1787
        %v5820 = vunpack.c.h.b16 %v1787
        %v5821 = vunpack.c.l.b16 %v1788
        %v5822 = vunpack.c.h.b16 %v1788
        %v5823 = vunpack.c.l.b16 %v1789
        %v5824 = vunpack.c.h.b16 %v1789
        %v5825 = vunpack.c.l.b16 %v1790
        %v5826 = vunpack.c.h.b16 %v1790
        %v5827 = vunpack.c.l.b16 %v1791
        %v5828 = vunpack.c.h.b16 %v1791
        %v5829 = vunpack.c.l.b16 %v1792
        %v5830 = vunpack.c.h.b16 %v1792
        %v5831 = vunpack.c.l.b16 %v1793
        %v5832 = vunpack.c.h.b16 %v1793
        %v5833 = vunpack.c.l.b16 %v1794
        %v5834 = vunpack.c.h.b16 %v1794
        %v5835 = vpack.c.b16 %v3279, %v3275
        %v5836 = vpack.c.b16 %v3280, %v3276
        %v5837 = vpack.c.b16 %v3281, %v3277
        %v5838 = vpack.c.b16 %v3282, %v3278
        %v5839 = vpack.c.b16 %v3287, %v3283
        %v5840 = vpack.c.b16 %v3288, %v3284
        %v5841 = vpack.c.b16 %v3289, %v3285
        %v5842 = vpack.c.b16 %v3290, %v3286
        %v5843 = vpack.c.b16 %v3295, %v3291
        %v5844 = vpack.c.b16 %v3296, %v3292
        %v5845 = vpack.c.b16 %v3297, %v3293
        %v5846 = vpack.c.b16 %v3298, %v3294
        %v5847 = vpack.c.b16 %v3303, %v3299
        %v5848 = vpack.c.b16 %v3304, %v3300
        %v5849 = vpack.c.b16 %v3305, %v3301
        %v5850 = vpack.c.b16 %v3306, %v3302
        %v5851 = vpack.c.b16 %v3311, %v3307
        %v5852 = vpack.c.b16 %v3312, %v3308
        %v5853 = vpack.c.b16 %v3313, %v3309
        %v5854 = vpack.c.b16 %v3314, %v3310
        %v5855 = vpack.c.b16 %v3319, %v3315
        %v5856 = vpack.c.b16 %v3320, %v3316
        %v5857 = vpack.c.b16 %v3321, %v3317
        %v5858 = vpack.c.b16 %v3322, %v3318
        %v5859 = vpack.c.b16 %v3327, %v3323
        %v5860 = vpack.c.b16 %v3328, %v3324
        %v5861 = vpack.c.b16 %v3329, %v3325
        %v5862 = vpack.c.b16 %v3330, %v3326
        %v5863 = vpack.c.b16 %v3335, %v3331
        %v5864 = vpack.c.b16 %v3336, %v3332
        %v5865 = vpack.c.b16 %v3337, %v3333
        %v5866 = vpack.c.b16 %v3338, %v3334
        %v5867 = vpack.c.b16 %v3343, %v3339
        %v5868 = vpack.c.b16 %v3344, %v3340
        %v5869 = vpack.c.b16 %v3345, %v3341
        %v5870 = vpack.c.b16 %v3346, %v3342
        %v5871 = vpack.c.b16 %v3351, %v3347
        %v5872 = vpack.c.b16 %v3352, %v3348
        %v5873 = vpack.c.b16 %v3353, %v3349
        %v5874 = vpack.c.b16 %v3354, %v3350
        %v5875 = vpack.c.b16 %v3359, %v3355
        %v5876 = vpack.c.b16 %v3360, %v3356
        %v5877 = vpack.c.b16 %v3361, %v3357
        %v5878 = vpack.c.b16 %v3362, %v3358
        %v5879 = vpack.c.b16 %v3367, %v3363
        %v5880 = vpack.c.b16 %v3368, %v3364
        %v5881 = vpack.c.b16 %v3369, %v3365
        %v5882 = vpack.c.b16 %v3370, %v3366
        %v5883 = vpack.c.b16 %v3375, %v3371
        %v5884 = vpack.c.b16 %v3376, %v3372
        %v5885 = vpack.c.b16 %v3377, %v3373
        %v5886 = vpack.c.b16 %v3378, %v3374
        %v5887 = vpack.c.b16 %v3383, %v3379
        %v5888 = vpack.c.b16 %v3384, %v3380
        %v5889 = vpack.c.b16 %v3385, %v3381
        %v5890 = vpack.c.b16 %v3386, %v3382
        %v5891 = vpack.c.b16 %v3391, %v3387
        %v5892 = vpack.c.b16 %v3392, %v3388
        %v5893 = vpack.c.b16 %v3393, %v3389
        %v5894 = vpack.c.b16 %v3394, %v3390
        %v5895 = vpack.c.b16 %v3399, %v3395
        %v5896 = vpack.c.b16 %v3400, %v3396
        %v5897 = vpack.c.b16 %v3401, %v3397
        %v5898 = vpack.c.b16 %v3402, %v3398
        %v5899 = vpack.c.b16 %v3407, %v3403
        %v5900 = vpack.c.b16 %v3408, %v3404
        %v5901 = vpack.c.b16 %v3409, %v3405
        %v5902 = vpack.c.b16 %v3410, %v3406
        %v5903 = vpack.c.b16 %v3415, %v3411
        %v5904 = vpack.c.b16 %v3416, %v3412
        %v5905 = vpack.c.b16 %v3417, %v3413
        %v5906 = vpack.c.b16 %v3418, %v3414
        %v5907 = vpack.c.b16 %v3423, %v3419
        %v5908 = vpack.c.b16 %v3424, %v3420
        %v5909 = vpack.c.b16 %v3425, %v3421
        %v5910 = vpack.c.b16 %v3426, %v3422
        %v5911 = vpack.c.b16 %v3431, %v3427
        %v5912 = vpack.c.b16 %v3432, %v3428
        %v5913 = vpack.c.b16 %v3433, %v3429
        %v5914 = vpack.c.b16 %v3434, %v3430
        %v5915 = vpack.c.b16 %v3439, %v3435
        %v5916 = vpack.c.b16 %v3440, %v3436
        %v5917 = vpack.c.b16 %v3441, %v3437
        %v5918 = vpack.c.b16 %v3442, %v3438
        %v5919 = vpack.c.b16 %v3447, %v3443
        %v5920 = vpack.c.b16 %v3448, %v3444
        %v5921 = vpack.c.b16 %v3449, %v3445
        %v5922 = vpack.c.b16 %v3450, %v3446
        %v5923 = vpack.c.b16 %v3455, %v3451
        %v5924 = vpack.c.b16 %v3456, %v3452
        %v5925 = vpack.c.b16 %v3457, %v3453
        %v5926 = vpack.c.b16 %v3458, %v3454
        %v5927 = vpack.c.b16 %v3463, %v3459
        %v5928 = vpack.c.b16 %v3464, %v3460
        %v5929 = vpack.c.b16 %v3465, %v3461
        %v5930 = vpack.c.b16 %v3466, %v3462
        %v5931 = vpack.c.b16 %v3471, %v3467
        %v5932 = vpack.c.b16 %v3472, %v3468
        %v5933 = vpack.c.b16 %v3473, %v3469
        %v5934 = vpack.c.b16 %v3474, %v3470
        %v5935 = vpack.c.b16 %v3479, %v3475
        %v5936 = vpack.c.b16 %v3480, %v3476
        %v5937 = vpack.c.b16 %v3481, %v3477
        %v5938 = vpack.c.b16 %v3482, %v3478
        %v5939 = vpack.c.b16 %v3487, %v3483
        %v5940 = vpack.c.b16 %v3488, %v3484
        %v5941 = vpack.c.b16 %v3489, %v3485
        %v5942 = vpack.c.b16 %v3490, %v3486
        %v5943 = vpack.c.b16 %v3495, %v3491
        %v5944 = vpack.c.b16 %v3496, %v3492
        %v5945 = vpack.c.b16 %v3497, %v3493
        %v5946 = vpack.c.b16 %v3498, %v3494
        %v5947 = vpack.c.b16 %v3503, %v3499
        %v5948 = vpack.c.b16 %v3504, %v3500
        %v5949 = vpack.c.b16 %v3505, %v3501
        %v5950 = vpack.c.b16 %v3506, %v3502
        %v5951 = vpack.c.b16 %v3511, %v3507
        %v5952 = vpack.c.b16 %v3512, %v3508
        %v5953 = vpack.c.b16 %v3513, %v3509
        %v5954 = vpack.c.b16 %v3514, %v3510
        %v5955 = vpack.c.b16 %v3519, %v3515
        %v5956 = vpack.c.b16 %v3520, %v3516
        %v5957 = vpack.c.b16 %v3521, %v3517
        %v5958 = vpack.c.b16 %v3522, %v3518
        %v5959 = vpack.c.b16 %v3527, %v3523
        %v5960 = vpack.c.b16 %v3528, %v3524
        %v5961 = vpack.c.b16 %v3529, %v3525
        %v5962 = vpack.c.b16 %v3530, %v3526
        %v5963 = vpack.c.b16 %v3535, %v3531
        %v5964 = vpack.c.b16 %v3536, %v3532
        %v5965 = vpack.c.b16 %v3537, %v3533
        %v5966 = vpack.c.b16 %v3538, %v3534
        %v5967 = vpack.c.b16 %v3543, %v3539
        %v5968 = vpack.c.b16 %v3544, %v3540
        %v5969 = vpack.c.b16 %v3545, %v3541
        %v5970 = vpack.c.b16 %v3546, %v3542
        %v5971 = vpack.c.b16 %v3551, %v3547
        %v5972 = vpack.c.b16 %v3552, %v3548
        %v5973 = vpack.c.b16 %v3553, %v3549
        %v5974 = vpack.c.b16 %v3554, %v3550
        %v5975 = vpack.c.b16 %v3559, %v3555
        %v5976 = vpack.c.b16 %v3560, %v3556
        %v5977 = vpack.c.b16 %v3561, %v3557
        %v5978 = vpack.c.b16 %v3562, %v3558
        %v5979 = vpack.c.b16 %v3567, %v3563
        %v5980 = vpack.c.b16 %v3568, %v3564
        %v5981 = vpack.c.b16 %v3569, %v3565
        %v5982 = vpack.c.b16 %v3570, %v3566
        %v5983 = vpack.c.b16 %v3575, %v3571
        %v5984 = vpack.c.b16 %v3576, %v3572
        %v5985 = vpack.c.b16 %v3577, %v3573
        %v5986 = vpack.c.b16 %v3578, %v3574
        %v5987 = vpack.c.b16 %v3583, %v3579
        %v5988 = vpack.c.b16 %v3584, %v3580
        %v5989 = vpack.c.b16 %v3585, %v3581
        %v5990 = vpack.c.b16 %v3586, %v3582
        %v5991 = vpack.c.b16 %v3591, %v3587
        %v5992 = vpack.c.b16 %v3592, %v3588
        %v5993 = vpack.c.b16 %v3593, %v3589
        %v5994 = vpack.c.b16 %v3594, %v3590
        %v5995 = vpack.c.b16 %v3599, %v3595
        %v5996 = vpack.c.b16 %v3600, %v3596
        %v5997 = vpack.c.b16 %v3601, %v3597
        %v5998 = vpack.c.b16 %v3602, %v3598
        %v5999 = vpack.c.b16 %v3607, %v3603
        %v6000 = vpack.c.b16 %v3608, %v3604
        %v6001 = vpack.c.b16 %v3609, %v3605
        %v6002 = vpack.c.b16 %v3610, %v3606
        %v6003 = vpack.c.b16 %v3615, %v3611
        %v6004 = vpack.c.b16 %v3616, %v3612
        %v6005 = vpack.c.b16 %v3617, %v3613
        %v6006 = vpack.c.b16 %v3618, %v3614
        %v6007 = vpack.c.b16 %v3623, %v3619
        %v6008 = vpack.c.b16 %v3624, %v3620
        %v6009 = vpack.c.b16 %v3625, %v3621
        %v6010 = vpack.c.b16 %v3626, %v3622
        %v6011 = vpack.c.b16 %v3631, %v3627
        %v6012 = vpack.c.b16 %v3632, %v3628
        %v6013 = vpack.c.b16 %v3633, %v3629
        %v6014 = vpack.c.b16 %v3634, %v3630
        %v6015 = vpack.c.b16 %v3639, %v3635
        %v6016 = vpack.c.b16 %v3640, %v3636
        %v6017 = vpack.c.b16 %v3641, %v3637
        %v6018 = vpack.c.b16 %v3642, %v3638
        %v6019 = vpack.c.b16 %v3647, %v3643
        %v6020 = vpack.c.b16 %v3648, %v3644
        %v6021 = vpack.c.b16 %v3649, %v3645
        %v6022 = vpack.c.b16 %v3650, %v3646
        %v6023 = vpack.c.b16 %v3655, %v3651
        %v6024 = vpack.c.b16 %v3656, %v3652
        %v6025 = vpack.c.b16 %v3657, %v3653
        %v6026 = vpack.c.b16 %v3658, %v3654
        %v6027 = vpack.c.b16 %v3663, %v3659
        %v6028 = vpack.c.b16 %v3664, %v3660
        %v6029 = vpack.c.b16 %v3665, %v3661
        %v6030 = vpack.c.b16 %v3666, %v3662
        %v6031 = vpack.c.b16 %v3671, %v3667
        %v6032 = vpack.c.b16 %v3672, %v3668
        %v6033 = vpack.c.b16 %v3673, %v3669
        %v6034 = vpack.c.b16 %v3674, %v3670
        %v6035 = vpack.c.b16 %v3679, %v3675
        %v6036 = vpack.c.b16 %v3680, %v3676
        %v6037 = vpack.c.b16 %v3681, %v3677
        %v6038 = vpack.c.b16 %v3682, %v3678
        %v6039 = vpack.c.b16 %v3687, %v3683
        %v6040 = vpack.c.b16 %v3688, %v3684
        %v6041 = vpack.c.b16 %v3689, %v3685
        %v6042 = vpack.c.b16 %v3690, %v3686
        %v6043 = vpack.c.b16 %v3695, %v3691
        %v6044 = vpack.c.b16 %v3696, %v3692
        %v6045 = vpack.c.b16 %v3697, %v3693
        %v6046 = vpack.c.b16 %v3698, %v3694
        %v6047 = vpack.c.b16 %v3703, %v3699
        %v6048 = vpack.c.b16 %v3704, %v3700
        %v6049 = vpack.c.b16 %v3705, %v3701
        %v6050 = vpack.c.b16 %v3706, %v3702
        %v6051 = vpack.c.b16 %v3711, %v3707
        %v6052 = vpack.c.b16 %v3712, %v3708
        %v6053 = vpack.c.b16 %v3713, %v3709
        %v6054 = vpack.c.b16 %v3714, %v3710
        %v6055 = vpack.c.b16 %v3719, %v3715
        %v6056 = vpack.c.b16 %v3720, %v3716
        %v6057 = vpack.c.b16 %v3721, %v3717
        %v6058 = vpack.c.b16 %v3722, %v3718
        %v6059 = vpack.c.b16 %v3727, %v3723
        %v6060 = vpack.c.b16 %v3728, %v3724
        %v6061 = vpack.c.b16 %v3729, %v3725
        %v6062 = vpack.c.b16 %v3730, %v3726
        %v6063 = vpack.c.b16 %v3735, %v3731
        %v6064 = vpack.c.b16 %v3736, %v3732
        %v6065 = vpack.c.b16 %v3737, %v3733
        %v6066 = vpack.c.b16 %v3738, %v3734
        %v6067 = vpack.c.b16 %v3743, %v3739
        %v6068 = vpack.c.b16 %v3744, %v3740
        %v6069 = vpack.c.b16 %v3745, %v3741
        %v6070 = vpack.c.b16 %v3746, %v3742
        %v6071 = vpack.c.b16 %v3751, %v3747
        %v6072 = vpack.c.b16 %v3752, %v3748
        %v6073 = vpack.c.b16 %v3753, %v3749
        %v6074 = vpack.c.b16 %v3754, %v3750
        %v6075 = vpack.c.b16 %v3759, %v3755
        %v6076 = vpack.c.b16 %v3760, %v3756
        %v6077 = vpack.c.b16 %v3761, %v3757
        %v6078 = vpack.c.b16 %v3762, %v3758
        %v6079 = vpack.c.b16 %v3767, %v3763
        %v6080 = vpack.c.b16 %v3768, %v3764
        %v6081 = vpack.c.b16 %v3769, %v3765
        %v6082 = vpack.c.b16 %v3770, %v3766
        %v6083 = vpack.c.b16 %v3775, %v3771
        %v6084 = vpack.c.b16 %v3776, %v3772
        %v6085 = vpack.c.b16 %v3777, %v3773
        %v6086 = vpack.c.b16 %v3778, %v3774
        %v6087 = vpack.c.b16 %v3783, %v3779
        %v6088 = vpack.c.b16 %v3784, %v3780
        %v6089 = vpack.c.b16 %v3785, %v3781
        %v6090 = vpack.c.b16 %v3786, %v3782
        %v6091 = vpack.c.b16 %v3791, %v3787
        %v6092 = vpack.c.b16 %v3792, %v3788
        %v6093 = vpack.c.b16 %v3793, %v3789
        %v6094 = vpack.c.b16 %v3794, %v3790
        %v6095 = vpack.c.b16 %v3799, %v3795
        %v6096 = vpack.c.b16 %v3800, %v3796
        %v6097 = vpack.c.b16 %v3801, %v3797
        %v6098 = vpack.c.b16 %v3802, %v3798
        %v6099 = vpack.c.b16 %v3807, %v3803
        %v6100 = vpack.c.b16 %v3808, %v3804
        %v6101 = vpack.c.b16 %v3809, %v3805
        %v6102 = vpack.c.b16 %v3810, %v3806
        %v6103 = vpack.c.b16 %v3815, %v3811
        %v6104 = vpack.c.b16 %v3816, %v3812
        %v6105 = vpack.c.b16 %v3817, %v3813
        %v6106 = vpack.c.b16 %v3818, %v3814
        %v6107 = vpack.c.b16 %v3823, %v3819
        %v6108 = vpack.c.b16 %v3824, %v3820
        %v6109 = vpack.c.b16 %v3825, %v3821
        %v6110 = vpack.c.b16 %v3826, %v3822
        %v6111 = vpack.c.b16 %v3831, %v3827
        %v6112 = vpack.c.b16 %v3832, %v3828
        %v6113 = vpack.c.b16 %v3833, %v3829
        %v6114 = vpack.c.b16 %v3834, %v3830
        %v6115 = vpack.c.b16 %v3839, %v3835
        %v6116 = vpack.c.b16 %v3840, %v3836
        %v6117 = vpack.c.b16 %v3841, %v3837
        %v6118 = vpack.c.b16 %v3842, %v3838
        %v6119 = vpack.c.b16 %v3847, %v3843
        %v6120 = vpack.c.b16 %v3848, %v3844
        %v6121 = vpack.c.b16 %v3849, %v3845
        %v6122 = vpack.c.b16 %v3850, %v3846
        %v6123 = vpack.c.b16 %v3855, %v3851
        %v6124 = vpack.c.b16 %v3856, %v3852
        %v6125 = vpack.c.b16 %v3857, %v3853
        %v6126 = vpack.c.b16 %v3858, %v3854
        %v6127 = vpack.c.b16 %v3863, %v3859
        %v6128 = vpack.c.b16 %v3864, %v3860
        %v6129 = vpack.c.b16 %v3865, %v3861
        %v6130 = vpack.c.b16 %v3866, %v3862
        %v6131 = vpack.c.b16 %v3871, %v3867
        %v6132 = vpack.c.b16 %v3872, %v3868
        %v6133 = vpack.c.b16 %v3873, %v3869
        %v6134 = vpack.c.b16 %v3874, %v3870
        %v6135 = vpack.c.b16 %v3879, %v3875
        %v6136 = vpack.c.b16 %v3880, %v3876
        %v6137 = vpack.c.b16 %v3881, %v3877
        %v6138 = vpack.c.b16 %v3882, %v3878
        %v6139 = vpack.c.b16 %v3887, %v3883
        %v6140 = vpack.c.b16 %v3888, %v3884
        %v6141 = vpack.c.b16 %v3889, %v3885
        %v6142 = vpack.c.b16 %v3890, %v3886
        %v6143 = vpack.c.b16 %v3895, %v3891
        %v6144 = vpack.c.b16 %v3896, %v3892
        %v6145 = vpack.c.b16 %v3897, %v3893
        %v6146 = vpack.c.b16 %v3898, %v3894
        %v6147 = vpack.c.b16 %v3903, %v3899
        %v6148 = vpack.c.b16 %v3904, %v3900
        %v6149 = vpack.c.b16 %v3905, %v3901
        %v6150 = vpack.c.b16 %v3906, %v3902
        %v6151 = vpack.c.b16 %v3911, %v3907
        %v6152 = vpack.c.b16 %v3912, %v3908
        %v6153 = vpack.c.b16 %v3913, %v3909
        %v6154 = vpack.c.b16 %v3914, %v3910
        %v6155 = vpack.c.b16 %v3919, %v3915
        %v6156 = vpack.c.b16 %v3920, %v3916
        %v6157 = vpack.c.b16 %v3921, %v3917
        %v6158 = vpack.c.b16 %v3922, %v3918
        %v6159 = vpack.c.b16 %v3927, %v3923
        %v6160 = vpack.c.b16 %v3928, %v3924
        %v6161 = vpack.c.b16 %v3929, %v3925
        %v6162 = vpack.c.b16 %v3930, %v3926
        %v6163 = vpack.c.b16 %v3935, %v3931
        %v6164 = vpack.c.b16 %v3936, %v3932
        %v6165 = vpack.c.b16 %v3937, %v3933
        %v6166 = vpack.c.b16 %v3938, %v3934
        %v6167 = vpack.c.b16 %v3943, %v3939
        %v6168 = vpack.c.b16 %v3944, %v3940
        %v6169 = vpack.c.b16 %v3945, %v3941
        %v6170 = vpack.c.b16 %v3946, %v3942
        %v6171 = vpack.c.b16 %v3951, %v3947
        %v6172 = vpack.c.b16 %v3952, %v3948
        %v6173 = vpack.c.b16 %v3953, %v3949
        %v6174 = vpack.c.b16 %v3954, %v3950
        %v6175 = vpack.c.b16 %v3959, %v3955
        %v6176 = vpack.c.b16 %v3960, %v3956
        %v6177 = vpack.c.b16 %v3961, %v3957
        %v6178 = vpack.c.b16 %v3962, %v3958
        %v6179 = vpack.c.b16 %v3967, %v3963
        %v6180 = vpack.c.b16 %v3968, %v3964
        %v6181 = vpack.c.b16 %v3969, %v3965
        %v6182 = vpack.c.b16 %v3970, %v3966
        %v6183 = vpack.c.b16 %v3975, %v3971
        %v6184 = vpack.c.b16 %v3976, %v3972
        %v6185 = vpack.c.b16 %v3977, %v3973
        %v6186 = vpack.c.b16 %v3978, %v3974
        %v6187 = vpack.c.b16 %v3983, %v3979
        %v6188 = vpack.c.b16 %v3984, %v3980
        %v6189 = vpack.c.b16 %v3985, %v3981
        %v6190 = vpack.c.b16 %v3986, %v3982
        %v6191 = vpack.c.b16 %v3991, %v3987
        %v6192 = vpack.c.b16 %v3992, %v3988
        %v6193 = vpack.c.b16 %v3993, %v3989
        %v6194 = vpack.c.b16 %v3994, %v3990
        %v6195 = vpack.c.b16 %v3999, %v3995
        %v6196 = vpack.c.b16 %v4000, %v3996
        %v6197 = vpack.c.b16 %v4001, %v3997
        %v6198 = vpack.c.b16 %v4002, %v3998
        %v6199 = vpack.c.b16 %v4007, %v4003
        %v6200 = vpack.c.b16 %v4008, %v4004
        %v6201 = vpack.c.b16 %v4009, %v4005
        %v6202 = vpack.c.b16 %v4010, %v4006
        %v6203 = vpack.c.b16 %v4015, %v4011
        %v6204 = vpack.c.b16 %v4016, %v4012
        %v6205 = vpack.c.b16 %v4017, %v4013
        %v6206 = vpack.c.b16 %v4018, %v4014
        %v6207 = vpack.c.b16 %v4023, %v4019
        %v6208 = vpack.c.b16 %v4024, %v4020
        %v6209 = vpack.c.b16 %v4025, %v4021
        %v6210 = vpack.c.b16 %v4026, %v4022
        %v6211 = vpack.c.b16 %v4031, %v4027
        %v6212 = vpack.c.b16 %v4032, %v4028
        %v6213 = vpack.c.b16 %v4033, %v4029
        %v6214 = vpack.c.b16 %v4034, %v4030
        %v6215 = vpack.c.b16 %v4039, %v4035
        %v6216 = vpack.c.b16 %v4040, %v4036
        %v6217 = vpack.c.b16 %v4041, %v4037
        %v6218 = vpack.c.b16 %v4042, %v4038
        %v6219 = vpack.c.b16 %v4047, %v4043
        %v6220 = vpack.c.b16 %v4048, %v4044
        %v6221 = vpack.c.b16 %v4049, %v4045
        %v6222 = vpack.c.b16 %v4050, %v4046
        %v6223 = vpack.c.b16 %v4055, %v4051
        %v6224 = vpack.c.b16 %v4056, %v4052
        %v6225 = vpack.c.b16 %v4057, %v4053
        %v6226 = vpack.c.b16 %v4058, %v4054
        %v6227 = vpack.c.b16 %v4063, %v4059
        %v6228 = vpack.c.b16 %v4064, %v4060
        %v6229 = vpack.c.b16 %v4065, %v4061
        %v6230 = vpack.c.b16 %v4066, %v4062
        %v6231 = vpack.c.b16 %v4071, %v4067
        %v6232 = vpack.c.b16 %v4072, %v4068
        %v6233 = vpack.c.b16 %v4073, %v4069
        %v6234 = vpack.c.b16 %v4074, %v4070
        %v6235 = vpack.c.b16 %v4079, %v4075
        %v6236 = vpack.c.b16 %v4080, %v4076
        %v6237 = vpack.c.b16 %v4081, %v4077
        %v6238 = vpack.c.b16 %v4082, %v4078
        %v6239 = vpack.c.b16 %v4087, %v4083
        %v6240 = vpack.c.b16 %v4088, %v4084
        %v6241 = vpack.c.b16 %v4089, %v4085
        %v6242 = vpack.c.b16 %v4090, %v4086
        %v6243 = vpack.c.b16 %v4095, %v4091
        %v6244 = vpack.c.b16 %v4096, %v4092
        %v6245 = vpack.c.b16 %v4097, %v4093
        %v6246 = vpack.c.b16 %v4098, %v4094
        %v6247 = vpack.c.b16 %v4103, %v4099
        %v6248 = vpack.c.b16 %v4104, %v4100
        %v6249 = vpack.c.b16 %v4105, %v4101
        %v6250 = vpack.c.b16 %v4106, %v4102
        %v6251 = vpack.c.b16 %v4111, %v4107
        %v6252 = vpack.c.b16 %v4112, %v4108
        %v6253 = vpack.c.b16 %v4113, %v4109
        %v6254 = vpack.c.b16 %v4114, %v4110
        %v6255 = vpack.c.b16 %v4119, %v4115
        %v6256 = vpack.c.b16 %v4120, %v4116
        %v6257 = vpack.c.b16 %v4121, %v4117
        %v6258 = vpack.c.b16 %v4122, %v4118
        %v6259 = vpack.c.b16 %v4127, %v4123
        %v6260 = vpack.c.b16 %v4128, %v4124
        %v6261 = vpack.c.b16 %v4129, %v4125
        %v6262 = vpack.c.b16 %v4130, %v4126
        %v6263 = vpack.c.b16 %v4135, %v4131
        %v6264 = vpack.c.b16 %v4136, %v4132
        %v6265 = vpack.c.b16 %v4137, %v4133
        %v6266 = vpack.c.b16 %v4138, %v4134
        %v6267 = vpack.c.b16 %v4143, %v4139
        %v6268 = vpack.c.b16 %v4144, %v4140
        %v6269 = vpack.c.b16 %v4145, %v4141
        %v6270 = vpack.c.b16 %v4146, %v4142
        %v6271 = vpack.c.b16 %v4151, %v4147
        %v6272 = vpack.c.b16 %v4152, %v4148
        %v6273 = vpack.c.b16 %v4153, %v4149
        %v6274 = vpack.c.b16 %v4154, %v4150
        %v6275 = vpack.c.b16 %v4159, %v4155
        %v6276 = vpack.c.b16 %v4160, %v4156
        %v6277 = vpack.c.b16 %v4161, %v4157
        %v6278 = vpack.c.b16 %v4162, %v4158
        %v6279 = vpack.c.b16 %v4167, %v4163
        %v6280 = vpack.c.b16 %v4168, %v4164
        %v6281 = vpack.c.b16 %v4169, %v4165
        %v6282 = vpack.c.b16 %v4170, %v4166
        %v6283 = vpack.c.b16 %v4175, %v4171
        %v6284 = vpack.c.b16 %v4176, %v4172
        %v6285 = vpack.c.b16 %v4177, %v4173
        %v6286 = vpack.c.b16 %v4178, %v4174
        %v6287 = vpack.c.b16 %v4183, %v4179
        %v6288 = vpack.c.b16 %v4184, %v4180
        %v6289 = vpack.c.b16 %v4185, %v4181
        %v6290 = vpack.c.b16 %v4186, %v4182
        %v6291 = vpack.c.b16 %v4191, %v4187
        %v6292 = vpack.c.b16 %v4192, %v4188
        %v6293 = vpack.c.b16 %v4193, %v4189
        %v6294 = vpack.c.b16 %v4194, %v4190
        %v6295 = vpack.c.b16 %v4199, %v4195
        %v6296 = vpack.c.b16 %v4200, %v4196
        %v6297 = vpack.c.b16 %v4201, %v4197
        %v6298 = vpack.c.b16 %v4202, %v4198
        %v6299 = vpack.c.b16 %v4207, %v4203
        %v6300 = vpack.c.b16 %v4208, %v4204
        %v6301 = vpack.c.b16 %v4209, %v4205
        %v6302 = vpack.c.b16 %v4210, %v4206
        %v6303 = vpack.c.b16 %v4215, %v4211
        %v6304 = vpack.c.b16 %v4216, %v4212
        %v6305 = vpack.c.b16 %v4217, %v4213
        %v6306 = vpack.c.b16 %v4218, %v4214
        %v6307 = vpack.c.b16 %v4223, %v4219
        %v6308 = vpack.c.b16 %v4224, %v4220
        %v6309 = vpack.c.b16 %v4225, %v4221
        %v6310 = vpack.c.b16 %v4226, %v4222
        %v6311 = vpack.c.b16 %v4231, %v4227
        %v6312 = vpack.c.b16 %v4232, %v4228
        %v6313 = vpack.c.b16 %v4233, %v4229
        %v6314 = vpack.c.b16 %v4234, %v4230
        %v6315 = vpack.c.b16 %v4239, %v4235
        %v6316 = vpack.c.b16 %v4240, %v4236
        %v6317 = vpack.c.b16 %v4241, %v4237
        %v6318 = vpack.c.b16 %v4242, %v4238
        %v6319 = vpack.c.b16 %v4247, %v4243
        %v6320 = vpack.c.b16 %v4248, %v4244
        %v6321 = vpack.c.b16 %v4249, %v4245
        %v6322 = vpack.c.b16 %v4250, %v4246
        %v6323 = vpack.c.b16 %v4255, %v4251
        %v6324 = vpack.c.b16 %v4256, %v4252
        %v6325 = vpack.c.b16 %v4257, %v4253
        %v6326 = vpack.c.b16 %v4258, %v4254
        %v6327 = vpack.c.b16 %v4263, %v4259
        %v6328 = vpack.c.b16 %v4264, %v4260
        %v6329 = vpack.c.b16 %v4265, %v4261
        %v6330 = vpack.c.b16 %v4266, %v4262
        %v6331 = vpack.c.b16 %v4271, %v4267
        %v6332 = vpack.c.b16 %v4272, %v4268
        %v6333 = vpack.c.b16 %v4273, %v4269
        %v6334 = vpack.c.b16 %v4274, %v4270
        %v6335 = vpack.c.b16 %v4279, %v4275
        %v6336 = vpack.c.b16 %v4280, %v4276
        %v6337 = vpack.c.b16 %v4281, %v4277
        %v6338 = vpack.c.b16 %v4282, %v4278
        %v6339 = vpack.c.b16 %v4287, %v4283
        %v6340 = vpack.c.b16 %v4288, %v4284
        %v6341 = vpack.c.b16 %v4289, %v4285
        %v6342 = vpack.c.b16 %v4290, %v4286
        %v6343 = vpack.c.b16 %v4295, %v4291
        %v6344 = vpack.c.b16 %v4296, %v4292
        %v6345 = vpack.c.b16 %v4297, %v4293
        %v6346 = vpack.c.b16 %v4298, %v4294
        %v6347 = vpack.c.b16 %v4303, %v4299
        %v6348 = vpack.c.b16 %v4304, %v4300
        %v6349 = vpack.c.b16 %v4305, %v4301
        %v6350 = vpack.c.b16 %v4306, %v4302
        %v6351 = vpack.c.b16 %v4311, %v4307
        %v6352 = vpack.c.b16 %v4312, %v4308
        %v6353 = vpack.c.b16 %v4313, %v4309
        %v6354 = vpack.c.b16 %v4314, %v4310
        %v6355 = vpack.c.b16 %v4319, %v4315
        %v6356 = vpack.c.b16 %v4320, %v4316
        %v6357 = vpack.c.b16 %v4321, %v4317
        %v6358 = vpack.c.b16 %v4322, %v4318
        %v6359 = vpack.c.b16 %v4327, %v4323
        %v6360 = vpack.c.b16 %v4328, %v4324
        %v6361 = vpack.c.b16 %v4329, %v4325
        %v6362 = vpack.c.b16 %v4330, %v4326
        %v6363 = vpack.c.b16 %v4335, %v4331
        %v6364 = vpack.c.b16 %v4336, %v4332
        %v6365 = vpack.c.b16 %v4337, %v4333
        %v6366 = vpack.c.b16 %v4338, %v4334
        %v6367 = vpack.c.b16 %v4343, %v4339
        %v6368 = vpack.c.b16 %v4344, %v4340
        %v6369 = vpack.c.b16 %v4345, %v4341
        %v6370 = vpack.c.b16 %v4346, %v4342
        %v6371 = vpack.c.b16 %v4351, %v4347
        %v6372 = vpack.c.b16 %v4352, %v4348
        %v6373 = vpack.c.b16 %v4353, %v4349
        %v6374 = vpack.c.b16 %v4354, %v4350
        %v6375 = vpack.c.b16 %v4359, %v4355
        %v6376 = vpack.c.b16 %v4360, %v4356
        %v6377 = vpack.c.b16 %v4361, %v4357
        %v6378 = vpack.c.b16 %v4362, %v4358
        %v6379 = vpack.c.b16 %v4367, %v4363
        %v6380 = vpack.c.b16 %v4368, %v4364
        %v6381 = vpack.c.b16 %v4369, %v4365
        %v6382 = vpack.c.b16 %v4370, %v4366
        %v6383 = vpack.c.b16 %v4375, %v4371
        %v6384 = vpack.c.b16 %v4376, %v4372
        %v6385 = vpack.c.b16 %v4377, %v4373
        %v6386 = vpack.c.b16 %v4378, %v4374
        %v6387 = vpack.c.b16 %v4383, %v4379
        %v6388 = vpack.c.b16 %v4384, %v4380
        %v6389 = vpack.c.b16 %v4385, %v4381
        %v6390 = vpack.c.b16 %v4386, %v4382
        %v6391 = vpack.c.b16 %v4391, %v4387
        %v6392 = vpack.c.b16 %v4392, %v4388
        %v6393 = vpack.c.b16 %v4393, %v4389
        %v6394 = vpack.c.b16 %v4394, %v4390
        %v6395 = vpack.c.b16 %v4399, %v4395
        %v6396 = vpack.c.b16 %v4400, %v4396
        %v6397 = vpack.c.b16 %v4401, %v4397
        %v6398 = vpack.c.b16 %v4402, %v4398
        %v6399 = vpack.c.b16 %v4407, %v4403
        %v6400 = vpack.c.b16 %v4408, %v4404
        %v6401 = vpack.c.b16 %v4409, %v4405
        %v6402 = vpack.c.b16 %v4410, %v4406
        %v6403 = vpack.c.b16 %v4415, %v4411
        %v6404 = vpack.c.b16 %v4416, %v4412
        %v6405 = vpack.c.b16 %v4417, %v4413
        %v6406 = vpack.c.b16 %v4418, %v4414
        %v6407 = vpack.c.b16 %v4423, %v4419
        %v6408 = vpack.c.b16 %v4424, %v4420
        %v6409 = vpack.c.b16 %v4425, %v4421
        %v6410 = vpack.c.b16 %v4426, %v4422
        %v6411 = vpack.c.b16 %v4431, %v4427
        %v6412 = vpack.c.b16 %v4432, %v4428
        %v6413 = vpack.c.b16 %v4433, %v4429
        %v6414 = vpack.c.b16 %v4434, %v4430
        %v6415 = vpack.c.b16 %v4439, %v4435
        %v6416 = vpack.c.b16 %v4440, %v4436
        %v6417 = vpack.c.b16 %v4441, %v4437
        %v6418 = vpack.c.b16 %v4442, %v4438
        %v6419 = vpack.c.b16 %v4447, %v4443
        %v6420 = vpack.c.b16 %v4448, %v4444
        %v6421 = vpack.c.b16 %v4449, %v4445
        %v6422 = vpack.c.b16 %v4450, %v4446
        %v6423 = vpack.c.b16 %v4455, %v4451
        %v6424 = vpack.c.b16 %v4456, %v4452
        %v6425 = vpack.c.b16 %v4457, %v4453
        %v6426 = vpack.c.b16 %v4458, %v4454
        %v6427 = vpack.c.b16 %v4463, %v4459
        %v6428 = vpack.c.b16 %v4464, %v4460
        %v6429 = vpack.c.b16 %v4465, %v4461
        %v6430 = vpack.c.b16 %v4466, %v4462
        %v6431 = vpack.c.b16 %v4471, %v4467
        %v6432 = vpack.c.b16 %v4472, %v4468
        %v6433 = vpack.c.b16 %v4473, %v4469
        %v6434 = vpack.c.b16 %v4474, %v4470
        %v6435 = vpack.c.b16 %v4479, %v4475
        %v6436 = vpack.c.b16 %v4480, %v4476
        %v6437 = vpack.c.b16 %v4481, %v4477
        %v6438 = vpack.c.b16 %v4482, %v4478
        %v6439 = vpack.c.b16 %v4487, %v4483
        %v6440 = vpack.c.b16 %v4488, %v4484
        %v6441 = vpack.c.b16 %v4489, %v4485
        %v6442 = vpack.c.b16 %v4490, %v4486
        %v6443 = vpack.c.b16 %v4495, %v4491
        %v6444 = vpack.c.b16 %v4496, %v4492
        %v6445 = vpack.c.b16 %v4497, %v4493
        %v6446 = vpack.c.b16 %v4498, %v4494
        %v6447 = vpack.c.b16 %v4503, %v4499
        %v6448 = vpack.c.b16 %v4504, %v4500
        %v6449 = vpack.c.b16 %v4505, %v4501
        %v6450 = vpack.c.b16 %v4506, %v4502
        %v6451 = vpack.c.b16 %v4511, %v4507
        %v6452 = vpack.c.b16 %v4512, %v4508
        %v6453 = vpack.c.b16 %v4513, %v4509
        %v6454 = vpack.c.b16 %v4514, %v4510
        %v6455 = vpack.c.b16 %v4519, %v4515
        %v6456 = vpack.c.b16 %v4520, %v4516
        %v6457 = vpack.c.b16 %v4521, %v4517
        %v6458 = vpack.c.b16 %v4522, %v4518
        %v6459 = vpack.c.b16 %v4527, %v4523
        %v6460 = vpack.c.b16 %v4528, %v4524
        %v6461 = vpack.c.b16 %v4529, %v4525
        %v6462 = vpack.c.b16 %v4530, %v4526
        %v6463 = vpack.c.b16 %v4535, %v4531
        %v6464 = vpack.c.b16 %v4536, %v4532
        %v6465 = vpack.c.b16 %v4537, %v4533
        %v6466 = vpack.c.b16 %v4538, %v4534
        %v6467 = vpack.c.b16 %v4543, %v4539
        %v6468 = vpack.c.b16 %v4544, %v4540
        %v6469 = vpack.c.b16 %v4545, %v4541
        %v6470 = vpack.c.b16 %v4546, %v4542
        %v6471 = vpack.c.b16 %v4551, %v4547
        %v6472 = vpack.c.b16 %v4552, %v4548
        %v6473 = vpack.c.b16 %v4553, %v4549
        %v6474 = vpack.c.b16 %v4554, %v4550
        %v6475 = vpack.c.b16 %v4559, %v4555
        %v6476 = vpack.c.b16 %v4560, %v4556
        %v6477 = vpack.c.b16 %v4561, %v4557
        %v6478 = vpack.c.b16 %v4562, %v4558
        %v6479 = vpack.c.b16 %v4567, %v4563
        %v6480 = vpack.c.b16 %v4568, %v4564
        %v6481 = vpack.c.b16 %v4569, %v4565
        %v6482 = vpack.c.b16 %v4570, %v4566
        %v6483 = vpack.c.b16 %v4575, %v4571
        %v6484 = vpack.c.b16 %v4576, %v4572
        %v6485 = vpack.c.b16 %v4577, %v4573
        %v6486 = vpack.c.b16 %v4578, %v4574
        %v6487 = vpack.c.b16 %v4583, %v4579
        %v6488 = vpack.c.b16 %v4584, %v4580
        %v6489 = vpack.c.b16 %v4585, %v4581
        %v6490 = vpack.c.b16 %v4586, %v4582
        %v6491 = vpack.c.b16 %v4591, %v4587
        %v6492 = vpack.c.b16 %v4592, %v4588
        %v6493 = vpack.c.b16 %v4593, %v4589
        %v6494 = vpack.c.b16 %v4594, %v4590
        %v6495 = vpack.c.b16 %v4599, %v4595
        %v6496 = vpack.c.b16 %v4600, %v4596
        %v6497 = vpack.c.b16 %v4601, %v4597
        %v6498 = vpack.c.b16 %v4602, %v4598
        %v6499 = vpack.c.b16 %v4607, %v4603
        %v6500 = vpack.c.b16 %v4608, %v4604
        %v6501 = vpack.c.b16 %v4609, %v4605
        %v6502 = vpack.c.b16 %v4610, %v4606
        %v6503 = vpack.c.b16 %v4615, %v4611
        %v6504 = vpack.c.b16 %v4616, %v4612
        %v6505 = vpack.c.b16 %v4617, %v4613
        %v6506 = vpack.c.b16 %v4618, %v4614
        %v6507 = vpack.c.b16 %v4623, %v4619
        %v6508 = vpack.c.b16 %v4624, %v4620
        %v6509 = vpack.c.b16 %v4625, %v4621
        %v6510 = vpack.c.b16 %v4626, %v4622
        %v6511 = vpack.c.b16 %v4631, %v4627
        %v6512 = vpack.c.b16 %v4632, %v4628
        %v6513 = vpack.c.b16 %v4633, %v4629
        %v6514 = vpack.c.b16 %v4634, %v4630
        %v6515 = vpack.c.b16 %v4639, %v4635
        %v6516 = vpack.c.b16 %v4640, %v4636
        %v6517 = vpack.c.b16 %v4641, %v4637
        %v6518 = vpack.c.b16 %v4642, %v4638
        %v6519 = vpack.c.b16 %v4647, %v4643
        %v6520 = vpack.c.b16 %v4648, %v4644
        %v6521 = vpack.c.b16 %v4649, %v4645
        %v6522 = vpack.c.b16 %v4650, %v4646
        %v6523 = vpack.c.b16 %v4655, %v4651
        %v6524 = vpack.c.b16 %v4656, %v4652
        %v6525 = vpack.c.b16 %v4657, %v4653
        %v6526 = vpack.c.b16 %v4658, %v4654
        %v6527 = vpack.c.b16 %v4663, %v4659
        %v6528 = vpack.c.b16 %v4664, %v4660
        %v6529 = vpack.c.b16 %v4665, %v4661
        %v6530 = vpack.c.b16 %v4666, %v4662
        %v6531 = vpack.c.b16 %v4671, %v4667
        %v6532 = vpack.c.b16 %v4672, %v4668
        %v6533 = vpack.c.b16 %v4673, %v4669
        %v6534 = vpack.c.b16 %v4674, %v4670
        %v6535 = vpack.c.b16 %v4679, %v4675
        %v6536 = vpack.c.b16 %v4680, %v4676
        %v6537 = vpack.c.b16 %v4681, %v4677
        %v6538 = vpack.c.b16 %v4682, %v4678
        %v6539 = vpack.c.b16 %v4687, %v4683
        %v6540 = vpack.c.b16 %v4688, %v4684
        %v6541 = vpack.c.b16 %v4689, %v4685
        %v6542 = vpack.c.b16 %v4690, %v4686
        %v6543 = vpack.c.b16 %v4695, %v4691
        %v6544 = vpack.c.b16 %v4696, %v4692
        %v6545 = vpack.c.b16 %v4697, %v4693
        %v6546 = vpack.c.b16 %v4698, %v4694
        %v6547 = vpack.c.b16 %v4703, %v4699
        %v6548 = vpack.c.b16 %v4704, %v4700
        %v6549 = vpack.c.b16 %v4705, %v4701
        %v6550 = vpack.c.b16 %v4706, %v4702
        %v6551 = vpack.c.b16 %v4711, %v4707
        %v6552 = vpack.c.b16 %v4712, %v4708
        %v6553 = vpack.c.b16 %v4713, %v4709
        %v6554 = vpack.c.b16 %v4714, %v4710
        %v6555 = vpack.c.b16 %v4719, %v4715
        %v6556 = vpack.c.b16 %v4720, %v4716
        %v6557 = vpack.c.b16 %v4721, %v4717
        %v6558 = vpack.c.b16 %v4722, %v4718
        %v6559 = vpack.c.b16 %v4727, %v4723
        %v6560 = vpack.c.b16 %v4728, %v4724
        %v6561 = vpack.c.b16 %v4729, %v4725
        %v6562 = vpack.c.b16 %v4730, %v4726
        %v6563 = vpack.c.b16 %v4735, %v4731
        %v6564 = vpack.c.b16 %v4736, %v4732
        %v6565 = vpack.c.b16 %v4737, %v4733
        %v6566 = vpack.c.b16 %v4738, %v4734
        %v6567 = vpack.c.b16 %v4743, %v4739
        %v6568 = vpack.c.b16 %v4744, %v4740
        %v6569 = vpack.c.b16 %v4745, %v4741
        %v6570 = vpack.c.b16 %v4746, %v4742
        %v6571 = vpack.c.b16 %v4751, %v4747
        %v6572 = vpack.c.b16 %v4752, %v4748
        %v6573 = vpack.c.b16 %v4753, %v4749
        %v6574 = vpack.c.b16 %v4754, %v4750
        %v6575 = vpack.c.b16 %v4759, %v4755
        %v6576 = vpack.c.b16 %v4760, %v4756
        %v6577 = vpack.c.b16 %v4761, %v4757
        %v6578 = vpack.c.b16 %v4762, %v4758
        %v6579 = vpack.c.b16 %v4767, %v4763
        %v6580 = vpack.c.b16 %v4768, %v4764
        %v6581 = vpack.c.b16 %v4769, %v4765
        %v6582 = vpack.c.b16 %v4770, %v4766
        %v6583 = vpack.c.b16 %v4775, %v4771
        %v6584 = vpack.c.b16 %v4776, %v4772
        %v6585 = vpack.c.b16 %v4777, %v4773
        %v6586 = vpack.c.b16 %v4778, %v4774
        %v6587 = vpack.c.b16 %v4783, %v4779
        %v6588 = vpack.c.b16 %v4784, %v4780
        %v6589 = vpack.c.b16 %v4785, %v4781
        %v6590 = vpack.c.b16 %v4786, %v4782
        %v6591 = vpack.c.b16 %v4791, %v4787
        %v6592 = vpack.c.b16 %v4792, %v4788
        %v6593 = vpack.c.b16 %v4793, %v4789
        %v6594 = vpack.c.b16 %v4794, %v4790
        %v6595 = vpack.c.b16 %v4799, %v4795
        %v6596 = vpack.c.b16 %v4800, %v4796
        %v6597 = vpack.c.b16 %v4801, %v4797
        %v6598 = vpack.c.b16 %v4802, %v4798
        %v6599 = vpack.c.b16 %v4807, %v4803
        %v6600 = vpack.c.b16 %v4808, %v4804
        %v6601 = vpack.c.b16 %v4809, %v4805
        %v6602 = vpack.c.b16 %v4810, %v4806
        %v6603 = vpack.c.b16 %v4815, %v4811
        %v6604 = vpack.c.b16 %v4816, %v4812
        %v6605 = vpack.c.b16 %v4817, %v4813
        %v6606 = vpack.c.b16 %v4818, %v4814
        %v6607 = vpack.c.b16 %v4823, %v4819
        %v6608 = vpack.c.b16 %v4824, %v4820
        %v6609 = vpack.c.b16 %v4825, %v4821
        %v6610 = vpack.c.b16 %v4826, %v4822
        %v6611 = vpack.c.b16 %v4831, %v4827
        %v6612 = vpack.c.b16 %v4832, %v4828
        %v6613 = vpack.c.b16 %v4833, %v4829
        %v6614 = vpack.c.b16 %v4834, %v4830
        %v6615 = vpack.c.b16 %v4839, %v4835
        %v6616 = vpack.c.b16 %v4840, %v4836
        %v6617 = vpack.c.b16 %v4841, %v4837
        %v6618 = vpack.c.b16 %v4842, %v4838
        %v6619 = vpack.c.b16 %v4847, %v4843
        %v6620 = vpack.c.b16 %v4848, %v4844
        %v6621 = vpack.c.b16 %v4849, %v4845
        %v6622 = vpack.c.b16 %v4850, %v4846
        %v6623 = vpack.c.b16 %v4855, %v4851
        %v6624 = vpack.c.b16 %v4856, %v4852
        %v6625 = vpack.c.b16 %v4857, %v4853
        %v6626 = vpack.c.b16 %v4858, %v4854
        %v6627 = vpack.c.b16 %v4863, %v4859
        %v6628 = vpack.c.b16 %v4864, %v4860
        %v6629 = vpack.c.b16 %v4865, %v4861
        %v6630 = vpack.c.b16 %v4866, %v4862
        %v6631 = vpack.c.b16 %v4871, %v4867
        %v6632 = vpack.c.b16 %v4872, %v4868
        %v6633 = vpack.c.b16 %v4873, %v4869
        %v6634 = vpack.c.b16 %v4874, %v4870
        %v6635 = vpack.c.b16 %v4879, %v4875
        %v6636 = vpack.c.b16 %v4880, %v4876
        %v6637 = vpack.c.b16 %v4881, %v4877
        %v6638 = vpack.c.b16 %v4882, %v4878
        %v6639 = vpack.c.b16 %v4887, %v4883
        %v6640 = vpack.c.b16 %v4888, %v4884
        %v6641 = vpack.c.b16 %v4889, %v4885
        %v6642 = vpack.c.b16 %v4890, %v4886
        %v6643 = vpack.c.b16 %v4895, %v4891
        %v6644 = vpack.c.b16 %v4896, %v4892
        %v6645 = vpack.c.b16 %v4897, %v4893
        %v6646 = vpack.c.b16 %v4898, %v4894
        %v6647 = vpack.c.b16 %v4903, %v4899
        %v6648 = vpack.c.b16 %v4904, %v4900
        %v6649 = vpack.c.b16 %v4905, %v4901
        %v6650 = vpack.c.b16 %v4906, %v4902
        %v6651 = vpack.c.b16 %v4911, %v4907
        %v6652 = vpack.c.b16 %v4912, %v4908
        %v6653 = vpack.c.b16 %v4913, %v4909
        %v6654 = vpack.c.b16 %v4914, %v4910
        %v6655 = vpack.c.b16 %v4919, %v4915
        %v6656 = vpack.c.b16 %v4920, %v4916
        %v6657 = vpack.c.b16 %v4921, %v4917
        %v6658 = vpack.c.b16 %v4922, %v4918
        %v6659 = vpack.c.b16 %v4927, %v4923
        %v6660 = vpack.c.b16 %v4928, %v4924
        %v6661 = vpack.c.b16 %v4929, %v4925
        %v6662 = vpack.c.b16 %v4930, %v4926
        %v6663 = vpack.c.b16 %v4935, %v4931
        %v6664 = vpack.c.b16 %v4936, %v4932
        %v6665 = vpack.c.b16 %v4937, %v4933
        %v6666 = vpack.c.b16 %v4938, %v4934
        %v6667 = vpack.c.b16 %v4943, %v4939
        %v6668 = vpack.c.b16 %v4944, %v4940
        %v6669 = vpack.c.b16 %v4945, %v4941
        %v6670 = vpack.c.b16 %v4946, %v4942
        %v6671 = vpack.c.b16 %v4951, %v4947
        %v6672 = vpack.c.b16 %v4952, %v4948
        %v6673 = vpack.c.b16 %v4953, %v4949
        %v6674 = vpack.c.b16 %v4954, %v4950
        %v6675 = vpack.c.b16 %v4959, %v4955
        %v6676 = vpack.c.b16 %v4960, %v4956
        %v6677 = vpack.c.b16 %v4961, %v4957
        %v6678 = vpack.c.b16 %v4962, %v4958
        %v6679 = vpack.c.b16 %v4967, %v4963
        %v6680 = vpack.c.b16 %v4968, %v4964
        %v6681 = vpack.c.b16 %v4969, %v4965
        %v6682 = vpack.c.b16 %v4970, %v4966
        %v6683 = vpack.c.b16 %v4975, %v4971
        %v6684 = vpack.c.b16 %v4976, %v4972
        %v6685 = vpack.c.b16 %v4977, %v4973
        %v6686 = vpack.c.b16 %v4978, %v4974
        %v6687 = vpack.c.b16 %v4983, %v4979
        %v6688 = vpack.c.b16 %v4984, %v4980
        %v6689 = vpack.c.b16 %v4985, %v4981
        %v6690 = vpack.c.b16 %v4986, %v4982
        %v6691 = vpack.c.b16 %v4991, %v4987
        %v6692 = vpack.c.b16 %v4992, %v4988
        %v6693 = vpack.c.b16 %v4993, %v4989
        %v6694 = vpack.c.b16 %v4994, %v4990
        %v6695 = vpack.c.b16 %v4999, %v4995
        %v6696 = vpack.c.b16 %v5000, %v4996
        %v6697 = vpack.c.b16 %v5001, %v4997
        %v6698 = vpack.c.b16 %v5002, %v4998
        %v6699 = vpack.c.b16 %v5007, %v5003
        %v6700 = vpack.c.b16 %v5008, %v5004
        %v6701 = vpack.c.b16 %v5009, %v5005
        %v6702 = vpack.c.b16 %v5010, %v5006
        %v6703 = vpack.c.b16 %v5015, %v5011
        %v6704 = vpack.c.b16 %v5016, %v5012
        %v6705 = vpack.c.b16 %v5017, %v5013
        %v6706 = vpack.c.b16 %v5018, %v5014
        %v6707 = vpack.c.b16 %v5023, %v5019
        %v6708 = vpack.c.b16 %v5024, %v5020
        %v6709 = vpack.c.b16 %v5025, %v5021
        %v6710 = vpack.c.b16 %v5026, %v5022
        %v6711 = vpack.c.b16 %v5031, %v5027
        %v6712 = vpack.c.b16 %v5032, %v5028
        %v6713 = vpack.c.b16 %v5033, %v5029
        %v6714 = vpack.c.b16 %v5034, %v5030
        %v6715 = vpack.c.b16 %v5039, %v5035
        %v6716 = vpack.c.b16 %v5040, %v5036
        %v6717 = vpack.c.b16 %v5041, %v5037
        %v6718 = vpack.c.b16 %v5042, %v5038
        %v6719 = vpack.c.b16 %v5047, %v5043
        %v6720 = vpack.c.b16 %v5048, %v5044
        %v6721 = vpack.c.b16 %v5049, %v5045
        %v6722 = vpack.c.b16 %v5050, %v5046
        %v6723 = vpack.c.b16 %v5055, %v5051
        %v6724 = vpack.c.b16 %v5056, %v5052
        %v6725 = vpack.c.b16 %v5057, %v5053
        %v6726 = vpack.c.b16 %v5058, %v5054
        %v6727 = vpack.c.b16 %v5063, %v5059
        %v6728 = vpack.c.b16 %v5064, %v5060
        %v6729 = vpack.c.b16 %v5065, %v5061
        %v6730 = vpack.c.b16 %v5066, %v5062
        %v6731 = vpack.c.b16 %v5071, %v5067
        %v6732 = vpack.c.b16 %v5072, %v5068
        %v6733 = vpack.c.b16 %v5073, %v5069
        %v6734 = vpack.c.b16 %v5074, %v5070
        %v6735 = vpack.c.b16 %v5079, %v5075
        %v6736 = vpack.c.b16 %v5080, %v5076
        %v6737 = vpack.c.b16 %v5081, %v5077
        %v6738 = vpack.c.b16 %v5082, %v5078
        %v6739 = vpack.c.b16 %v5087, %v5083
        %v6740 = vpack.c.b16 %v5088, %v5084
        %v6741 = vpack.c.b16 %v5089, %v5085
        %v6742 = vpack.c.b16 %v5090, %v5086
        %v6743 = vpack.c.b16 %v5095, %v5091
        %v6744 = vpack.c.b16 %v5096, %v5092
        %v6745 = vpack.c.b16 %v5097, %v5093
        %v6746 = vpack.c.b16 %v5098, %v5094
        %v6747 = vpack.c.b16 %v5103, %v5099
        %v6748 = vpack.c.b16 %v5104, %v5100
        %v6749 = vpack.c.b16 %v5105, %v5101
        %v6750 = vpack.c.b16 %v5106, %v5102
        %v6751 = vpack.c.b16 %v5111, %v5107
        %v6752 = vpack.c.b16 %v5112, %v5108
        %v6753 = vpack.c.b16 %v5113, %v5109
        %v6754 = vpack.c.b16 %v5114, %v5110
        %v6755 = vpack.c.b16 %v5119, %v5115
        %v6756 = vpack.c.b16 %v5120, %v5116
        %v6757 = vpack.c.b16 %v5121, %v5117
        %v6758 = vpack.c.b16 %v5122, %v5118
        %v6759 = vpack.c.b16 %v5127, %v5123
        %v6760 = vpack.c.b16 %v5128, %v5124
        %v6761 = vpack.c.b16 %v5129, %v5125
        %v6762 = vpack.c.b16 %v5130, %v5126
        %v6763 = vpack.c.b16 %v5135, %v5131
        %v6764 = vpack.c.b16 %v5136, %v5132
        %v6765 = vpack.c.b16 %v5137, %v5133
        %v6766 = vpack.c.b16 %v5138, %v5134
        %v6767 = vpack.c.b16 %v5143, %v5139
        %v6768 = vpack.c.b16 %v5144, %v5140
        %v6769 = vpack.c.b16 %v5145, %v5141
        %v6770 = vpack.c.b16 %v5146, %v5142
        %v6771 = vpack.c.b16 %v5151, %v5147
        %v6772 = vpack.c.b16 %v5152, %v5148
        %v6773 = vpack.c.b16 %v5153, %v5149
        %v6774 = vpack.c.b16 %v5154, %v5150
        %v6775 = vpack.c.b16 %v5159, %v5155
        %v6776 = vpack.c.b16 %v5160, %v5156
        %v6777 = vpack.c.b16 %v5161, %v5157
        %v6778 = vpack.c.b16 %v5162, %v5158
        %v6779 = vpack.c.b16 %v5167, %v5163
        %v6780 = vpack.c.b16 %v5168, %v5164
        %v6781 = vpack.c.b16 %v5169, %v5165
        %v6782 = vpack.c.b16 %v5170, %v5166
        %v6783 = vpack.c.b16 %v5175, %v5171
        %v6784 = vpack.c.b16 %v5176, %v5172
        %v6785 = vpack.c.b16 %v5177, %v5173
        %v6786 = vpack.c.b16 %v5178, %v5174
        %v6787 = vpack.c.b16 %v5183, %v5179
        %v6788 = vpack.c.b16 %v5184, %v5180
        %v6789 = vpack.c.b16 %v5185, %v5181
        %v6790 = vpack.c.b16 %v5186, %v5182
        %v6791 = vpack.c.b16 %v5191, %v5187
        %v6792 = vpack.c.b16 %v5192, %v5188
        %v6793 = vpack.c.b16 %v5193, %v5189
        %v6794 = vpack.c.b16 %v5194, %v5190
        %v6795 = vpack.c.b16 %v5199, %v5195
        %v6796 = vpack.c.b16 %v5200, %v5196
        %v6797 = vpack.c.b16 %v5201, %v5197
        %v6798 = vpack.c.b16 %v5202, %v5198
        %v6799 = vpack.c.b16 %v5207, %v5203
        %v6800 = vpack.c.b16 %v5208, %v5204
        %v6801 = vpack.c.b16 %v5209, %v5205
        %v6802 = vpack.c.b16 %v5210, %v5206
        %v6803 = vpack.c.b16 %v5215, %v5211
        %v6804 = vpack.c.b16 %v5216, %v5212
        %v6805 = vpack.c.b16 %v5217, %v5213
        %v6806 = vpack.c.b16 %v5218, %v5214
        %v6807 = vpack.c.b16 %v5223, %v5219
        %v6808 = vpack.c.b16 %v5224, %v5220
        %v6809 = vpack.c.b16 %v5225, %v5221
        %v6810 = vpack.c.b16 %v5226, %v5222
        %v6811 = vpack.c.b16 %v5231, %v5227
        %v6812 = vpack.c.b16 %v5232, %v5228
        %v6813 = vpack.c.b16 %v5233, %v5229
        %v6814 = vpack.c.b16 %v5234, %v5230
        %v6815 = vpack.c.b16 %v5239, %v5235
        %v6816 = vpack.c.b16 %v5240, %v5236
        %v6817 = vpack.c.b16 %v5241, %v5237
        %v6818 = vpack.c.b16 %v5242, %v5238
        %v6819 = vpack.c.b16 %v5247, %v5243
        %v6820 = vpack.c.b16 %v5248, %v5244
        %v6821 = vpack.c.b16 %v5249, %v5245
        %v6822 = vpack.c.b16 %v5250, %v5246
        %v6823 = vpack.c.b16 %v5255, %v5251
        %v6824 = vpack.c.b16 %v5256, %v5252
        %v6825 = vpack.c.b16 %v5257, %v5253
        %v6826 = vpack.c.b16 %v5258, %v5254
        %v6827 = vpack.c.b16 %v5263, %v5259
        %v6828 = vpack.c.b16 %v5264, %v5260
        %v6829 = vpack.c.b16 %v5265, %v5261
        %v6830 = vpack.c.b16 %v5266, %v5262
        %v6831 = vpack.c.b16 %v5271, %v5267
        %v6832 = vpack.c.b16 %v5272, %v5268
        %v6833 = vpack.c.b16 %v5273, %v5269
        %v6834 = vpack.c.b16 %v5274, %v5270
        %v6835 = vpack.c.b16 %v5279, %v5275
        %v6836 = vpack.c.b16 %v5280, %v5276
        %v6837 = vpack.c.b16 %v5281, %v5277
        %v6838 = vpack.c.b16 %v5282, %v5278
        %v6839 = vpack.c.b16 %v5287, %v5283
        %v6840 = vpack.c.b16 %v5288, %v5284
        %v6841 = vpack.c.b16 %v5289, %v5285
        %v6842 = vpack.c.b16 %v5290, %v5286
        %v6843 = vpack.c.b16 %v5295, %v5291
        %v6844 = vpack.c.b16 %v5296, %v5292
        %v6845 = vpack.c.b16 %v5297, %v5293
        %v6846 = vpack.c.b16 %v5298, %v5294
        %v6847 = vpack.c.b16 %v5303, %v5299
        %v6848 = vpack.c.b16 %v5304, %v5300
        %v6849 = vpack.c.b16 %v5305, %v5301
        %v6850 = vpack.c.b16 %v5306, %v5302
        %v6851 = vpack.c.b16 %v5311, %v5307
        %v6852 = vpack.c.b16 %v5312, %v5308
        %v6853 = vpack.c.b16 %v5313, %v5309
        %v6854 = vpack.c.b16 %v5314, %v5310
        %v6855 = vpack.c.b16 %v5319, %v5315
        %v6856 = vpack.c.b16 %v5320, %v5316
        %v6857 = vpack.c.b16 %v5321, %v5317
        %v6858 = vpack.c.b16 %v5322, %v5318
        %v6859 = vpack.c.b16 %v5327, %v5323
        %v6860 = vpack.c.b16 %v5328, %v5324
        %v6861 = vpack.c.b16 %v5329, %v5325
        %v6862 = vpack.c.b16 %v5330, %v5326
        %v6863 = vpack.c.b16 %v5335, %v5331
        %v6864 = vpack.c.b16 %v5336, %v5332
        %v6865 = vpack.c.b16 %v5337, %v5333
        %v6866 = vpack.c.b16 %v5338, %v5334
        %v6867 = vpack.c.b16 %v5343, %v5339
        %v6868 = vpack.c.b16 %v5344, %v5340
        %v6869 = vpack.c.b16 %v5345, %v5341
        %v6870 = vpack.c.b16 %v5346, %v5342
        %v6871 = vpack.c.b16 %v5351, %v5347
        %v6872 = vpack.c.b16 %v5352, %v5348
        %v6873 = vpack.c.b16 %v5353, %v5349
        %v6874 = vpack.c.b16 %v5354, %v5350
        %v6875 = vpack.c.b16 %v5359, %v5355
        %v6876 = vpack.c.b16 %v5360, %v5356
        %v6877 = vpack.c.b16 %v5361, %v5357
        %v6878 = vpack.c.b16 %v5362, %v5358
        %v6879 = vpack.c.b16 %v5367, %v5363
        %v6880 = vpack.c.b16 %v5368, %v5364
        %v6881 = vpack.c.b16 %v5369, %v5365
        %v6882 = vpack.c.b16 %v5370, %v5366
        %v6883 = vpack.c.b16 %v5375, %v5371
        %v6884 = vpack.c.b16 %v5376, %v5372
        %v6885 = vpack.c.b16 %v5377, %v5373
        %v6886 = vpack.c.b16 %v5378, %v5374
        %v6887 = vpack.c.b16 %v5383, %v5379
        %v6888 = vpack.c.b16 %v5384, %v5380
        %v6889 = vpack.c.b16 %v5385, %v5381
        %v6890 = vpack.c.b16 %v5386, %v5382
        %v6891 = vpack.c.b16 %v5391, %v5387
        %v6892 = vpack.c.b16 %v5392, %v5388
        %v6893 = vpack.c.b16 %v5393, %v5389
        %v6894 = vpack.c.b16 %v5394, %v5390
        %v6895 = vpack.c.b16 %v5399, %v5395
        %v6896 = vpack.c.b16 %v5400, %v5396
        %v6897 = vpack.c.b16 %v5401, %v5397
        %v6898 = vpack.c.b16 %v5402, %v5398
        %v6899 = vpack.c.b16 %v5407, %v5403
        %v6900 = vpack.c.b16 %v5408, %v5404
        %v6901 = vpack.c.b16 %v5409, %v5405
        %v6902 = vpack.c.b16 %v5410, %v5406
        %v6903 = vpack.c.b16 %v5415, %v5411
        %v6904 = vpack.c.b16 %v5416, %v5412
        %v6905 = vpack.c.b16 %v5417, %v5413
        %v6906 = vpack.c.b16 %v5418, %v5414
        %v6907 = vpack.c.b16 %v5423, %v5419
        %v6908 = vpack.c.b16 %v5424, %v5420
        %v6909 = vpack.c.b16 %v5425, %v5421
        %v6910 = vpack.c.b16 %v5426, %v5422
        %v6911 = vpack.c.b16 %v5431, %v5427
        %v6912 = vpack.c.b16 %v5432, %v5428
        %v6913 = vpack.c.b16 %v5433, %v5429
        %v6914 = vpack.c.b16 %v5434, %v5430
        %v6915 = vpack.c.b16 %v5439, %v5435
        %v6916 = vpack.c.b16 %v5440, %v5436
        %v6917 = vpack.c.b16 %v5441, %v5437
        %v6918 = vpack.c.b16 %v5442, %v5438
        %v6919 = vpack.c.b16 %v5447, %v5443
        %v6920 = vpack.c.b16 %v5448, %v5444
        %v6921 = vpack.c.b16 %v5449, %v5445
        %v6922 = vpack.c.b16 %v5450, %v5446
        %v6923 = vpack.c.b16 %v5455, %v5451
        %v6924 = vpack.c.b16 %v5456, %v5452
        %v6925 = vpack.c.b16 %v5457, %v5453
        %v6926 = vpack.c.b16 %v5458, %v5454
        %v6927 = vpack.c.b16 %v5463, %v5459
        %v6928 = vpack.c.b16 %v5464, %v5460
        %v6929 = vpack.c.b16 %v5465, %v5461
        %v6930 = vpack.c.b16 %v5466, %v5462
        %v6931 = vpack.c.b16 %v5471, %v5467
        %v6932 = vpack.c.b16 %v5472, %v5468
        %v6933 = vpack.c.b16 %v5473, %v5469
        %v6934 = vpack.c.b16 %v5474, %v5470
        %v6935 = vpack.c.b16 %v5479, %v5475
        %v6936 = vpack.c.b16 %v5480, %v5476
        %v6937 = vpack.c.b16 %v5481, %v5477
        %v6938 = vpack.c.b16 %v5482, %v5478
        %v6939 = vpack.c.b16 %v5487, %v5483
        %v6940 = vpack.c.b16 %v5488, %v5484
        %v6941 = vpack.c.b16 %v5489, %v5485
        %v6942 = vpack.c.b16 %v5490, %v5486
        %v6943 = vpack.c.b16 %v5495, %v5491
        %v6944 = vpack.c.b16 %v5496, %v5492
        %v6945 = vpack.c.b16 %v5497, %v5493
        %v6946 = vpack.c.b16 %v5498, %v5494
        %v6947 = vpack.c.b16 %v5503, %v5499
        %v6948 = vpack.c.b16 %v5504, %v5500
        %v6949 = vpack.c.b16 %v5505, %v5501
        %v6950 = vpack.c.b16 %v5506, %v5502
        %v6951 = vpack.c.b16 %v5511, %v5507
        %v6952 = vpack.c.b16 %v5512, %v5508
        %v6953 = vpack.c.b16 %v5513, %v5509
        %v6954 = vpack.c.b16 %v5514, %v5510
        %v6955 = vpack.c.b16 %v5519, %v5515
        %v6956 = vpack.c.b16 %v5520, %v5516
        %v6957 = vpack.c.b16 %v5521, %v5517
        %v6958 = vpack.c.b16 %v5522, %v5518
        %v6959 = vpack.c.b16 %v5527, %v5523
        %v6960 = vpack.c.b16 %v5528, %v5524
        %v6961 = vpack.c.b16 %v5529, %v5525
        %v6962 = vpack.c.b16 %v5530, %v5526
        %v6963 = vpack.c.b16 %v5535, %v5531
        %v6964 = vpack.c.b16 %v5536, %v5532
        %v6965 = vpack.c.b16 %v5537, %v5533
        %v6966 = vpack.c.b16 %v5538, %v5534
        %v6967 = vpack.c.b16 %v5543, %v5539
        %v6968 = vpack.c.b16 %v5544, %v5540
        %v6969 = vpack.c.b16 %v5545, %v5541
        %v6970 = vpack.c.b16 %v5546, %v5542
        %v6971 = vpack.c.b16 %v5551, %v5547
        %v6972 = vpack.c.b16 %v5552, %v5548
        %v6973 = vpack.c.b16 %v5553, %v5549
        %v6974 = vpack.c.b16 %v5554, %v5550
        %v6975 = vpack.c.b16 %v5559, %v5555
        %v6976 = vpack.c.b16 %v5560, %v5556
        %v6977 = vpack.c.b16 %v5561, %v5557
        %v6978 = vpack.c.b16 %v5562, %v5558
        %v6979 = vpack.c.b16 %v5567, %v5563
        %v6980 = vpack.c.b16 %v5568, %v5564
        %v6981 = vpack.c.b16 %v5569, %v5565
        %v6982 = vpack.c.b16 %v5570, %v5566
        %v6983 = vpack.c.b16 %v5575, %v5571
        %v6984 = vpack.c.b16 %v5576, %v5572
        %v6985 = vpack.c.b16 %v5577, %v5573
        %v6986 = vpack.c.b16 %v5578, %v5574
        %v6987 = vpack.c.b16 %v5583, %v5579
        %v6988 = vpack.c.b16 %v5584, %v5580
        %v6989 = vpack.c.b16 %v5585, %v5581
        %v6990 = vpack.c.b16 %v5586, %v5582
        %v6991 = vpack.c.b16 %v5591, %v5587
        %v6992 = vpack.c.b16 %v5592, %v5588
        %v6993 = vpack.c.b16 %v5593, %v5589
        %v6994 = vpack.c.b16 %v5594, %v5590
        %v6995 = vpack.c.b16 %v5599, %v5595
        %v6996 = vpack.c.b16 %v5600, %v5596
        %v6997 = vpack.c.b16 %v5601, %v5597
        %v6998 = vpack.c.b16 %v5602, %v5598
        %v6999 = vpack.c.b16 %v5607, %v5603
        %v7000 = vpack.c.b16 %v5608, %v5604
        %v7001 = vpack.c.b16 %v5609, %v5605
        %v7002 = vpack.c.b16 %v5610, %v5606
        %v7003 = vpack.c.b16 %v5615, %v5611
        %v7004 = vpack.c.b16 %v5616, %v5612
        %v7005 = vpack.c.b16 %v5617, %v5613
        %v7006 = vpack.c.b16 %v5618, %v5614
        %v7007 = vpack.c.b16 %v5623, %v5619
        %v7008 = vpack.c.b16 %v5624, %v5620
        %v7009 = vpack.c.b16 %v5625, %v5621
        %v7010 = vpack.c.b16 %v5626, %v5622
        %v7011 = vpack.c.b16 %v5631, %v5627
        %v7012 = vpack.c.b16 %v5632, %v5628
        %v7013 = vpack.c.b16 %v5633, %v5629
        %v7014 = vpack.c.b16 %v5634, %v5630
        %v7015 = vpack.c.b16 %v5639, %v5635
        %v7016 = vpack.c.b16 %v5640, %v5636
        %v7017 = vpack.c.b16 %v5641, %v5637
        %v7018 = vpack.c.b16 %v5642, %v5638
        %v7019 = vpack.c.b16 %v5647, %v5643
        %v7020 = vpack.c.b16 %v5648, %v5644
        %v7021 = vpack.c.b16 %v5649, %v5645
        %v7022 = vpack.c.b16 %v5650, %v5646
        %v7023 = vpack.c.b16 %v5655, %v5651
        %v7024 = vpack.c.b16 %v5656, %v5652
        %v7025 = vpack.c.b16 %v5657, %v5653
        %v7026 = vpack.c.b16 %v5658, %v5654
        %v7027 = vpack.c.b16 %v5663, %v5659
        %v7028 = vpack.c.b16 %v5664, %v5660
        %v7029 = vpack.c.b16 %v5665, %v5661
        %v7030 = vpack.c.b16 %v5666, %v5662
        %v7031 = vpack.c.b16 %v5671, %v5667
        %v7032 = vpack.c.b16 %v5672, %v5668
        %v7033 = vpack.c.b16 %v5673, %v5669
        %v7034 = vpack.c.b16 %v5674, %v5670
        %v7035 = vpack.c.b16 %v5679, %v5675
        %v7036 = vpack.c.b16 %v5680, %v5676
        %v7037 = vpack.c.b16 %v5681, %v5677
        %v7038 = vpack.c.b16 %v5682, %v5678
        %v7039 = vpack.c.b16 %v5687, %v5683
        %v7040 = vpack.c.b16 %v5688, %v5684
        %v7041 = vpack.c.b16 %v5689, %v5685
        %v7042 = vpack.c.b16 %v5690, %v5686
        %v7043 = vpack.c.b16 %v5695, %v5691
        %v7044 = vpack.c.b16 %v5696, %v5692
        %v7045 = vpack.c.b16 %v5697, %v5693
        %v7046 = vpack.c.b16 %v5698, %v5694
        %v7047 = vpack.c.b16 %v5703, %v5699
        %v7048 = vpack.c.b16 %v5704, %v5700
        %v7049 = vpack.c.b16 %v5705, %v5701
        %v7050 = vpack.c.b16 %v5706, %v5702
        %v7051 = vpack.c.b16 %v5711, %v5707
        %v7052 = vpack.c.b16 %v5712, %v5708
        %v7053 = vpack.c.b16 %v5713, %v5709
        %v7054 = vpack.c.b16 %v5714, %v5710
        %v7055 = vpack.c.b16 %v5719, %v5715
        %v7056 = vpack.c.b16 %v5720, %v5716
        %v7057 = vpack.c.b16 %v5721, %v5717
        %v7058 = vpack.c.b16 %v5722, %v5718
        %v7059 = vpack.c.b16 %v5727, %v5723
        %v7060 = vpack.c.b16 %v5728, %v5724
        %v7061 = vpack.c.b16 %v5729, %v5725
        %v7062 = vpack.c.b16 %v5730, %v5726
        %v7063 = vpack.c.b16 %v5735, %v5731
        %v7064 = vpack.c.b16 %v5736, %v5732
        %v7065 = vpack.c.b16 %v5737, %v5733
        %v7066 = vpack.c.b16 %v5738, %v5734
        %v7067 = vpack.c.b16 %v5743, %v5739
        %v7068 = vpack.c.b16 %v5744, %v5740
        %v7069 = vpack.c.b16 %v5745, %v5741
        %v7070 = vpack.c.b16 %v5746, %v5742
        %v7071 = vpack.c.b16 %v5751, %v5747
        %v7072 = vpack.c.b16 %v5752, %v5748
        %v7073 = vpack.c.b16 %v5753, %v5749
        %v7074 = vpack.c.b16 %v5754, %v5750
        %v7075 = vpack.c.b16 %v5759, %v5755
        %v7076 = vpack.c.b16 %v5760, %v5756
        %v7077 = vpack.c.b16 %v5761, %v5757
        %v7078 = vpack.c.b16 %v5762, %v5758
        %v7079 = vpack.c.b16 %v5767, %v5763
        %v7080 = vpack.c.b16 %v5768, %v5764
        %v7081 = vpack.c.b16 %v5769, %v5765
        %v7082 = vpack.c.b16 %v5770, %v5766
        %v7083 = vpack.c.b16 %v5775, %v5771
        %v7084 = vpack.c.b16 %v5776, %v5772
        %v7085 = vpack.c.b16 %v5777, %v5773
        %v7086 = vpack.c.b16 %v5778, %v5774
        %v7087 = vpack.c.b16 %v5783, %v5779
        %v7088 = vpack.c.b16 %v5784, %v5780
        %v7089 = vpack.c.b16 %v5785, %v5781
        %v7090 = vpack.c.b16 %v5786, %v5782
        %v7091 = vpack.c.b16 %v5791, %v5787
        %v7092 = vpack.c.b16 %v5792, %v5788
        %v7093 = vpack.c.b16 %v5793, %v5789
        %v7094 = vpack.c.b16 %v5794, %v5790
        %v7095 = vpack.c.b16 %v5799, %v5795
        %v7096 = vpack.c.b16 %v5800, %v5796
        %v7097 = vpack.c.b16 %v5801, %v5797
        %v7098 = vpack.c.b16 %v5802, %v5798
        %v7099 = vpack.c.b16 %v5807, %v5803
        %v7100 = vpack.c.b16 %v5808, %v5804
        %v7101 = vpack.c.b16 %v5809, %v5805
        %v7102 = vpack.c.b16 %v5810, %v5806
        %v7103 = vpack.c.b16 %v5815, %v5811
        %v7104 = vpack.c.b16 %v5816, %v5812
        %v7105 = vpack.c.b16 %v5817, %v5813
        %v7106 = vpack.c.b16 %v5818, %v5814
        %v7107 = vpack.c.b16 %v5823, %v5819
        %v7108 = vpack.c.b16 %v5824, %v5820
        %v7109 = vpack.c.b16 %v5825, %v5821
        %v7110 = vpack.c.b16 %v5826, %v5822
        %v7111 = vpack.c.b16 %v5831, %v5827
        %v7112 = vpack.c.b16 %v5832, %v5828
        %v7113 = vpack.c.b16 %v5833, %v5829
        %v7114 = vpack.c.b16 %v5834, %v5830
        %8395 = vmatprep.subr.bf16.mxu0 %v5836
        %8396 = vmatpush1.bf16.msra.mxu0 %v5835
        %8397 = vmatprep.subr.bf16.mxu0 %v5840
        %8398 = vmatpush1.bf16.msra.mxu0 %v5839
        %8399 = vmatprep.subr.bf16.mxu0 %v5844
        %8400 = vmatpush1.bf16.msra.mxu0 %v5843
        %8401 = vmatprep.subr.bf16.mxu0 %v5848
        %8402 = vmatpush1.bf16.msra.mxu0 %v5847
        %8403 = vmatprep.subr.bf16.mxu0 %v5852
        %8404 = vmatpush1.bf16.msra.mxu0 %v5851
        %8405 = vmatprep.subr.bf16.mxu0 %v5856
        %8406 = vmatpush1.bf16.msra.mxu0 %v5855
        %8407 = vmatprep.subr.bf16.mxu0 %v5860
        %8408 = vmatpush1.bf16.msra.mxu0 %v5859
        %8409 = vmatprep.subr.bf16.mxu0 %v5864
        %8410 = vmatpush1.bf16.msra.mxu0 %v5863
        %8411 = vmatprep.subr.bf16.mxu0 %v5868
        %8412 = vmatpush1.bf16.msra.mxu0 %v5867
        %8413 = vmatprep.subr.bf16.mxu0 %v5872
        %8414 = vmatpush1.bf16.msra.mxu0 %v5871
        %8415 = vmatprep.subr.bf16.mxu0 %v5876
        %8416 = vmatpush1.bf16.msra.mxu0 %v5875
        %8417 = vmatprep.subr.bf16.mxu0 %v5880
        %8418 = vmatpush1.bf16.msra.mxu0 %v5879
        %8419 = vmatprep.subr.bf16.mxu0 %v5884
        %8420 = vmatpush1.bf16.msra.mxu0 %v5883
        %8421 = vmatprep.subr.bf16.mxu0 %v5888
        %8422 = vmatpush1.bf16.msra.mxu0 %v5887
        %8423 = vmatprep.subr.bf16.mxu0 %v5892
        %8424 = vmatpush1.bf16.msra.mxu0 %v5891
        %8425 = vmatprep.subr.bf16.mxu0 %v5896
        %8426 = vmatpush1.bf16.msra.mxu0 %v5895
        %8427 = vmatprep.mubr.bf16.mxu0 %v1916
        %8428 = vmatmul.mubr.bf16.gmra.mrb[0].mxu0 %v1915
        %v8429 = vpop.f32.mrb[0].mxu0
        %v8430 = vadd.f32 0.0, %v8429
        %v8431 = vpop.f32.mrb[0].mxu0
        %v8432 = vadd.f32 0.0, %v8431
        %v8433 = vpop.f32.mrb[0].mxu0
        %v8434 = vadd.f32 0.0, %v8433
        %v8435 = vpop.f32.mrb[0].mxu0
        %v8436 = vadd.f32 0.0, %v8435
        %8437 = vdwg.mxu0
        %8438 = vmatprep.subr.bf16.mxu0 %v5900
        %8439 = vmatpush1.bf16.msra.mxu0 %v5899
        %8440 = vmatprep.subr.bf16.mxu0 %v5904
        %8441 = vmatpush1.bf16.msra.mxu0 %v5903
        %8442 = vmatprep.subr.bf16.mxu0 %v5908
        %8443 = vmatpush1.bf16.msra.mxu0 %v5907
        %8444 = vmatprep.subr.bf16.mxu0 %v5912
        %8445 = vmatpush1.bf16.msra.mxu0 %v5911
        %8446 = vmatprep.subr.bf16.mxu0 %v5916
        %8447 = vmatpush1.bf16.msra.mxu0 %v5915
        %8448 = vmatprep.subr.bf16.mxu0 %v5920
        %8449 = vmatpush1.bf16.msra.mxu0 %v5919
        %8450 = vmatprep.subr.bf16.mxu0 %v5924
        %8451 = vmatpush1.bf16.msra.mxu0 %v5923
        %8452 = vmatprep.subr.bf16.mxu0 %v5928
        %8453 = vmatpush1.bf16.msra.mxu0 %v5927
        %8454 = vmatprep.subr.bf16.mxu0 %v5932
        %8455 = vmatpush1.bf16.msra.mxu0 %v5931
        %8456 = vmatprep.subr.bf16.mxu0 %v5936
        %8457 = vmatpush1.bf16.msra.mxu0 %v5935
        %8458 = vmatprep.subr.bf16.mxu0 %v5940
        %8459 = vmatpush1.bf16.msra.mxu0 %v5939
        %8460 = vmatprep.subr.bf16.mxu0 %v5944
        %8461 = vmatpush1.bf16.msra.mxu0 %v5943
        %8462 = vmatprep.subr.bf16.mxu0 %v5948
        %8463 = vmatpush1.bf16.msra.mxu0 %v5947
        %8464 = vmatprep.subr.bf16.mxu0 %v5952
        %8465 = vmatpush1.bf16.msra.mxu0 %v5951
        %8466 = vmatprep.subr.bf16.mxu0 %v5956
        %8467 = vmatpush1.bf16.msra.mxu0 %v5955
        %8468 = vmatprep.subr.bf16.mxu0 %v5960
        %8469 = vmatpush1.bf16.msra.mxu0 %v5959
        %8470 = vmatprep.mubr.bf16.mxu0 %v1918
        %8471 = vmatmul.mubr.bf16.gmra.mrb[0].mxu0 %v1917
        %v8472 = vpop.f32.mrb[0].mxu0
        %v8473 = vadd.f32 %v8430, %v8472
        %v8474 = vpop.f32.mrb[0].mxu0
        %v8475 = vadd.f32 %v8432, %v8474
        %v8476 = vpop.f32.mrb[0].mxu0
        %v8477 = vadd.f32 %v8434, %v8476
        %v8478 = vpop.f32.mrb[0].mxu0
        %v8479 = vadd.f32 %v8436, %v8478
        %8480 = vdwg.mxu0
        %8481 = vmatprep.subr.bf16.mxu0 %v5964
        %8482 = vmatpush1.bf16.msra.mxu0 %v5963
        %8483 = vmatprep.subr.bf16.mxu0 %v5968
        %8484 = vmatpush1.bf16.msra.mxu0 %v5967
        %8485 = vmatprep.subr.bf16.mxu0 %v5972
        %8486 = vmatpush1.bf16.msra.mxu0 %v5971
        %8487 = vmatprep.subr.bf16.mxu0 %v5976
        %8488 = vmatpush1.bf16.msra.mxu0 %v5975
        %8489 = vmatprep.subr.bf16.mxu0 %v5980
        %8490 = vmatpush1.bf16.msra.mxu0 %v5979
        %8491 = vmatprep.subr.bf16.mxu0 %v5984
        %8492 = vmatpush1.bf16.msra.mxu0 %v5983
        %8493 = vmatprep.subr.bf16.mxu0 %v5988
        %8494 = vmatpush1.bf16.msra.mxu0 %v5987
        %8495 = vmatprep.subr.bf16.mxu0 %v5992
        %8496 = vmatpush1.bf16.msra.mxu0 %v5991
        %8497 = vmatprep.subr.bf16.mxu0 %v5996
        %8498 = vmatpush1.bf16.msra.mxu0 %v5995
        %8499 = vmatprep.subr.bf16.mxu0 %v6000
        %8500 = vmatpush1.bf16.msra.mxu0 %v5999
        %8501 = vmatprep.subr.bf16.mxu0 %v6004
        %8502 = vmatpush1.bf16.msra.mxu0 %v6003
        %8503 = vmatprep.subr.bf16.mxu0 %v6008
        %8504 = vmatpush1.bf16.msra.mxu0 %v6007
        %8505 = vmatprep.subr.bf16.mxu0 %v6012
        %8506 = vmatpush1.bf16.msra.mxu0 %v6011
        %8507 = vmatprep.subr.bf16.mxu0 %v6016
        %8508 = vmatpush1.bf16.msra.mxu0 %v6015
        %8509 = vmatprep.subr.bf16.mxu0 %v6020
        %8510 = vmatpush1.bf16.msra.mxu0 %v6019
        %8511 = vmatprep.subr.bf16.mxu0 %v6024
        %8512 = vmatpush1.bf16.msra.mxu0 %v6023
        %8513 = vmatprep.mubr.bf16.mxu0 %v1920
        %8514 = vmatmul.mubr.bf16.gmra.mrb[0].mxu0 %v1919
        %v8515 = vpop.f32.mrb[0].mxu0
        %v8516 = vadd.f32 %v8473, %v8515
        %v8517 = vpop.f32.mrb[0].mxu0
        %v8518 = vadd.f32 %v8475, %v8517
        %v8519 = vpop.f32.mrb[0].mxu0
        %v8520 = vadd.f32 %v8477, %v8519
        %v8521 = vpop.f32.mrb[0].mxu0
        %v8522 = vadd.f32 %v8479, %v8521
        %8523 = vdwg.mxu0
        %8524 = vmatprep.subr.bf16.mxu0 %v6028
        %8525 = vmatpush1.bf16.msra.mxu0 %v6027
        %8526 = vmatprep.subr.bf16.mxu0 %v6032
        %8527 = vmatpush1.bf16.msra.mxu0 %v6031
        %8528 = vmatprep.subr.bf16.mxu0 %v6036
        %8529 = vmatpush1.bf16.msra.mxu0 %v6035
        %8530 = vmatprep.subr.bf16.mxu0 %v6040
        %8531 = vmatpush1.bf16.msra.mxu0 %v6039
        %8532 = vmatprep.subr.bf16.mxu0 %v6044
        %8533 = vmatpush1.bf16.msra.mxu0 %v6043
        %8534 = vmatprep.subr.bf16.mxu0 %v6048
        %8535 = vmatpush1.bf16.msra.mxu0 %v6047
        %8536 = vmatprep.subr.bf16.mxu0 %v6052
        %8537 = vmatpush1.bf16.msra.mxu0 %v6051
        %8538 = vmatprep.subr.bf16.mxu0 %v6056
        %8539 = vmatpush1.bf16.msra.mxu0 %v6055
        %8540 = vmatprep.subr.bf16.mxu0 %v6060
        %8541 = vmatpush1.bf16.msra.mxu0 %v6059
        %8542 = vmatprep.subr.bf16.mxu0 %v6064
        %8543 = vmatpush1.bf16.msra.mxu0 %v6063
        %8544 = vmatprep.subr.bf16.mxu0 %v6068
        %8545 = vmatpush1.bf16.msra.mxu0 %v6067
        %8546 = vmatprep.subr.bf16.mxu0 %v6072
        %8547 = vmatpush1.bf16.msra.mxu0 %v6071
        %8548 = vmatprep.subr.bf16.mxu0 %v6076
        %8549 = vmatpush1.bf16.msra.mxu0 %v6075
        %8550 = vmatprep.subr.bf16.mxu0 %v6080
        %8551 = vmatpush1.bf16.msra.mxu0 %v6079
        %8552 = vmatprep.subr.bf16.mxu0 %v6084
        %8553 = vmatpush1.bf16.msra.mxu0 %v6083
        %8554 = vmatprep.subr.bf16.mxu0 %v6088
        %8555 = vmatpush1.bf16.msra.mxu0 %v6087
        %8556 = vmatprep.mubr.bf16.mxu0 %v1922
        %8557 = vmatmul.mubr.bf16.gmra.mrb[0].mxu0 %v1921
        %v8558 = vpop.f32.mrb[0].mxu0
        %v8559 = vadd.f32 %v8516, %v8558
        %v8560 = vpop.f32.mrb[0].mxu0
        %v8561 = vadd.f32 %v8518, %v8560
        %v8562 = vpop.f32.mrb[0].mxu0
        %v8563 = vadd.f32 %v8520, %v8562
        %v8564 = vpop.f32.mrb[0].mxu0
        %v8565 = vadd.f32 %v8522, %v8564
        %8566 = vdwg.mxu0
        %8567 = vmatprep.subr.bf16.mxu0 %v6092
        %8568 = vmatpush1.bf16.msra.mxu0 %v6091
        %8569 = vmatprep.subr.bf16.mxu0 %v6096
        %8570 = vmatpush1.bf16.msra.mxu0 %v6095
        %8571 = vmatprep.subr.bf16.mxu0 %v6100
        %8572 = vmatpush1.bf16.msra.mxu0 %v6099
        %8573 = vmatprep.subr.bf16.mxu0 %v6104
        %8574 = vmatpush1.bf16.msra.mxu0 %v6103
        %8575 = vmatprep.subr.bf16.mxu0 %v6108
        %8576 = vmatpush1.bf16.msra.mxu0 %v6107
        %8577 = vmatprep.subr.bf16.mxu0 %v6112
        %8578 = vmatpush1.bf16.msra.mxu0 %v6111
        %8579 = vmatprep.subr.bf16.mxu0 %v6116
        %8580 = vmatpush1.bf16.msra.mxu0 %v6115
        %8581 = vmatprep.subr.bf16.mxu0 %v6120
        %8582 = vmatpush1.bf16.msra.mxu0 %v6119
        %8583 = vmatprep.subr.bf16.mxu0 %v6124
        %8584 = vmatpush1.bf16.msra.mxu0 %v6123
        %8585 = vmatprep.subr.bf16.mxu0 %v6128
        %8586 = vmatpush1.bf16.msra.mxu0 %v6127
        %8587 = vmatprep.subr.bf16.mxu0 %v6132
        %8588 = vmatpush1.bf16.msra.mxu0 %v6131
        %8589 = vmatprep.subr.bf16.mxu0 %v6136
        %8590 = vmatpush1.bf16.msra.mxu0 %v6135
        %8591 = vmatprep.subr.bf16.mxu0 %v6140
        %8592 = vmatpush1.bf16.msra.mxu0 %v6139
        %8593 = vmatprep.subr.bf16.mxu0 %v6144
        %8594 = vmatpush1.bf16.msra.mxu0 %v6143
        %8595 = vmatprep.subr.bf16.mxu0 %v6148
        %8596 = vmatpush1.bf16.msra.mxu0 %v6147
        %8597 = vmatprep.subr.bf16.mxu0 %v6152
        %8598 = vmatpush1.bf16.msra.mxu0 %v6151
        %8599 = vmatprep.mubr.bf16.mxu0 %v1924
        %8600 = vmatmul.mubr.bf16.gmra.mrb[0].mxu0 %v1923
        %v8601 = vpop.f32.mrb[0].mxu0
        %v8602 = vadd.f32 %v8559, %v8601
        %v8603 = vpop.f32.mrb[0].mxu0
        %v8604 = vadd.f32 %v8561, %v8603
        %v8605 = vpop.f32.mrb[0].mxu0
        %v8606 = vadd.f32 %v8563, %v8605
        %v8607 = vpop.f32.mrb[0].mxu0
        %v8608 = vadd.f32 %v8565, %v8607
        %8609 = vdwg.mxu0
        %8610 = vmatprep.subr.bf16.mxu0 %v6156
        %8611 = vmatpush1.bf16.msra.mxu0 %v6155
        %8612 = vmatprep.subr.bf16.mxu0 %v6160
        %8613 = vmatpush1.bf16.msra.mxu0 %v6159
        %8614 = vmatprep.subr.bf16.mxu0 %v6164
        %8615 = vmatpush1.bf16.msra.mxu0 %v6163
        %8616 = vmatprep.subr.bf16.mxu0 %v6168
        %8617 = vmatpush1.bf16.msra.mxu0 %v6167
        %8618 = vmatprep.subr.bf16.mxu0 %v6172
        %8619 = vmatpush1.bf16.msra.mxu0 %v6171
        %8620 = vmatprep.subr.bf16.mxu0 %v6176
        %8621 = vmatpush1.bf16.msra.mxu0 %v6175
        %8622 = vmatprep.subr.bf16.mxu0 %v6180
        %8623 = vmatpush1.bf16.msra.mxu0 %v6179
        %8624 = vmatprep.subr.bf16.mxu0 %v6184
        %8625 = vmatpush1.bf16.msra.mxu0 %v6183
        %8626 = vmatprep.subr.bf16.mxu0 %v6188
        %8627 = vmatpush1.bf16.msra.mxu0 %v6187
        %8628 = vmatprep.subr.bf16.mxu0 %v6192
        %8629 = vmatpush1.bf16.msra.mxu0 %v6191
        %8630 = vmatprep.subr.bf16.mxu0 %v6196
        %8631 = vmatpush1.bf16.msra.mxu0 %v6195
        %8632 = vmatprep.subr.bf16.mxu0 %v6200
        %8633 = vmatpush1.bf16.msra.mxu0 %v6199
        %8634 = vmatprep.subr.bf16.mxu0 %v6204
        %8635 = vmatpush1.bf16.msra.mxu0 %v6203
        %8636 = vmatprep.subr.bf16.mxu0 %v6208
        %8637 = vmatpush1.bf16.msra.mxu0 %v6207
        %8638 = vmatprep.subr.bf16.mxu0 %v6212
        %8639 = vmatpush1.bf16.msra.mxu0 %v6211
        %8640 = vmatprep.subr.bf16.mxu0 %v6216
        %8641 = vmatpush1.bf16.msra.mxu0 %v6215
        %8642 = vmatprep.mubr.bf16.mxu0 %v1926
        %8643 = vmatmul.mubr.bf16.gmra.mrb[0].mxu0 %v1925
        %v8644 = vpop.f32.mrb[0].mxu0
        %v8645 = vadd.f32 %v8602, %v8644
        %v8646 = vpop.f32.mrb[0].mxu0
        %v8647 = vadd.f32 %v8604, %v8646
        %v8648 = vpop.f32.mrb[0].mxu0
        %v8649 = vadd.f32 %v8606, %v8648
        %v8650 = vpop.f32.mrb[0].mxu0
        %v8651 = vadd.f32 %v8608, %v8650
        %8652 = vdwg.mxu0
        %8653 = vmatprep.subr.bf16.mxu0 %v6220
        %8654 = vmatpush1.bf16.msra.mxu0 %v6219
        %8655 = vmatprep.subr.bf16.mxu0 %v6224
        %8656 = vmatpush1.bf16.msra.mxu0 %v6223
        %8657 = vmatprep.subr.bf16.mxu0 %v6228
        %8658 = vmatpush1.bf16.msra.mxu0 %v6227
        %8659 = vmatprep.subr.bf16.mxu0 %v6232
        %8660 = vmatpush1.bf16.msra.mxu0 %v6231
        %8661 = vmatprep.subr.bf16.mxu0 %v6236
        %8662 = vmatpush1.bf16.msra.mxu0 %v6235
        %8663 = vmatprep.subr.bf16.mxu0 %v6240
        %8664 = vmatpush1.bf16.msra.mxu0 %v6239
        %8665 = vmatprep.subr.bf16.mxu0 %v6244
        %8666 = vmatpush1.bf16.msra.mxu0 %v6243
        %8667 = vmatprep.subr.bf16.mxu0 %v6248
        %8668 = vmatpush1.bf16.msra.mxu0 %v6247
        %8669 = vmatprep.subr.bf16.mxu0 %v6252
        %8670 = vmatpush1.bf16.msra.mxu0 %v6251
        %8671 = vmatprep.subr.bf16.mxu0 %v6256
        %8672 = vmatpush1.bf16.msra.mxu0 %v6255
        %8673 = vmatprep.subr.bf16.mxu0 %v6260
        %8674 = vmatpush1.bf16.msra.mxu0 %v6259
        %8675 = vmatprep.subr.bf16.mxu0 %v6264
        %8676 = vmatpush1.bf16.msra.mxu0 %v6263
        %8677 = vmatprep.subr.bf16.mxu0 %v6268
        %8678 = vmatpush1.bf16.msra.mxu0 %v6267
        %8679 = vmatprep.subr.bf16.mxu0 %v6272
        %8680 = vmatpush1.bf16.msra.mxu0 %v6271
        %8681 = vmatprep.subr.bf16.mxu0 %v6276
        %8682 = vmatpush1.bf16.msra.mxu0 %v6275
        %8683 = vmatprep.subr.bf16.mxu0 %v6280
        %8684 = vmatpush1.bf16.msra.mxu0 %v6279
        %8685 = vmatprep.mubr.bf16.mxu0 %v1928
        %8686 = vmatmul.mubr.bf16.gmra.mrb[0].mxu0 %v1927
        %v8687 = vpop.f32.mrb[0].mxu0
        %v8688 = vadd.f32 %v8645, %v8687
        %v8689 = vpop.f32.mrb[0].mxu0
        %v8690 = vadd.f32 %v8647, %v8689
        %v8691 = vpop.f32.mrb[0].mxu0
        %v8692 = vadd.f32 %v8649, %v8691
        %v8693 = vpop.f32.mrb[0].mxu0
        %v8694 = vadd.f32 %v8651, %v8693
        %8695 = vdwg.mxu0
        %8696 = vmatprep.subr.bf16.mxu0 %v6284
        %8697 = vmatpush1.bf16.msra.mxu0 %v6283
        %8698 = vmatprep.subr.bf16.mxu0 %v6288
        %8699 = vmatpush1.bf16.msra.mxu0 %v6287
        %8700 = vmatprep.subr.bf16.mxu0 %v6292
        %8701 = vmatpush1.bf16.msra.mxu0 %v6291
        %8702 = vmatprep.subr.bf16.mxu0 %v6296
        %8703 = vmatpush1.bf16.msra.mxu0 %v6295
        %8704 = vmatprep.subr.bf16.mxu0 %v6300
        %8705 = vmatpush1.bf16.msra.mxu0 %v6299
        %8706 = vmatprep.subr.bf16.mxu0 %v6304
        %8707 = vmatpush1.bf16.msra.mxu0 %v6303
        %8708 = vmatprep.subr.bf16.mxu0 %v6308
        %8709 = vmatpush1.bf16.msra.mxu0 %v6307
        %8710 = vmatprep.subr.bf16.mxu0 %v6312
        %8711 = vmatpush1.bf16.msra.mxu0 %v6311
        %8712 = vmatprep.subr.bf16.mxu0 %v6316
        %8713 = vmatpush1.bf16.msra.mxu0 %v6315
        %8714 = vmatprep.subr.bf16.mxu0 %v6320
        %8715 = vmatpush1.bf16.msra.mxu0 %v6319
        %8716 = vmatprep.subr.bf16.mxu0 %v6324
        %8717 = vmatpush1.bf16.msra.mxu0 %v6323
        %8718 = vmatprep.subr.bf16.mxu0 %v6328
        %8719 = vmatpush1.bf16.msra.mxu0 %v6327
        %8720 = vmatprep.subr.bf16.mxu0 %v6332
        %8721 = vmatpush1.bf16.msra.mxu0 %v6331
        %8722 = vmatprep.subr.bf16.mxu0 %v6336
        %8723 = vmatpush1.bf16.msra.mxu0 %v6335
        %8724 = vmatprep.subr.bf16.mxu0 %v6340
        %8725 = vmatpush1.bf16.msra.mxu0 %v6339
        %8726 = vmatprep.subr.bf16.mxu0 %v6344
        %8727 = vmatpush1.bf16.msra.mxu0 %v6343
        %8728 = vmatprep.mubr.bf16.mxu0 %v1930
        %8729 = vmatmul.mubr.bf16.gmra.mrb[0].mxu0 %v1929
        %v8730 = vpop.f32.mrb[0].mxu0
        %v8731 = vadd.f32 %v8688, %v8730
        %v8732 = vpop.f32.mrb[0].mxu0
        %v8733 = vadd.f32 %v8690, %v8732
        %v8734 = vpop.f32.mrb[0].mxu0
        %v8735 = vadd.f32 %v8692, %v8734
        %v8736 = vpop.f32.mrb[0].mxu0
        %v8737 = vadd.f32 %v8694, %v8736
        %8738 = vdwg.mxu0
        %8739 = vmatprep.subr.bf16.mxu0 %v6348
        %8740 = vmatpush1.bf16.msra.mxu0 %v6347
        %8741 = vmatprep.subr.bf16.mxu0 %v6352
        %8742 = vmatpush1.bf16.msra.mxu0 %v6351
        %8743 = vmatprep.subr.bf16.mxu0 %v6356
        %8744 = vmatpush1.bf16.msra.mxu0 %v6355
        %8745 = vmatprep.subr.bf16.mxu0 %v6360
        %8746 = vmatpush1.bf16.msra.mxu0 %v6359
        %8747 = vmatprep.subr.bf16.mxu0 %v6364
        %8748 = vmatpush1.bf16.msra.mxu0 %v6363
        %8749 = vmatprep.subr.bf16.mxu0 %v6368
        %8750 = vmatpush1.bf16.msra.mxu0 %v6367
        %8751 = vmatprep.subr.bf16.mxu0 %v6372
        %8752 = vmatpush1.bf16.msra.mxu0 %v6371
        %8753 = vmatprep.subr.bf16.mxu0 %v6376
        %8754 = vmatpush1.bf16.msra.mxu0 %v6375
        %8755 = vmatprep.subr.bf16.mxu0 %v6380
        %8756 = vmatpush1.bf16.msra.mxu0 %v6379
        %8757 = vmatprep.subr.bf16.mxu0 %v6384
        %8758 = vmatpush1.bf16.msra.mxu0 %v6383
        %8759 = vmatprep.subr.bf16.mxu0 %v6388
        %8760 = vmatpush1.bf16.msra.mxu0 %v6387
        %8761 = vmatprep.subr.bf16.mxu0 %v6392
        %8762 = vmatpush1.bf16.msra.mxu0 %v6391
        %8763 = vmatprep.subr.bf16.mxu0 %v6396
        %8764 = vmatpush1.bf16.msra.mxu0 %v6395
        %8765 = vmatprep.subr.bf16.mxu0 %v6400
        %8766 = vmatpush1.bf16.msra.mxu0 %v6399
        %8767 = vmatprep.subr.bf16.mxu0 %v6404
        %8768 = vmatpush1.bf16.msra.mxu0 %v6403
        %8769 = vmatprep.subr.bf16.mxu0 %v6408
        %8770 = vmatpush1.bf16.msra.mxu0 %v6407
        %8771 = vmatprep.mubr.bf16.mxu0 %v1932
        %8772 = vmatmul.mubr.bf16.gmra.mrb[0].mxu0 %v1931
        %v8773 = vpop.f32.mrb[0].mxu0
        %v8774 = vadd.f32 %v8731, %v8773
        %v8775 = vpop.f32.mrb[0].mxu0
        %v8776 = vadd.f32 %v8733, %v8775
        %v8777 = vpop.f32.mrb[0].mxu0
        %v8778 = vadd.f32 %v8735, %v8777
        %v8779 = vpop.f32.mrb[0].mxu0
        %v8780 = vadd.f32 %v8737, %v8779
        %8781 = vdwg.mxu0
        %8782 = vmatprep.subr.bf16.mxu0 %v6412
        %8783 = vmatpush1.bf16.msra.mxu0 %v6411
        %8784 = vmatprep.subr.bf16.mxu0 %v6416
        %8785 = vmatpush1.bf16.msra.mxu0 %v6415
        %8786 = vmatprep.subr.bf16.mxu0 %v6420
        %8787 = vmatpush1.bf16.msra.mxu0 %v6419
        %8788 = vmatprep.subr.bf16.mxu0 %v6424
        %8789 = vmatpush1.bf16.msra.mxu0 %v6423
        %8790 = vmatprep.subr.bf16.mxu0 %v6428
        %8791 = vmatpush1.bf16.msra.mxu0 %v6427
        %8792 = vmatprep.subr.bf16.mxu0 %v6432
        %8793 = vmatpush1.bf16.msra.mxu0 %v6431
        %8794 = vmatprep.subr.bf16.mxu0 %v6436
        %8795 = vmatpush1.bf16.msra.mxu0 %v6435
        %8796 = vmatprep.subr.bf16.mxu0 %v6440
        %8797 = vmatpush1.bf16.msra.mxu0 %v6439
        %8798 = vmatprep.subr.bf16.mxu0 %v6444
        %8799 = vmatpush1.bf16.msra.mxu0 %v6443
        %8800 = vmatprep.subr.bf16.mxu0 %v6448
        %8801 = vmatpush1.bf16.msra.mxu0 %v6447
        %8802 = vmatprep.subr.bf16.mxu0 %v6452
        %8803 = vmatpush1.bf16.msra.mxu0 %v6451
        %8804 = vmatprep.subr.bf16.mxu0 %v6456
        %8805 = vmatpush1.bf16.msra.mxu0 %v6455
        %8806 = vmatprep.subr.bf16.mxu0 %v6460
        %8807 = vmatpush1.bf16.msra.mxu0 %v6459
        %8808 = vmatprep.subr.bf16.mxu0 %v6464
        %8809 = vmatpush1.bf16.msra.mxu0 %v6463
        %8810 = vmatprep.subr.bf16.mxu0 %v6468
        %8811 = vmatpush1.bf16.msra.mxu0 %v6467
        %8812 = vmatprep.subr.bf16.mxu0 %v6472
        %8813 = vmatpush1.bf16.msra.mxu0 %v6471
        %8814 = vmatprep.mubr.bf16.mxu0 %v1934
        %8815 = vmatmul.mubr.bf16.gmra.mrb[0].mxu0 %v1933
        %v8816 = vpop.f32.mrb[0].mxu0
        %v8817 = vadd.f32 %v8774, %v8816
        %v8818 = vpop.f32.mrb[0].mxu0
        %v8819 = vadd.f32 %v8776, %v8818
        %v8820 = vpop.f32.mrb[0].mxu0
        %v8821 = vadd.f32 %v8778, %v8820
        %v8822 = vpop.f32.mrb[0].mxu0
        %v8823 = vadd.f32 %v8780, %v8822
        %8824 = vdwg.mxu0
        %8825 = vmatprep.subr.bf16.mxu0 %v6476
        %8826 = vmatpush1.bf16.msra.mxu0 %v6475
        %8827 = vmatprep.subr.bf16.mxu0 %v6480
        %8828 = vmatpush1.bf16.msra.mxu0 %v6479
        %8829 = vmatprep.subr.bf16.mxu0 %v6484
        %8830 = vmatpush1.bf16.msra.mxu0 %v6483
        %8831 = vmatprep.subr.bf16.mxu0 %v6488
        %8832 = vmatpush1.bf16.msra.mxu0 %v6487
        %8833 = vmatprep.subr.bf16.mxu0 %v6492
        %8834 = vmatpush1.bf16.msra.mxu0 %v6491
        %8835 = vmatprep.subr.bf16.mxu0 %v6496
        %8836 = vmatpush1.bf16.msra.mxu0 %v6495
        %8837 = vmatprep.subr.bf16.mxu0 %v6500
        %8838 = vmatpush1.bf16.msra.mxu0 %v6499
        %8839 = vmatprep.subr.bf16.mxu0 %v6504
        %8840 = vmatpush1.bf16.msra.mxu0 %v6503
        %8841 = vmatprep.subr.bf16.mxu0 %v6508
        %8842 = vmatpush1.bf16.msra.mxu0 %v6507
        %8843 = vmatprep.subr.bf16.mxu0 %v6512
        %8844 = vmatpush1.bf16.msra.mxu0 %v6511
        %8845 = vmatprep.subr.bf16.mxu0 %v6516
        %8846 = vmatpush1.bf16.msra.mxu0 %v6515
        %8847 = vmatprep.subr.bf16.mxu0 %v6520
        %8848 = vmatpush1.bf16.msra.mxu0 %v6519
        %8849 = vmatprep.subr.bf16.mxu0 %v6524
        %8850 = vmatpush1.bf16.msra.mxu0 %v6523
        %8851 = vmatprep.subr.bf16.mxu0 %v6528
        %8852 = vmatpush1.bf16.msra.mxu0 %v6527
        %8853 = vmatprep.subr.bf16.mxu0 %v6532
        %8854 = vmatpush1.bf16.msra.mxu0 %v6531
        %8855 = vmatprep.subr.bf16.mxu0 %v6536
        %8856 = vmatpush1.bf16.msra.mxu0 %v6535
        %8857 = vmatprep.mubr.bf16.mxu0 %v1936
        %8858 = vmatmul.mubr.bf16.gmra.mrb[0].mxu0 %v1935
        %v8859 = vpop.f32.mrb[0].mxu0
        %v8860 = vadd.f32 %v8817, %v8859
        %v8861 = vpop.f32.mrb[0].mxu0
        %v8862 = vadd.f32 %v8819, %v8861
        %v8863 = vpop.f32.mrb[0].mxu0
        %v8864 = vadd.f32 %v8821, %v8863
        %v8865 = vpop.f32.mrb[0].mxu0
        %v8866 = vadd.f32 %v8823, %v8865
        %8867 = vdwg.mxu0
        %8868 = vmatprep.subr.bf16.mxu0 %v6540
        %8869 = vmatpush1.bf16.msra.mxu0 %v6539
        %8870 = vmatprep.subr.bf16.mxu0 %v6544
        %8871 = vmatpush1.bf16.msra.mxu0 %v6543
        %8872 = vmatprep.subr.bf16.mxu0 %v6548
        %8873 = vmatpush1.bf16.msra.mxu0 %v6547
        %8874 = vmatprep.subr.bf16.mxu0 %v6552
        %8875 = vmatpush1.bf16.msra.mxu0 %v6551
        %8876 = vmatprep.subr.bf16.mxu0 %v6556
        %8877 = vmatpush1.bf16.msra.mxu0 %v6555
        %8878 = vmatprep.subr.bf16.mxu0 %v6560
        %8879 = vmatpush1.bf16.msra.mxu0 %v6559
        %8880 = vmatprep.subr.bf16.mxu0 %v6564
        %8881 = vmatpush1.bf16.msra.mxu0 %v6563
        %8882 = vmatprep.subr.bf16.mxu0 %v6568
        %8883 = vmatpush1.bf16.msra.mxu0 %v6567
        %8884 = vmatprep.subr.bf16.mxu0 %v6572
        %8885 = vmatpush1.bf16.msra.mxu0 %v6571
        %8886 = vmatprep.subr.bf16.mxu0 %v6576
        %8887 = vmatpush1.bf16.msra.mxu0 %v6575
        %8888 = vmatprep.subr.bf16.mxu0 %v6580
        %8889 = vmatpush1.bf16.msra.mxu0 %v6579
        %8890 = vmatprep.subr.bf16.mxu0 %v6584
        %8891 = vmatpush1.bf16.msra.mxu0 %v6583
        %8892 = vmatprep.subr.bf16.mxu0 %v6588
        %8893 = vmatpush1.bf16.msra.mxu0 %v6587
        %8894 = vmatprep.subr.bf16.mxu0 %v6592
        %8895 = vmatpush1.bf16.msra.mxu0 %v6591
        %8896 = vmatprep.subr.bf16.mxu0 %v6596
        %8897 = vmatpush1.bf16.msra.mxu0 %v6595
        %8898 = vmatprep.subr.bf16.mxu0 %v6600
        %8899 = vmatpush1.bf16.msra.mxu0 %v6599
        %8900 = vmatprep.mubr.bf16.mxu0 %v1938
        %8901 = vmatmul.mubr.bf16.gmra.mrb[0].mxu0 %v1937
        %v8902 = vpop.f32.mrb[0].mxu0
        %v8903 = vadd.f32 %v8860, %v8902
        %v8904 = vpop.f32.mrb[0].mxu0
        %v8905 = vadd.f32 %v8862, %v8904
        %v8906 = vpop.f32.mrb[0].mxu0
        %v8907 = vadd.f32 %v8864, %v8906
        %v8908 = vpop.f32.mrb[0].mxu0
        %v8909 = vadd.f32 %v8866, %v8908
        %8910 = vdwg.mxu0
        %8911 = vmatprep.subr.bf16.mxu0 %v6604
        %8912 = vmatpush1.bf16.msra.mxu0 %v6603
        %8913 = vmatprep.subr.bf16.mxu0 %v6608
        %8914 = vmatpush1.bf16.msra.mxu0 %v6607
        %8915 = vmatprep.subr.bf16.mxu0 %v6612
        %8916 = vmatpush1.bf16.msra.mxu0 %v6611
        %8917 = vmatprep.subr.bf16.mxu0 %v6616
        %8918 = vmatpush1.bf16.msra.mxu0 %v6615
        %8919 = vmatprep.subr.bf16.mxu0 %v6620
        %8920 = vmatpush1.bf16.msra.mxu0 %v6619
        %8921 = vmatprep.subr.bf16.mxu0 %v6624
        %8922 = vmatpush1.bf16.msra.mxu0 %v6623
        %8923 = vmatprep.subr.bf16.mxu0 %v6628
        %8924 = vmatpush1.bf16.msra.mxu0 %v6627
        %8925 = vmatprep.subr.bf16.mxu0 %v6632
        %8926 = vmatpush1.bf16.msra.mxu0 %v6631
        %8927 = vmatprep.subr.bf16.mxu0 %v6636
        %8928 = vmatpush1.bf16.msra.mxu0 %v6635
        %8929 = vmatprep.subr.bf16.mxu0 %v6640
        %8930 = vmatpush1.bf16.msra.mxu0 %v6639
        %8931 = vmatprep.subr.bf16.mxu0 %v6644
        %8932 = vmatpush1.bf16.msra.mxu0 %v6643
        %8933 = vmatprep.subr.bf16.mxu0 %v6648
        %8934 = vmatpush1.bf16.msra.mxu0 %v6647
        %8935 = vmatprep.subr.bf16.mxu0 %v6652
        %8936 = vmatpush1.bf16.msra.mxu0 %v6651
        %8937 = vmatprep.subr.bf16.mxu0 %v6656
        %8938 = vmatpush1.bf16.msra.mxu0 %v6655
        %8939 = vmatprep.subr.bf16.mxu0 %v6660
        %8940 = vmatpush1.bf16.msra.mxu0 %v6659
        %8941 = vmatprep.subr.bf16.mxu0 %v6664
        %8942 = vmatpush1.bf16.msra.mxu0 %v6663
        %8943 = vmatprep.mubr.bf16.mxu0 %v1940
        %8944 = vmatmul.mubr.bf16.gmra.mrb[0].mxu0 %v1939
        %v8945 = vpop.f32.mrb[0].mxu0
        %v8946 = vadd.f32 %v8903, %v8945
        %v8947 = vpop.f32.mrb[0].mxu0
        %v8948 = vadd.f32 %v8905, %v8947
        %v8949 = vpop.f32.mrb[0].mxu0
        %v8950 = vadd.f32 %v8907, %v8949
        %v8951 = vpop.f32.mrb[0].mxu0
        %v8952 = vadd.f32 %v8909, %v8951
        %8953 = vdwg.mxu0
        %8954 = vmatprep.subr.bf16.mxu0 %v6668
        %8955 = vmatpush1.bf16.msra.mxu0 %v6667
        %8956 = vmatprep.subr.bf16.mxu0 %v6672
        %8957 = vmatpush1.bf16.msra.mxu0 %v6671
        %8958 = vmatprep.subr.bf16.mxu0 %v6676
        %8959 = vmatpush1.bf16.msra.mxu0 %v6675
        %8960 = vmatprep.subr.bf16.mxu0 %v6680
        %8961 = vmatpush1.bf16.msra.mxu0 %v6679
        %8962 = vmatprep.subr.bf16.mxu0 %v6684
        %8963 = vmatpush1.bf16.msra.mxu0 %v6683
        %8964 = vmatprep.subr.bf16.mxu0 %v6688
        %8965 = vmatpush1.bf16.msra.mxu0 %v6687
        %8966 = vmatprep.subr.bf16.mxu0 %v6692
        %8967 = vmatpush1.bf16.msra.mxu0 %v6691
        %8968 = vmatprep.subr.bf16.mxu0 %v6696
        %8969 = vmatpush1.bf16.msra.mxu0 %v6695
        %8970 = vmatprep.subr.bf16.mxu0 %v6700
        %8971 = vmatpush1.bf16.msra.mxu0 %v6699
        %8972 = vmatprep.subr.bf16.mxu0 %v6704
        %8973 = vmatpush1.bf16.msra.mxu0 %v6703
        %8974 = vmatprep.subr.bf16.mxu0 %v6708
        %8975 = vmatpush1.bf16.msra.mxu0 %v6707
        %8976 = vmatprep.subr.bf16.mxu0 %v6712
        %8977 = vmatpush1.bf16.msra.mxu0 %v6711
        %8978 = vmatprep.subr.bf16.mxu0 %v6716
        %8979 = vmatpush1.bf16.msra.mxu0 %v6715
        %8980 = vmatprep.subr.bf16.mxu0 %v6720
        %8981 = vmatpush1.bf16.msra.mxu0 %v6719
        %8982 = vmatprep.subr.bf16.mxu0 %v6724
        %8983 = vmatpush1.bf16.msra.mxu0 %v6723
        %8984 = vmatprep.subr.bf16.mxu0 %v6728
        %8985 = vmatpush1.bf16.msra.mxu0 %v6727
        %8986 = vmatprep.mubr.bf16.mxu0 %v1942
        %8987 = vmatmul.mubr.bf16.gmra.mrb[0].mxu0 %v1941
        %v8988 = vpop.f32.mrb[0].mxu0
        %v8989 = vadd.f32 %v8946, %v8988
        %v8990 = vpop.f32.mrb[0].mxu0
        %v8991 = vadd.f32 %v8948, %v8990
        %v8992 = vpop.f32.mrb[0].mxu0
        %v8993 = vadd.f32 %v8950, %v8992
        %v8994 = vpop.f32.mrb[0].mxu0
        %v8995 = vadd.f32 %v8952, %v8994
        %8996 = vdwg.mxu0
        %8997 = vmatprep.subr.bf16.mxu0 %v6732
        %8998 = vmatpush1.bf16.msra.mxu0 %v6731
        %8999 = vmatprep.subr.bf16.mxu0 %v6736
        %9000 = vmatpush1.bf16.msra.mxu0 %v6735
        %9001 = vmatprep.subr.bf16.mxu0 %v6740
        %9002 = vmatpush1.bf16.msra.mxu0 %v6739
        %9003 = vmatprep.subr.bf16.mxu0 %v6744
        %9004 = vmatpush1.bf16.msra.mxu0 %v6743
        %9005 = vmatprep.subr.bf16.mxu0 %v6748
        %9006 = vmatpush1.bf16.msra.mxu0 %v6747
        %9007 = vmatprep.subr.bf16.mxu0 %v6752
        %9008 = vmatpush1.bf16.msra.mxu0 %v6751
        %9009 = vmatprep.subr.bf16.mxu0 %v6756
        %9010 = vmatpush1.bf16.msra.mxu0 %v6755
        %9011 = vmatprep.subr.bf16.mxu0 %v6760
        %9012 = vmatpush1.bf16.msra.mxu0 %v6759
        %9013 = vmatprep.subr.bf16.mxu0 %v6764
        %9014 = vmatpush1.bf16.msra.mxu0 %v6763
        %9015 = vmatprep.subr.bf16.mxu0 %v6768
        %9016 = vmatpush1.bf16.msra.mxu0 %v6767
        %9017 = vmatprep.subr.bf16.mxu0 %v6772
        %9018 = vmatpush1.bf16.msra.mxu0 %v6771
        %9019 = vmatprep.subr.bf16.mxu0 %v6776
        %9020 = vmatpush1.bf16.msra.mxu0 %v6775
        %9021 = vmatprep.subr.bf16.mxu0 %v6780
        %9022 = vmatpush1.bf16.msra.mxu0 %v6779
        %9023 = vmatprep.subr.bf16.mxu0 %v6784
        %9024 = vmatpush1.bf16.msra.mxu0 %v6783
        %9025 = vmatprep.subr.bf16.mxu0 %v6788
        %9026 = vmatpush1.bf16.msra.mxu0 %v6787
        %9027 = vmatprep.subr.bf16.mxu0 %v6792
        %9028 = vmatpush1.bf16.msra.mxu0 %v6791
        %9029 = vmatprep.mubr.bf16.mxu0 %v1944
        %9030 = vmatmul.mubr.bf16.gmra.mrb[0].mxu0 %v1943
        %v9031 = vpop.f32.mrb[0].mxu0
        %v9032 = vadd.f32 %v8989, %v9031
        %v9033 = vpop.f32.mrb[0].mxu0
        %v9034 = vadd.f32 %v8991, %v9033
        %v9035 = vpop.f32.mrb[0].mxu0
        %v9036 = vadd.f32 %v8993, %v9035
        %v9037 = vpop.f32.mrb[0].mxu0
        %v9038 = vadd.f32 %v8995, %v9037
        %9039 = vdwg.mxu0
        %9040 = vmatprep.subr.bf16.mxu0 %v6796
        %9041 = vmatpush1.bf16.msra.mxu0 %v6795
        %9042 = vmatprep.subr.bf16.mxu0 %v6800
        %9043 = vmatpush1.bf16.msra.mxu0 %v6799
        %9044 = vmatprep.subr.bf16.mxu0 %v6804
        %9045 = vmatpush1.bf16.msra.mxu0 %v6803
        %9046 = vmatprep.subr.bf16.mxu0 %v6808
        %9047 = vmatpush1.bf16.msra.mxu0 %v6807
        %9048 = vmatprep.subr.bf16.mxu0 %v6812
        %9049 = vmatpush1.bf16.msra.mxu0 %v6811
        %9050 = vmatprep.subr.bf16.mxu0 %v6816
        %9051 = vmatpush1.bf16.msra.mxu0 %v6815
        %9052 = vmatprep.subr.bf16.mxu0 %v6820
        %9053 = vmatpush1.bf16.msra.mxu0 %v6819
        %9054 = vmatprep.subr.bf16.mxu0 %v6824
        %9055 = vmatpush1.bf16.msra.mxu0 %v6823
        %9056 = vmatprep.subr.bf16.mxu0 %v6828
        %9057 = vmatpush1.bf16.msra.mxu0 %v6827
        %9058 = vmatprep.subr.bf16.mxu0 %v6832
        %9059 = vmatpush1.bf16.msra.mxu0 %v6831
        %9060 = vmatprep.subr.bf16.mxu0 %v6836
        %9061 = vmatpush1.bf16.msra.mxu0 %v6835
        %9062 = vmatprep.subr.bf16.mxu0 %v6840
        %9063 = vmatpush1.bf16.msra.mxu0 %v6839
        %9064 = vmatprep.subr.bf16.mxu0 %v6844
        %9065 = vmatpush1.bf16.msra.mxu0 %v6843
        %9066 = vmatprep.subr.bf16.mxu0 %v6848
        %9067 = vmatpush1.bf16.msra.mxu0 %v6847
        %9068 = vmatprep.subr.bf16.mxu0 %v6852
        %9069 = vmatpush1.bf16.msra.mxu0 %v6851
        %9070 = vmatprep.subr.bf16.mxu0 %v6856
        %9071 = vmatpush1.bf16.msra.mxu0 %v6855
        %9072 = vmatprep.mubr.bf16.mxu0 %v1946
        %9073 = vmatmul.mubr.bf16.gmra.mrb[0].mxu0 %v1945
        %v9074 = vpop.f32.mrb[0].mxu0
        %v9075 = vadd.f32 %v9032, %v9074
        %v9076 = vpop.f32.mrb[0].mxu0
        %v9077 = vadd.f32 %v9034, %v9076
        %v9078 = vpop.f32.mrb[0].mxu0
        %v9079 = vadd.f32 %v9036, %v9078
        %v9080 = vpop.f32.mrb[0].mxu0
        %v9081 = vadd.f32 %v9038, %v9080
        %9082 = vdwg.mxu0
        %9083 = vmatprep.subr.bf16.mxu0 %v6860
        %9084 = vmatpush1.bf16.msra.mxu0 %v6859
        %9085 = vmatprep.subr.bf16.mxu0 %v6864
        %9086 = vmatpush1.bf16.msra.mxu0 %v6863
        %9087 = vmatprep.subr.bf16.mxu0 %v6868
        %9088 = vmatpush1.bf16.msra.mxu0 %v6867
        %9089 = vmatprep.subr.bf16.mxu0 %v6872
        %9090 = vmatpush1.bf16.msra.mxu0 %v6871
        %9091 = vmatprep.subr.bf16.mxu0 %v6876
        %9092 = vmatpush1.bf16.msra.mxu0 %v6875
        %9093 = vmatprep.subr.bf16.mxu0 %v6880
        %9094 = vmatpush1.bf16.msra.mxu0 %v6879
        %9095 = vmatprep.subr.bf16.mxu0 %v6884
        %9096 = vmatpush1.bf16.msra.mxu0 %v6883
        %9097 = vmatprep.subr.bf16.mxu0 %v6888
        %9098 = vmatpush1.bf16.msra.mxu0 %v6887
        %9099 = vmatprep.subr.bf16.mxu0 %v6892
        %9100 = vmatpush1.bf16.msra.mxu0 %v6891
        %9101 = vmatprep.subr.bf16.mxu0 %v6896
        %9102 = vmatpush1.bf16.msra.mxu0 %v6895
        %9103 = vmatprep.subr.bf16.mxu0 %v6900
        %9104 = vmatpush1.bf16.msra.mxu0 %v6899
        %9105 = vmatprep.subr.bf16.mxu0 %v6904
        %9106 = vmatpush1.bf16.msra.mxu0 %v6903
        %9107 = vmatprep.subr.bf16.mxu0 %v6908
        %9108 = vmatpush1.bf16.msra.mxu0 %v6907
        %9109 = vmatprep.subr.bf16.mxu0 %v6912
        %9110 = vmatpush1.bf16.msra.mxu0 %v6911
        %9111 = vmatprep.subr.bf16.mxu0 %v6916
        %9112 = vmatpush1.bf16.msra.mxu0 %v6915
        %9113 = vmatprep.subr.bf16.mxu0 %v6920
        %9114 = vmatpush1.bf16.msra.mxu0 %v6919
        %9115 = vmatprep.mubr.bf16.mxu0 %v1948
        %9116 = vmatmul.mubr.bf16.gmra.mrb[0].mxu0 %v1947
        %v9117 = vpop.f32.mrb[0].mxu0
        %v9118 = vadd.f32 %v9075, %v9117
        %v9119 = vpop.f32.mrb[0].mxu0
        %v9120 = vadd.f32 %v9077, %v9119
        %v9121 = vpop.f32.mrb[0].mxu0
        %v9122 = vadd.f32 %v9079, %v9121
        %v9123 = vpop.f32.mrb[0].mxu0
        %v9124 = vadd.f32 %v9081, %v9123
        %9125 = vdwg.mxu0
        %9126 = vmatprep.subr.bf16.mxu0 %v6924
        %9127 = vmatpush1.bf16.msra.mxu0 %v6923
        %9128 = vmatprep.subr.bf16.mxu0 %v6928
        %9129 = vmatpush1.bf16.msra.mxu0 %v6927
        %9130 = vmatprep.subr.bf16.mxu0 %v6932
        %9131 = vmatpush1.bf16.msra.mxu0 %v6931
        %9132 = vmatprep.subr.bf16.mxu0 %v6936
        %9133 = vmatpush1.bf16.msra.mxu0 %v6935
        %9134 = vmatprep.subr.bf16.mxu0 %v6940
        %9135 = vmatpush1.bf16.msra.mxu0 %v6939
        %9136 = vmatprep.subr.bf16.mxu0 %v6944
        %9137 = vmatpush1.bf16.msra.mxu0 %v6943
        %9138 = vmatprep.subr.bf16.mxu0 %v6948
        %9139 = vmatpush1.bf16.msra.mxu0 %v6947
        %9140 = vmatprep.subr.bf16.mxu0 %v6952
        %9141 = vmatpush1.bf16.msra.mxu0 %v6951
        %9142 = vmatprep.subr.bf16.mxu0 %v6956
        %9143 = vmatpush1.bf16.msra.mxu0 %v6955
        %9144 = vmatprep.subr.bf16.mxu0 %v6960
        %9145 = vmatpush1.bf16.msra.mxu0 %v6959
        %9146 = vmatprep.subr.bf16.mxu0 %v6964
        %9147 = vmatpush1.bf16.msra.mxu0 %v6963
        %9148 = vmatprep.subr.bf16.mxu0 %v6968
        %9149 = vmatpush1.bf16.msra.mxu0 %v6967
        %9150 = vmatprep.subr.bf16.mxu0 %v6972
        %9151 = vmatpush1.bf16.msra.mxu0 %v6971
        %9152 = vmatprep.subr.bf16.mxu0 %v6976
        %9153 = vmatpush1.bf16.msra.mxu0 %v6975
        %9154 = vmatprep.subr.bf16.mxu0 %v6980
        %9155 = vmatpush1.bf16.msra.mxu0 %v6979
        %9156 = vmatprep.subr.bf16.mxu0 %v6984
        %9157 = vmatpush1.bf16.msra.mxu0 %v6983
        %9158 = vmatprep.mubr.bf16.mxu0 %v1950
        %9159 = vmatmul.mubr.bf16.gmra.mrb[0].mxu0 %v1949
        %v9160 = vpop.f32.mrb[0].mxu0
        %v9161 = vadd.f32 %v9118, %v9160
        %v9162 = vpop.f32.mrb[0].mxu0
        %v9163 = vadd.f32 %v9120, %v9162
        %v9164 = vpop.f32.mrb[0].mxu0
        %v9165 = vadd.f32 %v9122, %v9164
        %v9166 = vpop.f32.mrb[0].mxu0
        %v9167 = vadd.f32 %v9124, %v9166
        %9168 = vdwg.mxu0
        %9169 = vmatprep.subr.bf16.mxu0 %v6988
        %9170 = vmatpush1.bf16.msra.mxu0 %v6987
        %9171 = vmatprep.subr.bf16.mxu0 %v6992
        %9172 = vmatpush1.bf16.msra.mxu0 %v6991
        %9173 = vmatprep.subr.bf16.mxu0 %v6996
        %9174 = vmatpush1.bf16.msra.mxu0 %v6995
        %9175 = vmatprep.subr.bf16.mxu0 %v7000
        %9176 = vmatpush1.bf16.msra.mxu0 %v6999
        %9177 = vmatprep.subr.bf16.mxu0 %v7004
        %9178 = vmatpush1.bf16.msra.mxu0 %v7003
        %9179 = vmatprep.subr.bf16.mxu0 %v7008
        %9180 = vmatpush1.bf16.msra.mxu0 %v7007
        %9181 = vmatprep.subr.bf16.mxu0 %v7012
        %9182 = vmatpush1.bf16.msra.mxu0 %v7011
        %9183 = vmatprep.subr.bf16.mxu0 %v7016
        %9184 = vmatpush1.bf16.msra.mxu0 %v7015
        %9185 = vmatprep.subr.bf16.mxu0 %v7020
        %9186 = vmatpush1.bf16.msra.mxu0 %v7019
        %9187 = vmatprep.subr.bf16.mxu0 %v7024
        %9188 = vmatpush1.bf16.msra.mxu0 %v7023
        %9189 = vmatprep.subr.bf16.mxu0 %v7028
        %9190 = vmatpush1.bf16.msra.mxu0 %v7027
        %9191 = vmatprep.subr.bf16.mxu0 %v7032
        %9192 = vmatpush1.bf16.msra.mxu0 %v7031
        %9193 = vmatprep.subr.bf16.mxu0 %v7036
        %9194 = vmatpush1.bf16.msra.mxu0 %v7035
        %9195 = vmatprep.subr.bf16.mxu0 %v7040
        %9196 = vmatpush1.bf16.msra.mxu0 %v7039
        %9197 = vmatprep.subr.bf16.mxu0 %v7044
        %9198 = vmatpush1.bf16.msra.mxu0 %v7043
        %9199 = vmatprep.subr.bf16.mxu0 %v7048
        %9200 = vmatpush1.bf16.msra.mxu0 %v7047
        %9201 = vmatprep.mubr.bf16.mxu0 %v1952
        %9202 = vmatmul.mubr.bf16.gmra.mrb[0].mxu0 %v1951
        %v9203 = vpop.f32.mrb[0].mxu0
        %v9204 = vadd.f32 %v9161, %v9203
        %v9205 = vpop.f32.mrb[0].mxu0
        %v9206 = vadd.f32 %v9163, %v9205
        %v9207 = vpop.f32.mrb[0].mxu0
        %v9208 = vadd.f32 %v9165, %v9207
        %v9209 = vpop.f32.mrb[0].mxu0
        %v9210 = vadd.f32 %v9167, %v9209
        %9211 = vdwg.mxu0
        %9212 = vmatprep.subr.bf16.mxu0 %v7052
        %9213 = vmatpush1.bf16.msra.mxu0 %v7051
        %9214 = vmatprep.subr.bf16.mxu0 %v7056
        %9215 = vmatpush1.bf16.msra.mxu0 %v7055
        %9216 = vmatprep.subr.bf16.mxu0 %v7060
        %9217 = vmatpush1.bf16.msra.mxu0 %v7059
        %9218 = vmatprep.subr.bf16.mxu0 %v7064
        %9219 = vmatpush1.bf16.msra.mxu0 %v7063
        %9220 = vmatprep.subr.bf16.mxu0 %v7068
        %9221 = vmatpush1.bf16.msra.mxu0 %v7067
        %9222 = vmatprep.subr.bf16.mxu0 %v7072
        %9223 = vmatpush1.bf16.msra.mxu0 %v7071
        %9224 = vmatprep.subr.bf16.mxu0 %v7076
        %9225 = vmatpush1.bf16.msra.mxu0 %v7075
        %9226 = vmatprep.subr.bf16.mxu0 %v7080
        %9227 = vmatpush1.bf16.msra.mxu0 %v7079
        %9228 = vmatprep.subr.bf16.mxu0 %v7084
        %9229 = vmatpush1.bf16.msra.mxu0 %v7083
        %9230 = vmatprep.subr.bf16.mxu0 %v7088
        %9231 = vmatpush1.bf16.msra.mxu0 %v7087
        %9232 = vmatprep.subr.bf16.mxu0 %v7092
        %9233 = vmatpush1.bf16.msra.mxu0 %v7091
        %9234 = vmatprep.subr.bf16.mxu0 %v7096
        %9235 = vmatpush1.bf16.msra.mxu0 %v7095
        %9236 = vmatprep.subr.bf16.mxu0 %v7100
        %9237 = vmatpush1.bf16.msra.mxu0 %v7099
        %9238 = vmatprep.subr.bf16.mxu0 %v7104
        %9239 = vmatpush1.bf16.msra.mxu0 %v7103
        %9240 = vmatprep.subr.bf16.mxu0 %v7108
        %9241 = vmatpush1.bf16.msra.mxu0 %v7107
        %9242 = vmatprep.subr.bf16.mxu0 %v7112
        %9243 = vmatpush1.bf16.msra.mxu0 %v7111
        %9244 = vmatprep.mubr.bf16.mxu0 %v1954
        %9245 = vmatmul.mubr.bf16.gmra.mrb[0].mxu0 %v1953
        %v9246 = vpop.f32.mrb[0].mxu0
        %v9247 = vadd.f32 %v9204, %v9246
        %v9248 = vpop.f32.mrb[0].mxu0
        %v9249 = vadd.f32 %v9206, %v9248
        %v9250 = vpop.f32.mrb[0].mxu0
        %v9251 = vadd.f32 %v9208, %v9250
        %v9252 = vpop.f32.mrb[0].mxu0
        %v9253 = vadd.f32 %v9210, %v9252
        %9254 = vdwg.mxu0
        %9255 = vmatprep.subr.bf16.mxu0 %v5838
        %9256 = vmatpush1.bf16.msra.mxu0 %v5837
        %9257 = vmatprep.subr.bf16.mxu0 %v5842
        %9258 = vmatpush1.bf16.msra.mxu0 %v5841
        %9259 = vmatprep.subr.bf16.mxu0 %v5846
        %9260 = vmatpush1.bf16.msra.mxu0 %v5845
        %9261 = vmatprep.subr.bf16.mxu0 %v5850
        %9262 = vmatpush1.bf16.msra.mxu0 %v5849
        %9263 = vmatprep.subr.bf16.mxu0 %v5854
        %9264 = vmatpush1.bf16.msra.mxu0 %v5853
        %9265 = vmatprep.subr.bf16.mxu0 %v5858
        %9266 = vmatpush1.bf16.msra.mxu0 %v5857
        %9267 = vmatprep.subr.bf16.mxu0 %v5862
        %9268 = vmatpush1.bf16.msra.mxu0 %v5861
        %9269 = vmatprep.subr.bf16.mxu0 %v5866
        %9270 = vmatpush1.bf16.msra.mxu0 %v5865
        %9271 = vmatprep.subr.bf16.mxu0 %v5870
        %9272 = vmatpush1.bf16.msra.mxu0 %v5869
        %9273 = vmatprep.subr.bf16.mxu0 %v5874
        %9274 = vmatpush1.bf16.msra.mxu0 %v5873
        %9275 = vmatprep.subr.bf16.mxu0 %v5878
        %9276 = vmatpush1.bf16.msra.mxu0 %v5877
        %9277 = vmatprep.subr.bf16.mxu0 %v5882
        %9278 = vmatpush1.bf16.msra.mxu0 %v5881
        %9279 = vmatprep.subr.bf16.mxu0 %v5886
        %9280 = vmatpush1.bf16.msra.mxu0 %v5885
        %9281 = vmatprep.subr.bf16.mxu0 %v5890
        %9282 = vmatpush1.bf16.msra.mxu0 %v5889
        %9283 = vmatprep.subr.bf16.mxu0 %v5894
        %9284 = vmatpush1.bf16.msra.mxu0 %v5893
        %9285 = vmatprep.subr.bf16.mxu0 %v5898
        %9286 = vmatpush1.bf16.msra.mxu0 %v5897
        %9287 = vmatprep.mubr.bf16.mxu0 %v1916
        %9288 = vmatmul.mubr.bf16.gmra.mrb[0].mxu0 %v1915
        %v9289 = vpop.f32.mrb[0].mxu0
        %v9290 = vadd.f32 0.0, %v9289
        %v9291 = vpop.f32.mrb[0].mxu0
        %v9292 = vadd.f32 0.0, %v9291
        %v9293 = vpop.f32.mrb[0].mxu0
        %v9294 = vadd.f32 0.0, %v9293
        %v9295 = vpop.f32.mrb[0].mxu0
        %v9296 = vadd.f32 0.0, %v9295
        %9297 = vdwg.mxu0
        %9298 = vmatprep.subr.bf16.mxu0 %v5902
        %9299 = vmatpush1.bf16.msra.mxu0 %v5901
        %9300 = vmatprep.subr.bf16.mxu0 %v5906
        %9301 = vmatpush1.bf16.msra.mxu0 %v5905
        %9302 = vmatprep.subr.bf16.mxu0 %v5910
        %9303 = vmatpush1.bf16.msra.mxu0 %v5909
        %9304 = vmatprep.subr.bf16.mxu0 %v5914
        %9305 = vmatpush1.bf16.msra.mxu0 %v5913
        %9306 = vmatprep.subr.bf16.mxu0 %v5918
        %9307 = vmatpush1.bf16.msra.mxu0 %v5917
        %9308 = vmatprep.subr.bf16.mxu0 %v5922
        %9309 = vmatpush1.bf16.msra.mxu0 %v5921
        %9310 = vmatprep.subr.bf16.mxu0 %v5926
        %9311 = vmatpush1.bf16.msra.mxu0 %v5925
        %9312 = vmatprep.subr.bf16.mxu0 %v5930
        %9313 = vmatpush1.bf16.msra.mxu0 %v5929
        %9314 = vmatprep.subr.bf16.mxu0 %v5934
        %9315 = vmatpush1.bf16.msra.mxu0 %v5933
        %9316 = vmatprep.subr.bf16.mxu0 %v5938
        %9317 = vmatpush1.bf16.msra.mxu0 %v5937
        %9318 = vmatprep.subr.bf16.mxu0 %v5942
        %9319 = vmatpush1.bf16.msra.mxu0 %v5941
        %9320 = vmatprep.subr.bf16.mxu0 %v5946
        %9321 = vmatpush1.bf16.msra.mxu0 %v5945
        %9322 = vmatprep.subr.bf16.mxu0 %v5950
        %9323 = vmatpush1.bf16.msra.mxu0 %v5949
        %9324 = vmatprep.subr.bf16.mxu0 %v5954
        %9325 = vmatpush1.bf16.msra.mxu0 %v5953
        %9326 = vmatprep.subr.bf16.mxu0 %v5958
        %9327 = vmatpush1.bf16.msra.mxu0 %v5957
        %9328 = vmatprep.subr.bf16.mxu0 %v5962
        %9329 = vmatpush1.bf16.msra.mxu0 %v5961
        %9330 = vmatprep.mubr.bf16.mxu0 %v1918
        %9331 = vmatmul.mubr.bf16.gmra.mrb[0].mxu0 %v1917
        %v9332 = vpop.f32.mrb[0].mxu0
        %v9333 = vadd.f32 %v9290, %v9332
        %v9334 = vpop.f32.mrb[0].mxu0
        %v9335 = vadd.f32 %v9292, %v9334
        %v9336 = vpop.f32.mrb[0].mxu0
        %v9337 = vadd.f32 %v9294, %v9336
        %v9338 = vpop.f32.mrb[0].mxu0
        %v9339 = vadd.f32 %v9296, %v9338
        %9340 = vdwg.mxu0
        %9341 = vmatprep.subr.bf16.mxu0 %v5966
        %9342 = vmatpush1.bf16.msra.mxu0 %v5965
        %9343 = vmatprep.subr.bf16.mxu0 %v5970
        %9344 = vmatpush1.bf16.msra.mxu0 %v5969
        %9345 = vmatprep.subr.bf16.mxu0 %v5974
        %9346 = vmatpush1.bf16.msra.mxu0 %v5973
        %9347 = vmatprep.subr.bf16.mxu0 %v5978
        %9348 = vmatpush1.bf16.msra.mxu0 %v5977
        %9349 = vmatprep.subr.bf16.mxu0 %v5982
        %9350 = vmatpush1.bf16.msra.mxu0 %v5981
        %9351 = vmatprep.subr.bf16.mxu0 %v5986
        %9352 = vmatpush1.bf16.msra.mxu0 %v5985
        %9353 = vmatprep.subr.bf16.mxu0 %v5990
        %9354 = vmatpush1.bf16.msra.mxu0 %v5989
        %9355 = vmatprep.subr.bf16.mxu0 %v5994
        %9356 = vmatpush1.bf16.msra.mxu0 %v5993
        %9357 = vmatprep.subr.bf16.mxu0 %v5998
        %9358 = vmatpush1.bf16.msra.mxu0 %v5997
        %9359 = vmatprep.subr.bf16.mxu0 %v6002
        %9360 = vmatpush1.bf16.msra.mxu0 %v6001
        %9361 = vmatprep.subr.bf16.mxu0 %v6006
        %9362 = vmatpush1.bf16.msra.mxu0 %v6005
        %9363 = vmatprep.subr.bf16.mxu0 %v6010
        %9364 = vmatpush1.bf16.msra.mxu0 %v6009
        %9365 = vmatprep.subr.bf16.mxu0 %v6014
        %9366 = vmatpush1.bf16.msra.mxu0 %v6013
        %9367 = vmatprep.subr.bf16.mxu0 %v6018
        %9368 = vmatpush1.bf16.msra.mxu0 %v6017
        %9369 = vmatprep.subr.bf16.mxu0 %v6022
        %9370 = vmatpush1.bf16.msra.mxu0 %v6021
        %9371 = vmatprep.subr.bf16.mxu0 %v6026
        %9372 = vmatpush1.bf16.msra.mxu0 %v6025
        %9373 = vmatprep.mubr.bf16.mxu0 %v1920
        %9374 = vmatmul.mubr.bf16.gmra.mrb[0].mxu0 %v1919
        %v9375 = vpop.f32.mrb[0].mxu0
        %v9376 = vadd.f32 %v9333, %v9375
        %v9377 = vpop.f32.mrb[0].mxu0
        %v9378 = vadd.f32 %v9335, %v9377
        %v9379 = vpop.f32.mrb[0].mxu0
        %v9380 = vadd.f32 %v9337, %v9379
        %v9381 = vpop.f32.mrb[0].mxu0
        %v9382 = vadd.f32 %v9339, %v9381
        %9383 = vdwg.mxu0
        %9384 = vmatprep.subr.bf16.mxu0 %v6030
        %9385 = vmatpush1.bf16.msra.mxu0 %v6029
        %9386 = vmatprep.subr.bf16.mxu0 %v6034
        %9387 = vmatpush1.bf16.msra.mxu0 %v6033
        %9388 = vmatprep.subr.bf16.mxu0 %v6038
        %9389 = vmatpush1.bf16.msra.mxu0 %v6037
        %9390 = vmatprep.subr.bf16.mxu0 %v6042
        %9391 = vmatpush1.bf16.msra.mxu0 %v6041
        %9392 = vmatprep.subr.bf16.mxu0 %v6046
        %9393 = vmatpush1.bf16.msra.mxu0 %v6045
        %9394 = vmatprep.subr.bf16.mxu0 %v6050
        %9395 = vmatpush1.bf16.msra.mxu0 %v6049
        %9396 = vmatprep.subr.bf16.mxu0 %v6054
        %9397 = vmatpush1.bf16.msra.mxu0 %v6053
        %9398 = vmatprep.subr.bf16.mxu0 %v6058
        %9399 = vmatpush1.bf16.msra.mxu0 %v6057
        %9400 = vmatprep.subr.bf16.mxu0 %v6062
        %9401 = vmatpush1.bf16.msra.mxu0 %v6061
        %9402 = vmatprep.subr.bf16.mxu0 %v6066
        %9403 = vmatpush1.bf16.msra.mxu0 %v6065
        %9404 = vmatprep.subr.bf16.mxu0 %v6070
        %9405 = vmatpush1.bf16.msra.mxu0 %v6069
        %9406 = vmatprep.subr.bf16.mxu0 %v6074
        %9407 = vmatpush1.bf16.msra.mxu0 %v6073
        %9408 = vmatprep.subr.bf16.mxu0 %v6078
        %9409 = vmatpush1.bf16.msra.mxu0 %v6077
        %9410 = vmatprep.subr.bf16.mxu0 %v6082
        %9411 = vmatpush1.bf16.msra.mxu0 %v6081
        %9412 = vmatprep.subr.bf16.mxu0 %v6086
        %9413 = vmatpush1.bf16.msra.mxu0 %v6085
        %9414 = vmatprep.subr.bf16.mxu0 %v6090
        %9415 = vmatpush1.bf16.msra.mxu0 %v6089
        %9416 = vmatprep.mubr.bf16.mxu0 %v1922
        %9417 = vmatmul.mubr.bf16.gmra.mrb[0].mxu0 %v1921
        %v9418 = vpop.f32.mrb[0].mxu0
        %v9419 = vadd.f32 %v9376, %v9418
        %v9420 = vpop.f32.mrb[0].mxu0
        %v9421 = vadd.f32 %v9378, %v9420
        %v9422 = vpop.f32.mrb[0].mxu0
        %v9423 = vadd.f32 %v9380, %v9422
        %v9424 = vpop.f32.mrb[0].mxu0
        %v9425 = vadd.f32 %v9382, %v9424
        %9426 = vdwg.mxu0
        %9427 = vmatprep.subr.bf16.mxu0 %v6094
        %9428 = vmatpush1.bf16.msra.mxu0 %v6093
        %9429 = vmatprep.subr.bf16.mxu0 %v6098
        %9430 = vmatpush1.bf16.msra.mxu0 %v6097
        %9431 = vmatprep.subr.bf16.mxu0 %v6102
        %9432 = vmatpush1.bf16.msra.mxu0 %v6101
        %9433 = vmatprep.subr.bf16.mxu0 %v6106
        %9434 = vmatpush1.bf16.msra.mxu0 %v6105
        %9435 = vmatprep.subr.bf16.mxu0 %v6110
        %9436 = vmatpush1.bf16.msra.mxu0 %v6109
        %9437 = vmatprep.subr.bf16.mxu0 %v6114
        %9438 = vmatpush1.bf16.msra.mxu0 %v6113
        %9439 = vmatprep.subr.bf16.mxu0 %v6118
        %9440 = vmatpush1.bf16.msra.mxu0 %v6117
        %9441 = vmatprep.subr.bf16.mxu0 %v6122
        %9442 = vmatpush1.bf16.msra.mxu0 %v6121
        %9443 = vmatprep.subr.bf16.mxu0 %v6126
        %9444 = vmatpush1.bf16.msra.mxu0 %v6125
        %9445 = vmatprep.subr.bf16.mxu0 %v6130
        %9446 = vmatpush1.bf16.msra.mxu0 %v6129
        %9447 = vmatprep.subr.bf16.mxu0 %v6134
        %9448 = vmatpush1.bf16.msra.mxu0 %v6133
        %9449 = vmatprep.subr.bf16.mxu0 %v6138
        %9450 = vmatpush1.bf16.msra.mxu0 %v6137
        %9451 = vmatprep.subr.bf16.mxu0 %v6142
        %9452 = vmatpush1.bf16.msra.mxu0 %v6141
        %9453 = vmatprep.subr.bf16.mxu0 %v6146
        %9454 = vmatpush1.bf16.msra.mxu0 %v6145
        %9455 = vmatprep.subr.bf16.mxu0 %v6150
        %9456 = vmatpush1.bf16.msra.mxu0 %v6149
        %9457 = vmatprep.subr.bf16.mxu0 %v6154
        %9458 = vmatpush1.bf16.msra.mxu0 %v6153
        %9459 = vmatprep.mubr.bf16.mxu0 %v1924
        %9460 = vmatmul.mubr.bf16.gmra.mrb[0].mxu0 %v1923
        %v9461 = vpop.f32.mrb[0].mxu0
        %v9462 = vadd.f32 %v9419, %v9461
        %v9463 = vpop.f32.mrb[0].mxu0
        %v9464 = vadd.f32 %v9421, %v9463
        %v9465 = vpop.f32.mrb[0].mxu0
        %v9466 = vadd.f32 %v9423, %v9465
        %v9467 = vpop.f32.mrb[0].mxu0
        %v9468 = vadd.f32 %v9425, %v9467
        %9469 = vdwg.mxu0
        %9470 = vmatprep.subr.bf16.mxu0 %v6158
        %9471 = vmatpush1.bf16.msra.mxu0 %v6157
        %9472 = vmatprep.subr.bf16.mxu0 %v6162
        %9473 = vmatpush1.bf16.msra.mxu0 %v6161
        %9474 = vmatprep.subr.bf16.mxu0 %v6166
        %9475 = vmatpush1.bf16.msra.mxu0 %v6165
        %9476 = vmatprep.subr.bf16.mxu0 %v6170
        %9477 = vmatpush1.bf16.msra.mxu0 %v6169
        %9478 = vmatprep.subr.bf16.mxu0 %v6174
        %9479 = vmatpush1.bf16.msra.mxu0 %v6173
        %9480 = vmatprep.subr.bf16.mxu0 %v6178
        %9481 = vmatpush1.bf16.msra.mxu0 %v6177
        %9482 = vmatprep.subr.bf16.mxu0 %v6182
        %9483 = vmatpush1.bf16.msra.mxu0 %v6181
        %9484 = vmatprep.subr.bf16.mxu0 %v6186
        %9485 = vmatpush1.bf16.msra.mxu0 %v6185
        %9486 = vmatprep.subr.bf16.mxu0 %v6190
        %9487 = vmatpush1.bf16.msra.mxu0 %v6189
        %9488 = vmatprep.subr.bf16.mxu0 %v6194
        %9489 = vmatpush1.bf16.msra.mxu0 %v6193
        %9490 = vmatprep.subr.bf16.mxu0 %v6198
        %9491 = vmatpush1.bf16.msra.mxu0 %v6197
        %9492 = vmatprep.subr.bf16.mxu0 %v6202
        %9493 = vmatpush1.bf16.msra.mxu0 %v6201
        %9494 = vmatprep.subr.bf16.mxu0 %v6206
        %9495 = vmatpush1.bf16.msra.mxu0 %v6205
        %9496 = vmatprep.subr.bf16.mxu0 %v6210
        %9497 = vmatpush1.bf16.msra.mxu0 %v6209
        %9498 = vmatprep.subr.bf16.mxu0 %v6214
        %9499 = vmatpush1.bf16.msra.mxu0 %v6213
        %9500 = vmatprep.subr.bf16.mxu0 %v6218
        %9501 = vmatpush1.bf16.msra.mxu0 %v6217
        %9502 = vmatprep.mubr.bf16.mxu0 %v1926
        %9503 = vmatmul.mubr.bf16.gmra.mrb[0].mxu0 %v1925
        %v9504 = vpop.f32.mrb[0].mxu0
        %v9505 = vadd.f32 %v9462, %v9504
        %v9506 = vpop.f32.mrb[0].mxu0
        %v9507 = vadd.f32 %v9464, %v9506
        %v9508 = vpop.f32.mrb[0].mxu0
        %v9509 = vadd.f32 %v9466, %v9508
        %v9510 = vpop.f32.mrb[0].mxu0
        %v9511 = vadd.f32 %v9468, %v9510
        %9512 = vdwg.mxu0
        %9513 = vmatprep.subr.bf16.mxu0 %v6222
        %9514 = vmatpush1.bf16.msra.mxu0 %v6221
        %9515 = vmatprep.subr.bf16.mxu0 %v6226
        %9516 = vmatpush1.bf16.msra.mxu0 %v6225
        %9517 = vmatprep.subr.bf16.mxu0 %v6230
        %9518 = vmatpush1.bf16.msra.mxu0 %v6229
        %9519 = vmatprep.subr.bf16.mxu0 %v6234
        %9520 = vmatpush1.bf16.msra.mxu0 %v6233
        %9521 = vmatprep.subr.bf16.mxu0 %v6238
        %9522 = vmatpush1.bf16.msra.mxu0 %v6237
        %9523 = vmatprep.subr.bf16.mxu0 %v6242
        %9524 = vmatpush1.bf16.msra.mxu0 %v6241
        %9525 = vmatprep.subr.bf16.mxu0 %v6246
        %9526 = vmatpush1.bf16.msra.mxu0 %v6245
        %9527 = vmatprep.subr.bf16.mxu0 %v6250
        %9528 = vmatpush1.bf16.msra.mxu0 %v6249
        %9529 = vmatprep.subr.bf16.mxu0 %v6254
        %9530 = vmatpush1.bf16.msra.mxu0 %v6253
        %9531 = vmatprep.subr.bf16.mxu0 %v6258
        %9532 = vmatpush1.bf16.msra.mxu0 %v6257
        %9533 = vmatprep.subr.bf16.mxu0 %v6262
        %9534 = vmatpush1.bf16.msra.mxu0 %v6261
        %9535 = vmatprep.subr.bf16.mxu0 %v6266
        %9536 = vmatpush1.bf16.msra.mxu0 %v6265
        %9537 = vmatprep.subr.bf16.mxu0 %v6270
        %9538 = vmatpush1.bf16.msra.mxu0 %v6269
        %9539 = vmatprep.subr.bf16.mxu0 %v6274
        %9540 = vmatpush1.bf16.msra.mxu0 %v6273
        %9541 = vmatprep.subr.bf16.mxu0 %v6278
        %9542 = vmatpush1.bf16.msra.mxu0 %v6277
        %9543 = vmatprep.subr.bf16.mxu0 %v6282
        %9544 = vmatpush1.bf16.msra.mxu0 %v6281
        %9545 = vmatprep.mubr.bf16.mxu0 %v1928
        %9546 = vmatmul.mubr.bf16.gmra.mrb[0].mxu0 %v1927
        %v9547 = vpop.f32.mrb[0].mxu0
        %v9548 = vadd.f32 %v9505, %v9547
        %v9549 = vpop.f32.mrb[0].mxu0
        %v9550 = vadd.f32 %v9507, %v9549
        %v9551 = vpop.f32.mrb[0].mxu0
        %v9552 = vadd.f32 %v9509, %v9551
        %v9553 = vpop.f32.mrb[0].mxu0
        %v9554 = vadd.f32 %v9511, %v9553
        %9555 = vdwg.mxu0
        %9556 = vmatprep.subr.bf16.mxu0 %v6286
        %9557 = vmatpush1.bf16.msra.mxu0 %v6285
        %9558 = vmatprep.subr.bf16.mxu0 %v6290
        %9559 = vmatpush1.bf16.msra.mxu0 %v6289
        %9560 = vmatprep.subr.bf16.mxu0 %v6294
        %9561 = vmatpush1.bf16.msra.mxu0 %v6293
        %9562 = vmatprep.subr.bf16.mxu0 %v6298
        %9563 = vmatpush1.bf16.msra.mxu0 %v6297
        %9564 = vmatprep.subr.bf16.mxu0 %v6302
        %9565 = vmatpush1.bf16.msra.mxu0 %v6301
        %9566 = vmatprep.subr.bf16.mxu0 %v6306
        %9567 = vmatpush1.bf16.msra.mxu0 %v6305
        %9568 = vmatprep.subr.bf16.mxu0 %v6310
        %9569 = vmatpush1.bf16.msra.mxu0 %v6309
        %9570 = vmatprep.subr.bf16.mxu0 %v6314
        %9571 = vmatpush1.bf16.msra.mxu0 %v6313
        %9572 = vmatprep.subr.bf16.mxu0 %v6318
        %9573 = vmatpush1.bf16.msra.mxu0 %v6317
        %9574 = vmatprep.subr.bf16.mxu0 %v6322
        %9575 = vmatpush1.bf16.msra.mxu0 %v6321
        %9576 = vmatprep.subr.bf16.mxu0 %v6326
        %9577 = vmatpush1.bf16.msra.mxu0 %v6325
        %9578 = vmatprep.subr.bf16.mxu0 %v6330
        %9579 = vmatpush1.bf16.msra.mxu0 %v6329
        %9580 = vmatprep.subr.bf16.mxu0 %v6334
        %9581 = vmatpush1.bf16.msra.mxu0 %v6333
        %9582 = vmatprep.subr.bf16.mxu0 %v6338
        %9583 = vmatpush1.bf16.msra.mxu0 %v6337
        %9584 = vmatprep.subr.bf16.mxu0 %v6342
        %9585 = vmatpush1.bf16.msra.mxu0 %v6341
        %9586 = vmatprep.subr.bf16.mxu0 %v6346
        %9587 = vmatpush1.bf16.msra.mxu0 %v6345
        %9588 = vmatprep.mubr.bf16.mxu0 %v1930
        %9589 = vmatmul.mubr.bf16.gmra.mrb[0].mxu0 %v1929
        %v9590 = vpop.f32.mrb[0].mxu0
        %v9591 = vadd.f32 %v9548, %v9590
        %v9592 = vpop.f32.mrb[0].mxu0
        %v9593 = vadd.f32 %v9550, %v9592
        %v9594 = vpop.f32.mrb[0].mxu0
        %v9595 = vadd.f32 %v9552, %v9594
        %v9596 = vpop.f32.mrb[0].mxu0
        %v9597 = vadd.f32 %v9554, %v9596
        %9598 = vdwg.mxu0
        %9599 = vmatprep.subr.bf16.mxu0 %v6350
        %9600 = vmatpush1.bf16.msra.mxu0 %v6349
        %9601 = vmatprep.subr.bf16.mxu0 %v6354
        %9602 = vmatpush1.bf16.msra.mxu0 %v6353
        %9603 = vmatprep.subr.bf16.mxu0 %v6358
        %9604 = vmatpush1.bf16.msra.mxu0 %v6357
        %9605 = vmatprep.subr.bf16.mxu0 %v6362
        %9606 = vmatpush1.bf16.msra.mxu0 %v6361
        %9607 = vmatprep.subr.bf16.mxu0 %v6366
        %9608 = vmatpush1.bf16.msra.mxu0 %v6365
        %9609 = vmatprep.subr.bf16.mxu0 %v6370
        %9610 = vmatpush1.bf16.msra.mxu0 %v6369
        %9611 = vmatprep.subr.bf16.mxu0 %v6374
        %9612 = vmatpush1.bf16.msra.mxu0 %v6373
        %9613 = vmatprep.subr.bf16.mxu0 %v6378
        %9614 = vmatpush1.bf16.msra.mxu0 %v6377
        %9615 = vmatprep.subr.bf16.mxu0 %v6382
        %9616 = vmatpush1.bf16.msra.mxu0 %v6381
        %9617 = vmatprep.subr.bf16.mxu0 %v6386
        %9618 = vmatpush1.bf16.msra.mxu0 %v6385
        %9619 = vmatprep.subr.bf16.mxu0 %v6390
        %9620 = vmatpush1.bf16.msra.mxu0 %v6389
        %9621 = vmatprep.subr.bf16.mxu0 %v6394
        %9622 = vmatpush1.bf16.msra.mxu0 %v6393
        %9623 = vmatprep.subr.bf16.mxu0 %v6398
        %9624 = vmatpush1.bf16.msra.mxu0 %v6397
        %9625 = vmatprep.subr.bf16.mxu0 %v6402
        %9626 = vmatpush1.bf16.msra.mxu0 %v6401
        %9627 = vmatprep.subr.bf16.mxu0 %v6406
        %9628 = vmatpush1.bf16.msra.mxu0 %v6405
        %9629 = vmatprep.subr.bf16.mxu0 %v6410
        %9630 = vmatpush1.bf16.msra.mxu0 %v6409
        %9631 = vmatprep.mubr.bf16.mxu0 %v1932
        %9632 = vmatmul.mubr.bf16.gmra.mrb[0].mxu0 %v1931
        %v9633 = vpop.f32.mrb[0].mxu0
        %v9634 = vadd.f32 %v9591, %v9633
        %v9635 = vpop.f32.mrb[0].mxu0
        %v9636 = vadd.f32 %v9593, %v9635
        %v9637 = vpop.f32.mrb[0].mxu0
        %v9638 = vadd.f32 %v9595, %v9637
        %v9639 = vpop.f32.mrb[0].mxu0
        %v9640 = vadd.f32 %v9597, %v9639
        %9641 = vdwg.mxu0
        %9642 = vmatprep.subr.bf16.mxu0 %v6414
        %9643 = vmatpush1.bf16.msra.mxu0 %v6413
        %9644 = vmatprep.subr.bf16.mxu0 %v6418
        %9645 = vmatpush1.bf16.msra.mxu0 %v6417
        %9646 = vmatprep.subr.bf16.mxu0 %v6422
        %9647 = vmatpush1.bf16.msra.mxu0 %v6421
        %9648 = vmatprep.subr.bf16.mxu0 %v6426
        %9649 = vmatpush1.bf16.msra.mxu0 %v6425
        %9650 = vmatprep.subr.bf16.mxu0 %v6430
        %9651 = vmatpush1.bf16.msra.mxu0 %v6429
        %9652 = vmatprep.subr.bf16.mxu0 %v6434
        %9653 = vmatpush1.bf16.msra.mxu0 %v6433
        %9654 = vmatprep.subr.bf16.mxu0 %v6438
        %9655 = vmatpush1.bf16.msra.mxu0 %v6437
        %9656 = vmatprep.subr.bf16.mxu0 %v6442
        %9657 = vmatpush1.bf16.msra.mxu0 %v6441
        %9658 = vmatprep.subr.bf16.mxu0 %v6446
        %9659 = vmatpush1.bf16.msra.mxu0 %v6445
        %9660 = vmatprep.subr.bf16.mxu0 %v6450
        %9661 = vmatpush1.bf16.msra.mxu0 %v6449
        %9662 = vmatprep.subr.bf16.mxu0 %v6454
        %9663 = vmatpush1.bf16.msra.mxu0 %v6453
        %9664 = vmatprep.subr.bf16.mxu0 %v6458
        %9665 = vmatpush1.bf16.msra.mxu0 %v6457
        %9666 = vmatprep.subr.bf16.mxu0 %v6462
        %9667 = vmatpush1.bf16.msra.mxu0 %v6461
        %9668 = vmatprep.subr.bf16.mxu0 %v6466
        %9669 = vmatpush1.bf16.msra.mxu0 %v6465
        %9670 = vmatprep.subr.bf16.mxu0 %v6470
        %9671 = vmatpush1.bf16.msra.mxu0 %v6469
        %9672 = vmatprep.subr.bf16.mxu0 %v6474
        %9673 = vmatpush1.bf16.msra.mxu0 %v6473
        %9674 = vmatprep.mubr.bf16.mxu0 %v1934
        %9675 = vmatmul.mubr.bf16.gmra.mrb[0].mxu0 %v1933
        %v9676 = vpop.f32.mrb[0].mxu0
        %v9677 = vadd.f32 %v9634, %v9676
        %v9678 = vpop.f32.mrb[0].mxu0
        %v9679 = vadd.f32 %v9636, %v9678
        %v9680 = vpop.f32.mrb[0].mxu0
        %v9681 = vadd.f32 %v9638, %v9680
        %v9682 = vpop.f32.mrb[0].mxu0
        %v9683 = vadd.f32 %v9640, %v9682
        %9684 = vdwg.mxu0
        %9685 = vmatprep.subr.bf16.mxu0 %v6478
        %9686 = vmatpush1.bf16.msra.mxu0 %v6477
        %9687 = vmatprep.subr.bf16.mxu0 %v6482
        %9688 = vmatpush1.bf16.msra.mxu0 %v6481
        %9689 = vmatprep.subr.bf16.mxu0 %v6486
        %9690 = vmatpush1.bf16.msra.mxu0 %v6485
        %9691 = vmatprep.subr.bf16.mxu0 %v6490
        %9692 = vmatpush1.bf16.msra.mxu0 %v6489
        %9693 = vmatprep.subr.bf16.mxu0 %v6494
        %9694 = vmatpush1.bf16.msra.mxu0 %v6493
        %9695 = vmatprep.subr.bf16.mxu0 %v6498
        %9696 = vmatpush1.bf16.msra.mxu0 %v6497
        %9697 = vmatprep.subr.bf16.mxu0 %v6502
        %9698 = vmatpush1.bf16.msra.mxu0 %v6501
        %9699 = vmatprep.subr.bf16.mxu0 %v6506
        %9700 = vmatpush1.bf16.msra.mxu0 %v6505
        %9701 = vmatprep.subr.bf16.mxu0 %v6510
        %9702 = vmatpush1.bf16.msra.mxu0 %v6509
        %9703 = vmatprep.subr.bf16.mxu0 %v6514
        %9704 = vmatpush1.bf16.msra.mxu0 %v6513
        %9705 = vmatprep.subr.bf16.mxu0 %v6518
        %9706 = vmatpush1.bf16.msra.mxu0 %v6517
        %9707 = vmatprep.subr.bf16.mxu0 %v6522
        %9708 = vmatpush1.bf16.msra.mxu0 %v6521
        %9709 = vmatprep.subr.bf16.mxu0 %v6526
        %9710 = vmatpush1.bf16.msra.mxu0 %v6525
        %9711 = vmatprep.subr.bf16.mxu0 %v6530
        %9712 = vmatpush1.bf16.msra.mxu0 %v6529
        %9713 = vmatprep.subr.bf16.mxu0 %v6534
        %9714 = vmatpush1.bf16.msra.mxu0 %v6533
        %9715 = vmatprep.subr.bf16.mxu0 %v6538
        %9716 = vmatpush1.bf16.msra.mxu0 %v6537
        %9717 = vmatprep.mubr.bf16.mxu0 %v1936
        %9718 = vmatmul.mubr.bf16.gmra.mrb[0].mxu0 %v1935
        %v9719 = vpop.f32.mrb[0].mxu0
        %v9720 = vadd.f32 %v9677, %v9719
        %v9721 = vpop.f32.mrb[0].mxu0
        %v9722 = vadd.f32 %v9679, %v9721
        %v9723 = vpop.f32.mrb[0].mxu0
        %v9724 = vadd.f32 %v9681, %v9723
        %v9725 = vpop.f32.mrb[0].mxu0
        %v9726 = vadd.f32 %v9683, %v9725
        %9727 = vdwg.mxu0
        %9728 = vmatprep.subr.bf16.mxu0 %v6542
        %9729 = vmatpush1.bf16.msra.mxu0 %v6541
        %9730 = vmatprep.subr.bf16.mxu0 %v6546
        %9731 = vmatpush1.bf16.msra.mxu0 %v6545
        %9732 = vmatprep.subr.bf16.mxu0 %v6550
        %9733 = vmatpush1.bf16.msra.mxu0 %v6549
        %9734 = vmatprep.subr.bf16.mxu0 %v6554
        %9735 = vmatpush1.bf16.msra.mxu0 %v6553
        %9736 = vmatprep.subr.bf16.mxu0 %v6558
        %9737 = vmatpush1.bf16.msra.mxu0 %v6557
        %9738 = vmatprep.subr.bf16.mxu0 %v6562
        %9739 = vmatpush1.bf16.msra.mxu0 %v6561
        %9740 = vmatprep.subr.bf16.mxu0 %v6566
        %9741 = vmatpush1.bf16.msra.mxu0 %v6565
        %9742 = vmatprep.subr.bf16.mxu0 %v6570
        %9743 = vmatpush1.bf16.msra.mxu0 %v6569
        %9744 = vmatprep.subr.bf16.mxu0 %v6574
        %9745 = vmatpush1.bf16.msra.mxu0 %v6573
        %9746 = vmatprep.subr.bf16.mxu0 %v6578
        %9747 = vmatpush1.bf16.msra.mxu0 %v6577
        %9748 = vmatprep.subr.bf16.mxu0 %v6582
        %9749 = vmatpush1.bf16.msra.mxu0 %v6581
        %9750 = vmatprep.subr.bf16.mxu0 %v6586
        %9751 = vmatpush1.bf16.msra.mxu0 %v6585
        %9752 = vmatprep.subr.bf16.mxu0 %v6590
        %9753 = vmatpush1.bf16.msra.mxu0 %v6589
        %9754 = vmatprep.subr.bf16.mxu0 %v6594
        %9755 = vmatpush1.bf16.msra.mxu0 %v6593
        %9756 = vmatprep.subr.bf16.mxu0 %v6598
        %9757 = vmatpush1.bf16.msra.mxu0 %v6597
        %9758 = vmatprep.subr.bf16.mxu0 %v6602
        %9759 = vmatpush1.bf16.msra.mxu0 %v6601
        %9760 = vmatprep.mubr.bf16.mxu0 %v1938
        %9761 = vmatmul.mubr.bf16.gmra.mrb[0].mxu0 %v1937
        %v9762 = vpop.f32.mrb[0].mxu0
        %v9763 = vadd.f32 %v9720, %v9762
        %v9764 = vpop.f32.mrb[0].mxu0
        %v9765 = vadd.f32 %v9722, %v9764
        %v9766 = vpop.f32.mrb[0].mxu0
        %v9767 = vadd.f32 %v9724, %v9766
        %v9768 = vpop.f32.mrb[0].mxu0
        %v9769 = vadd.f32 %v9726, %v9768
        %9770 = vdwg.mxu0
        %9771 = vmatprep.subr.bf16.mxu0 %v6606
        %9772 = vmatpush1.bf16.msra.mxu0 %v6605
        %9773 = vmatprep.subr.bf16.mxu0 %v6610
        %9774 = vmatpush1.bf16.msra.mxu0 %v6609
        %9775 = vmatprep.subr.bf16.mxu0 %v6614
        %9776 = vmatpush1.bf16.msra.mxu0 %v6613
        %9777 = vmatprep.subr.bf16.mxu0 %v6618
        %9778 = vmatpush1.bf16.msra.mxu0 %v6617
        %9779 = vmatprep.subr.bf16.mxu0 %v6622
        %9780 = vmatpush1.bf16.msra.mxu0 %v6621
        %9781 = vmatprep.subr.bf16.mxu0 %v6626
        %9782 = vmatpush1.bf16.msra.mxu0 %v6625
        %9783 = vmatprep.subr.bf16.mxu0 %v6630
        %9784 = vmatpush1.bf16.msra.mxu0 %v6629
        %9785 = vmatprep.subr.bf16.mxu0 %v6634
        %9786 = vmatpush1.bf16.msra.mxu0 %v6633
        %9787 = vmatprep.subr.bf16.mxu0 %v6638
        %9788 = vmatpush1.bf16.msra.mxu0 %v6637
        %9789 = vmatprep.subr.bf16.mxu0 %v6642
        %9790 = vmatpush1.bf16.msra.mxu0 %v6641
        %9791 = vmatprep.subr.bf16.mxu0 %v6646
        %9792 = vmatpush1.bf16.msra.mxu0 %v6645
        %9793 = vmatprep.subr.bf16.mxu0 %v6650
        %9794 = vmatpush1.bf16.msra.mxu0 %v6649
        %9795 = vmatprep.subr.bf16.mxu0 %v6654
        %9796 = vmatpush1.bf16.msra.mxu0 %v6653
        %9797 = vmatprep.subr.bf16.mxu0 %v6658
        %9798 = vmatpush1.bf16.msra.mxu0 %v6657
        %9799 = vmatprep.subr.bf16.mxu0 %v6662
        %9800 = vmatpush1.bf16.msra.mxu0 %v6661
        %9801 = vmatprep.subr.bf16.mxu0 %v6666
        %9802 = vmatpush1.bf16.msra.mxu0 %v6665
        %9803 = vmatprep.mubr.bf16.mxu0 %v1940
        %9804 = vmatmul.mubr.bf16.gmra.mrb[0].mxu0 %v1939
        %v9805 = vpop.f32.mrb[0].mxu0
        %v9806 = vadd.f32 %v9763, %v9805
        %v9807 = vpop.f32.mrb[0].mxu0
        %v9808 = vadd.f32 %v9765, %v9807
        %v9809 = vpop.f32.mrb[0].mxu0
        %v9810 = vadd.f32 %v9767, %v9809
        %v9811 = vpop.f32.mrb[0].mxu0
        %v9812 = vadd.f32 %v9769, %v9811
        %9813 = vdwg.mxu0
        %9814 = vmatprep.subr.bf16.mxu0 %v6670
        %9815 = vmatpush1.bf16.msra.mxu0 %v6669
        %9816 = vmatprep.subr.bf16.mxu0 %v6674
        %9817 = vmatpush1.bf16.msra.mxu0 %v6673
        %9818 = vmatprep.subr.bf16.mxu0 %v6678
        %9819 = vmatpush1.bf16.msra.mxu0 %v6677
        %9820 = vmatprep.subr.bf16.mxu0 %v6682
        %9821 = vmatpush1.bf16.msra.mxu0 %v6681
        %9822 = vmatprep.subr.bf16.mxu0 %v6686
        %9823 = vmatpush1.bf16.msra.mxu0 %v6685
        %9824 = vmatprep.subr.bf16.mxu0 %v6690
        %9825 = vmatpush1.bf16.msra.mxu0 %v6689
        %9826 = vmatprep.subr.bf16.mxu0 %v6694
        %9827 = vmatpush1.bf16.msra.mxu0 %v6693
        %9828 = vmatprep.subr.bf16.mxu0 %v6698
        %9829 = vmatpush1.bf16.msra.mxu0 %v6697
        %9830 = vmatprep.subr.bf16.mxu0 %v6702
        %9831 = vmatpush1.bf16.msra.mxu0 %v6701
        %9832 = vmatprep.subr.bf16.mxu0 %v6706
        %9833 = vmatpush1.bf16.msra.mxu0 %v6705
        %9834 = vmatprep.subr.bf16.mxu0 %v6710
        %9835 = vmatpush1.bf16.msra.mxu0 %v6709
        %9836 = vmatprep.subr.bf16.mxu0 %v6714
        %9837 = vmatpush1.bf16.msra.mxu0 %v6713
        %9838 = vmatprep.subr.bf16.mxu0 %v6718
        %9839 = vmatpush1.bf16.msra.mxu0 %v6717
        %9840 = vmatprep.subr.bf16.mxu0 %v6722
        %9841 = vmatpush1.bf16.msra.mxu0 %v6721
        %9842 = vmatprep.subr.bf16.mxu0 %v6726
        %9843 = vmatpush1.bf16.msra.mxu0 %v6725
        %9844 = vmatprep.subr.bf16.mxu0 %v6730
        %9845 = vmatpush1.bf16.msra.mxu0 %v6729
        %9846 = vmatprep.mubr.bf16.mxu0 %v1942
        %9847 = vmatmul.mubr.bf16.gmra.mrb[0].mxu0 %v1941
        %v9848 = vpop.f32.mrb[0].mxu0
        %v9849 = vadd.f32 %v9806, %v9848
        %v9850 = vpop.f32.mrb[0].mxu0
        %v9851 = vadd.f32 %v9808, %v9850
        %v9852 = vpop.f32.mrb[0].mxu0
        %v9853 = vadd.f32 %v9810, %v9852
        %v9854 = vpop.f32.mrb[0].mxu0
        %v9855 = vadd.f32 %v9812, %v9854
        %9856 = vdwg.mxu0
        %9857 = vmatprep.subr.bf16.mxu0 %v6734
        %9858 = vmatpush1.bf16.msra.mxu0 %v6733
        %9859 = vmatprep.subr.bf16.mxu0 %v6738
        %9860 = vmatpush1.bf16.msra.mxu0 %v6737
        %9861 = vmatprep.subr.bf16.mxu0 %v6742
        %9862 = vmatpush1.bf16.msra.mxu0 %v6741
        %9863 = vmatprep.subr.bf16.mxu0 %v6746
        %9864 = vmatpush1.bf16.msra.mxu0 %v6745
        %9865 = vmatprep.subr.bf16.mxu0 %v6750
        %9866 = vmatpush1.bf16.msra.mxu0 %v6749
        %9867 = vmatprep.subr.bf16.mxu0 %v6754
        %9868 = vmatpush1.bf16.msra.mxu0 %v6753
        %9869 = vmatprep.subr.bf16.mxu0 %v6758
        %9870 = vmatpush1.bf16.msra.mxu0 %v6757
        %9871 = vmatprep.subr.bf16.mxu0 %v6762
        %9872 = vmatpush1.bf16.msra.mxu0 %v6761
        %9873 = vmatprep.subr.bf16.mxu0 %v6766
        %9874 = vmatpush1.bf16.msra.mxu0 %v6765
        %9875 = vmatprep.subr.bf16.mxu0 %v6770
        %9876 = vmatpush1.bf16.msra.mxu0 %v6769
        %9877 = vmatprep.subr.bf16.mxu0 %v6774
        %9878 = vmatpush1.bf16.msra.mxu0 %v6773
        %9879 = vmatprep.subr.bf16.mxu0 %v6778
        %9880 = vmatpush1.bf16.msra.mxu0 %v6777
        %9881 = vmatprep.subr.bf16.mxu0 %v6782
        %9882 = vmatpush1.bf16.msra.mxu0 %v6781
        %9883 = vmatprep.subr.bf16.mxu0 %v6786
        %9884 = vmatpush1.bf16.msra.mxu0 %v6785
        %9885 = vmatprep.subr.bf16.mxu0 %v6790
        %9886 = vmatpush1.bf16.msra.mxu0 %v6789
        %9887 = vmatprep.subr.bf16.mxu0 %v6794
        %9888 = vmatpush1.bf16.msra.mxu0 %v6793
        %9889 = vmatprep.mubr.bf16.mxu0 %v1944
        %9890 = vmatmul.mubr.bf16.gmra.mrb[0].mxu0 %v1943
        %v9891 = vpop.f32.mrb[0].mxu0
        %v9892 = vadd.f32 %v9849, %v9891
        %v9893 = vpop.f32.mrb[0].mxu0
        %v9894 = vadd.f32 %v9851, %v9893
        %v9895 = vpop.f32.mrb[0].mxu0
        %v9896 = vadd.f32 %v9853, %v9895
        %v9897 = vpop.f32.mrb[0].mxu0
        %v9898 = vadd.f32 %v9855, %v9897
        %9899 = vdwg.mxu0
        %9900 = vmatprep.subr.bf16.mxu0 %v6798
        %9901 = vmatpush1.bf16.msra.mxu0 %v6797
        %9902 = vmatprep.subr.bf16.mxu0 %v6802
        %9903 = vmatpush1.bf16.msra.mxu0 %v6801
        %9904 = vmatprep.subr.bf16.mxu0 %v6806
        %9905 = vmatpush1.bf16.msra.mxu0 %v6805
        %9906 = vmatprep.subr.bf16.mxu0 %v6810
        %9907 = vmatpush1.bf16.msra.mxu0 %v6809
        %9908 = vmatprep.subr.bf16.mxu0 %v6814
        %9909 = vmatpush1.bf16.msra.mxu0 %v6813
        %9910 = vmatprep.subr.bf16.mxu0 %v6818
        %9911 = vmatpush1.bf16.msra.mxu0 %v6817
        %9912 = vmatprep.subr.bf16.mxu0 %v6822
        %9913 = vmatpush1.bf16.msra.mxu0 %v6821
        %9914 = vmatprep.subr.bf16.mxu0 %v6826
        %9915 = vmatpush1.bf16.msra.mxu0 %v6825
        %9916 = vmatprep.subr.bf16.mxu0 %v6830
        %9917 = vmatpush1.bf16.msra.mxu0 %v6829
        %9918 = vmatprep.subr.bf16.mxu0 %v6834
        %9919 = vmatpush1.bf16.msra.mxu0 %v6833
        %9920 = vmatprep.subr.bf16.mxu0 %v6838
        %9921 = vmatpush1.bf16.msra.mxu0 %v6837
        %9922 = vmatprep.subr.bf16.mxu0 %v6842
        %9923 = vmatpush1.bf16.msra.mxu0 %v6841
        %9924 = vmatprep.subr.bf16.mxu0 %v6846
        %9925 = vmatpush1.bf16.msra.mxu0 %v6845
        %9926 = vmatprep.subr.bf16.mxu0 %v6850
        %9927 = vmatpush1.bf16.msra.mxu0 %v6849
        %9928 = vmatprep.subr.bf16.mxu0 %v6854
        %9929 = vmatpush1.bf16.msra.mxu0 %v6853
        %9930 = vmatprep.subr.bf16.mxu0 %v6858
        %9931 = vmatpush1.bf16.msra.mxu0 %v6857
        %9932 = vmatprep.mubr.bf16.mxu0 %v1946
        %9933 = vmatmul.mubr.bf16.gmra.mrb[0].mxu0 %v1945
        %v9934 = vpop.f32.mrb[0].mxu0
        %v9935 = vadd.f32 %v9892, %v9934
        %v9936 = vpop.f32.mrb[0].mxu0
        %v9937 = vadd.f32 %v9894, %v9936
        %v9938 = vpop.f32.mrb[0].mxu0
        %v9939 = vadd.f32 %v9896, %v9938
        %v9940 = vpop.f32.mrb[0].mxu0
        %v9941 = vadd.f32 %v9898, %v9940
        %9942 = vdwg.mxu0
        %9943 = vmatprep.subr.bf16.mxu0 %v6862
        %9944 = vmatpush1.bf16.msra.mxu0 %v6861
        %9945 = vmatprep.subr.bf16.mxu0 %v6866
        %9946 = vmatpush1.bf16.msra.mxu0 %v6865
        %9947 = vmatprep.subr.bf16.mxu0 %v6870
        %9948 = vmatpush1.bf16.msra.mxu0 %v6869
        %9949 = vmatprep.subr.bf16.mxu0 %v6874
        %9950 = vmatpush1.bf16.msra.mxu0 %v6873
        %9951 = vmatprep.subr.bf16.mxu0 %v6878
        %9952 = vmatpush1.bf16.msra.mxu0 %v6877
        %9953 = vmatprep.subr.bf16.mxu0 %v6882
        %9954 = vmatpush1.bf16.msra.mxu0 %v6881
        %9955 = vmatprep.subr.bf16.mxu0 %v6886
        %9956 = vmatpush1.bf16.msra.mxu0 %v6885
        %9957 = vmatprep.subr.bf16.mxu0 %v6890
        %9958 = vmatpush1.bf16.msra.mxu0 %v6889
        %9959 = vmatprep.subr.bf16.mxu0 %v6894
        %9960 = vmatpush1.bf16.msra.mxu0 %v6893
        %9961 = vmatprep.subr.bf16.mxu0 %v6898
        %9962 = vmatpush1.bf16.msra.mxu0 %v6897
        %9963 = vmatprep.subr.bf16.mxu0 %v6902
        %9964 = vmatpush1.bf16.msra.mxu0 %v6901
        %9965 = vmatprep.subr.bf16.mxu0 %v6906
        %9966 = vmatpush1.bf16.msra.mxu0 %v6905
        %9967 = vmatprep.subr.bf16.mxu0 %v6910
        %9968 = vmatpush1.bf16.msra.mxu0 %v6909
        %9969 = vmatprep.subr.bf16.mxu0 %v6914
        %9970 = vmatpush1.bf16.msra.mxu0 %v6913
        %9971 = vmatprep.subr.bf16.mxu0 %v6918
        %9972 = vmatpush1.bf16.msra.mxu0 %v6917
        %9973 = vmatprep.subr.bf16.mxu0 %v6922
        %9974 = vmatpush1.bf16.msra.mxu0 %v6921
        %9975 = vmatprep.mubr.bf16.mxu0 %v1948
        %9976 = vmatmul.mubr.bf16.gmra.mrb[0].mxu0 %v1947
        %v9977 = vpop.f32.mrb[0].mxu0
        %v9978 = vadd.f32 %v9935, %v9977
        %v9979 = vpop.f32.mrb[0].mxu0
        %v9980 = vadd.f32 %v9937, %v9979
        %v9981 = vpop.f32.mrb[0].mxu0
        %v9982 = vadd.f32 %v9939, %v9981
        %v9983 = vpop.f32.mrb[0].mxu0
        %v9984 = vadd.f32 %v9941, %v9983
        %9985 = vdwg.mxu0
        %9986 = vmatprep.subr.bf16.mxu0 %v6926
        %9987 = vmatpush1.bf16.msra.mxu0 %v6925
        %9988 = vmatprep.subr.bf16.mxu0 %v6930
        %9989 = vmatpush1.bf16.msra.mxu0 %v6929
        %9990 = vmatprep.subr.bf16.mxu0 %v6934
        %9991 = vmatpush1.bf16.msra.mxu0 %v6933
        %9992 = vmatprep.subr.bf16.mxu0 %v6938
        %9993 = vmatpush1.bf16.msra.mxu0 %v6937
        %9994 = vmatprep.subr.bf16.mxu0 %v6942
        %9995 = vmatpush1.bf16.msra.mxu0 %v6941
        %9996 = vmatprep.subr.bf16.mxu0 %v6946
        %9997 = vmatpush1.bf16.msra.mxu0 %v6945
        %9998 = vmatprep.subr.bf16.mxu0 %v6950
        %9999 = vmatpush1.bf16.msra.mxu0 %v6949
        %10000 = vmatprep.subr.bf16.mxu0 %v6954
        %10001 = vmatpush1.bf16.msra.mxu0 %v6953
        %10002 = vmatprep.subr.bf16.mxu0 %v6958
        %10003 = vmatpush1.bf16.msra.mxu0 %v6957
        %10004 = vmatprep.subr.bf16.mxu0 %v6962
        %10005 = vmatpush1.bf16.msra.mxu0 %v6961
        %10006 = vmatprep.subr.bf16.mxu0 %v6966
        %10007 = vmatpush1.bf16.msra.mxu0 %v6965
        %10008 = vmatprep.subr.bf16.mxu0 %v6970
        %10009 = vmatpush1.bf16.msra.mxu0 %v6969
        %10010 = vmatprep.subr.bf16.mxu0 %v6974
        %10011 = vmatpush1.bf16.msra.mxu0 %v6973
        %10012 = vmatprep.subr.bf16.mxu0 %v6978
        %10013 = vmatpush1.bf16.msra.mxu0 %v6977
        %10014 = vmatprep.subr.bf16.mxu0 %v6982
        %10015 = vmatpush1.bf16.msra.mxu0 %v6981
        %10016 = vmatprep.subr.bf16.mxu0 %v6986
        %10017 = vmatpush1.bf16.msra.mxu0 %v6985
        %10018 = vmatprep.mubr.bf16.mxu0 %v1950
        %10019 = vmatmul.mubr.bf16.gmra.mrb[0].mxu0 %v1949
        %v10020 = vpop.f32.mrb[0].mxu0
        %v10021 = vadd.f32 %v9978, %v10020
        %v10022 = vpop.f32.mrb[0].mxu0
        %v10023 = vadd.f32 %v9980, %v10022
        %v10024 = vpop.f32.mrb[0].mxu0
        %v10025 = vadd.f32 %v9982, %v10024
        %v10026 = vpop.f32.mrb[0].mxu0
        %v10027 = vadd.f32 %v9984, %v10026
        %10028 = vdwg.mxu0
        %10029 = vmatprep.subr.bf16.mxu0 %v6990
        %10030 = vmatpush1.bf16.msra.mxu0 %v6989
        %10031 = vmatprep.subr.bf16.mxu0 %v6994
        %10032 = vmatpush1.bf16.msra.mxu0 %v6993
        %10033 = vmatprep.subr.bf16.mxu0 %v6998
        %10034 = vmatpush1.bf16.msra.mxu0 %v6997
        %10035 = vmatprep.subr.bf16.mxu0 %v7002
        %10036 = vmatpush1.bf16.msra.mxu0 %v7001
        %10037 = vmatprep.subr.bf16.mxu0 %v7006
        %10038 = vmatpush1.bf16.msra.mxu0 %v7005
        %10039 = vmatprep.subr.bf16.mxu0 %v7010
        %10040 = vmatpush1.bf16.msra.mxu0 %v7009
        %10041 = vmatprep.subr.bf16.mxu0 %v7014
        %10042 = vmatpush1.bf16.msra.mxu0 %v7013
        %10043 = vmatprep.subr.bf16.mxu0 %v7018
        %10044 = vmatpush1.bf16.msra.mxu0 %v7017
        %10045 = vmatprep.subr.bf16.mxu0 %v7022
        %10046 = vmatpush1.bf16.msra.mxu0 %v7021
        %10047 = vmatprep.subr.bf16.mxu0 %v7026
        %10048 = vmatpush1.bf16.msra.mxu0 %v7025
        %10049 = vmatprep.subr.bf16.mxu0 %v7030
        %10050 = vmatpush1.bf16.msra.mxu0 %v7029
        %10051 = vmatprep.subr.bf16.mxu0 %v7034
        %10052 = vmatpush1.bf16.msra.mxu0 %v7033
        %10053 = vmatprep.subr.bf16.mxu0 %v7038
        %10054 = vmatpush1.bf16.msra.mxu0 %v7037
        %10055 = vmatprep.subr.bf16.mxu0 %v7042
        %10056 = vmatpush1.bf16.msra.mxu0 %v7041
        %10057 = vmatprep.subr.bf16.mxu0 %v7046
        %10058 = vmatpush1.bf16.msra.mxu0 %v7045
        %10059 = vmatprep.subr.bf16.mxu0 %v7050
        %10060 = vmatpush1.bf16.msra.mxu0 %v7049
        %10061 = vmatprep.mubr.bf16.mxu0 %v1952
        %10062 = vmatmul.mubr.bf16.gmra.mrb[0].mxu0 %v1951
        %v10063 = vpop.f32.mrb[0].mxu0
        %v10064 = vadd.f32 %v10021, %v10063
        %v10065 = vpop.f32.mrb[0].mxu0
        %v10066 = vadd.f32 %v10023, %v10065
        %v10067 = vpop.f32.mrb[0].mxu0
        %v10068 = vadd.f32 %v10025, %v10067
        %v10069 = vpop.f32.mrb[0].mxu0
        %v10070 = vadd.f32 %v10027, %v10069
        %10071 = vdwg.mxu0
        %10072 = vmatprep.subr.bf16.mxu0 %v7054
        %10073 = vmatpush1.bf16.msra.mxu0 %v7053
        %10074 = vmatprep.subr.bf16.mxu0 %v7058
        %10075 = vmatpush1.bf16.msra.mxu0 %v7057
        %10076 = vmatprep.subr.bf16.mxu0 %v7062
        %10077 = vmatpush1.bf16.msra.mxu0 %v7061
        %10078 = vmatprep.subr.bf16.mxu0 %v7066
        %10079 = vmatpush1.bf16.msra.mxu0 %v7065
        %10080 = vmatprep.subr.bf16.mxu0 %v7070
        %10081 = vmatpush1.bf16.msra.mxu0 %v7069
        %10082 = vmatprep.subr.bf16.mxu0 %v7074
        %10083 = vmatpush1.bf16.msra.mxu0 %v7073
        %10084 = vmatprep.subr.bf16.mxu0 %v7078
        %10085 = vmatpush1.bf16.msra.mxu0 %v7077
        %10086 = vmatprep.subr.bf16.mxu0 %v7082
        %10087 = vmatpush1.bf16.msra.mxu0 %v7081
        %10088 = vmatprep.subr.bf16.mxu0 %v7086
        %10089 = vmatpush1.bf16.msra.mxu0 %v7085
        %10090 = vmatprep.subr.bf16.mxu0 %v7090
        %10091 = vmatpush1.bf16.msra.mxu0 %v7089
        %10092 = vmatprep.subr.bf16.mxu0 %v7094
        %10093 = vmatpush1.bf16.msra.mxu0 %v7093
        %10094 = vmatprep.subr.bf16.mxu0 %v7098
        %10095 = vmatpush1.bf16.msra.mxu0 %v7097
        %10096 = vmatprep.subr.bf16.mxu0 %v7102
        %10097 = vmatpush1.bf16.msra.mxu0 %v7101
        %10098 = vmatprep.subr.bf16.mxu0 %v7106
        %10099 = vmatpush1.bf16.msra.mxu0 %v7105
        %10100 = vmatprep.subr.bf16.mxu0 %v7110
        %10101 = vmatpush1.bf16.msra.mxu0 %v7109
        %10102 = vmatprep.subr.bf16.mxu0 %v7114
        %10103 = vmatpush1.bf16.msra.mxu0 %v7113
        %10104 = vmatprep.mubr.bf16.mxu0 %v1954
        %10105 = vmatmul.mubr.bf16.gmra.mrb[0].mxu0 %v1953
        %v10106 = vpop.f32.mrb[0].mxu0
        %v10107 = vadd.f32 %v10064, %v10106
        %v10108 = vpop.f32.mrb[0].mxu0
        %v10109 = vadd.f32 %v10066, %v10108
        %v10110 = vpop.f32.mrb[0].mxu0
        %v10111 = vadd.f32 %v10068, %v10110
        %v10112 = vpop.f32.mrb[0].mxu0
        %v10113 = vadd.f32 %v10070, %v10112
        %10114 = vdwg.mxu0
        %v10115 = vadd.f32 %v467, %v9247
        %v10116 = vadd.f32 %v468, %v9249
        %v10117 = vadd.f32 %v469, %v10107
        %v10118 = vadd.f32 %v470, %v10109
        %v10119 = vadd.f32 %v471, %v9251
        %v10120 = vadd.f32 %v472, %v9253
        %v10121 = vadd.f32 %v473, %v10111
        %v10122 = vadd.f32 %v474, %v10113
        %10123 = vst [vmem:[#allocation2] sm:$0xff] %v10115
        %10124 = vst [vmem:[#allocation2 + $0x8] sm:$0xff] %v10116
        %10125 = vst [vmem:[#allocation2 + $0x10] sm:$0xff] %v10117
        %10126 = vst [vmem:[#allocation2 + $0x18] sm:$0xff] %v10118
        %10127 = vst [vmem:[#allocation2 + $0x20] sm:$0xff] %v10119
        %10128 = vst [vmem:[#allocation2 + $0x28] sm:$0xff] %v10120
        %10129 = vst [vmem:[#allocation2 + $0x30] sm:$0xff] %v10121
        %10130 = vst [vmem:[#allocation2 + $0x38] sm:$0xff] %v10122
        %p10131 = scmp.eq.s32.totalorder %s28, 1
        // Predicated region
        $region76: #{mlp_forward.1} parent=54 // pred_check
          %p10132 = pneg %p10131
        $region77: #{mlp_forward.1} parent=54 // pred_check_branch
          %10134 = sbr.rel (%p10132) target = $region79
        $region78: #{mlp_forward.1} parent=54 // pred_region
          %v10135 = vld [vmem:[#allocation2] sm:$0xff]
          %v10136 = vld [vmem:[#allocation2 + $0x8] sm:$0xff]
          %v10137 = vld [vmem:[#allocation2 + $0x10] sm:$0xff]
          %v10138 = vld [vmem:[#allocation2 + $0x18] sm:$0xff]
          %v10139 = vld [vmem:[#allocation2 + $0x20] sm:$0xff]
          %v10140 = vld [vmem:[#allocation2 + $0x28] sm:$0xff]
          %v10141 = vld [vmem:[#allocation2 + $0x30] sm:$0xff]
          %v10142 = vld [vmem:[#allocation2 + $0x38] sm:$0xff]
          %v10143 = vld [vmem:[%s387] sm:$0xf]
          %v10145 = vlaneseq
          %v10146 = vshrl.u32 %v10145, 7
          %v10147 = vsub.s32 0, %v10146
          %v10148 = vrot.slane %v10143, %v10147
          %v10149 = vlaneseq
          %v10150 = vshrl.u32 %v10149, 7
          %v10151 = vsub.s32 1, %v10150
          %v10152 = vrot.slane %v10143, %v10151
          %v10153 = vlaneseq
          %v10154 = vshrl.u32 %v10153, 7
          %v10155 = vsub.s32 2, %v10154
          %v10156 = vrot.slane %v10143, %v10155
          %v10157 = vlaneseq
          %v10158 = vshrl.u32 %v10157, 7
          %v10159 = vsub.s32 3, %v10158
          %v10160 = vrot.slane %v10143, %v10159
          %v10165 = vadd.f32 %v10135, %v10148
          %v10166 = vadd.f32 %v10136, %v10152
          %v10167 = vadd.f32 %v10137, %v10156
          %v10168 = vadd.f32 %v10138, %v10160
          %v10169 = vadd.f32 %v10139, %v10148
          %v10170 = vadd.f32 %v10140, %v10152
          %v10171 = vadd.f32 %v10141, %v10156
          %v10172 = vadd.f32 %v10142, %v10160
          %v10173 = vmax.f32 %v10165, 0.0
          %v10174 = vmax.f32 %v10166, 0.0
          %v10175 = vmax.f32 %v10167, 0.0
          %v10176 = vmax.f32 %v10168, 0.0
          %v10177 = vmax.f32 %v10169, 0.0
          %v10178 = vmax.f32 %v10170, 0.0
          %v10179 = vmax.f32 %v10171, 0.0
          %v10180 = vmax.f32 %v10172, 0.0
          %v10181 = vld [vmem:[%s396] sm:$0xf]
          %v10183 = vlaneseq
          %v10184 = vshrl.u32 %v10183, 7
          %v10185 = vsub.s32 0, %v10184
          %v10186 = vrot.slane %v10181, %v10185
          %v10187 = vlaneseq
          %v10188 = vshrl.u32 %v10187, 7
          %v10189 = vsub.s32 1, %v10188
          %v10190 = vrot.slane %v10181, %v10189
          %v10191 = vlaneseq
          %v10192 = vshrl.u32 %v10191, 7
          %v10193 = vsub.s32 2, %v10192
          %v10194 = vrot.slane %v10181, %v10193
          %v10195 = vlaneseq
          %v10196 = vshrl.u32 %v10195, 7
          %v10197 = vsub.s32 3, %v10196
          %v10198 = vrot.slane %v10181, %v10197
          %v10203 = vmul.f32 %v10173, %v10186
          %v10204 = vmul.f32 %v10174, %v10190
          %v10205 = vmul.f32 %v10175, %v10194
          %v10206 = vmul.f32 %v10176, %v10198
          %v10207 = vmul.f32 %v10177, %v10186
          %v10208 = vmul.f32 %v10178, %v10190
          %v10209 = vmul.f32 %v10179, %v10194
          %v10210 = vmul.f32 %v10180, %v10198
          %v10211 = vadd.f32 %v10203, %v10204
          %v10212 = vadd.f32 %v10211, %v10205
          %v10213 = vadd.f32 %v10212, %v10206
          %10214 = vadd.xlane.f32.xlu0 %v10213
          %v10215 = vpop.xlane.xlu0 %10214
          %v10216 = vadd.f32 %v10207, %v10208
          %v10217 = vadd.f32 %v10216, %v10209
          %v10218 = vadd.f32 %v10217, %v10210
          %10219 = vadd.xlane.f32.xlu0 %v10218
          %v10220 = vpop.xlane.xlu0 %10219
          %vm10221 = vcmask 7168
          %10222 = vst.msk [vmem:[%s453] sm:$0xff] %vm10221, %v10215
          %10223 = vst.msk [vmem:[%s453 + $0x8] sm:$0xff] %vm10221, %v10220
        $region79: #{mlp_forward.1} parent=54 // pred_fallthru
          _
        %s10224 = smul.u32 2, %s27
        %p10225 = scmp.lt.s32.totalorder %s26, 1
        %s10226 = scalar_select %p10225, %s26, 1
        %p10227 = scmp.lt.s32.totalorder %s10224, 1
        %s10228 = scalar_select %p10227, %s10224, 1
        %s10229 = smul.addr %s10226, 2
        %s10230 = sadd.s32 %s10228, %s10229
        %s10231 = smul.addr %s10230, 8
        %s10232 = scalar_lea.vmem %s4, %s10231
        // Predicated region
        $region80: #{mlp_forward.1} parent=54 // pred_check
          %p10233 = pneg %p168
        $region81: #{mlp_forward.1} parent=54 // pred_check_branch
          %10235 = sbr.rel (%p10233) target = $region83
        $region82: #{mlp_forward.1} parent=54 // pred_region
          %s10236 = smul.u32 2, %s27
        $region83: #{mlp_forward.1} parent=54 // pred_fallthru
          _
      $region55: #{mlp_forward.1} parent=5 // pred_fallthru
        _
      %p10237 = scmp.le.s32.totalorder 2, %s16
      // Predicated region
      $region84: #{mlp_forward.1} parent=5 // pred_check
        %p10238 = pneg %p10237
      $region85: #{mlp_forward.1} parent=5 // pred_check_branch
        %10240 = sbr.rel (%p10238) target = $region87
      $region86: #{mlp_forward.1} parent=5 // pred_region
        %s10241 = ssub.s32 %s16, 2
        // Predicated region
        $region88: #{mlp_forward.1} parent=86 // pred_check
          %p10242 = pneg %p174
        $region89: #{mlp_forward.1} parent=86 // pred_check_branch
          %10244 = sbr.rel (%p10242) target = $region91
        $region90: #{mlp_forward.1} parent=86 // pred_region
          %s10245 = smul.u32 2, %s30
          %p10246 = scmp.lt.s32.totalorder %s29, 1
          %s10247 = scalar_select %p10246, %s29, 1
          %p10248 = scmp.lt.s32.totalorder %s10245, 1
          %s10249 = scalar_select %p10248, %s10245, 1
          %s10250 = smul.addr %s10247, 2
          %s10251 = sadd.s32 %s10249, %s10250
          %s10252 = smul.addr %s10251, 8
          %s10253 = scalar_lea.vmem %s4, %s10252
        $region91: #{mlp_forward.1} parent=86 // pred_fallthru
          _
      $region87: #{mlp_forward.1} parent=5 // pred_fallthru
        _
    $region6: #{mlp_forward.1} parent=1 // loop_footer
      %s20 = sadd.s32 1, %s16
    $region7: #{mlp_forward.1} parent=1 // loop_footer_branch
      %15 = sbr.rel target = $region3
    $region8: #{mlp_forward.1} parent=1 // loop_exit
      _
    %10254 = vsyncpa [#allocation5], 1
    %s10255 = scalar_lea.sflag [#allocation5], 1
    %10256 = vsyncpa %s10255, 1
    %10257 = vsyncpa [#allocation7], 1
    %s10258 = scalar_lea.sflag [#allocation7], 1
    %10259 = vsyncpa %s10258, 1

</llo_original>
